<compile_context>
chip_gen: v6e
topology: v6e:2x2x1
jax: 0.10.0
libtpu: 0.0.40
codegen_flags: <defaults>
</compile_context>

<pallas_src>
import functools

import jax
import jax.numpy as jnp
from jax.experimental import pallas as pl
from jax.experimental.pallas import tpu as pltpu


def _round_up(x, m):
    return ((x + m - 1) // m) * m


def _next_pow2(x):
    x = int(x)
    return 1 if x <= 1 else 1 << (x - 1).bit_length()


# ---------------------------------------------------------------------------
# Pallas kernel: one (M-tile, Cout-tile) step of the fused shifted-window conv
# ---------------------------------------------------------------------------
def _fused_conv_kernel(xm_ref, xh_ref, w_ref, b_ref, o_ref, slab_ref, acc_ref,
                       *, tm, halo, shifts):
    # xm_ref:   (tm, cin_p)      bf16  rows [i*tm, (i+1)*tm) of the flat padded input
    # xh_ref:   (halo, cin_p)    bf16  halo rows [(i+1)*tm, (i+1)*tm + halo)
    # w_ref:    (T, cin_p, tn)   bf16  per-tap weights (VMEM resident across M tiles)
    # b_ref:    (1, tn)          f32   bias
    # o_ref:    (tm, tn)         f32   output tile
    # slab_ref: (tm+halo, cin_p) bf16  scratch: contiguous shifted-window source
    # acc_ref:  (tm, tn)         f32   scratch accumulator

    # Assemble the contiguous source rows [i*tm, i*tm + tm + halo) once per step.
    slab_ref[pl.ds(0, tm), :] = xm_ref[...]
    slab_ref[pl.ds(tm, halo), :] = xh_ref[...]

    # One (tm, cin_p) x (cin_p, tn) MXU matmul per kernel tap; the tap shift is a
    # static row offset into the VMEM slab (in-VMEM im2col, no HBM re-reads).
    acc_ref[...] = jnp.dot(slab_ref[pl.ds(shifts[0], tm), :], w_ref[0],
                           preferred_element_type=jnp.float32)
    for t in range(1, len(shifts)):
        acc_ref[...] += jnp.dot(slab_ref[pl.ds(shifts[t], tm), :], w_ref[t],
                                preferred_element_type=jnp.float32)

    # Epilogue: bias + ReLU in f32.
    # TODO(synk): the module's `activation` is generic; ReLU is hardcoded here.
    o_ref[...] = jnp.maximum(acc_ref[...] + b_ref[...], 0.0).astype(o_ref.dtype)


# ---------------------------------------------------------------------------
# Pure-JAX wrapper
# ---------------------------------------------------------------------------
def conv2d_thingy(x_nchw, weight_oihw, bias, kernel_size, *, tm=1024):
    """Conv2d(stride=1, padding=kernel_size//2) + ReLU; NCHW in -> NCHW f32 out."""
    if kernel_size % 2 != 1:
        raise ValueError("Conv2DThingy Pallas kernel requires odd kernel_size "
                         "(padding=k//2 preserves spatial size only for odd k).")

    n, cin, h, w = x_nchw.shape
    cout = weight_oihw.shape[0]
    kh = kw = kernel_size
    p = kernel_size // 2
    hp, wp = h + 2 * p, w + 2 * p
    taps = kh * kw

    # --- shifted-window geometry on the flat padded grid ----------------------
    # Flat row r = (n*Hp + y)*Wp + x over the PADDED spatial grid.
    #   out[r] = sum_t X[r + shift_t] @ W[t],  shift_t = i*Wp + j.
    # Rows with y >= H or x >= W are garbage and sliced away afterwards.
    shifts = tuple(i * wp + j for i in range(kh) for j in range(kw))
    halo = max(16, _next_pow2(max(shifts[-1], 1)))     # rows needed past each tile

    cin_p = _round_up(cin, 8)
    cout_p = 128 if cout <= 128 else _round_up(cout, 256)   # lane-dense, MXU aligned
    tn = cout_p if cout_p <= 256 else 256

    m_rows = n * hp * wp
    tm_eff = _round_up(min(tm, m_rows), halo)          # M tile rows; multiple of halo
    m_pad = _round_up(m_rows, tm_eff)
    m_tiles = m_pad // tm_eff
    n_tiles = cout_p // tn
    halo_stride = tm_eff // halo                       # halo block-index multiplier

    # --- operands: single bf16 materialization each, via jnp.pad ---------------
    x_nhwc = jnp.transpose(x_nchw, (0, 2, 3, 1)).astype(jnp.bfloat16)
    x_flat = jnp.pad(x_nhwc, ((0, 0), (p, p), (p, p), (0, cin_p - cin)))
    x_flat = x_flat.reshape(m_rows, cin_p)
    x_flat = jnp.pad(x_flat, ((0, m_pad + halo - m_rows), (0, 0)))

    w_taps = jnp.transpose(weight_oihw, (2, 3, 1, 0)).reshape(taps, cin, cout)
    w_taps = jnp.pad(w_taps.astype(jnp.bfloat16),
                     ((0, 0), (0, cin_p - cin), (0, cout_p - cout)))
    b_row = jnp.pad(bias.astype(jnp.float32).reshape(1, cout),
                    ((0, 0), (0, cout_p - cout)))

    # --- VMEM budget (kept far under the v7x 64 MiB physical VMEM) -------------
    cin_l = max(cin_p, 128)                            # lane padding in VMEM
    vmem_bytes = (2 * tm_eff * cin_l * 2               # main block (double buffered)
                  + 2 * halo * cin_l * 2               # halo block
                  + 2 * taps * cin_l * tn * 2          # weights
                  + 2 * 8 * tn * 4                     # bias
                  + 2 * tm_eff * tn * 4                # output
                  + (tm_eff + halo) * cin_l * 2        # slab scratch
                  + tm_eff * tn * 4)                   # accumulator scratch
    vmem_limit = int(min(56 * 1024 * 1024, max(32 * 1024 * 1024, 2 * vmem_bytes)))

    cost = pl.CostEstimate(
        flops=2 * m_pad * cin_p * cout_p * taps,
        transcendentals=0,
        bytes_accessed=int(
            x_flat.size * 2                                  # activation stream (~1x)
            + m_tiles * halo * cin_p * 2                     # halo re-reads
            + (m_tiles if n_tiles > 1 else 1) * w_taps.size * 2
            + m_pad * cout_p * 4 + b_row.size * 4),
    )

    kernel = functools.partial(_fused_conv_kernel,
                               tm=tm_eff, halo=halo, shifts=shifts)

    out_flat = pl.pallas_call(
        kernel,
        out_shape=jax.ShapeDtypeStruct((m_pad, cout_p), jnp.float32),
        grid_spec=pltpu.PrefetchScalarGridSpec(
            num_scalar_prefetch=0,
            grid=(m_tiles, n_tiles),
            in_specs=[
                # main rows of this M tile
                pl.BlockSpec((tm_eff, cin_p), lambda i, j: (i, 0)),
                # halo rows just past this M tile (tm_eff % halo == 0 by construction)
                pl.BlockSpec((halo, cin_p), lambda i, j: ((i + 1) * halo_stride, 0)),
                # all taps' weights for this Cout tile (resident across M tiles)
                pl.BlockSpec((taps, cin_p, tn), lambda i, j: (0, 0, j)),
                pl.BlockSpec((1, tn), lambda i, j: (0, j)),
            ],
            out_specs=pl.BlockSpec((tm_eff, tn), lambda i, j: (i, j)),
            scratch_shapes=[
                pltpu.VMEM((tm_eff + halo, cin_p), jnp.bfloat16),   # slab
                pltpu.VMEM((tm_eff, tn), jnp.float32),              # accumulator
            ],
        ),
        compiler_params=pltpu.CompilerParams(
            dimension_semantics=("parallel", "parallel"),
            vmem_limit_bytes=vmem_limit,
        ),
        cost_estimate=cost,
    )(x_flat, x_flat, w_taps, b_row)

    # Valid rows / channels; padded grid (Hp, Wp) -> (H, W); back to NCHW f32.
    # (Keeping NHWC / bf16 output would save a relayout + half the writeback if the
    #  consumer allowed it; NCHW f32 is kept to match the PyTorch module.)
    out = out_flat[:m_rows, :cout].reshape(n, hp, wp, cout)[:, :h, :w, :]
    return jnp.transpose(out, (0, 3, 1, 2))


if __name__ == "__main__":
    # Small shapes consistent with the module.
    N, Cin, H, W = 2, 4, 16, 16
    Cout, K = 8, 3

    key = jax.random.PRNGKey(0)
    kx, kw_key, kb_key = jax.random.split(key, 3)

    fan_in = Cin * K * K
    bound = float(1.0 / (fan_in ** 0.5))
    weight = jax.random.uniform(kw_key, (Cout, Cin, K, K), jnp.float32, -bound, bound)
    bias = jax.random.uniform(kb_key, (Cout,), jnp.float32, -bound, bound)
    x = jax.random.normal(kx, (N, Cin, H, W), jnp.float32)

    fwd = jax.jit(conv2d_thingy, static_argnums=(3,))
    out = jax.block_until_ready(fwd(x, weight, bias, K))

    # Reference: same bf16-operand / f32-accumulate math in plain JAX.
    x_bf = x.astype(jnp.bfloat16).astype(jnp.float32)
    w_bf = weight.astype(jnp.bfloat16).astype(jnp.float32)
    ref = jax.lax.conv_general_dilated(
        x_bf, w_bf, window_strides=(1, 1),
        padding=[(K // 2, K // 2), (K // 2, K // 2)],
        dimension_numbers=("NCHW", "OIHW", "NCHW"),
        precision=jax.lax.Precision.HIGHEST)
    ref = jnp.maximum(ref + bias[None, :, None, None], 0.0)

    assert out.shape == (N, Cout, H, W)
    assert jnp.allclose(out, ref, rtol=1e-3, atol=1e-3), "mismatch vs reference"
    print("KERNEL_OK")
</pallas_src>

<mosaic_0001>
module attributes {stable_mosaic.version = 11 : i64} {
  func.func @_fused_conv_kernel(%arg0: i32, %arg1: i32, %arg2: memref<704x8xbf16, #tpu.memory_space<vmem>>, %arg3: memref<64x8xbf16, #tpu.memory_space<vmem>>, %arg4: memref<9x8x128xbf16, #tpu.memory_space<vmem>>, %arg5: memref<1x128xf32, #tpu.memory_space<vmem>>, %arg6: memref<704x128xf32, #tpu.memory_space<vmem>>, %arg7: memref<768x8xbf16, #tpu.memory_space<vmem>>, %arg8: memref<704x128xf32, #tpu.memory_space<vmem>>) attributes {dimension_semantics = [#tpu.dimension_semantics<parallel>, #tpu.dimension_semantics<parallel>], iteration_bounds = array<i64: 1, 1>, scalar_prefetch = 0 : i64, scratch_operands = 2 : i64, tpu.core_type = #tpu.core_type<tc>, window_params = [{transform_indices = @transform_0, window_bounds = array<i64: 704, 8>}, {transform_indices = @transform_1, window_bounds = array<i64: 64, 8>}, {transform_indices = @transform_2, window_bounds = array<i64: 9, 8, 128>}, {transform_indices = @transform_3, window_bounds = array<i64: 1, 128>}, {transform_indices = @transform_4, window_bounds = array<i64: 704, 128>}]} {
    %c0 = arith.constant 0 : index
    %c0_0 = arith.constant 0 : index
    %0 = vector.load %arg2[%c0, %c0_0] : memref<704x8xbf16, #tpu.memory_space<vmem>>, vector<704x8xbf16>
    %c0_1 = arith.constant 0 : index
    %c0_2 = arith.constant 0 : index
    %1 = vector.load %arg7[%c0_1, %c0_2] : memref<768x8xbf16, #tpu.memory_space<vmem>>, vector<704x8xbf16>
    tpu.vector_store %arg7[%c0_1, %c0_2], %0 {strides = array<i32>} : memref<768x8xbf16, #tpu.memory_space<vmem>>, vector<704x8xbf16>,
    %c0_3 = arith.constant 0 : index
    %c0_4 = arith.constant 0 : index
    %2 = vector.load %arg3[%c0_3, %c0_4] : memref<64x8xbf16, #tpu.memory_space<vmem>>, vector<64x8xbf16>
    %c704 = arith.constant 704 : index
    %c0_5 = arith.constant 0 : index
    %3 = vector.load %arg7[%c704, %c0_5] : memref<768x8xbf16, #tpu.memory_space<vmem>>, vector<64x8xbf16>
    tpu.vector_store %arg7[%c704, %c0_5], %2 {strides = array<i32>} : memref<768x8xbf16, #tpu.memory_space<vmem>>, vector<64x8xbf16>,
    %c0_6 = arith.constant 0 : index
    %c0_7 = arith.constant 0 : index
    %4 = vector.load %arg7[%c0_6, %c0_7] : memref<768x8xbf16, #tpu.memory_space<vmem>>, vector<704x8xbf16>
    %c0_8 = arith.constant 0 : index
    %c0_9 = arith.constant 0 : index
    %c0_10 = arith.constant 0 : index
    %5 = vector.load %arg4[%c0_8, %c0_9, %c0_10] : memref<9x8x128xbf16, #tpu.memory_space<vmem>>, vector<1x8x128xbf16>
    %6 = vector.shape_cast %5 : vector<1x8x128xbf16> to vector<8x128xbf16>
    %cst = arith.constant dense<0.000000e+00> : vector<704x128xf32>
    %7 = tpu.matmul %4, %6, %cst {dimension_numbers = #tpu.dot_dimension_numbers<[1], [0], [0], [1], [0, 0, 1, 1], [], []>} : vector<704x8xbf16>, vector<8x128xbf16>, vector<704x128xf32> -> vector<704x128xf32>
    %c0_11 = arith.constant 0 : index
    %c0_12 = arith.constant 0 : index
    %8 = vector.load %arg8[%c0_11, %c0_12] : memref<704x128xf32, #tpu.memory_space<vmem>>, vector<704x128xf32>
    tpu.vector_store %arg8[%c0_11, %c0_12], %7 {strides = array<i32>} : memref<704x128xf32, #tpu.memory_space<vmem>>, vector<704x128xf32>,
    %c0_13 = arith.constant 0 : index
    %c0_14 = arith.constant 0 : index
    %9 = vector.load %arg8[%c0_13, %c0_14] : memref<704x128xf32, #tpu.memory_space<vmem>>, vector<704x128xf32>
    %c1 = arith.constant 1 : index
    %c0_15 = arith.constant 0 : index
    %10 = vector.load %arg7[%c1, %c0_15] : memref<768x8xbf16, #tpu.memory_space<vmem>>, vector<704x8xbf16>
    %c1_16 = arith.constant 1 : index
    %c0_17 = arith.constant 0 : index
    %c0_18 = arith.constant 0 : index
    %11 = vector.load %arg4[%c1_16, %c0_17, %c0_18] : memref<9x8x128xbf16, #tpu.memory_space<vmem>>, vector<1x8x128xbf16>
    %12 = vector.shape_cast %11 : vector<1x8x128xbf16> to vector<8x128xbf16>
    %cst_19 = arith.constant dense<0.000000e+00> : vector<704x128xf32>
    %13 = tpu.matmul %10, %12, %cst_19 {dimension_numbers = #tpu.dot_dimension_numbers<[1], [0], [0], [1], [0, 0, 1, 1], [], []>} : vector<704x8xbf16>, vector<8x128xbf16>, vector<704x128xf32> -> vector<704x128xf32>
    %14 = arith.addf %9, %13 : vector<704x128xf32>
    %c0_20 = arith.constant 0 : index
    %c0_21 = arith.constant 0 : index
    %15 = vector.load %arg8[%c0_20, %c0_21] : memref<704x128xf32, #tpu.memory_space<vmem>>, vector<704x128xf32>
    tpu.vector_store %arg8[%c0_20, %c0_21], %14 {strides = array<i32>} : memref<704x128xf32, #tpu.memory_space<vmem>>, vector<704x128xf32>,
    %c0_22 = arith.constant 0 : index
    %c0_23 = arith.constant 0 : index
    %16 = vector.load %arg8[%c0_22, %c0_23] : memref<704x128xf32, #tpu.memory_space<vmem>>, vector<704x128xf32>
    %c2 = arith.constant 2 : index
    %c0_24 = arith.constant 0 : index
    %17 = vector.load %arg7[%c2, %c0_24] : memref<768x8xbf16, #tpu.memory_space<vmem>>, vector<704x8xbf16>
    %c2_25 = arith.constant 2 : index
    %c0_26 = arith.constant 0 : index
    %c0_27 = arith.constant 0 : index
    %18 = vector.load %arg4[%c2_25, %c0_26, %c0_27] : memref<9x8x128xbf16, #tpu.memory_space<vmem>>, vector<1x8x128xbf16>
    %19 = vector.shape_cast %18 : vector<1x8x128xbf16> to vector<8x128xbf16>
    %cst_28 = arith.constant dense<0.000000e+00> : vector<704x128xf32>
    %20 = tpu.matmul %17, %19, %cst_28 {dimension_numbers = #tpu.dot_dimension_numbers<[1], [0], [0], [1], [0, 0, 1, 1], [], []>} : vector<704x8xbf16>, vector<8x128xbf16>, vector<704x128xf32> -> vector<704x128xf32>
    %21 = arith.addf %16, %20 : vector<704x128xf32>
    %c0_29 = arith.constant 0 : index
    %c0_30 = arith.constant 0 : index
    %22 = vector.load %arg8[%c0_29, %c0_30] : memref<704x128xf32, #tpu.memory_space<vmem>>, vector<704x128xf32>
    tpu.vector_store %arg8[%c0_29, %c0_30], %21 {strides = array<i32>} : memref<704x128xf32, #tpu.memory_space<vmem>>, vector<704x128xf32>,
    %c0_31 = arith.constant 0 : index
    %c0_32 = arith.constant 0 : index
    %23 = vector.load %arg8[%c0_31, %c0_32] : memref<704x128xf32, #tpu.memory_space<vmem>>, vector<704x128xf32>
    %c18 = arith.constant 18 : index
    %c0_33 = arith.constant 0 : index
    %24 = vector.load %arg7[%c18, %c0_33] : memref<768x8xbf16, #tpu.memory_space<vmem>>, vector<704x8xbf16>
    %c3 = arith.constant 3 : index
    %c0_34 = arith.constant 0 : index
    %c0_35 = arith.constant 0 : index
    %25 = vector.load %arg4[%c3, %c0_34, %c0_35] : memref<9x8x128xbf16, #tpu.memory_space<vmem>>, vector<1x8x128xbf16>
    %26 = vector.shape_cast %25 : vector<1x8x128xbf16> to vector<8x128xbf16>
    %cst_36 = arith.constant dense<0.000000e+00> : vector<704x128xf32>
    %27 = tpu.matmul %24, %26, %cst_36 {dimension_numbers = #tpu.dot_dimension_numbers<[1], [0], [0], [1], [0, 0, 1, 1], [], []>} : vector<704x8xbf16>, vector<8x128xbf16>, vector<704x128xf32> -> vector<704x128xf32>
    %28 = arith.addf %23, %27 : vector<704x128xf32>
    %c0_37 = arith.constant 0 : index
    %c0_38 = arith.constant 0 : index
    %29 = vector.load %arg8[%c0_37, %c0_38] : memref<704x128xf32, #tpu.memory_space<vmem>>, vector<704x128xf32>
    tpu.vector_store %arg8[%c0_37, %c0_38], %28 {strides = array<i32>} : memref<704x128xf32, #tpu.memory_space<vmem>>, vector<704x128xf32>,
    %c0_39 = arith.constant 0 : index
    %c0_40 = arith.constant 0 : index
    %30 = vector.load %arg8[%c0_39, %c0_40] : memref<704x128xf32, #tpu.memory_space<vmem>>, vector<704x128xf32>
    %c19 = arith.constant 19 : index
    %c0_41 = arith.constant 0 : index
    %31 = vector.load %arg7[%c19, %c0_41] : memref<768x8xbf16, #tpu.memory_space<vmem>>, vector<704x8xbf16>
    %c4 = arith.constant 4 : index
    %c0_42 = arith.constant 0 : index
    %c0_43 = arith.constant 0 : index
    %32 = vector.load %arg4[%c4, %c0_42, %c0_43] : memref<9x8x128xbf16, #tpu.memory_space<vmem>>, vector<1x8x128xbf16>
    %33 = vector.shape_cast %32 : vector<1x8x128xbf16> to vector<8x128xbf16>
    %cst_44 = arith.constant dense<0.000000e+00> : vector<704x128xf32>
    %34 = tpu.matmul %31, %33, %cst_44 {dimension_numbers = #tpu.dot_dimension_numbers<[1], [0], [0], [1], [0, 0, 1, 1], [], []>} : vector<704x8xbf16>, vector<8x128xbf16>, vector<704x128xf32> -> vector<704x128xf32>
    %35 = arith.addf %30, %34 : vector<704x128xf32>
    %c0_45 = arith.constant 0 : index
    %c0_46 = arith.constant 0 : index
    %36 = vector.load %arg8[%c0_45, %c0_46] : memref<704x128xf32, #tpu.memory_space<vmem>>, vector<704x128xf32>
    tpu.vector_store %arg8[%c0_45, %c0_46], %35 {strides = array<i32>} : memref<704x128xf32, #tpu.memory_space<vmem>>, vector<704x128xf32>,
    %c0_47 = arith.constant 0 : index
    %c0_48 = arith.constant 0 : index
    %37 = vector.load %arg8[%c0_47, %c0_48] : memref<704x128xf32, #tpu.memory_space<vmem>>, vector<704x128xf32>
    %c20 = arith.constant 20 : index
    %c0_49 = arith.constant 0 : index
    %38 = vector.load %arg7[%c20, %c0_49] : memref<768x8xbf16, #tpu.memory_space<vmem>>, vector<704x8xbf16>
    %c5 = arith.constant 5 : index
    %c0_50 = arith.constant 0 : index
    %c0_51 = arith.constant 0 : index
    %39 = vector.load %arg4[%c5, %c0_50, %c0_51] : memref<9x8x128xbf16, #tpu.memory_space<vmem>>, vector<1x8x128xbf16>
    %40 = vector.shape_cast %39 : vector<1x8x128xbf16> to vector<8x128xbf16>
    %cst_52 = arith.constant dense<0.000000e+00> : vector<704x128xf32>
    %41 = tpu.matmul %38, %40, %cst_52 {dimension_numbers = #tpu.dot_dimension_numbers<[1], [0], [0], [1], [0, 0, 1, 1], [], []>} : vector<704x8xbf16>, vector<8x128xbf16>, vector<704x128xf32> -> vector<704x128xf32>
    %42 = arith.addf %37, %41 : vector<704x128xf32>
    %c0_53 = arith.constant 0 : index
    %c0_54 = arith.constant 0 : index
    %43 = vector.load %arg8[%c0_53, %c0_54] : memref<704x128xf32, #tpu.memory_space<vmem>>, vector<704x128xf32>
    tpu.vector_store %arg8[%c0_53, %c0_54], %42 {strides = array<i32>} : memref<704x128xf32, #tpu.memory_space<vmem>>, vector<704x128xf32>,
    %c0_55 = arith.constant 0 : index
    %c0_56 = arith.constant 0 : index
    %44 = vector.load %arg8[%c0_55, %c0_56] : memref<704x128xf32, #tpu.memory_space<vmem>>, vector<704x128xf32>
    %c36 = arith.constant 36 : index
    %c0_57 = arith.constant 0 : index
    %45 = vector.load %arg7[%c36, %c0_57] : memref<768x8xbf16, #tpu.memory_space<vmem>>, vector<704x8xbf16>
    %c6 = arith.constant 6 : index
    %c0_58 = arith.constant 0 : index
    %c0_59 = arith.constant 0 : index
    %46 = vector.load %arg4[%c6, %c0_58, %c0_59] : memref<9x8x128xbf16, #tpu.memory_space<vmem>>, vector<1x8x128xbf16>
    %47 = vector.shape_cast %46 : vector<1x8x128xbf16> to vector<8x128xbf16>
    %cst_60 = arith.constant dense<0.000000e+00> : vector<704x128xf32>
    %48 = tpu.matmul %45, %47, %cst_60 {dimension_numbers = #tpu.dot_dimension_numbers<[1], [0], [0], [1], [0, 0, 1, 1], [], []>} : vector<704x8xbf16>, vector<8x128xbf16>, vector<704x128xf32> -> vector<704x128xf32>
    %49 = arith.addf %44, %48 : vector<704x128xf32>
    %c0_61 = arith.constant 0 : index
    %c0_62 = arith.constant 0 : index
    %50 = vector.load %arg8[%c0_61, %c0_62] : memref<704x128xf32, #tpu.memory_space<vmem>>, vector<704x128xf32>
    tpu.vector_store %arg8[%c0_61, %c0_62], %49 {strides = array<i32>} : memref<704x128xf32, #tpu.memory_space<vmem>>, vector<704x128xf32>,
    %c0_63 = arith.constant 0 : index
    %c0_64 = arith.constant 0 : index
    %51 = vector.load %arg8[%c0_63, %c0_64] : memref<704x128xf32, #tpu.memory_space<vmem>>, vector<704x128xf32>
    %c37 = arith.constant 37 : index
    %c0_65 = arith.constant 0 : index
    %52 = vector.load %arg7[%c37, %c0_65] : memref<768x8xbf16, #tpu.memory_space<vmem>>, vector<704x8xbf16>
    %c7 = arith.constant 7 : index
    %c0_66 = arith.constant 0 : index
    %c0_67 = arith.constant 0 : index
    %53 = vector.load %arg4[%c7, %c0_66, %c0_67] : memref<9x8x128xbf16, #tpu.memory_space<vmem>>, vector<1x8x128xbf16>
    %54 = vector.shape_cast %53 : vector<1x8x128xbf16> to vector<8x128xbf16>
    %cst_68 = arith.constant dense<0.000000e+00> : vector<704x128xf32>
    %55 = tpu.matmul %52, %54, %cst_68 {dimension_numbers = #tpu.dot_dimension_numbers<[1], [0], [0], [1], [0, 0, 1, 1], [], []>} : vector<704x8xbf16>, vector<8x128xbf16>, vector<704x128xf32> -> vector<704x128xf32>
    %56 = arith.addf %51, %55 : vector<704x128xf32>
    %c0_69 = arith.constant 0 : index
    %c0_70 = arith.constant 0 : index
    %57 = vector.load %arg8[%c0_69, %c0_70] : memref<704x128xf32, #tpu.memory_space<vmem>>, vector<704x128xf32>
    tpu.vector_store %arg8[%c0_69, %c0_70], %56 {strides = array<i32>} : memref<704x128xf32, #tpu.memory_space<vmem>>, vector<704x128xf32>,
    %c0_71 = arith.constant 0 : index
    %c0_72 = arith.constant 0 : index
    %58 = vector.load %arg8[%c0_71, %c0_72] : memref<704x128xf32, #tpu.memory_space<vmem>>, vector<704x128xf32>
    %c38 = arith.constant 38 : index
    %c0_73 = arith.constant 0 : index
    %59 = vector.load %arg7[%c38, %c0_73] : memref<768x8xbf16, #tpu.memory_space<vmem>>, vector<704x8xbf16>
    %c8 = arith.constant 8 : index
    %c0_74 = arith.constant 0 : index
    %c0_75 = arith.constant 0 : index
    %60 = vector.load %arg4[%c8, %c0_74, %c0_75] : memref<9x8x128xbf16, #tpu.memory_space<vmem>>, vector<1x8x128xbf16>
    %61 = vector.shape_cast %60 : vector<1x8x128xbf16> to vector<8x128xbf16>
    %cst_76 = arith.constant dense<0.000000e+00> : vector<704x128xf32>
    %62 = tpu.matmul %59, %61, %cst_76 {dimension_numbers = #tpu.dot_dimension_numbers<[1], [0], [0], [1], [0, 0, 1, 1], [], []>} : vector<704x8xbf16>, vector<8x128xbf16>, vector<704x128xf32> -> vector<704x128xf32>
    %63 = arith.addf %58, %62 : vector<704x128xf32>
    %c0_77 = arith.constant 0 : index
    %c0_78 = arith.constant 0 : index
    %64 = vector.load %arg8[%c0_77, %c0_78] : memref<704x128xf32, #tpu.memory_space<vmem>>, vector<704x128xf32>
    tpu.vector_store %arg8[%c0_77, %c0_78], %63 {strides = array<i32>} : memref<704x128xf32, #tpu.memory_space<vmem>>, vector<704x128xf32>,
    %c0_79 = arith.constant 0 : index
    %c0_80 = arith.constant 0 : index
    %65 = vector.load %arg8[%c0_79, %c0_80] : memref<704x128xf32, #tpu.memory_space<vmem>>, vector<704x128xf32>
    %c0_81 = arith.constant 0 : index
    %c0_82 = arith.constant 0 : index
    %66 = vector.load %arg5[%c0_81, %c0_82] : memref<1x128xf32, #tpu.memory_space<vmem>>, vector<1x128xf32>
    %67 = vector.broadcast %66 : vector<1x128xf32> to vector<704x128xf32>
    %68 = arith.addf %65, %67 : vector<704x128xf32>
    %cst_83 = arith.constant 0.000000e+00 : f32
    %69 = vector.broadcast %cst_83 : f32 to vector<704x128xf32>
    %70 = arith.maximumf %68, %69 : vector<704x128xf32>
    %c0_84 = arith.constant 0 : index
    %c0_85 = arith.constant 0 : index
    %71 = vector.load %arg6[%c0_84, %c0_85] : memref<704x128xf32, #tpu.memory_space<vmem>>, vector<704x128xf32>
    tpu.vector_store %arg6[%c0_84, %c0_85], %70 {strides = array<i32>} : memref<704x128xf32, #tpu.memory_space<vmem>>, vector<704x128xf32>,
    return
  }
  func.func @transform_0(%arg0: i32, %arg1: i32) -> (i32, i32) {
    %c0_i32 = arith.constant 0 : i32
    %c0_i32_0 = arith.constant 0 : i32
    return %arg0, %c0_i32 : i32, i32
  }
  func.func @transform_1(%arg0: i32, %arg1: i32) -> (i32, i32) {
    %c1_i32 = arith.constant 1 : i32
    %0 = arith.addi %arg0, %c1_i32 : i32
    %c11_i32 = arith.constant 11 : i32
    %1 = arith.muli %0, %c11_i32 : i32
    %c0_i32 = arith.constant 0 : i32
    %c0_i32_0 = arith.constant 0 : i32
    return %1, %c0_i32 : i32, i32
  }
  func.func @transform_2(%arg0: i32, %arg1: i32) -> (i32, i32, i32) {
    %c0_i32 = arith.constant 0 : i32
    %c0_i32_0 = arith.constant 0 : i32
    %c0_i32_1 = arith.constant 0 : i32
    return %c0_i32, %c0_i32_0, %arg1 : i32, i32, i32
  }
  func.func @transform_3(%arg0: i32, %arg1: i32) -> (i32, i32) {
    %c0_i32 = arith.constant 0 : i32
    %c0_i32_0 = arith.constant 0 : i32
    return %c0_i32, %arg1 : i32, i32
  }
  func.func @transform_4(%arg0: i32, %arg1: i32) -> (i32, i32) {
    %c0_i32 = arith.constant 0 : i32
    return %arg0, %arg1 : i32, i32
  }
}

</mosaic_0001>

<llo_original>
// kernel: conv2d_thingy.1
$region0: #{conv2d_thingy.1}
  #allocation0 [shape = 'u32[]', space=smem, size = 0x4, offset = 0x4, fixed_abs, tag = 'smem constant byte address 0x4 - core index']
  #allocation1 [shape = 'u32[144,128]{1,0:T(1,128)}', space=vmem, size = 0x12000, scoped, tag = 'internal scratch']
  #allocation2 [shape = 'bf16[768,8]{1,0:T(8,128)(2,1)}', space=vmem, size = 0x30000, scoped, tag = 'scratch operand']
  #allocation3 [shape = 'f32[704,128]{1,0:T(8,128)}', space=vmem, size = 0x58000, scoped, tag = 'scratch operand']
  %s0 = inlined_call_operand.vmem [shape: bf16[768,8], index: 0, kind: input, shape index: {}, may-alias: {0,1}]
  %s1 = inlined_call_operand.vmem [shape: bf16[768,8], index: 1, kind: input, shape index: {}, may-alias: {0,1}]
  %s2 = inlined_call_operand.vmem [shape: bf16[9,8,128], index: 2, kind: input, shape index: {}]
  %s3 = inlined_call_operand.vmem [shape: f32[1,128], index: 3, kind: input, shape index: {}]
  %s4 = inlined_call_operand.vmem [shape: f32[704,128], index: 4, kind: output, shape index: {}]
  %s5 = sld [smem:[#allocation0]]
  $region26: #{conv2d_thingy.1} parent=0
    _
  %s7 = ssub.s32 1, %s5
  %s8 = scalar_select 0, %s7, %s5
  // Predicated region
  $region2: #{conv2d_thingy.1} parent=0 // pred_check
    _
  $region3: #{conv2d_thingy.1} parent=0 // pred_check_branch
    %10 = sbr.rel (0) target = $region5
  $region4: #{conv2d_thingy.1} parent=0 // pred_region
    _
  $region5: #{conv2d_thingy.1} parent=0 // pred_fallthru
    _
  // Predicated region
  $region6: #{conv2d_thingy.1} parent=0 // pred_check
    _
  $region7: #{conv2d_thingy.1} parent=0 // pred_check_branch
    %12 = sbr.rel (0) target = $region9
  $region8: #{conv2d_thingy.1} parent=0 // pred_region
    %s13 = sadd.s32 0, 1
    %s14 = smul.u32 %s13, 11
    %s15 = smul.u32 8, %s14
    %p16 = scmp.lt.s32.totalorder %s15, 95
    %s17 = scalar_select %p16, %s15, 95
    %s18 = smul.addr %s17, 4
    %s19 = scalar_lea.vmem %s1, %s18
    %s20 = sadd.s32 0, 1
    %s21 = smul.u32 %s20, 11
    %s22 = smul.u32 8, %s21
  $region9: #{conv2d_thingy.1} parent=0 // pred_fallthru
    _
  // Predicated region
  $region10: #{conv2d_thingy.1} parent=0 // pred_check
    _
  $region11: #{conv2d_thingy.1} parent=0 // pred_check_branch
    %24 = sbr.rel (0) target = $region13
  $region12: #{conv2d_thingy.1} parent=0 // pred_region
    _
  $region13: #{conv2d_thingy.1} parent=0 // pred_fallthru
    _
  // Predicated region
  $region14: #{conv2d_thingy.1} parent=0 // pred_check
    _
  $region15: #{conv2d_thingy.1} parent=0 // pred_check_branch
    %26 = sbr.rel (0) target = $region17
  $region16: #{conv2d_thingy.1} parent=0 // pred_region
    _
  $region17: #{conv2d_thingy.1} parent=0 // pred_fallthru
    _
  %s27 = sadd.s32 0, 1
  %s28 = smul.u32 %s27, 11
  %s29 = smul.u32 8, %s28
  %p30 = scmp.lt.s32.totalorder %s29, 95
  %s31 = scalar_select %p30, %s29, 95
  %s32 = smul.addr %s31, 4
  %s33 = scalar_lea.vmem %s1, %s32
  %s34 = sadd.s32 0, 1
  %s35 = smul.u32 %s34, 11
  %s36 = smul.u32 8, %s35
  %p37 = scmp.lt.s32.totalorder %s36, 95
  %s38 = scalar_select %p37, %s36, 95
  %s39 = smul.addr %s38, 4
  %s40 = scalar_lea.vmem %s1, %s39
  %s41 = sadd.s32 0, 1
  %s42 = smul.u32 %s41, 11
  %s43 = smul.u32 8, %s42
  %v45 = vld [vmem:[%s0] sm:$0xf]
  %v46 = vld [vmem:[%s0 + $0x4] sm:$0xf]
  %v47 = vld [vmem:[%s0 + $0x8] sm:$0xf]
  %v48 = vld [vmem:[%s0 + $0xc] sm:$0xf]
  %v49 = vld [vmem:[%s0 + $0x10] sm:$0xf]
  %v50 = vld [vmem:[%s0 + $0x14] sm:$0xf]
  %v51 = vld [vmem:[%s0 + $0x18] sm:$0xf]
  %v52 = vld [vmem:[%s0 + $0x1c] sm:$0xf]
  %v53 = vld [vmem:[%s0 + $0x20] sm:$0xf]
  %v54 = vld [vmem:[%s0 + $0x24] sm:$0xf]
  %v55 = vld [vmem:[%s0 + $0x28] sm:$0xf]
  %v56 = vld [vmem:[%s0 + $0x2c] sm:$0xf]
  %v57 = vld [vmem:[%s0 + $0x30] sm:$0xf]
  %v58 = vld [vmem:[%s0 + $0x34] sm:$0xf]
  %v59 = vld [vmem:[%s0 + $0x38] sm:$0xf]
  %v60 = vld [vmem:[%s0 + $0x3c] sm:$0xf]
  %v61 = vld [vmem:[%s0 + $0x40] sm:$0xf]
  %v62 = vld [vmem:[%s0 + $0x44] sm:$0xf]
  %v63 = vld [vmem:[%s0 + $0x48] sm:$0xf]
  %v64 = vld [vmem:[%s0 + $0x4c] sm:$0xf]
  %v65 = vld [vmem:[%s0 + $0x50] sm:$0xf]
  %v66 = vld [vmem:[%s0 + $0x54] sm:$0xf]
  %v67 = vld [vmem:[%s0 + $0x58] sm:$0xf]
  %v68 = vld [vmem:[%s0 + $0x5c] sm:$0xf]
  %v69 = vld [vmem:[%s0 + $0x60] sm:$0xf]
  %v70 = vld [vmem:[%s0 + $0x64] sm:$0xf]
  %v71 = vld [vmem:[%s0 + $0x68] sm:$0xf]
  %v72 = vld [vmem:[%s0 + $0x6c] sm:$0xf]
  %v73 = vld [vmem:[%s0 + $0x70] sm:$0xf]
  %v74 = vld [vmem:[%s0 + $0x74] sm:$0xf]
  %v75 = vld [vmem:[%s0 + $0x78] sm:$0xf]
  %v76 = vld [vmem:[%s0 + $0x7c] sm:$0xf]
  %v77 = vld [vmem:[%s0 + $0x80] sm:$0xf]
  %v78 = vld [vmem:[%s0 + $0x84] sm:$0xf]
  %v79 = vld [vmem:[%s0 + $0x88] sm:$0xf]
  %v80 = vld [vmem:[%s0 + $0x8c] sm:$0xf]
  %v81 = vld [vmem:[%s0 + $0x90] sm:$0xf]
  %v82 = vld [vmem:[%s0 + $0x94] sm:$0xf]
  %v83 = vld [vmem:[%s0 + $0x98] sm:$0xf]
  %v84 = vld [vmem:[%s0 + $0x9c] sm:$0xf]
  %v85 = vld [vmem:[%s0 + $0xa0] sm:$0xf]
  %v86 = vld [vmem:[%s0 + $0xa4] sm:$0xf]
  %v87 = vld [vmem:[%s0 + $0xa8] sm:$0xf]
  %v88 = vld [vmem:[%s0 + $0xac] sm:$0xf]
  %v89 = vld [vmem:[%s0 + $0xb0] sm:$0xf]
  %v90 = vld [vmem:[%s0 + $0xb4] sm:$0xf]
  %v91 = vld [vmem:[%s0 + $0xb8] sm:$0xf]
  %v92 = vld [vmem:[%s0 + $0xbc] sm:$0xf]
  %v93 = vld [vmem:[%s0 + $0xc0] sm:$0xf]
  %v94 = vld [vmem:[%s0 + $0xc4] sm:$0xf]
  %v95 = vld [vmem:[%s0 + $0xc8] sm:$0xf]
  %v96 = vld [vmem:[%s0 + $0xcc] sm:$0xf]
  %v97 = vld [vmem:[%s0 + $0xd0] sm:$0xf]
  %v98 = vld [vmem:[%s0 + $0xd4] sm:$0xf]
  %v99 = vld [vmem:[%s0 + $0xd8] sm:$0xf]
  %v100 = vld [vmem:[%s0 + $0xdc] sm:$0xf]
  %v101 = vld [vmem:[%s0 + $0xe0] sm:$0xf]
  %v102 = vld [vmem:[%s0 + $0xe4] sm:$0xf]
  %v103 = vld [vmem:[%s0 + $0xe8] sm:$0xf]
  %v104 = vld [vmem:[%s0 + $0xec] sm:$0xf]
  %v105 = vld [vmem:[%s0 + $0xf0] sm:$0xf]
  %v106 = vld [vmem:[%s0 + $0xf4] sm:$0xf]
  %v107 = vld [vmem:[%s0 + $0xf8] sm:$0xf]
  %v108 = vld [vmem:[%s0 + $0xfc] sm:$0xf]
  %v109 = vld [vmem:[%s0 + $0x100] sm:$0xf]
  %v110 = vld [vmem:[%s0 + $0x104] sm:$0xf]
  %v111 = vld [vmem:[%s0 + $0x108] sm:$0xf]
  %v112 = vld [vmem:[%s0 + $0x10c] sm:$0xf]
  %v113 = vld [vmem:[%s0 + $0x110] sm:$0xf]
  %v114 = vld [vmem:[%s0 + $0x114] sm:$0xf]
  %v115 = vld [vmem:[%s0 + $0x118] sm:$0xf]
  %v116 = vld [vmem:[%s0 + $0x11c] sm:$0xf]
  %v117 = vld [vmem:[%s0 + $0x120] sm:$0xf]
  %v118 = vld [vmem:[%s0 + $0x124] sm:$0xf]
  %v119 = vld [vmem:[%s0 + $0x128] sm:$0xf]
  %v120 = vld [vmem:[%s0 + $0x12c] sm:$0xf]
  %v121 = vld [vmem:[%s0 + $0x130] sm:$0xf]
  %v122 = vld [vmem:[%s0 + $0x134] sm:$0xf]
  %v123 = vld [vmem:[%s0 + $0x138] sm:$0xf]
  %v124 = vld [vmem:[%s0 + $0x13c] sm:$0xf]
  %v125 = vld [vmem:[%s0 + $0x140] sm:$0xf]
  %v126 = vld [vmem:[%s0 + $0x144] sm:$0xf]
  %v127 = vld [vmem:[%s0 + $0x148] sm:$0xf]
  %v128 = vld [vmem:[%s0 + $0x14c] sm:$0xf]
  %v129 = vld [vmem:[%s0 + $0x150] sm:$0xf]
  %v130 = vld [vmem:[%s0 + $0x154] sm:$0xf]
  %v131 = vld [vmem:[%s0 + $0x158] sm:$0xf]
  %v132 = vld [vmem:[%s0 + $0x15c] sm:$0xf]
  %vm133 = vcmask 60416
  %134 = vst.msk [vmem:[#allocation2] sm:$0xf] %vm133, %v45
  %135 = vst.msk [vmem:[#allocation2 + $0x4] sm:$0xf] %vm133, %v46
  %136 = vst.msk [vmem:[#allocation2 + $0x8] sm:$0xf] %vm133, %v47
  %137 = vst.msk [vmem:[#allocation2 + $0xc] sm:$0xf] %vm133, %v48
  %138 = vst.msk [vmem:[#allocation2 + $0x10] sm:$0xf] %vm133, %v49
  %139 = vst.msk [vmem:[#allocation2 + $0x14] sm:$0xf] %vm133, %v50
  %140 = vst.msk [vmem:[#allocation2 + $0x18] sm:$0xf] %vm133, %v51
  %141 = vst.msk [vmem:[#allocation2 + $0x1c] sm:$0xf] %vm133, %v52
  %142 = vst.msk [vmem:[#allocation2 + $0x20] sm:$0xf] %vm133, %v53
  %143 = vst.msk [vmem:[#allocation2 + $0x24] sm:$0xf] %vm133, %v54
  %144 = vst.msk [vmem:[#allocation2 + $0x28] sm:$0xf] %vm133, %v55
  %145 = vst.msk [vmem:[#allocation2 + $0x2c] sm:$0xf] %vm133, %v56
  %146 = vst.msk [vmem:[#allocation2 + $0x30] sm:$0xf] %vm133, %v57
  %147 = vst.msk [vmem:[#allocation2 + $0x34] sm:$0xf] %vm133, %v58
  %148 = vst.msk [vmem:[#allocation2 + $0x38] sm:$0xf] %vm133, %v59
  %149 = vst.msk [vmem:[#allocation2 + $0x3c] sm:$0xf] %vm133, %v60
  %150 = vst.msk [vmem:[#allocation2 + $0x40] sm:$0xf] %vm133, %v61
  %151 = vst.msk [vmem:[#allocation2 + $0x44] sm:$0xf] %vm133, %v62
  %152 = vst.msk [vmem:[#allocation2 + $0x48] sm:$0xf] %vm133, %v63
  %153 = vst.msk [vmem:[#allocation2 + $0x4c] sm:$0xf] %vm133, %v64
  %154 = vst.msk [vmem:[#allocation2 + $0x50] sm:$0xf] %vm133, %v65
  %155 = vst.msk [vmem:[#allocation2 + $0x54] sm:$0xf] %vm133, %v66
  %156 = vst.msk [vmem:[#allocation2 + $0x58] sm:$0xf] %vm133, %v67
  %157 = vst.msk [vmem:[#allocation2 + $0x5c] sm:$0xf] %vm133, %v68
  %158 = vst.msk [vmem:[#allocation2 + $0x60] sm:$0xf] %vm133, %v69
  %159 = vst.msk [vmem:[#allocation2 + $0x64] sm:$0xf] %vm133, %v70
  %160 = vst.msk [vmem:[#allocation2 + $0x68] sm:$0xf] %vm133, %v71
  %161 = vst.msk [vmem:[#allocation2 + $0x6c] sm:$0xf] %vm133, %v72
  %162 = vst.msk [vmem:[#allocation2 + $0x70] sm:$0xf] %vm133, %v73
  %163 = vst.msk [vmem:[#allocation2 + $0x74] sm:$0xf] %vm133, %v74
  %164 = vst.msk [vmem:[#allocation2 + $0x78] sm:$0xf] %vm133, %v75
  %165 = vst.msk [vmem:[#allocation2 + $0x7c] sm:$0xf] %vm133, %v76
  %166 = vst.msk [vmem:[#allocation2 + $0x80] sm:$0xf] %vm133, %v77
  %167 = vst.msk [vmem:[#allocation2 + $0x84] sm:$0xf] %vm133, %v78
  %168 = vst.msk [vmem:[#allocation2 + $0x88] sm:$0xf] %vm133, %v79
  %169 = vst.msk [vmem:[#allocation2 + $0x8c] sm:$0xf] %vm133, %v80
  %170 = vst.msk [vmem:[#allocation2 + $0x90] sm:$0xf] %vm133, %v81
  %171 = vst.msk [vmem:[#allocation2 + $0x94] sm:$0xf] %vm133, %v82
  %172 = vst.msk [vmem:[#allocation2 + $0x98] sm:$0xf] %vm133, %v83
  %173 = vst.msk [vmem:[#allocation2 + $0x9c] sm:$0xf] %vm133, %v84
  %174 = vst.msk [vmem:[#allocation2 + $0xa0] sm:$0xf] %vm133, %v85
  %175 = vst.msk [vmem:[#allocation2 + $0xa4] sm:$0xf] %vm133, %v86
  %176 = vst.msk [vmem:[#allocation2 + $0xa8] sm:$0xf] %vm133, %v87
  %177 = vst.msk [vmem:[#allocation2 + $0xac] sm:$0xf] %vm133, %v88
  %178 = vst.msk [vmem:[#allocation2 + $0xb0] sm:$0xf] %vm133, %v89
  %179 = vst.msk [vmem:[#allocation2 + $0xb4] sm:$0xf] %vm133, %v90
  %180 = vst.msk [vmem:[#allocation2 + $0xb8] sm:$0xf] %vm133, %v91
  %181 = vst.msk [vmem:[#allocation2 + $0xbc] sm:$0xf] %vm133, %v92
  %182 = vst.msk [vmem:[#allocation2 + $0xc0] sm:$0xf] %vm133, %v93
  %183 = vst.msk [vmem:[#allocation2 + $0xc4] sm:$0xf] %vm133, %v94
  %184 = vst.msk [vmem:[#allocation2 + $0xc8] sm:$0xf] %vm133, %v95
  %185 = vst.msk [vmem:[#allocation2 + $0xcc] sm:$0xf] %vm133, %v96
  %186 = vst.msk [vmem:[#allocation2 + $0xd0] sm:$0xf] %vm133, %v97
  %187 = vst.msk [vmem:[#allocation2 + $0xd4] sm:$0xf] %vm133, %v98
  %188 = vst.msk [vmem:[#allocation2 + $0xd8] sm:$0xf] %vm133, %v99
  %189 = vst.msk [vmem:[#allocation2 + $0xdc] sm:$0xf] %vm133, %v100
  %190 = vst.msk [vmem:[#allocation2 + $0xe0] sm:$0xf] %vm133, %v101
  %191 = vst.msk [vmem:[#allocation2 + $0xe4] sm:$0xf] %vm133, %v102
  %192 = vst.msk [vmem:[#allocation2 + $0xe8] sm:$0xf] %vm133, %v103
  %193 = vst.msk [vmem:[#allocation2 + $0xec] sm:$0xf] %vm133, %v104
  %194 = vst.msk [vmem:[#allocation2 + $0xf0] sm:$0xf] %vm133, %v105
  %195 = vst.msk [vmem:[#allocation2 + $0xf4] sm:$0xf] %vm133, %v106
  %196 = vst.msk [vmem:[#allocation2 + $0xf8] sm:$0xf] %vm133, %v107
  %197 = vst.msk [vmem:[#allocation2 + $0xfc] sm:$0xf] %vm133, %v108
  %198 = vst.msk [vmem:[#allocation2 + $0x100] sm:$0xf] %vm133, %v109
  %199 = vst.msk [vmem:[#allocation2 + $0x104] sm:$0xf] %vm133, %v110
  %200 = vst.msk [vmem:[#allocation2 + $0x108] sm:$0xf] %vm133, %v111
  %201 = vst.msk [vmem:[#allocation2 + $0x10c] sm:$0xf] %vm133, %v112
  %202 = vst.msk [vmem:[#allocation2 + $0x110] sm:$0xf] %vm133, %v113
  %203 = vst.msk [vmem:[#allocation2 + $0x114] sm:$0xf] %vm133, %v114
  %204 = vst.msk [vmem:[#allocation2 + $0x118] sm:$0xf] %vm133, %v115
  %205 = vst.msk [vmem:[#allocation2 + $0x11c] sm:$0xf] %vm133, %v116
  %206 = vst.msk [vmem:[#allocation2 + $0x120] sm:$0xf] %vm133, %v117
  %207 = vst.msk [vmem:[#allocation2 + $0x124] sm:$0xf] %vm133, %v118
  %208 = vst.msk [vmem:[#allocation2 + $0x128] sm:$0xf] %vm133, %v119
  %209 = vst.msk [vmem:[#allocation2 + $0x12c] sm:$0xf] %vm133, %v120
  %210 = vst.msk [vmem:[#allocation2 + $0x130] sm:$0xf] %vm133, %v121
  %211 = vst.msk [vmem:[#allocation2 + $0x134] sm:$0xf] %vm133, %v122
  %212 = vst.msk [vmem:[#allocation2 + $0x138] sm:$0xf] %vm133, %v123
  %213 = vst.msk [vmem:[#allocation2 + $0x13c] sm:$0xf] %vm133, %v124
  %214 = vst.msk [vmem:[#allocation2 + $0x140] sm:$0xf] %vm133, %v125
  %215 = vst.msk [vmem:[#allocation2 + $0x144] sm:$0xf] %vm133, %v126
  %216 = vst.msk [vmem:[#allocation2 + $0x148] sm:$0xf] %vm133, %v127
  %217 = vst.msk [vmem:[#allocation2 + $0x14c] sm:$0xf] %vm133, %v128
  %218 = vst.msk [vmem:[#allocation2 + $0x150] sm:$0xf] %vm133, %v129
  %219 = vst.msk [vmem:[#allocation2 + $0x154] sm:$0xf] %vm133, %v130
  %220 = vst.msk [vmem:[#allocation2 + $0x158] sm:$0xf] %vm133, %v131
  %221 = vst.msk [vmem:[#allocation2 + $0x15c] sm:$0xf] %vm133, %v132
  %v222 = vld [vmem:[%s40] sm:$0xf]
  %v223 = vld [vmem:[%s40 + $0x4] sm:$0xf]
  %v224 = vld [vmem:[%s40 + $0x8] sm:$0xf]
  %v225 = vld [vmem:[%s40 + $0xc] sm:$0xf]
  %v226 = vld [vmem:[%s40 + $0x10] sm:$0xf]
  %v227 = vld [vmem:[%s40 + $0x14] sm:$0xf]
  %v228 = vld [vmem:[%s40 + $0x18] sm:$0xf]
  %v229 = vld [vmem:[%s40 + $0x1c] sm:$0xf]
  %230 = vst.msk [vmem:[#allocation2 + $0x160] sm:$0xf] %vm133, %v222
  %231 = vst.msk [vmem:[#allocation2 + $0x164] sm:$0xf] %vm133, %v223
  %232 = vst.msk [vmem:[#allocation2 + $0x168] sm:$0xf] %vm133, %v224
  %233 = vst.msk [vmem:[#allocation2 + $0x16c] sm:$0xf] %vm133, %v225
  %234 = vst.msk [vmem:[#allocation2 + $0x170] sm:$0xf] %vm133, %v226
  %235 = vst.msk [vmem:[#allocation2 + $0x174] sm:$0xf] %vm133, %v227
  %236 = vst.msk [vmem:[#allocation2 + $0x178] sm:$0xf] %vm133, %v228
  %237 = vst.msk [vmem:[#allocation2 + $0x17c] sm:$0xf] %vm133, %v229
  %v238 = vld [vmem:[#allocation2] sm:$0xf]
  %v239 = vld [vmem:[#allocation2 + $0x4] sm:$0xf]
  %v240 = vld [vmem:[#allocation2 + $0x8] sm:$0xf]
  %v241 = vld [vmem:[#allocation2 + $0xc] sm:$0xf]
  %v242 = vld [vmem:[#allocation2 + $0x10] sm:$0xf]
  %v243 = vld [vmem:[#allocation2 + $0x14] sm:$0xf]
  %v244 = vld [vmem:[#allocation2 + $0x18] sm:$0xf]
  %v245 = vld [vmem:[#allocation2 + $0x1c] sm:$0xf]
  %v246 = vld [vmem:[#allocation2 + $0x20] sm:$0xf]
  %v247 = vld [vmem:[#allocation2 + $0x24] sm:$0xf]
  %v248 = vld [vmem:[#allocation2 + $0x28] sm:$0xf]
  %v249 = vld [vmem:[#allocation2 + $0x2c] sm:$0xf]
  %v250 = vld [vmem:[#allocation2 + $0x30] sm:$0xf]
  %v251 = vld [vmem:[#allocation2 + $0x34] sm:$0xf]
  %v252 = vld [vmem:[#allocation2 + $0x38] sm:$0xf]
  %v253 = vld [vmem:[#allocation2 + $0x3c] sm:$0xf]
  %v254 = vld [vmem:[#allocation2 + $0x40] sm:$0xf]
  %v255 = vld [vmem:[#allocation2 + $0x44] sm:$0xf]
  %v256 = vld [vmem:[#allocation2 + $0x48] sm:$0xf]
  %v257 = vld [vmem:[#allocation2 + $0x4c] sm:$0xf]
  %v258 = vld [vmem:[#allocation2 + $0x50] sm:$0xf]
  %v259 = vld [vmem:[#allocation2 + $0x54] sm:$0xf]
  %v260 = vld [vmem:[#allocation2 + $0x58] sm:$0xf]
  %v261 = vld [vmem:[#allocation2 + $0x5c] sm:$0xf]
  %v262 = vld [vmem:[#allocation2 + $0x60] sm:$0xf]
  %v263 = vld [vmem:[#allocation2 + $0x64] sm:$0xf]
  %v264 = vld [vmem:[#allocation2 + $0x68] sm:$0xf]
  %v265 = vld [vmem:[#allocation2 + $0x6c] sm:$0xf]
  %v266 = vld [vmem:[#allocation2 + $0x70] sm:$0xf]
  %v267 = vld [vmem:[#allocation2 + $0x74] sm:$0xf]
  %v268 = vld [vmem:[#allocation2 + $0x78] sm:$0xf]
  %v269 = vld [vmem:[#allocation2 + $0x7c] sm:$0xf]
  %v270 = vld [vmem:[#allocation2 + $0x80] sm:$0xf]
  %v271 = vld [vmem:[#allocation2 + $0x84] sm:$0xf]
  %v272 = vld [vmem:[#allocation2 + $0x88] sm:$0xf]
  %v273 = vld [vmem:[#allocation2 + $0x8c] sm:$0xf]
  %v274 = vld [vmem:[#allocation2 + $0x90] sm:$0xf]
  %v275 = vld [vmem:[#allocation2 + $0x94] sm:$0xf]
  %v276 = vld [vmem:[#allocation2 + $0x98] sm:$0xf]
  %v277 = vld [vmem:[#allocation2 + $0x9c] sm:$0xf]
  %v278 = vld [vmem:[#allocation2 + $0xa0] sm:$0xf]
  %v279 = vld [vmem:[#allocation2 + $0xa4] sm:$0xf]
  %v280 = vld [vmem:[#allocation2 + $0xa8] sm:$0xf]
  %v281 = vld [vmem:[#allocation2 + $0xac] sm:$0xf]
  %v282 = vld [vmem:[#allocation2 + $0xb0] sm:$0xf]
  %v283 = vld [vmem:[#allocation2 + $0xb4] sm:$0xf]
  %v284 = vld [vmem:[#allocation2 + $0xb8] sm:$0xf]
  %v285 = vld [vmem:[#allocation2 + $0xbc] sm:$0xf]
  %v286 = vld [vmem:[#allocation2 + $0xc0] sm:$0xf]
  %v287 = vld [vmem:[#allocation2 + $0xc4] sm:$0xf]
  %v288 = vld [vmem:[#allocation2 + $0xc8] sm:$0xf]
  %v289 = vld [vmem:[#allocation2 + $0xcc] sm:$0xf]
  %v290 = vld [vmem:[#allocation2 + $0xd0] sm:$0xf]
  %v291 = vld [vmem:[#allocation2 + $0xd4] sm:$0xf]
  %v292 = vld [vmem:[#allocation2 + $0xd8] sm:$0xf]
  %v293 = vld [vmem:[#allocation2 + $0xdc] sm:$0xf]
  %v294 = vld [vmem:[#allocation2 + $0xe0] sm:$0xf]
  %v295 = vld [vmem:[#allocation2 + $0xe4] sm:$0xf]
  %v296 = vld [vmem:[#allocation2 + $0xe8] sm:$0xf]
  %v297 = vld [vmem:[#allocation2 + $0xec] sm:$0xf]
  %v298 = vld [vmem:[#allocation2 + $0xf0] sm:$0xf]
  %v299 = vld [vmem:[#allocation2 + $0xf4] sm:$0xf]
  %v300 = vld [vmem:[#allocation2 + $0xf8] sm:$0xf]
  %v301 = vld [vmem:[#allocation2 + $0xfc] sm:$0xf]
  %v302 = vld [vmem:[#allocation2 + $0x100] sm:$0xf]
  %v303 = vld [vmem:[#allocation2 + $0x104] sm:$0xf]
  %v304 = vld [vmem:[#allocation2 + $0x108] sm:$0xf]
  %v305 = vld [vmem:[#allocation2 + $0x10c] sm:$0xf]
  %v306 = vld [vmem:[#allocation2 + $0x110] sm:$0xf]
  %v307 = vld [vmem:[#allocation2 + $0x114] sm:$0xf]
  %v308 = vld [vmem:[#allocation2 + $0x118] sm:$0xf]
  %v309 = vld [vmem:[#allocation2 + $0x11c] sm:$0xf]
  %v310 = vld [vmem:[#allocation2 + $0x120] sm:$0xf]
  %v311 = vld [vmem:[#allocation2 + $0x124] sm:$0xf]
  %v312 = vld [vmem:[#allocation2 + $0x128] sm:$0xf]
  %v313 = vld [vmem:[#allocation2 + $0x12c] sm:$0xf]
  %v314 = vld [vmem:[#allocation2 + $0x130] sm:$0xf]
  %v315 = vld [vmem:[#allocation2 + $0x134] sm:$0xf]
  %v316 = vld [vmem:[#allocation2 + $0x138] sm:$0xf]
  %v317 = vld [vmem:[#allocation2 + $0x13c] sm:$0xf]
  %v318 = vld [vmem:[#allocation2 + $0x140] sm:$0xf]
  %v319 = vld [vmem:[#allocation2 + $0x144] sm:$0xf]
  %v320 = vld [vmem:[#allocation2 + $0x148] sm:$0xf]
  %v321 = vld [vmem:[#allocation2 + $0x14c] sm:$0xf]
  %v322 = vld [vmem:[#allocation2 + $0x150] sm:$0xf]
  %v323 = vld [vmem:[#allocation2 + $0x154] sm:$0xf]
  %v324 = vld [vmem:[#allocation2 + $0x158] sm:$0xf]
  %v325 = vld [vmem:[#allocation2 + $0x15c] sm:$0xf]
  %v326 = vld [vmem:[%s2] sm:$0xf]
  %v415 = vunpack.c.l.b16 %v238
  %v416 = vunpack.c.l.b16 %v239
  %v417 = vunpack.c.l.b16 %v240
  %v418 = vunpack.c.l.b16 %v241
  %v419 = vunpack.c.l.b16 %v242
  %v420 = vunpack.c.l.b16 %v243
  %v421 = vunpack.c.l.b16 %v244
  %v422 = vunpack.c.l.b16 %v245
  %v423 = vunpack.c.l.b16 %v246
  %v424 = vunpack.c.l.b16 %v247
  %v425 = vunpack.c.l.b16 %v248
  %v426 = vunpack.c.l.b16 %v249
  %v427 = vunpack.c.l.b16 %v250
  %v428 = vunpack.c.l.b16 %v251
  %v429 = vunpack.c.l.b16 %v252
  %v430 = vunpack.c.l.b16 %v253
  %v431 = vunpack.c.l.b16 %v254
  %v432 = vunpack.c.l.b16 %v255
  %v433 = vunpack.c.l.b16 %v256
  %v434 = vunpack.c.l.b16 %v257
  %v435 = vunpack.c.l.b16 %v258
  %v436 = vunpack.c.l.b16 %v259
  %v437 = vunpack.c.l.b16 %v260
  %v438 = vunpack.c.l.b16 %v261
  %v439 = vunpack.c.l.b16 %v262
  %v440 = vunpack.c.l.b16 %v263
  %v441 = vunpack.c.l.b16 %v264
  %v442 = vunpack.c.l.b16 %v265
  %v443 = vunpack.c.l.b16 %v266
  %v444 = vunpack.c.l.b16 %v267
  %v445 = vunpack.c.l.b16 %v268
  %v446 = vunpack.c.l.b16 %v269
  %v447 = vunpack.c.l.b16 %v270
  %v448 = vunpack.c.l.b16 %v271
  %v449 = vunpack.c.l.b16 %v272
  %v450 = vunpack.c.l.b16 %v273
  %v451 = vunpack.c.l.b16 %v274
  %v452 = vunpack.c.l.b16 %v275
  %v453 = vunpack.c.l.b16 %v276
  %v454 = vunpack.c.l.b16 %v277
  %v455 = vunpack.c.l.b16 %v278
  %v456 = vunpack.c.l.b16 %v279
  %v457 = vunpack.c.l.b16 %v280
  %v458 = vunpack.c.l.b16 %v281
  %v459 = vunpack.c.l.b16 %v282
  %v460 = vunpack.c.l.b16 %v283
  %v461 = vunpack.c.l.b16 %v284
  %v462 = vunpack.c.l.b16 %v285
  %v463 = vunpack.c.l.b16 %v286
  %v464 = vunpack.c.l.b16 %v287
  %v465 = vunpack.c.l.b16 %v288
  %v466 = vunpack.c.l.b16 %v289
  %v467 = vunpack.c.l.b16 %v290
  %v468 = vunpack.c.l.b16 %v291
  %v469 = vunpack.c.l.b16 %v292
  %v470 = vunpack.c.l.b16 %v293
  %v471 = vunpack.c.l.b16 %v294
  %v472 = vunpack.c.l.b16 %v295
  %v473 = vunpack.c.l.b16 %v296
  %v474 = vunpack.c.l.b16 %v297
  %v475 = vunpack.c.l.b16 %v298
  %v476 = vunpack.c.l.b16 %v299
  %v477 = vunpack.c.l.b16 %v300
  %v478 = vunpack.c.l.b16 %v301
  %v479 = vunpack.c.l.b16 %v302
  %v480 = vunpack.c.l.b16 %v303
  %v481 = vunpack.c.l.b16 %v304
  %v482 = vunpack.c.l.b16 %v305
  %v483 = vunpack.c.l.b16 %v306
  %v484 = vunpack.c.l.b16 %v307
  %v485 = vunpack.c.l.b16 %v308
  %v486 = vunpack.c.l.b16 %v309
  %v487 = vunpack.c.l.b16 %v310
  %v488 = vunpack.c.l.b16 %v311
  %v489 = vunpack.c.l.b16 %v312
  %v490 = vunpack.c.l.b16 %v313
  %v491 = vunpack.c.l.b16 %v314
  %v492 = vunpack.c.l.b16 %v315
  %v493 = vunpack.c.l.b16 %v316
  %v494 = vunpack.c.l.b16 %v317
  %v495 = vunpack.c.l.b16 %v318
  %v496 = vunpack.c.l.b16 %v319
  %v497 = vunpack.c.l.b16 %v320
  %v498 = vunpack.c.l.b16 %v321
  %v499 = vunpack.c.l.b16 %v322
  %v500 = vunpack.c.l.b16 %v323
  %v501 = vunpack.c.l.b16 %v324
  %v502 = vunpack.c.l.b16 %v325
  %v503 = vpack.c.b16 %v416, %v415
  %v504 = vpack.c.b16 %v418, %v417
  %v505 = vpack.c.b16 %v420, %v419
  %v506 = vpack.c.b16 %v422, %v421
  %v507 = vpack.c.b16 %v424, %v423
  %v508 = vpack.c.b16 %v426, %v425
  %v509 = vpack.c.b16 %v428, %v427
  %v510 = vpack.c.b16 %v430, %v429
  %v511 = vpack.c.b16 %v432, %v431
  %v512 = vpack.c.b16 %v434, %v433
  %v513 = vpack.c.b16 %v436, %v435
  %v514 = vpack.c.b16 %v438, %v437
  %v515 = vpack.c.b16 %v440, %v439
  %v516 = vpack.c.b16 %v442, %v441
  %v517 = vpack.c.b16 %v444, %v443
  %v518 = vpack.c.b16 %v446, %v445
  %v519 = vpack.c.b16 %v448, %v447
  %v520 = vpack.c.b16 %v450, %v449
  %v521 = vpack.c.b16 %v452, %v451
  %v522 = vpack.c.b16 %v454, %v453
  %v523 = vpack.c.b16 %v456, %v455
  %v524 = vpack.c.b16 %v458, %v457
  %v525 = vpack.c.b16 %v460, %v459
  %v526 = vpack.c.b16 %v462, %v461
  %v527 = vpack.c.b16 %v464, %v463
  %v528 = vpack.c.b16 %v466, %v465
  %v529 = vpack.c.b16 %v468, %v467
  %v530 = vpack.c.b16 %v470, %v469
  %v531 = vpack.c.b16 %v472, %v471
  %v532 = vpack.c.b16 %v474, %v473
  %v533 = vpack.c.b16 %v476, %v475
  %v534 = vpack.c.b16 %v478, %v477
  %v535 = vpack.c.b16 %v480, %v479
  %v536 = vpack.c.b16 %v482, %v481
  %v537 = vpack.c.b16 %v484, %v483
  %v538 = vpack.c.b16 %v486, %v485
  %v539 = vpack.c.b16 %v488, %v487
  %v540 = vpack.c.b16 %v490, %v489
  %v541 = vpack.c.b16 %v492, %v491
  %v542 = vpack.c.b16 %v494, %v493
  %v543 = vpack.c.b16 %v496, %v495
  %v544 = vpack.c.b16 %v498, %v497
  %v545 = vpack.c.b16 %v500, %v499
  %v546 = vpack.c.b16 %v502, %v501
  %vm547 = vcmask 64512
  %v549 = vsel %vm547, %v503, 0
  %v552 = vsel %vm547, %v504, 0
  %v555 = vsel %vm547, %v505, 0
  %v558 = vsel %vm547, %v506, 0
  %v561 = vsel %vm547, %v507, 0
  %v564 = vsel %vm547, %v508, 0
  %v567 = vsel %vm547, %v509, 0
  %v570 = vsel %vm547, %v510, 0
  %v573 = vsel %vm547, %v511, 0
  %v576 = vsel %vm547, %v512, 0
  %v579 = vsel %vm547, %v513, 0
  %v582 = vsel %vm547, %v514, 0
  %v585 = vsel %vm547, %v515, 0
  %v588 = vsel %vm547, %v516, 0
  %v591 = vsel %vm547, %v517, 0
  %v594 = vsel %vm547, %v518, 0
  %v597 = vsel %vm547, %v519, 0
  %v600 = vsel %vm547, %v520, 0
  %v603 = vsel %vm547, %v521, 0
  %v606 = vsel %vm547, %v522, 0
  %v609 = vsel %vm547, %v523, 0
  %v612 = vsel %vm547, %v524, 0
  %v615 = vsel %vm547, %v525, 0
  %v618 = vsel %vm547, %v526, 0
  %v621 = vsel %vm547, %v527, 0
  %v624 = vsel %vm547, %v528, 0
  %v627 = vsel %vm547, %v529, 0
  %v630 = vsel %vm547, %v530, 0
  %v633 = vsel %vm547, %v531, 0
  %v636 = vsel %vm547, %v532, 0
  %v639 = vsel %vm547, %v533, 0
  %v642 = vsel %vm547, %v534, 0
  %v645 = vsel %vm547, %v535, 0
  %v648 = vsel %vm547, %v536, 0
  %v651 = vsel %vm547, %v537, 0
  %v654 = vsel %vm547, %v538, 0
  %v657 = vsel %vm547, %v539, 0
  %v660 = vsel %vm547, %v540, 0
  %v663 = vsel %vm547, %v541, 0
  %v666 = vsel %vm547, %v542, 0
  %v669 = vsel %vm547, %v543, 0
  %v672 = vsel %vm547, %v544, 0
  %v675 = vsel %vm547, %v545, 0
  %v678 = vsel %vm547, %v546, 0
  %vm680 = vcmask 1043456
  %v682 = vsel %vm680, %v326, 0
  %684 = vmatprep.subr.bf16.mxu0 0
  %685 = vmatpush1.bf16.msra.mxu0 0
  %686 = vmatprep.subr.bf16.mxu0 0
  %687 = vmatpush1.bf16.msra.mxu0 0
  %688 = vmatprep.subr.bf16.mxu0 0
  %689 = vmatpush1.bf16.msra.mxu0 0
  %690 = vmatprep.subr.bf16.mxu0 0
  %691 = vmatpush1.bf16.msra.mxu0 0
  %692 = vmatprep.subr.bf16.mxu0 0
  %693 = vmatpush1.bf16.msra.mxu0 0
  %694 = vmatprep.subr.bf16.mxu0 0
  %695 = vmatpush1.bf16.msra.mxu0 0
  %696 = vmatprep.subr.bf16.mxu0 0
  %697 = vmatpush1.bf16.msra.mxu0 0
  %698 = vmatprep.subr.bf16.mxu0 0
  %699 = vmatpush1.bf16.msra.mxu0 %v682
  %700 = vmatprep.subr.bf16.mxu0 0
  %701 = vmatpush2.bf16.msra.mxu0 0
  %702 = vmatprep.subr.bf16.mxu0 0
  %703 = vmatpush2.bf16.msra.mxu0 0
  %704 = vmatprep.subr.bf16.mxu0 0
  %705 = vmatpush2.bf16.msra.mxu0 0
  %706 = vmatprep.subr.bf16.mxu0 0
  %707 = vmatpush2.bf16.msra.mxu0 0
  %708 = vmatprep.subr.bf16.mxu0 0
  %709 = vmatpush2.bf16.msra.mxu0 0
  %710 = vmatprep.subr.bf16.mxu0 0
  %711 = vmatpush2.bf16.msra.mxu0 0
  %712 = vmatprep.subr.bf16.mxu0 0
  %713 = vmatpush2.bf16.msra.mxu0 0
  %714 = vmatprep.subr.bf16.mxu0 0
  %715 = vmatpush2.bf16.msra.mxu0 0
  %716 = vmatprep.mubr.bf16.mxu0 0
  %717 = vmatmul.mubr.bf16.gmra.mxu0 %v549
  %v718 = vpop.f32.mrf.mxu0
  %v719 = vadd.f32 0.0, %v718
  %v720 = vpop.f32.mrf.mxu0
  %v721 = vpop.f32.mrf.mxu0
  %v722 = vadd.f32 0.0, %v721
  %v723 = vpop.f32.mrf.mxu0
  %724 = vmatprep.mubr.bf16.mxu0 0
  %725 = vmatmul.mubr.bf16.gmra.mxu0 %v552
  %v726 = vpop.f32.mrf.mxu0
  %v727 = vadd.f32 0.0, %v726
  %v728 = vpop.f32.mrf.mxu0
  %v729 = vpop.f32.mrf.mxu0
  %v730 = vadd.f32 0.0, %v729
  %v731 = vpop.f32.mrf.mxu0
  %732 = vmatprep.mubr.bf16.mxu0 0
  %733 = vmatmul.mubr.bf16.gmra.mxu0 %v555
  %v734 = vpop.f32.mrf.mxu0
  %v735 = vadd.f32 0.0, %v734
  %v736 = vpop.f32.mrf.mxu0
  %v737 = vpop.f32.mrf.mxu0
  %v738 = vadd.f32 0.0, %v737
  %v739 = vpop.f32.mrf.mxu0
  %740 = vmatprep.mubr.bf16.mxu0 0
  %741 = vmatmul.mubr.bf16.gmra.mxu0 %v558
  %v742 = vpop.f32.mrf.mxu0
  %v743 = vadd.f32 0.0, %v742
  %v744 = vpop.f32.mrf.mxu0
  %v745 = vpop.f32.mrf.mxu0
  %v746 = vadd.f32 0.0, %v745
  %v747 = vpop.f32.mrf.mxu0
  %748 = vmatprep.mubr.bf16.mxu0 0
  %749 = vmatmul.mubr.bf16.gmra.mxu0 %v561
  %v750 = vpop.f32.mrf.mxu0
  %v751 = vadd.f32 0.0, %v750
  %v752 = vpop.f32.mrf.mxu0
  %v753 = vpop.f32.mrf.mxu0
  %v754 = vadd.f32 0.0, %v753
  %v755 = vpop.f32.mrf.mxu0
  %756 = vmatprep.mubr.bf16.mxu0 0
  %757 = vmatmul.mubr.bf16.gmra.mxu0 %v564
  %v758 = vpop.f32.mrf.mxu0
  %v759 = vadd.f32 0.0, %v758
  %v760 = vpop.f32.mrf.mxu0
  %v761 = vpop.f32.mrf.mxu0
  %v762 = vadd.f32 0.0, %v761
  %v763 = vpop.f32.mrf.mxu0
  %764 = vmatprep.mubr.bf16.mxu0 0
  %765 = vmatmul.mubr.bf16.gmra.mxu0 %v567
  %v766 = vpop.f32.mrf.mxu0
  %v767 = vadd.f32 0.0, %v766
  %v768 = vpop.f32.mrf.mxu0
  %v769 = vpop.f32.mrf.mxu0
  %v770 = vadd.f32 0.0, %v769
  %v771 = vpop.f32.mrf.mxu0
  %772 = vmatprep.mubr.bf16.mxu0 0
  %773 = vmatmul.mubr.bf16.gmra.mxu0 %v570
  %v774 = vpop.f32.mrf.mxu0
  %v775 = vadd.f32 0.0, %v774
  %v776 = vpop.f32.mrf.mxu0
  %v777 = vpop.f32.mrf.mxu0
  %v778 = vadd.f32 0.0, %v777
  %v779 = vpop.f32.mrf.mxu0
  %780 = vmatprep.mubr.bf16.mxu0 0
  %781 = vmatmul.mubr.bf16.gmra.mxu0 %v573
  %v782 = vpop.f32.mrf.mxu0
  %v783 = vadd.f32 0.0, %v782
  %v784 = vpop.f32.mrf.mxu0
  %v785 = vpop.f32.mrf.mxu0
  %v786 = vadd.f32 0.0, %v785
  %v787 = vpop.f32.mrf.mxu0
  %788 = vmatprep.mubr.bf16.mxu0 0
  %789 = vmatmul.mubr.bf16.gmra.mxu0 %v576
  %v790 = vpop.f32.mrf.mxu0
  %v791 = vadd.f32 0.0, %v790
  %v792 = vpop.f32.mrf.mxu0
  %v793 = vpop.f32.mrf.mxu0
  %v794 = vadd.f32 0.0, %v793
  %v795 = vpop.f32.mrf.mxu0
  %796 = vmatprep.mubr.bf16.mxu0 0
  %797 = vmatmul.mubr.bf16.gmra.mxu0 %v579
  %v798 = vpop.f32.mrf.mxu0
  %v799 = vadd.f32 0.0, %v798
  %v800 = vpop.f32.mrf.mxu0
  %v801 = vpop.f32.mrf.mxu0
  %v802 = vadd.f32 0.0, %v801
  %v803 = vpop.f32.mrf.mxu0
  %804 = vmatprep.mubr.bf16.mxu0 0
  %805 = vmatmul.mubr.bf16.gmra.mxu0 %v582
  %v806 = vpop.f32.mrf.mxu0
  %v807 = vadd.f32 0.0, %v806
  %v808 = vpop.f32.mrf.mxu0
  %v809 = vpop.f32.mrf.mxu0
  %v810 = vadd.f32 0.0, %v809
  %v811 = vpop.f32.mrf.mxu0
  %812 = vmatprep.mubr.bf16.mxu0 0
  %813 = vmatmul.mubr.bf16.gmra.mxu0 %v585
  %v814 = vpop.f32.mrf.mxu0
  %v815 = vadd.f32 0.0, %v814
  %v816 = vpop.f32.mrf.mxu0
  %v817 = vpop.f32.mrf.mxu0
  %v818 = vadd.f32 0.0, %v817
  %v819 = vpop.f32.mrf.mxu0
  %820 = vmatprep.mubr.bf16.mxu0 0
  %821 = vmatmul.mubr.bf16.gmra.mxu0 %v588
  %v822 = vpop.f32.mrf.mxu0
  %v823 = vadd.f32 0.0, %v822
  %v824 = vpop.f32.mrf.mxu0
  %v825 = vpop.f32.mrf.mxu0
  %v826 = vadd.f32 0.0, %v825
  %v827 = vpop.f32.mrf.mxu0
  %828 = vmatprep.mubr.bf16.mxu0 0
  %829 = vmatmul.mubr.bf16.gmra.mxu0 %v591
  %v830 = vpop.f32.mrf.mxu0
  %v831 = vadd.f32 0.0, %v830
  %v832 = vpop.f32.mrf.mxu0
  %v833 = vpop.f32.mrf.mxu0
  %v834 = vadd.f32 0.0, %v833
  %v835 = vpop.f32.mrf.mxu0
  %836 = vmatprep.mubr.bf16.mxu0 0
  %837 = vmatmul.mubr.bf16.gmra.mxu0 %v594
  %v838 = vpop.f32.mrf.mxu0
  %v839 = vadd.f32 0.0, %v838
  %v840 = vpop.f32.mrf.mxu0
  %v841 = vpop.f32.mrf.mxu0
  %v842 = vadd.f32 0.0, %v841
  %v843 = vpop.f32.mrf.mxu0
  %844 = vmatprep.mubr.bf16.mxu0 0
  %845 = vmatmul.mubr.bf16.gmra.mxu0 %v597
  %v846 = vpop.f32.mrf.mxu0
  %v847 = vadd.f32 0.0, %v846
  %v848 = vpop.f32.mrf.mxu0
  %v849 = vpop.f32.mrf.mxu0
  %v850 = vadd.f32 0.0, %v849
  %v851 = vpop.f32.mrf.mxu0
  %852 = vmatprep.mubr.bf16.mxu0 0
  %853 = vmatmul.mubr.bf16.gmra.mxu0 %v600
  %v854 = vpop.f32.mrf.mxu0
  %v855 = vadd.f32 0.0, %v854
  %v856 = vpop.f32.mrf.mxu0
  %v857 = vpop.f32.mrf.mxu0
  %v858 = vadd.f32 0.0, %v857
  %v859 = vpop.f32.mrf.mxu0
  %860 = vmatprep.mubr.bf16.mxu0 0
  %861 = vmatmul.mubr.bf16.gmra.mxu0 %v603
  %v862 = vpop.f32.mrf.mxu0
  %v863 = vadd.f32 0.0, %v862
  %v864 = vpop.f32.mrf.mxu0
  %v865 = vpop.f32.mrf.mxu0
  %v866 = vadd.f32 0.0, %v865
  %v867 = vpop.f32.mrf.mxu0
  %868 = vmatprep.mubr.bf16.mxu0 0
  %869 = vmatmul.mubr.bf16.gmra.mxu0 %v606
  %v870 = vpop.f32.mrf.mxu0
  %v871 = vadd.f32 0.0, %v870
  %v872 = vpop.f32.mrf.mxu0
  %v873 = vpop.f32.mrf.mxu0
  %v874 = vadd.f32 0.0, %v873
  %v875 = vpop.f32.mrf.mxu0
  %876 = vmatprep.mubr.bf16.mxu0 0
  %877 = vmatmul.mubr.bf16.gmra.mxu0 %v609
  %v878 = vpop.f32.mrf.mxu0
  %v879 = vadd.f32 0.0, %v878
  %v880 = vpop.f32.mrf.mxu0
  %v881 = vpop.f32.mrf.mxu0
  %v882 = vadd.f32 0.0, %v881
  %v883 = vpop.f32.mrf.mxu0
  %884 = vmatprep.mubr.bf16.mxu0 0
  %885 = vmatmul.mubr.bf16.gmra.mxu0 %v612
  %v886 = vpop.f32.mrf.mxu0
  %v887 = vadd.f32 0.0, %v886
  %v888 = vpop.f32.mrf.mxu0
  %v889 = vpop.f32.mrf.mxu0
  %v890 = vadd.f32 0.0, %v889
  %v891 = vpop.f32.mrf.mxu0
  %892 = vmatprep.mubr.bf16.mxu0 0
  %893 = vmatmul.mubr.bf16.gmra.mxu0 %v615
  %v894 = vpop.f32.mrf.mxu0
  %v895 = vadd.f32 0.0, %v894
  %v896 = vpop.f32.mrf.mxu0
  %v897 = vpop.f32.mrf.mxu0
  %v898 = vadd.f32 0.0, %v897
  %v899 = vpop.f32.mrf.mxu0
  %900 = vmatprep.mubr.bf16.mxu0 0
  %901 = vmatmul.mubr.bf16.gmra.mxu0 %v618
  %v902 = vpop.f32.mrf.mxu0
  %v903 = vadd.f32 0.0, %v902
  %v904 = vpop.f32.mrf.mxu0
  %v905 = vpop.f32.mrf.mxu0
  %v906 = vadd.f32 0.0, %v905
  %v907 = vpop.f32.mrf.mxu0
  %908 = vmatprep.mubr.bf16.mxu0 0
  %909 = vmatmul.mubr.bf16.gmra.mxu0 %v621
  %v910 = vpop.f32.mrf.mxu0
  %v911 = vadd.f32 0.0, %v910
  %v912 = vpop.f32.mrf.mxu0
  %v913 = vpop.f32.mrf.mxu0
  %v914 = vadd.f32 0.0, %v913
  %v915 = vpop.f32.mrf.mxu0
  %916 = vmatprep.mubr.bf16.mxu0 0
  %917 = vmatmul.mubr.bf16.gmra.mxu0 %v624
  %v918 = vpop.f32.mrf.mxu0
  %v919 = vadd.f32 0.0, %v918
  %v920 = vpop.f32.mrf.mxu0
  %v921 = vpop.f32.mrf.mxu0
  %v922 = vadd.f32 0.0, %v921
  %v923 = vpop.f32.mrf.mxu0
  %924 = vmatprep.mubr.bf16.mxu0 0
  %925 = vmatmul.mubr.bf16.gmra.mxu0 %v627
  %v926 = vpop.f32.mrf.mxu0
  %v927 = vadd.f32 0.0, %v926
  %v928 = vpop.f32.mrf.mxu0
  %v929 = vpop.f32.mrf.mxu0
  %v930 = vadd.f32 0.0, %v929
  %v931 = vpop.f32.mrf.mxu0
  %932 = vmatprep.mubr.bf16.mxu0 0
  %933 = vmatmul.mubr.bf16.gmra.mxu0 %v630
  %v934 = vpop.f32.mrf.mxu0
  %v935 = vadd.f32 0.0, %v934
  %v936 = vpop.f32.mrf.mxu0
  %v937 = vpop.f32.mrf.mxu0
  %v938 = vadd.f32 0.0, %v937
  %v939 = vpop.f32.mrf.mxu0
  %940 = vmatprep.mubr.bf16.mxu0 0
  %941 = vmatmul.mubr.bf16.gmra.mxu0 %v633
  %v942 = vpop.f32.mrf.mxu0
  %v943 = vadd.f32 0.0, %v942
  %v944 = vpop.f32.mrf.mxu0
  %v945 = vpop.f32.mrf.mxu0
  %v946 = vadd.f32 0.0, %v945
  %v947 = vpop.f32.mrf.mxu0
  %948 = vmatprep.mubr.bf16.mxu0 0
  %949 = vmatmul.mubr.bf16.gmra.mxu0 %v636
  %v950 = vpop.f32.mrf.mxu0
  %v951 = vadd.f32 0.0, %v950
  %v952 = vpop.f32.mrf.mxu0
  %v953 = vpop.f32.mrf.mxu0
  %v954 = vadd.f32 0.0, %v953
  %v955 = vpop.f32.mrf.mxu0
  %956 = vmatprep.mubr.bf16.mxu0 0
  %957 = vmatmul.mubr.bf16.gmra.mxu0 %v639
  %v958 = vpop.f32.mrf.mxu0
  %v959 = vadd.f32 0.0, %v958
  %v960 = vpop.f32.mrf.mxu0
  %v961 = vpop.f32.mrf.mxu0
  %v962 = vadd.f32 0.0, %v961
  %v963 = vpop.f32.mrf.mxu0
  %964 = vmatprep.mubr.bf16.mxu0 0
  %965 = vmatmul.mubr.bf16.gmra.mxu0 %v642
  %v966 = vpop.f32.mrf.mxu0
  %v967 = vadd.f32 0.0, %v966
  %v968 = vpop.f32.mrf.mxu0
  %v969 = vpop.f32.mrf.mxu0
  %v970 = vadd.f32 0.0, %v969
  %v971 = vpop.f32.mrf.mxu0
  %972 = vmatprep.mubr.bf16.mxu0 0
  %973 = vmatmul.mubr.bf16.gmra.mxu0 %v645
  %v974 = vpop.f32.mrf.mxu0
  %v975 = vadd.f32 0.0, %v974
  %v976 = vpop.f32.mrf.mxu0
  %v977 = vpop.f32.mrf.mxu0
  %v978 = vadd.f32 0.0, %v977
  %v979 = vpop.f32.mrf.mxu0
  %980 = vmatprep.mubr.bf16.mxu0 0
  %981 = vmatmul.mubr.bf16.gmra.mxu0 %v648
  %v982 = vpop.f32.mrf.mxu0
  %v983 = vadd.f32 0.0, %v982
  %v984 = vpop.f32.mrf.mxu0
  %v985 = vpop.f32.mrf.mxu0
  %v986 = vadd.f32 0.0, %v985
  %v987 = vpop.f32.mrf.mxu0
  %988 = vmatprep.mubr.bf16.mxu0 0
  %989 = vmatmul.mubr.bf16.gmra.mxu0 %v651
  %v990 = vpop.f32.mrf.mxu0
  %v991 = vadd.f32 0.0, %v990
  %v992 = vpop.f32.mrf.mxu0
  %v993 = vpop.f32.mrf.mxu0
  %v994 = vadd.f32 0.0, %v993
  %v995 = vpop.f32.mrf.mxu0
  %996 = vmatprep.mubr.bf16.mxu0 0
  %997 = vmatmul.mubr.bf16.gmra.mxu0 %v654
  %v998 = vpop.f32.mrf.mxu0
  %v999 = vadd.f32 0.0, %v998
  %v1000 = vpop.f32.mrf.mxu0
  %v1001 = vpop.f32.mrf.mxu0
  %v1002 = vadd.f32 0.0, %v1001
  %v1003 = vpop.f32.mrf.mxu0
  %1004 = vmatprep.mubr.bf16.mxu0 0
  %1005 = vmatmul.mubr.bf16.gmra.mxu0 %v657
  %v1006 = vpop.f32.mrf.mxu0
  %v1007 = vadd.f32 0.0, %v1006
  %v1008 = vpop.f32.mrf.mxu0
  %v1009 = vpop.f32.mrf.mxu0
  %v1010 = vadd.f32 0.0, %v1009
  %v1011 = vpop.f32.mrf.mxu0
  %1012 = vmatprep.mubr.bf16.mxu0 0
  %1013 = vmatmul.mubr.bf16.gmra.mxu0 %v660
  %v1014 = vpop.f32.mrf.mxu0
  %v1015 = vadd.f32 0.0, %v1014
  %v1016 = vpop.f32.mrf.mxu0
  %v1017 = vpop.f32.mrf.mxu0
  %v1018 = vadd.f32 0.0, %v1017
  %v1019 = vpop.f32.mrf.mxu0
  %1020 = vmatprep.mubr.bf16.mxu0 0
  %1021 = vmatmul.mubr.bf16.gmra.mxu0 %v663
  %v1022 = vpop.f32.mrf.mxu0
  %v1023 = vadd.f32 0.0, %v1022
  %v1024 = vpop.f32.mrf.mxu0
  %v1025 = vpop.f32.mrf.mxu0
  %v1026 = vadd.f32 0.0, %v1025
  %v1027 = vpop.f32.mrf.mxu0
  %1028 = vmatprep.mubr.bf16.mxu0 0
  %1029 = vmatmul.mubr.bf16.gmra.mxu0 %v666
  %v1030 = vpop.f32.mrf.mxu0
  %v1031 = vadd.f32 0.0, %v1030
  %v1032 = vpop.f32.mrf.mxu0
  %v1033 = vpop.f32.mrf.mxu0
  %v1034 = vadd.f32 0.0, %v1033
  %v1035 = vpop.f32.mrf.mxu0
  %1036 = vmatprep.mubr.bf16.mxu0 0
  %1037 = vmatmul.mubr.bf16.gmra.mxu0 %v669
  %v1038 = vpop.f32.mrf.mxu0
  %v1039 = vadd.f32 0.0, %v1038
  %v1040 = vpop.f32.mrf.mxu0
  %v1041 = vpop.f32.mrf.mxu0
  %v1042 = vadd.f32 0.0, %v1041
  %v1043 = vpop.f32.mrf.mxu0
  %1044 = vmatprep.mubr.bf16.mxu0 0
  %1045 = vmatmul.mubr.bf16.gmra.mxu0 %v672
  %v1046 = vpop.f32.mrf.mxu0
  %v1047 = vadd.f32 0.0, %v1046
  %v1048 = vpop.f32.mrf.mxu0
  %v1049 = vpop.f32.mrf.mxu0
  %v1050 = vadd.f32 0.0, %v1049
  %v1051 = vpop.f32.mrf.mxu0
  %1052 = vmatprep.mubr.bf16.mxu0 0
  %1053 = vmatmul.mubr.bf16.gmra.mxu0 %v675
  %v1054 = vpop.f32.mrf.mxu0
  %v1055 = vadd.f32 0.0, %v1054
  %v1056 = vpop.f32.mrf.mxu0
  %v1057 = vpop.f32.mrf.mxu0
  %v1058 = vadd.f32 0.0, %v1057
  %v1059 = vpop.f32.mrf.mxu0
  %1060 = vmatprep.mubr.bf16.mxu0 0
  %1061 = vmatmul.mubr.bf16.gmra.mxu0 %v678
  %v1062 = vpop.f32.mrf.mxu0
  %v1063 = vadd.f32 0.0, %v1062
  %v1064 = vpop.f32.mrf.mxu0
  %v1065 = vpop.f32.mrf.mxu0
  %v1066 = vadd.f32 0.0, %v1065
  %v1067 = vpop.f32.mrf.mxu0
  %1068 = vdwg.mxu0
  %1069 = vst [vmem:[#allocation3] sm:$0xff] %v719
  %1070 = vst [vmem:[#allocation3 + $0x8] sm:$0xff] %v722
  %1071 = vst [vmem:[#allocation3 + $0x10] sm:$0xff] %v727
  %1072 = vst [vmem:[#allocation3 + $0x18] sm:$0xff] %v730
  %1073 = vst [vmem:[#allocation3 + $0x20] sm:$0xff] %v735
  %1074 = vst [vmem:[#allocation3 + $0x28] sm:$0xff] %v738
  %1075 = vst [vmem:[#allocation3 + $0x30] sm:$0xff] %v743
  %1076 = vst [vmem:[#allocation3 + $0x38] sm:$0xff] %v746
  %1077 = vst [vmem:[#allocation3 + $0x40] sm:$0xff] %v751
  %1078 = vst [vmem:[#allocation3 + $0x48] sm:$0xff] %v754
  %1079 = vst [vmem:[#allocation3 + $0x50] sm:$0xff] %v759
  %1080 = vst [vmem:[#allocation3 + $0x58] sm:$0xff] %v762
  %1081 = vst [vmem:[#allocation3 + $0x60] sm:$0xff] %v767
  %1082 = vst [vmem:[#allocation3 + $0x68] sm:$0xff] %v770
  %1083 = vst [vmem:[#allocation3 + $0x70] sm:$0xff] %v775
  %1084 = vst [vmem:[#allocation3 + $0x78] sm:$0xff] %v778
  %1085 = vst [vmem:[#allocation3 + $0x80] sm:$0xff] %v783
  %1086 = vst [vmem:[#allocation3 + $0x88] sm:$0xff] %v786
  %1087 = vst [vmem:[#allocation3 + $0x90] sm:$0xff] %v791
  %1088 = vst [vmem:[#allocation3 + $0x98] sm:$0xff] %v794
  %1089 = vst [vmem:[#allocation3 + $0xa0] sm:$0xff] %v799
  %1090 = vst [vmem:[#allocation3 + $0xa8] sm:$0xff] %v802
  %1091 = vst [vmem:[#allocation3 + $0xb0] sm:$0xff] %v807
  %1092 = vst [vmem:[#allocation3 + $0xb8] sm:$0xff] %v810
  %1093 = vst [vmem:[#allocation3 + $0xc0] sm:$0xff] %v815
  %1094 = vst [vmem:[#allocation3 + $0xc8] sm:$0xff] %v818
  %1095 = vst [vmem:[#allocation3 + $0xd0] sm:$0xff] %v823
  %1096 = vst [vmem:[#allocation3 + $0xd8] sm:$0xff] %v826
  %1097 = vst [vmem:[#allocation3 + $0xe0] sm:$0xff] %v831
  %1098 = vst [vmem:[#allocation3 + $0xe8] sm:$0xff] %v834
  %1099 = vst [vmem:[#allocation3 + $0xf0] sm:$0xff] %v839
  %1100 = vst [vmem:[#allocation3 + $0xf8] sm:$0xff] %v842
  %1101 = vst [vmem:[#allocation3 + $0x100] sm:$0xff] %v847
  %1102 = vst [vmem:[#allocation3 + $0x108] sm:$0xff] %v850
  %1103 = vst [vmem:[#allocation3 + $0x110] sm:$0xff] %v855
  %1104 = vst [vmem:[#allocation3 + $0x118] sm:$0xff] %v858
  %1105 = vst [vmem:[#allocation3 + $0x120] sm:$0xff] %v863
  %1106 = vst [vmem:[#allocation3 + $0x128] sm:$0xff] %v866
  %1107 = vst [vmem:[#allocation3 + $0x130] sm:$0xff] %v871
  %1108 = vst [vmem:[#allocation3 + $0x138] sm:$0xff] %v874
  %1109 = vst [vmem:[#allocation3 + $0x140] sm:$0xff] %v879
  %1110 = vst [vmem:[#allocation3 + $0x148] sm:$0xff] %v882
  %1111 = vst [vmem:[#allocation3 + $0x150] sm:$0xff] %v887
  %1112 = vst [vmem:[#allocation3 + $0x158] sm:$0xff] %v890
  %1113 = vst [vmem:[#allocation3 + $0x160] sm:$0xff] %v895
  %1114 = vst [vmem:[#allocation3 + $0x168] sm:$0xff] %v898
  %1115 = vst [vmem:[#allocation3 + $0x170] sm:$0xff] %v903
  %1116 = vst [vmem:[#allocation3 + $0x178] sm:$0xff] %v906
  %1117 = vst [vmem:[#allocation3 + $0x180] sm:$0xff] %v911
  %1118 = vst [vmem:[#allocation3 + $0x188] sm:$0xff] %v914
  %1119 = vst [vmem:[#allocation3 + $0x190] sm:$0xff] %v919
  %1120 = vst [vmem:[#allocation3 + $0x198] sm:$0xff] %v922
  %1121 = vst [vmem:[#allocation3 + $0x1a0] sm:$0xff] %v927
  %1122 = vst [vmem:[#allocation3 + $0x1a8] sm:$0xff] %v930
  %1123 = vst [vmem:[#allocation3 + $0x1b0] sm:$0xff] %v935
  %1124 = vst [vmem:[#allocation3 + $0x1b8] sm:$0xff] %v938
  %1125 = vst [vmem:[#allocation3 + $0x1c0] sm:$0xff] %v943
  %1126 = vst [vmem:[#allocation3 + $0x1c8] sm:$0xff] %v946
  %1127 = vst [vmem:[#allocation3 + $0x1d0] sm:$0xff] %v951
  %1128 = vst [vmem:[#allocation3 + $0x1d8] sm:$0xff] %v954
  %1129 = vst [vmem:[#allocation3 + $0x1e0] sm:$0xff] %v959
  %1130 = vst [vmem:[#allocation3 + $0x1e8] sm:$0xff] %v962
  %1131 = vst [vmem:[#allocation3 + $0x1f0] sm:$0xff] %v967
  %1132 = vst [vmem:[#allocation3 + $0x1f8] sm:$0xff] %v970
  %1133 = vst [vmem:[#allocation3 + $0x200] sm:$0xff] %v975
  %1134 = vst [vmem:[#allocation3 + $0x208] sm:$0xff] %v978
  %1135 = vst [vmem:[#allocation3 + $0x210] sm:$0xff] %v983
  %1136 = vst [vmem:[#allocation3 + $0x218] sm:$0xff] %v986
  %1137 = vst [vmem:[#allocation3 + $0x220] sm:$0xff] %v991
  %1138 = vst [vmem:[#allocation3 + $0x228] sm:$0xff] %v994
  %1139 = vst [vmem:[#allocation3 + $0x230] sm:$0xff] %v999
  %1140 = vst [vmem:[#allocation3 + $0x238] sm:$0xff] %v1002
  %1141 = vst [vmem:[#allocation3 + $0x240] sm:$0xff] %v1007
  %1142 = vst [vmem:[#allocation3 + $0x248] sm:$0xff] %v1010
  %1143 = vst [vmem:[#allocation3 + $0x250] sm:$0xff] %v1015
  %1144 = vst [vmem:[#allocation3 + $0x258] sm:$0xff] %v1018
  %1145 = vst [vmem:[#allocation3 + $0x260] sm:$0xff] %v1023
  %1146 = vst [vmem:[#allocation3 + $0x268] sm:$0xff] %v1026
  %1147 = vst [vmem:[#allocation3 + $0x270] sm:$0xff] %v1031
  %1148 = vst [vmem:[#allocation3 + $0x278] sm:$0xff] %v1034
  %1149 = vst [vmem:[#allocation3 + $0x280] sm:$0xff] %v1039
  %1150 = vst [vmem:[#allocation3 + $0x288] sm:$0xff] %v1042
  %1151 = vst [vmem:[#allocation3 + $0x290] sm:$0xff] %v1047
  %1152 = vst [vmem:[#allocation3 + $0x298] sm:$0xff] %v1050
  %1153 = vst [vmem:[#allocation3 + $0x2a0] sm:$0xff] %v1055
  %1154 = vst [vmem:[#allocation3 + $0x2a8] sm:$0xff] %v1058
  %1155 = vst [vmem:[#allocation3 + $0x2b0] sm:$0xff] %v1063
  %1156 = vst [vmem:[#allocation3 + $0x2b8] sm:$0xff] %v1066
  %v1157 = vld [vmem:[#allocation3] sm:$0xff]
  %v1158 = vld [vmem:[#allocation3 + $0x8] sm:$0xff]
  %v1159 = vld [vmem:[#allocation3 + $0x10] sm:$0xff]
  %v1160 = vld [vmem:[#allocation3 + $0x18] sm:$0xff]
  %v1161 = vld [vmem:[#allocation3 + $0x20] sm:$0xff]
  %v1162 = vld [vmem:[#allocation3 + $0x28] sm:$0xff]
  %v1163 = vld [vmem:[#allocation3 + $0x30] sm:$0xff]
  %v1164 = vld [vmem:[#allocation3 + $0x38] sm:$0xff]
  %v1165 = vld [vmem:[#allocation3 + $0x40] sm:$0xff]
  %v1166 = vld [vmem:[#allocation3 + $0x48] sm:$0xff]
  %v1167 = vld [vmem:[#allocation3 + $0x50] sm:$0xff]
  %v1168 = vld [vmem:[#allocation3 + $0x58] sm:$0xff]
  %v1169 = vld [vmem:[#allocation3 + $0x60] sm:$0xff]
  %v1170 = vld [vmem:[#allocation3 + $0x68] sm:$0xff]
  %v1171 = vld [vmem:[#allocation3 + $0x70] sm:$0xff]
  %v1172 = vld [vmem:[#allocation3 + $0x78] sm:$0xff]
  %v1173 = vld [vmem:[#allocation3 + $0x80] sm:$0xff]
  %v1174 = vld [vmem:[#allocation3 + $0x88] sm:$0xff]
  %v1175 = vld [vmem:[#allocation3 + $0x90] sm:$0xff]
  %v1176 = vld [vmem:[#allocation3 + $0x98] sm:$0xff]
  %v1177 = vld [vmem:[#allocation3 + $0xa0] sm:$0xff]
  %v1178 = vld [vmem:[#allocation3 + $0xa8] sm:$0xff]
  %v1179 = vld [vmem:[#allocation3 + $0xb0] sm:$0xff]
  %v1180 = vld [vmem:[#allocation3 + $0xb8] sm:$0xff]
  %v1181 = vld [vmem:[#allocation3 + $0xc0] sm:$0xff]
  %v1182 = vld [vmem:[#allocation3 + $0xc8] sm:$0xff]
  %v1183 = vld [vmem:[#allocation3 + $0xd0] sm:$0xff]
  %v1184 = vld [vmem:[#allocation3 + $0xd8] sm:$0xff]
  %v1185 = vld [vmem:[#allocation3 + $0xe0] sm:$0xff]
  %v1186 = vld [vmem:[#allocation3 + $0xe8] sm:$0xff]
  %v1187 = vld [vmem:[#allocation3 + $0xf0] sm:$0xff]
  %v1188 = vld [vmem:[#allocation3 + $0xf8] sm:$0xff]
  %v1189 = vld [vmem:[#allocation3 + $0x100] sm:$0xff]
  %v1190 = vld [vmem:[#allocation3 + $0x108] sm:$0xff]
  %v1191 = vld [vmem:[#allocation3 + $0x110] sm:$0xff]
  %v1192 = vld [vmem:[#allocation3 + $0x118] sm:$0xff]
  %v1193 = vld [vmem:[#allocation3 + $0x120] sm:$0xff]
  %v1194 = vld [vmem:[#allocation3 + $0x128] sm:$0xff]
  %v1195 = vld [vmem:[#allocation3 + $0x130] sm:$0xff]
  %v1196 = vld [vmem:[#allocation3 + $0x138] sm:$0xff]
  %v1197 = vld [vmem:[#allocation3 + $0x140] sm:$0xff]
  %v1198 = vld [vmem:[#allocation3 + $0x148] sm:$0xff]
  %v1199 = vld [vmem:[#allocation3 + $0x150] sm:$0xff]
  %v1200 = vld [vmem:[#allocation3 + $0x158] sm:$0xff]
  %v1201 = vld [vmem:[#allocation3 + $0x160] sm:$0xff]
  %v1202 = vld [vmem:[#allocation3 + $0x168] sm:$0xff]
  %v1203 = vld [vmem:[#allocation3 + $0x170] sm:$0xff]
  %v1204 = vld [vmem:[#allocation3 + $0x178] sm:$0xff]
  %v1205 = vld [vmem:[#allocation3 + $0x180] sm:$0xff]
  %v1206 = vld [vmem:[#allocation3 + $0x188] sm:$0xff]
  %v1207 = vld [vmem:[#allocation3 + $0x190] sm:$0xff]
  %v1208 = vld [vmem:[#allocation3 + $0x198] sm:$0xff]
  %v1209 = vld [vmem:[#allocation3 + $0x1a0] sm:$0xff]
  %v1210 = vld [vmem:[#allocation3 + $0x1a8] sm:$0xff]
  %v1211 = vld [vmem:[#allocation3 + $0x1b0] sm:$0xff]
  %v1212 = vld [vmem:[#allocation3 + $0x1b8] sm:$0xff]
  %v1213 = vld [vmem:[#allocation3 + $0x1c0] sm:$0xff]
  %v1214 = vld [vmem:[#allocation3 + $0x1c8] sm:$0xff]
  %v1215 = vld [vmem:[#allocation3 + $0x1d0] sm:$0xff]
  %v1216 = vld [vmem:[#allocation3 + $0x1d8] sm:$0xff]
  %v1217 = vld [vmem:[#allocation3 + $0x1e0] sm:$0xff]
  %v1218 = vld [vmem:[#allocation3 + $0x1e8] sm:$0xff]
  %v1219 = vld [vmem:[#allocation3 + $0x1f0] sm:$0xff]
  %v1220 = vld [vmem:[#allocation3 + $0x1f8] sm:$0xff]
  %v1221 = vld [vmem:[#allocation3 + $0x200] sm:$0xff]
  %v1222 = vld [vmem:[#allocation3 + $0x208] sm:$0xff]
  %v1223 = vld [vmem:[#allocation3 + $0x210] sm:$0xff]
  %v1224 = vld [vmem:[#allocation3 + $0x218] sm:$0xff]
  %v1225 = vld [vmem:[#allocation3 + $0x220] sm:$0xff]
  %v1226 = vld [vmem:[#allocation3 + $0x228] sm:$0xff]
  %v1227 = vld [vmem:[#allocation3 + $0x230] sm:$0xff]
  %v1228 = vld [vmem:[#allocation3 + $0x238] sm:$0xff]
  %v1229 = vld [vmem:[#allocation3 + $0x240] sm:$0xff]
  %v1230 = vld [vmem:[#allocation3 + $0x248] sm:$0xff]
  %v1231 = vld [vmem:[#allocation3 + $0x250] sm:$0xff]
  %v1232 = vld [vmem:[#allocation3 + $0x258] sm:$0xff]
  %v1233 = vld [vmem:[#allocation3 + $0x260] sm:$0xff]
  %v1234 = vld [vmem:[#allocation3 + $0x268] sm:$0xff]
  %v1235 = vld [vmem:[#allocation3 + $0x270] sm:$0xff]
  %v1236 = vld [vmem:[#allocation3 + $0x278] sm:$0xff]
  %v1237 = vld [vmem:[#allocation3 + $0x280] sm:$0xff]
  %v1238 = vld [vmem:[#allocation3 + $0x288] sm:$0xff]
  %v1239 = vld [vmem:[#allocation3 + $0x290] sm:$0xff]
  %v1240 = vld [vmem:[#allocation3 + $0x298] sm:$0xff]
  %v1241 = vld [vmem:[#allocation3 + $0x2a0] sm:$0xff]
  %v1242 = vld [vmem:[#allocation3 + $0x2a8] sm:$0xff]
  %v1243 = vld [vmem:[#allocation3 + $0x2b0] sm:$0xff]
  %v1244 = vld [vmem:[#allocation3 + $0x2b8] sm:$0xff]
  %v1245 = vld [vmem:[#allocation2] sm:$0xf]
  %v1246 = vld [vmem:[#allocation2 + $0x4] sm:$0xf]
  %v1247 = vld [vmem:[#allocation2 + $0x8] sm:$0xf]
  %v1248 = vld [vmem:[#allocation2 + $0xc] sm:$0xf]
  %v1249 = vld [vmem:[#allocation2 + $0x10] sm:$0xf]
  %v1250 = vld [vmem:[#allocation2 + $0x14] sm:$0xf]
  %v1251 = vld [vmem:[#allocation2 + $0x18] sm:$0xf]
  %v1252 = vld [vmem:[#allocation2 + $0x1c] sm:$0xf]
  %v1253 = vld [vmem:[#allocation2 + $0x20] sm:$0xf]
  %v1254 = vld [vmem:[#allocation2 + $0x24] sm:$0xf]
  %v1255 = vld [vmem:[#allocation2 + $0x28] sm:$0xf]
  %v1256 = vld [vmem:[#allocation2 + $0x2c] sm:$0xf]
  %v1257 = vld [vmem:[#allocation2 + $0x30] sm:$0xf]
  %v1258 = vld [vmem:[#allocation2 + $0x34] sm:$0xf]
  %v1259 = vld [vmem:[#allocation2 + $0x38] sm:$0xf]
  %v1260 = vld [vmem:[#allocation2 + $0x3c] sm:$0xf]
  %v1261 = vld [vmem:[#allocation2 + $0x40] sm:$0xf]
  %v1262 = vld [vmem:[#allocation2 + $0x44] sm:$0xf]
  %v1263 = vld [vmem:[#allocation2 + $0x48] sm:$0xf]
  %v1264 = vld [vmem:[#allocation2 + $0x4c] sm:$0xf]
  %v1265 = vld [vmem:[#allocation2 + $0x50] sm:$0xf]
  %v1266 = vld [vmem:[#allocation2 + $0x54] sm:$0xf]
  %v1267 = vld [vmem:[#allocation2 + $0x58] sm:$0xf]
  %v1268 = vld [vmem:[#allocation2 + $0x5c] sm:$0xf]
  %v1269 = vld [vmem:[#allocation2 + $0x60] sm:$0xf]
  %v1270 = vld [vmem:[#allocation2 + $0x64] sm:$0xf]
  %v1271 = vld [vmem:[#allocation2 + $0x68] sm:$0xf]
  %v1272 = vld [vmem:[#allocation2 + $0x6c] sm:$0xf]
  %v1273 = vld [vmem:[#allocation2 + $0x70] sm:$0xf]
  %v1274 = vld [vmem:[#allocation2 + $0x74] sm:$0xf]
  %v1275 = vld [vmem:[#allocation2 + $0x78] sm:$0xf]
  %v1276 = vld [vmem:[#allocation2 + $0x7c] sm:$0xf]
  %v1277 = vld [vmem:[#allocation2 + $0x80] sm:$0xf]
  %v1278 = vld [vmem:[#allocation2 + $0x84] sm:$0xf]
  %v1279 = vld [vmem:[#allocation2 + $0x88] sm:$0xf]
  %v1280 = vld [vmem:[#allocation2 + $0x8c] sm:$0xf]
  %v1281 = vld [vmem:[#allocation2 + $0x90] sm:$0xf]
  %v1282 = vld [vmem:[#allocation2 + $0x94] sm:$0xf]
  %v1283 = vld [vmem:[#allocation2 + $0x98] sm:$0xf]
  %v1284 = vld [vmem:[#allocation2 + $0x9c] sm:$0xf]
  %v1285 = vld [vmem:[#allocation2 + $0xa0] sm:$0xf]
  %v1286 = vld [vmem:[#allocation2 + $0xa4] sm:$0xf]
  %v1287 = vld [vmem:[#allocation2 + $0xa8] sm:$0xf]
  %v1288 = vld [vmem:[#allocation2 + $0xac] sm:$0xf]
  %v1289 = vld [vmem:[#allocation2 + $0xb0] sm:$0xf]
  %v1290 = vld [vmem:[#allocation2 + $0xb4] sm:$0xf]
  %v1291 = vld [vmem:[#allocation2 + $0xb8] sm:$0xf]
  %v1292 = vld [vmem:[#allocation2 + $0xbc] sm:$0xf]
  %v1293 = vld [vmem:[#allocation2 + $0xc0] sm:$0xf]
  %v1294 = vld [vmem:[#allocation2 + $0xc4] sm:$0xf]
  %v1295 = vld [vmem:[#allocation2 + $0xc8] sm:$0xf]
  %v1296 = vld [vmem:[#allocation2 + $0xcc] sm:$0xf]
  %v1297 = vld [vmem:[#allocation2 + $0xd0] sm:$0xf]
  %v1298 = vld [vmem:[#allocation2 + $0xd4] sm:$0xf]
  %v1299 = vld [vmem:[#allocation2 + $0xd8] sm:$0xf]
  %v1300 = vld [vmem:[#allocation2 + $0xdc] sm:$0xf]
  %v1301 = vld [vmem:[#allocation2 + $0xe0] sm:$0xf]
  %v1302 = vld [vmem:[#allocation2 + $0xe4] sm:$0xf]
  %v1303 = vld [vmem:[#allocation2 + $0xe8] sm:$0xf]
  %v1304 = vld [vmem:[#allocation2 + $0xec] sm:$0xf]
  %v1305 = vld [vmem:[#allocation2 + $0xf0] sm:$0xf]
  %v1306 = vld [vmem:[#allocation2 + $0xf4] sm:$0xf]
  %v1307 = vld [vmem:[#allocation2 + $0xf8] sm:$0xf]
  %v1308 = vld [vmem:[#allocation2 + $0xfc] sm:$0xf]
  %v1309 = vld [vmem:[#allocation2 + $0x100] sm:$0xf]
  %v1310 = vld [vmem:[#allocation2 + $0x104] sm:$0xf]
  %v1311 = vld [vmem:[#allocation2 + $0x108] sm:$0xf]
  %v1312 = vld [vmem:[#allocation2 + $0x10c] sm:$0xf]
  %v1313 = vld [vmem:[#allocation2 + $0x110] sm:$0xf]
  %v1314 = vld [vmem:[#allocation2 + $0x114] sm:$0xf]
  %v1315 = vld [vmem:[#allocation2 + $0x118] sm:$0xf]
  %v1316 = vld [vmem:[#allocation2 + $0x11c] sm:$0xf]
  %v1317 = vld [vmem:[#allocation2 + $0x120] sm:$0xf]
  %v1318 = vld [vmem:[#allocation2 + $0x124] sm:$0xf]
  %v1319 = vld [vmem:[#allocation2 + $0x128] sm:$0xf]
  %v1320 = vld [vmem:[#allocation2 + $0x12c] sm:$0xf]
  %v1321 = vld [vmem:[#allocation2 + $0x130] sm:$0xf]
  %v1322 = vld [vmem:[#allocation2 + $0x134] sm:$0xf]
  %v1323 = vld [vmem:[#allocation2 + $0x138] sm:$0xf]
  %v1324 = vld [vmem:[#allocation2 + $0x13c] sm:$0xf]
  %v1325 = vld [vmem:[#allocation2 + $0x140] sm:$0xf]
  %v1326 = vld [vmem:[#allocation2 + $0x144] sm:$0xf]
  %v1327 = vld [vmem:[#allocation2 + $0x148] sm:$0xf]
  %v1328 = vld [vmem:[#allocation2 + $0x14c] sm:$0xf]
  %v1329 = vld [vmem:[#allocation2 + $0x150] sm:$0xf]
  %v1330 = vld [vmem:[#allocation2 + $0x154] sm:$0xf]
  %v1331 = vld [vmem:[#allocation2 + $0x158] sm:$0xf]
  %v1332 = vld [vmem:[#allocation2 + $0x15c] sm:$0xf]
  %v1333 = vld [vmem:[#allocation2 + $0x160] sm:$0x1]
  %s1334 = scalar_lea.vmem %s2, 4
  %v1335 = vld [vmem:[%s1334] sm:$0xf]
  %v1425 = vunpack.c.l.b16 %v1245
  %v1426 = vunpack.c.l.b16 %v1246
  %v1427 = vunpack.c.l.b16 %v1247
  %v1428 = vunpack.c.l.b16 %v1248
  %v1429 = vunpack.c.l.b16 %v1249
  %v1430 = vunpack.c.l.b16 %v1250
  %v1431 = vunpack.c.l.b16 %v1251
  %v1432 = vunpack.c.l.b16 %v1252
  %v1433 = vunpack.c.l.b16 %v1253
  %v1434 = vunpack.c.l.b16 %v1254
  %v1435 = vunpack.c.l.b16 %v1255
  %v1436 = vunpack.c.l.b16 %v1256
  %v1437 = vunpack.c.l.b16 %v1257
  %v1438 = vunpack.c.l.b16 %v1258
  %v1439 = vunpack.c.l.b16 %v1259
  %v1440 = vunpack.c.l.b16 %v1260
  %v1441 = vunpack.c.l.b16 %v1261
  %v1442 = vunpack.c.l.b16 %v1262
  %v1443 = vunpack.c.l.b16 %v1263
  %v1444 = vunpack.c.l.b16 %v1264
  %v1445 = vunpack.c.l.b16 %v1265
  %v1446 = vunpack.c.l.b16 %v1266
  %v1447 = vunpack.c.l.b16 %v1267
  %v1448 = vunpack.c.l.b16 %v1268
  %v1449 = vunpack.c.l.b16 %v1269
  %v1450 = vunpack.c.l.b16 %v1270
  %v1451 = vunpack.c.l.b16 %v1271
  %v1452 = vunpack.c.l.b16 %v1272
  %v1453 = vunpack.c.l.b16 %v1273
  %v1454 = vunpack.c.l.b16 %v1274
  %v1455 = vunpack.c.l.b16 %v1275
  %v1456 = vunpack.c.l.b16 %v1276
  %v1457 = vunpack.c.l.b16 %v1277
  %v1458 = vunpack.c.l.b16 %v1278
  %v1459 = vunpack.c.l.b16 %v1279
  %v1460 = vunpack.c.l.b16 %v1280
  %v1461 = vunpack.c.l.b16 %v1281
  %v1462 = vunpack.c.l.b16 %v1282
  %v1463 = vunpack.c.l.b16 %v1283
  %v1464 = vunpack.c.l.b16 %v1284
  %v1465 = vunpack.c.l.b16 %v1285
  %v1466 = vunpack.c.l.b16 %v1286
  %v1467 = vunpack.c.l.b16 %v1287
  %v1468 = vunpack.c.l.b16 %v1288
  %v1469 = vunpack.c.l.b16 %v1289
  %v1470 = vunpack.c.l.b16 %v1290
  %v1471 = vunpack.c.l.b16 %v1291
  %v1472 = vunpack.c.l.b16 %v1292
  %v1473 = vunpack.c.l.b16 %v1293
  %v1474 = vunpack.c.l.b16 %v1294
  %v1475 = vunpack.c.l.b16 %v1295
  %v1476 = vunpack.c.l.b16 %v1296
  %v1477 = vunpack.c.l.b16 %v1297
  %v1478 = vunpack.c.l.b16 %v1298
  %v1479 = vunpack.c.l.b16 %v1299
  %v1480 = vunpack.c.l.b16 %v1300
  %v1481 = vunpack.c.l.b16 %v1301
  %v1482 = vunpack.c.l.b16 %v1302
  %v1483 = vunpack.c.l.b16 %v1303
  %v1484 = vunpack.c.l.b16 %v1304
  %v1485 = vunpack.c.l.b16 %v1305
  %v1486 = vunpack.c.l.b16 %v1306
  %v1487 = vunpack.c.l.b16 %v1307
  %v1488 = vunpack.c.l.b16 %v1308
  %v1489 = vunpack.c.l.b16 %v1309
  %v1490 = vunpack.c.l.b16 %v1310
  %v1491 = vunpack.c.l.b16 %v1311
  %v1492 = vunpack.c.l.b16 %v1312
  %v1493 = vunpack.c.l.b16 %v1313
  %v1494 = vunpack.c.l.b16 %v1314
  %v1495 = vunpack.c.l.b16 %v1315
  %v1496 = vunpack.c.l.b16 %v1316
  %v1497 = vunpack.c.l.b16 %v1317
  %v1498 = vunpack.c.l.b16 %v1318
  %v1499 = vunpack.c.l.b16 %v1319
  %v1500 = vunpack.c.l.b16 %v1320
  %v1501 = vunpack.c.l.b16 %v1321
  %v1502 = vunpack.c.l.b16 %v1322
  %v1503 = vunpack.c.l.b16 %v1323
  %v1504 = vunpack.c.l.b16 %v1324
  %v1505 = vunpack.c.l.b16 %v1325
  %v1506 = vunpack.c.l.b16 %v1326
  %v1507 = vunpack.c.l.b16 %v1327
  %v1508 = vunpack.c.l.b16 %v1328
  %v1509 = vunpack.c.l.b16 %v1329
  %v1510 = vunpack.c.l.b16 %v1330
  %v1511 = vunpack.c.l.b16 %v1331
  %v1512 = vunpack.c.l.b16 %v1332
  %v1513 = vunpack.c.l.b16 %v1333
  %v1514 = vpack.c.b16 %v1426, %v1425
  %v1515 = vpack.c.b16 %v1428, %v1427
  %v1516 = vpack.c.b16 %v1430, %v1429
  %v1517 = vpack.c.b16 %v1432, %v1431
  %v1518 = vpack.c.b16 %v1434, %v1433
  %v1519 = vpack.c.b16 %v1436, %v1435
  %v1520 = vpack.c.b16 %v1438, %v1437
  %v1521 = vpack.c.b16 %v1440, %v1439
  %v1522 = vpack.c.b16 %v1442, %v1441
  %v1523 = vpack.c.b16 %v1444, %v1443
  %v1524 = vpack.c.b16 %v1446, %v1445
  %v1525 = vpack.c.b16 %v1448, %v1447
  %v1526 = vpack.c.b16 %v1450, %v1449
  %v1527 = vpack.c.b16 %v1452, %v1451
  %v1528 = vpack.c.b16 %v1454, %v1453
  %v1529 = vpack.c.b16 %v1456, %v1455
  %v1530 = vpack.c.b16 %v1458, %v1457
  %v1531 = vpack.c.b16 %v1460, %v1459
  %v1532 = vpack.c.b16 %v1462, %v1461
  %v1533 = vpack.c.b16 %v1464, %v1463
  %v1534 = vpack.c.b16 %v1466, %v1465
  %v1535 = vpack.c.b16 %v1468, %v1467
  %v1536 = vpack.c.b16 %v1470, %v1469
  %v1537 = vpack.c.b16 %v1472, %v1471
  %v1538 = vpack.c.b16 %v1474, %v1473
  %v1539 = vpack.c.b16 %v1476, %v1475
  %v1540 = vpack.c.b16 %v1478, %v1477
  %v1541 = vpack.c.b16 %v1480, %v1479
  %v1542 = vpack.c.b16 %v1482, %v1481
  %v1543 = vpack.c.b16 %v1484, %v1483
  %v1544 = vpack.c.b16 %v1486, %v1485
  %v1545 = vpack.c.b16 %v1488, %v1487
  %v1546 = vpack.c.b16 %v1490, %v1489
  %v1547 = vpack.c.b16 %v1492, %v1491
  %v1548 = vpack.c.b16 %v1494, %v1493
  %v1549 = vpack.c.b16 %v1496, %v1495
  %v1550 = vpack.c.b16 %v1498, %v1497
  %v1551 = vpack.c.b16 %v1500, %v1499
  %v1552 = vpack.c.b16 %v1502, %v1501
  %v1553 = vpack.c.b16 %v1504, %v1503
  %v1554 = vpack.c.b16 %v1506, %v1505
  %v1555 = vpack.c.b16 %v1508, %v1507
  %v1556 = vpack.c.b16 %v1510, %v1509
  %v1557 = vpack.c.b16 %v1512, %v1511
  %v1558 = vpack.c.b16 %v1513, %v1513
  %vm1559 = vsmask.f32 7424
  %v1561 = vshrl.u32 %v1514, 16
  %v1563 = vshll.u32 %v1514, 16
  %v1565 = vrot.slane %v1563, 1
  %v1566 = vor.u32 %v1561, %v1565
  %v1568 = vshll.u32 %v1515, 16
  %v1570 = vrot.slane %v1568, 1
  %v1571 = vsel %vm1559, %v1566, %v1570
  %v1572 = vshrl.u32 %v1515, 16
  %v1574 = vor.u32 %v1572, %v1570
  %v1576 = vshll.u32 %v1516, 16
  %v1578 = vrot.slane %v1576, 1
  %v1579 = vsel %vm1559, %v1574, %v1578
  %v1580 = vshrl.u32 %v1516, 16
  %v1582 = vor.u32 %v1580, %v1578
  %v1584 = vshll.u32 %v1517, 16
  %v1586 = vrot.slane %v1584, 1
  %v1587 = vsel %vm1559, %v1582, %v1586
  %v1588 = vshrl.u32 %v1517, 16
  %v1590 = vor.u32 %v1588, %v1586
  %v1592 = vshll.u32 %v1518, 16
  %v1594 = vrot.slane %v1592, 1
  %v1595 = vsel %vm1559, %v1590, %v1594
  %v1596 = vshrl.u32 %v1518, 16
  %v1598 = vor.u32 %v1596, %v1594
  %v1600 = vshll.u32 %v1519, 16
  %v1602 = vrot.slane %v1600, 1
  %v1603 = vsel %vm1559, %v1598, %v1602
  %v1604 = vshrl.u32 %v1519, 16
  %v1606 = vor.u32 %v1604, %v1602
  %v1608 = vshll.u32 %v1520, 16
  %v1610 = vrot.slane %v1608, 1
  %v1611 = vsel %vm1559, %v1606, %v1610
  %v1612 = vshrl.u32 %v1520, 16
  %v1614 = vor.u32 %v1612, %v1610
  %v1616 = vshll.u32 %v1521, 16
  %v1618 = vrot.slane %v1616, 1
  %v1619 = vsel %vm1559, %v1614, %v1618
  %v1620 = vshrl.u32 %v1521, 16
  %v1622 = vor.u32 %v1620, %v1618
  %v1624 = vshll.u32 %v1522, 16
  %v1626 = vrot.slane %v1624, 1
  %v1627 = vsel %vm1559, %v1622, %v1626
  %v1628 = vshrl.u32 %v1522, 16
  %v1630 = vor.u32 %v1628, %v1626
  %v1632 = vshll.u32 %v1523, 16
  %v1634 = vrot.slane %v1632, 1
  %v1635 = vsel %vm1559, %v1630, %v1634
  %v1636 = vshrl.u32 %v1523, 16
  %v1638 = vor.u32 %v1636, %v1634
  %v1640 = vshll.u32 %v1524, 16
  %v1642 = vrot.slane %v1640, 1
  %v1643 = vsel %vm1559, %v1638, %v1642
  %v1644 = vshrl.u32 %v1524, 16
  %v1646 = vor.u32 %v1644, %v1642
  %v1648 = vshll.u32 %v1525, 16
  %v1650 = vrot.slane %v1648, 1
  %v1651 = vsel %vm1559, %v1646, %v1650
  %v1652 = vshrl.u32 %v1525, 16
  %v1654 = vor.u32 %v1652, %v1650
  %v1656 = vshll.u32 %v1526, 16
  %v1658 = vrot.slane %v1656, 1
  %v1659 = vsel %vm1559, %v1654, %v1658
  %v1660 = vshrl.u32 %v1526, 16
  %v1662 = vor.u32 %v1660, %v1658
  %v1664 = vshll.u32 %v1527, 16
  %v1666 = vrot.slane %v1664, 1
  %v1667 = vsel %vm1559, %v1662, %v1666
  %v1668 = vshrl.u32 %v1527, 16
  %v1670 = vor.u32 %v1668, %v1666
  %v1672 = vshll.u32 %v1528, 16
  %v1674 = vrot.slane %v1672, 1
  %v1675 = vsel %vm1559, %v1670, %v1674
  %v1676 = vshrl.u32 %v1528, 16
  %v1678 = vor.u32 %v1676, %v1674
  %v1680 = vshll.u32 %v1529, 16
  %v1682 = vrot.slane %v1680, 1
  %v1683 = vsel %vm1559, %v1678, %v1682
  %v1684 = vshrl.u32 %v1529, 16
  %v1686 = vor.u32 %v1684, %v1682
  %v1688 = vshll.u32 %v1530, 16
  %v1690 = vrot.slane %v1688, 1
  %v1691 = vsel %vm1559, %v1686, %v1690
  %v1692 = vshrl.u32 %v1530, 16
  %v1694 = vor.u32 %v1692, %v1690
  %v1696 = vshll.u32 %v1531, 16
  %v1698 = vrot.slane %v1696, 1
  %v1699 = vsel %vm1559, %v1694, %v1698
  %v1700 = vshrl.u32 %v1531, 16
  %v1702 = vor.u32 %v1700, %v1698
  %v1704 = vshll.u32 %v1532, 16
  %v1706 = vrot.slane %v1704, 1
  %v1707 = vsel %vm1559, %v1702, %v1706
  %v1708 = vshrl.u32 %v1532, 16
  %v1710 = vor.u32 %v1708, %v1706
  %v1712 = vshll.u32 %v1533, 16
  %v1714 = vrot.slane %v1712, 1
  %v1715 = vsel %vm1559, %v1710, %v1714
  %v1716 = vshrl.u32 %v1533, 16
  %v1718 = vor.u32 %v1716, %v1714
  %v1720 = vshll.u32 %v1534, 16
  %v1722 = vrot.slane %v1720, 1
  %v1723 = vsel %vm1559, %v1718, %v1722
  %v1724 = vshrl.u32 %v1534, 16
  %v1726 = vor.u32 %v1724, %v1722
  %v1728 = vshll.u32 %v1535, 16
  %v1730 = vrot.slane %v1728, 1
  %v1731 = vsel %vm1559, %v1726, %v1730
  %v1732 = vshrl.u32 %v1535, 16
  %v1734 = vor.u32 %v1732, %v1730
  %v1736 = vshll.u32 %v1536, 16
  %v1738 = vrot.slane %v1736, 1
  %v1739 = vsel %vm1559, %v1734, %v1738
  %v1740 = vshrl.u32 %v1536, 16
  %v1742 = vor.u32 %v1740, %v1738
  %v1744 = vshll.u32 %v1537, 16
  %v1746 = vrot.slane %v1744, 1
  %v1747 = vsel %vm1559, %v1742, %v1746
  %v1748 = vshrl.u32 %v1537, 16
  %v1750 = vor.u32 %v1748, %v1746
  %v1752 = vshll.u32 %v1538, 16
  %v1754 = vrot.slane %v1752, 1
  %v1755 = vsel %vm1559, %v1750, %v1754
  %v1756 = vshrl.u32 %v1538, 16
  %v1758 = vor.u32 %v1756, %v1754
  %v1760 = vshll.u32 %v1539, 16
  %v1762 = vrot.slane %v1760, 1
  %v1763 = vsel %vm1559, %v1758, %v1762
  %v1764 = vshrl.u32 %v1539, 16
  %v1766 = vor.u32 %v1764, %v1762
  %v1768 = vshll.u32 %v1540, 16
  %v1770 = vrot.slane %v1768, 1
  %v1771 = vsel %vm1559, %v1766, %v1770
  %v1772 = vshrl.u32 %v1540, 16
  %v1774 = vor.u32 %v1772, %v1770
  %v1776 = vshll.u32 %v1541, 16
  %v1778 = vrot.slane %v1776, 1
  %v1779 = vsel %vm1559, %v1774, %v1778
  %v1780 = vshrl.u32 %v1541, 16
  %v1782 = vor.u32 %v1780, %v1778
  %v1784 = vshll.u32 %v1542, 16
  %v1786 = vrot.slane %v1784, 1
  %v1787 = vsel %vm1559, %v1782, %v1786
  %v1788 = vshrl.u32 %v1542, 16
  %v1790 = vor.u32 %v1788, %v1786
  %v1792 = vshll.u32 %v1543, 16
  %v1794 = vrot.slane %v1792, 1
  %v1795 = vsel %vm1559, %v1790, %v1794
  %v1796 = vshrl.u32 %v1543, 16
  %v1798 = vor.u32 %v1796, %v1794
  %v1800 = vshll.u32 %v1544, 16
  %v1802 = vrot.slane %v1800, 1
  %v1803 = vsel %vm1559, %v1798, %v1802
  %v1804 = vshrl.u32 %v1544, 16
  %v1806 = vor.u32 %v1804, %v1802
  %v1808 = vshll.u32 %v1545, 16
  %v1810 = vrot.slane %v1808, 1
  %v1811 = vsel %vm1559, %v1806, %v1810
  %v1812 = vshrl.u32 %v1545, 16
  %v1814 = vor.u32 %v1812, %v1810
  %v1816 = vshll.u32 %v1546, 16
  %v1818 = vrot.slane %v1816, 1
  %v1819 = vsel %vm1559, %v1814, %v1818
  %v1820 = vshrl.u32 %v1546, 16
  %v1822 = vor.u32 %v1820, %v1818
  %v1824 = vshll.u32 %v1547, 16
  %v1826 = vrot.slane %v1824, 1
  %v1827 = vsel %vm1559, %v1822, %v1826
  %v1828 = vshrl.u32 %v1547, 16
  %v1830 = vor.u32 %v1828, %v1826
  %v1832 = vshll.u32 %v1548, 16
  %v1834 = vrot.slane %v1832, 1
  %v1835 = vsel %vm1559, %v1830, %v1834
  %v1836 = vshrl.u32 %v1548, 16
  %v1838 = vor.u32 %v1836, %v1834
  %v1840 = vshll.u32 %v1549, 16
  %v1842 = vrot.slane %v1840, 1
  %v1843 = vsel %vm1559, %v1838, %v1842
  %v1844 = vshrl.u32 %v1549, 16
  %v1846 = vor.u32 %v1844, %v1842
  %v1848 = vshll.u32 %v1550, 16
  %v1850 = vrot.slane %v1848, 1
  %v1851 = vsel %vm1559, %v1846, %v1850
  %v1852 = vshrl.u32 %v1550, 16
  %v1854 = vor.u32 %v1852, %v1850
  %v1856 = vshll.u32 %v1551, 16
  %v1858 = vrot.slane %v1856, 1
  %v1859 = vsel %vm1559, %v1854, %v1858
  %v1860 = vshrl.u32 %v1551, 16
  %v1862 = vor.u32 %v1860, %v1858
  %v1864 = vshll.u32 %v1552, 16
  %v1866 = vrot.slane %v1864, 1
  %v1867 = vsel %vm1559, %v1862, %v1866
  %v1868 = vshrl.u32 %v1552, 16
  %v1870 = vor.u32 %v1868, %v1866
  %v1872 = vshll.u32 %v1553, 16
  %v1874 = vrot.slane %v1872, 1
  %v1875 = vsel %vm1559, %v1870, %v1874
  %v1876 = vshrl.u32 %v1553, 16
  %v1878 = vor.u32 %v1876, %v1874
  %v1880 = vshll.u32 %v1554, 16
  %v1882 = vrot.slane %v1880, 1
  %v1883 = vsel %vm1559, %v1878, %v1882
  %v1884 = vshrl.u32 %v1554, 16
  %v1886 = vor.u32 %v1884, %v1882
  %v1888 = vshll.u32 %v1555, 16
  %v1890 = vrot.slane %v1888, 1
  %v1891 = vsel %vm1559, %v1886, %v1890
  %v1892 = vshrl.u32 %v1555, 16
  %v1894 = vor.u32 %v1892, %v1890
  %v1896 = vshll.u32 %v1556, 16
  %v1898 = vrot.slane %v1896, 1
  %v1899 = vsel %vm1559, %v1894, %v1898
  %v1900 = vshrl.u32 %v1556, 16
  %v1902 = vor.u32 %v1900, %v1898
  %v1904 = vshll.u32 %v1557, 16
  %v1906 = vrot.slane %v1904, 1
  %v1907 = vsel %vm1559, %v1902, %v1906
  %v1908 = vshrl.u32 %v1557, 16
  %v1910 = vor.u32 %v1908, %v1906
  %v1912 = vshll.u32 %v1558, 16
  %v1914 = vrot.slane %v1912, 1
  %v1915 = vsel %vm1559, %v1910, %v1914
  %v1917 = vsel %vm547, %v1571, 0
  %v1920 = vsel %vm547, %v1579, 0
  %v1923 = vsel %vm547, %v1587, 0
  %v1926 = vsel %vm547, %v1595, 0
  %v1929 = vsel %vm547, %v1603, 0
  %v1932 = vsel %vm547, %v1611, 0
  %v1935 = vsel %vm547, %v1619, 0
  %v1938 = vsel %vm547, %v1627, 0
  %v1941 = vsel %vm547, %v1635, 0
  %v1944 = vsel %vm547, %v1643, 0
  %v1947 = vsel %vm547, %v1651, 0
  %v1950 = vsel %vm547, %v1659, 0
  %v1953 = vsel %vm547, %v1667, 0
  %v1956 = vsel %vm547, %v1675, 0
  %v1959 = vsel %vm547, %v1683, 0
  %v1962 = vsel %vm547, %v1691, 0
  %v1965 = vsel %vm547, %v1699, 0
  %v1968 = vsel %vm547, %v1707, 0
  %v1971 = vsel %vm547, %v1715, 0
  %v1974 = vsel %vm547, %v1723, 0
  %v1977 = vsel %vm547, %v1731, 0
  %v1980 = vsel %vm547, %v1739, 0
  %v1983 = vsel %vm547, %v1747, 0
  %v1986 = vsel %vm547, %v1755, 0
  %v1989 = vsel %vm547, %v1763, 0
  %v1992 = vsel %vm547, %v1771, 0
  %v1995 = vsel %vm547, %v1779, 0
  %v1998 = vsel %vm547, %v1787, 0
  %v2001 = vsel %vm547, %v1795, 0
  %v2004 = vsel %vm547, %v1803, 0
  %v2007 = vsel %vm547, %v1811, 0
  %v2010 = vsel %vm547, %v1819, 0
  %v2013 = vsel %vm547, %v1827, 0
  %v2016 = vsel %vm547, %v1835, 0
  %v2019 = vsel %vm547, %v1843, 0
  %v2022 = vsel %vm547, %v1851, 0
  %v2025 = vsel %vm547, %v1859, 0
  %v2028 = vsel %vm547, %v1867, 0
  %v2031 = vsel %vm547, %v1875, 0
  %v2034 = vsel %vm547, %v1883, 0
  %v2037 = vsel %vm547, %v1891, 0
  %v2040 = vsel %vm547, %v1899, 0
  %v2043 = vsel %vm547, %v1907, 0
  %v2046 = vsel %vm547, %v1915, 0
  %v2049 = vsel %vm680, %v1335, 0
  %2051 = vmatprep.subr.bf16.mxu0 0
  %2052 = vmatpush1.bf16.msra.mxu0 0
  %2053 = vmatprep.subr.bf16.mxu0 0
  %2054 = vmatpush1.bf16.msra.mxu0 0
  %2055 = vmatprep.subr.bf16.mxu0 0
  %2056 = vmatpush1.bf16.msra.mxu0 0
  %2057 = vmatprep.subr.bf16.mxu0 0
  %2058 = vmatpush1.bf16.msra.mxu0 0
  %2059 = vmatprep.subr.bf16.mxu0 0
  %2060 = vmatpush1.bf16.msra.mxu0 0
  %2061 = vmatprep.subr.bf16.mxu0 0
  %2062 = vmatpush1.bf16.msra.mxu0 0
  %2063 = vmatprep.subr.bf16.mxu0 0
  %2064 = vmatpush1.bf16.msra.mxu0 0
  %2065 = vmatprep.subr.bf16.mxu0 0
  %2066 = vmatpush1.bf16.msra.mxu0 %v2049
  %2067 = vmatprep.subr.bf16.mxu0 0
  %2068 = vmatpush2.bf16.msra.mxu0 0
  %2069 = vmatprep.subr.bf16.mxu0 0
  %2070 = vmatpush2.bf16.msra.mxu0 0
  %2071 = vmatprep.subr.bf16.mxu0 0
  %2072 = vmatpush2.bf16.msra.mxu0 0
  %2073 = vmatprep.subr.bf16.mxu0 0
  %2074 = vmatpush2.bf16.msra.mxu0 0
  %2075 = vmatprep.subr.bf16.mxu0 0
  %2076 = vmatpush2.bf16.msra.mxu0 0
  %2077 = vmatprep.subr.bf16.mxu0 0
  %2078 = vmatpush2.bf16.msra.mxu0 0
  %2079 = vmatprep.subr.bf16.mxu0 0
  %2080 = vmatpush2.bf16.msra.mxu0 0
  %2081 = vmatprep.subr.bf16.mxu0 0
  %2082 = vmatpush2.bf16.msra.mxu0 0
  %2083 = vmatprep.mubr.bf16.mxu0 0
  %2084 = vmatmul.mubr.bf16.gmra.mxu0 %v1917
  %v2085 = vpop.f32.mrf.mxu0
  %v2086 = vadd.f32 0.0, %v2085
  %v2087 = vpop.f32.mrf.mxu0
  %v2088 = vpop.f32.mrf.mxu0
  %v2089 = vadd.f32 0.0, %v2088
  %v2090 = vpop.f32.mrf.mxu0
  %2091 = vmatprep.mubr.bf16.mxu0 0
  %2092 = vmatmul.mubr.bf16.gmra.mxu0 %v1920
  %v2093 = vpop.f32.mrf.mxu0
  %v2094 = vadd.f32 0.0, %v2093
  %v2095 = vpop.f32.mrf.mxu0
  %v2096 = vpop.f32.mrf.mxu0
  %v2097 = vadd.f32 0.0, %v2096
  %v2098 = vpop.f32.mrf.mxu0
  %2099 = vmatprep.mubr.bf16.mxu0 0
  %2100 = vmatmul.mubr.bf16.gmra.mxu0 %v1923
  %v2101 = vpop.f32.mrf.mxu0
  %v2102 = vadd.f32 0.0, %v2101
  %v2103 = vpop.f32.mrf.mxu0
  %v2104 = vpop.f32.mrf.mxu0
  %v2105 = vadd.f32 0.0, %v2104
  %v2106 = vpop.f32.mrf.mxu0
  %2107 = vmatprep.mubr.bf16.mxu0 0
  %2108 = vmatmul.mubr.bf16.gmra.mxu0 %v1926
  %v2109 = vpop.f32.mrf.mxu0
  %v2110 = vadd.f32 0.0, %v2109
  %v2111 = vpop.f32.mrf.mxu0
  %v2112 = vpop.f32.mrf.mxu0
  %v2113 = vadd.f32 0.0, %v2112
  %v2114 = vpop.f32.mrf.mxu0
  %2115 = vmatprep.mubr.bf16.mxu0 0
  %2116 = vmatmul.mubr.bf16.gmra.mxu0 %v1929
  %v2117 = vpop.f32.mrf.mxu0
  %v2118 = vadd.f32 0.0, %v2117
  %v2119 = vpop.f32.mrf.mxu0
  %v2120 = vpop.f32.mrf.mxu0
  %v2121 = vadd.f32 0.0, %v2120
  %v2122 = vpop.f32.mrf.mxu0
  %2123 = vmatprep.mubr.bf16.mxu0 0
  %2124 = vmatmul.mubr.bf16.gmra.mxu0 %v1932
  %v2125 = vpop.f32.mrf.mxu0
  %v2126 = vadd.f32 0.0, %v2125
  %v2127 = vpop.f32.mrf.mxu0
  %v2128 = vpop.f32.mrf.mxu0
  %v2129 = vadd.f32 0.0, %v2128
  %v2130 = vpop.f32.mrf.mxu0
  %2131 = vmatprep.mubr.bf16.mxu0 0
  %2132 = vmatmul.mubr.bf16.gmra.mxu0 %v1935
  %v2133 = vpop.f32.mrf.mxu0
  %v2134 = vadd.f32 0.0, %v2133
  %v2135 = vpop.f32.mrf.mxu0
  %v2136 = vpop.f32.mrf.mxu0
  %v2137 = vadd.f32 0.0, %v2136
  %v2138 = vpop.f32.mrf.mxu0
  %2139 = vmatprep.mubr.bf16.mxu0 0
  %2140 = vmatmul.mubr.bf16.gmra.mxu0 %v1938
  %v2141 = vpop.f32.mrf.mxu0
  %v2142 = vadd.f32 0.0, %v2141
  %v2143 = vpop.f32.mrf.mxu0
  %v2144 = vpop.f32.mrf.mxu0
  %v2145 = vadd.f32 0.0, %v2144
  %v2146 = vpop.f32.mrf.mxu0
  %2147 = vmatprep.mubr.bf16.mxu0 0
  %2148 = vmatmul.mubr.bf16.gmra.mxu0 %v1941
  %v2149 = vpop.f32.mrf.mxu0
  %v2150 = vadd.f32 0.0, %v2149
  %v2151 = vpop.f32.mrf.mxu0
  %v2152 = vpop.f32.mrf.mxu0
  %v2153 = vadd.f32 0.0, %v2152
  %v2154 = vpop.f32.mrf.mxu0
  %2155 = vmatprep.mubr.bf16.mxu0 0
  %2156 = vmatmul.mubr.bf16.gmra.mxu0 %v1944
  %v2157 = vpop.f32.mrf.mxu0
  %v2158 = vadd.f32 0.0, %v2157
  %v2159 = vpop.f32.mrf.mxu0
  %v2160 = vpop.f32.mrf.mxu0
  %v2161 = vadd.f32 0.0, %v2160
  %v2162 = vpop.f32.mrf.mxu0
  %2163 = vmatprep.mubr.bf16.mxu0 0
  %2164 = vmatmul.mubr.bf16.gmra.mxu0 %v1947
  %v2165 = vpop.f32.mrf.mxu0
  %v2166 = vadd.f32 0.0, %v2165
  %v2167 = vpop.f32.mrf.mxu0
  %v2168 = vpop.f32.mrf.mxu0
  %v2169 = vadd.f32 0.0, %v2168
  %v2170 = vpop.f32.mrf.mxu0
  %2171 = vmatprep.mubr.bf16.mxu0 0
  %2172 = vmatmul.mubr.bf16.gmra.mxu0 %v1950
  %v2173 = vpop.f32.mrf.mxu0
  %v2174 = vadd.f32 0.0, %v2173
  %v2175 = vpop.f32.mrf.mxu0
  %v2176 = vpop.f32.mrf.mxu0
  %v2177 = vadd.f32 0.0, %v2176
  %v2178 = vpop.f32.mrf.mxu0
  %2179 = vmatprep.mubr.bf16.mxu0 0
  %2180 = vmatmul.mubr.bf16.gmra.mxu0 %v1953
  %v2181 = vpop.f32.mrf.mxu0
  %v2182 = vadd.f32 0.0, %v2181
  %v2183 = vpop.f32.mrf.mxu0
  %v2184 = vpop.f32.mrf.mxu0
  %v2185 = vadd.f32 0.0, %v2184
  %v2186 = vpop.f32.mrf.mxu0
  %2187 = vmatprep.mubr.bf16.mxu0 0
  %2188 = vmatmul.mubr.bf16.gmra.mxu0 %v1956
  %v2189 = vpop.f32.mrf.mxu0
  %v2190 = vadd.f32 0.0, %v2189
  %v2191 = vpop.f32.mrf.mxu0
  %v2192 = vpop.f32.mrf.mxu0
  %v2193 = vadd.f32 0.0, %v2192
  %v2194 = vpop.f32.mrf.mxu0
  %2195 = vmatprep.mubr.bf16.mxu0 0
  %2196 = vmatmul.mubr.bf16.gmra.mxu0 %v1959
  %v2197 = vpop.f32.mrf.mxu0
  %v2198 = vadd.f32 0.0, %v2197
  %v2199 = vpop.f32.mrf.mxu0
  %v2200 = vpop.f32.mrf.mxu0
  %v2201 = vadd.f32 0.0, %v2200
  %v2202 = vpop.f32.mrf.mxu0
  %2203 = vmatprep.mubr.bf16.mxu0 0
  %2204 = vmatmul.mubr.bf16.gmra.mxu0 %v1962
  %v2205 = vpop.f32.mrf.mxu0
  %v2206 = vadd.f32 0.0, %v2205
  %v2207 = vpop.f32.mrf.mxu0
  %v2208 = vpop.f32.mrf.mxu0
  %v2209 = vadd.f32 0.0, %v2208
  %v2210 = vpop.f32.mrf.mxu0
  %2211 = vmatprep.mubr.bf16.mxu0 0
  %2212 = vmatmul.mubr.bf16.gmra.mxu0 %v1965
  %v2213 = vpop.f32.mrf.mxu0
  %v2214 = vadd.f32 0.0, %v2213
  %v2215 = vpop.f32.mrf.mxu0
  %v2216 = vpop.f32.mrf.mxu0
  %v2217 = vadd.f32 0.0, %v2216
  %v2218 = vpop.f32.mrf.mxu0
  %2219 = vmatprep.mubr.bf16.mxu0 0
  %2220 = vmatmul.mubr.bf16.gmra.mxu0 %v1968
  %v2221 = vpop.f32.mrf.mxu0
  %v2222 = vadd.f32 0.0, %v2221
  %v2223 = vpop.f32.mrf.mxu0
  %v2224 = vpop.f32.mrf.mxu0
  %v2225 = vadd.f32 0.0, %v2224
  %v2226 = vpop.f32.mrf.mxu0
  %2227 = vmatprep.mubr.bf16.mxu0 0
  %2228 = vmatmul.mubr.bf16.gmra.mxu0 %v1971
  %v2229 = vpop.f32.mrf.mxu0
  %v2230 = vadd.f32 0.0, %v2229
  %v2231 = vpop.f32.mrf.mxu0
  %v2232 = vpop.f32.mrf.mxu0
  %v2233 = vadd.f32 0.0, %v2232
  %v2234 = vpop.f32.mrf.mxu0
  %2235 = vmatprep.mubr.bf16.mxu0 0
  %2236 = vmatmul.mubr.bf16.gmra.mxu0 %v1974
  %v2237 = vpop.f32.mrf.mxu0
  %v2238 = vadd.f32 0.0, %v2237
  %v2239 = vpop.f32.mrf.mxu0
  %v2240 = vpop.f32.mrf.mxu0
  %v2241 = vadd.f32 0.0, %v2240
  %v2242 = vpop.f32.mrf.mxu0
  %2243 = vmatprep.mubr.bf16.mxu0 0
  %2244 = vmatmul.mubr.bf16.gmra.mxu0 %v1977
  %v2245 = vpop.f32.mrf.mxu0
  %v2246 = vadd.f32 0.0, %v2245
  %v2247 = vpop.f32.mrf.mxu0
  %v2248 = vpop.f32.mrf.mxu0
  %v2249 = vadd.f32 0.0, %v2248
  %v2250 = vpop.f32.mrf.mxu0
  %2251 = vmatprep.mubr.bf16.mxu0 0
  %2252 = vmatmul.mubr.bf16.gmra.mxu0 %v1980
  %v2253 = vpop.f32.mrf.mxu0
  %v2254 = vadd.f32 0.0, %v2253
  %v2255 = vpop.f32.mrf.mxu0
  %v2256 = vpop.f32.mrf.mxu0
  %v2257 = vadd.f32 0.0, %v2256
  %v2258 = vpop.f32.mrf.mxu0
  %2259 = vmatprep.mubr.bf16.mxu0 0
  %2260 = vmatmul.mubr.bf16.gmra.mxu0 %v1983
  %v2261 = vpop.f32.mrf.mxu0
  %v2262 = vadd.f32 0.0, %v2261
  %v2263 = vpop.f32.mrf.mxu0
  %v2264 = vpop.f32.mrf.mxu0
  %v2265 = vadd.f32 0.0, %v2264
  %v2266 = vpop.f32.mrf.mxu0
  %2267 = vmatprep.mubr.bf16.mxu0 0
  %2268 = vmatmul.mubr.bf16.gmra.mxu0 %v1986
  %v2269 = vpop.f32.mrf.mxu0
  %v2270 = vadd.f32 0.0, %v2269
  %v2271 = vpop.f32.mrf.mxu0
  %v2272 = vpop.f32.mrf.mxu0
  %v2273 = vadd.f32 0.0, %v2272
  %v2274 = vpop.f32.mrf.mxu0
  %2275 = vmatprep.mubr.bf16.mxu0 0
  %2276 = vmatmul.mubr.bf16.gmra.mxu0 %v1989
  %v2277 = vpop.f32.mrf.mxu0
  %v2278 = vadd.f32 0.0, %v2277
  %v2279 = vpop.f32.mrf.mxu0
  %v2280 = vpop.f32.mrf.mxu0
  %v2281 = vadd.f32 0.0, %v2280
  %v2282 = vpop.f32.mrf.mxu0
  %2283 = vmatprep.mubr.bf16.mxu0 0
  %2284 = vmatmul.mubr.bf16.gmra.mxu0 %v1992
  %v2285 = vpop.f32.mrf.mxu0
  %v2286 = vadd.f32 0.0, %v2285
  %v2287 = vpop.f32.mrf.mxu0
  %v2288 = vpop.f32.mrf.mxu0
  %v2289 = vadd.f32 0.0, %v2288
  %v2290 = vpop.f32.mrf.mxu0
  %2291 = vmatprep.mubr.bf16.mxu0 0
  %2292 = vmatmul.mubr.bf16.gmra.mxu0 %v1995
  %v2293 = vpop.f32.mrf.mxu0
  %v2294 = vadd.f32 0.0, %v2293
  %v2295 = vpop.f32.mrf.mxu0
  %v2296 = vpop.f32.mrf.mxu0
  %v2297 = vadd.f32 0.0, %v2296
  %v2298 = vpop.f32.mrf.mxu0
  %2299 = vmatprep.mubr.bf16.mxu0 0
  %2300 = vmatmul.mubr.bf16.gmra.mxu0 %v1998
  %v2301 = vpop.f32.mrf.mxu0
  %v2302 = vadd.f32 0.0, %v2301
  %v2303 = vpop.f32.mrf.mxu0
  %v2304 = vpop.f32.mrf.mxu0
  %v2305 = vadd.f32 0.0, %v2304
  %v2306 = vpop.f32.mrf.mxu0
  %2307 = vmatprep.mubr.bf16.mxu0 0
  %2308 = vmatmul.mubr.bf16.gmra.mxu0 %v2001
  %v2309 = vpop.f32.mrf.mxu0
  %v2310 = vadd.f32 0.0, %v2309
  %v2311 = vpop.f32.mrf.mxu0
  %v2312 = vpop.f32.mrf.mxu0
  %v2313 = vadd.f32 0.0, %v2312
  %v2314 = vpop.f32.mrf.mxu0
  %2315 = vmatprep.mubr.bf16.mxu0 0
  %2316 = vmatmul.mubr.bf16.gmra.mxu0 %v2004
  %v2317 = vpop.f32.mrf.mxu0
  %v2318 = vadd.f32 0.0, %v2317
  %v2319 = vpop.f32.mrf.mxu0
  %v2320 = vpop.f32.mrf.mxu0
  %v2321 = vadd.f32 0.0, %v2320
  %v2322 = vpop.f32.mrf.mxu0
  %2323 = vmatprep.mubr.bf16.mxu0 0
  %2324 = vmatmul.mubr.bf16.gmra.mxu0 %v2007
  %v2325 = vpop.f32.mrf.mxu0
  %v2326 = vadd.f32 0.0, %v2325
  %v2327 = vpop.f32.mrf.mxu0
  %v2328 = vpop.f32.mrf.mxu0
  %v2329 = vadd.f32 0.0, %v2328
  %v2330 = vpop.f32.mrf.mxu0
  %2331 = vmatprep.mubr.bf16.mxu0 0
  %2332 = vmatmul.mubr.bf16.gmra.mxu0 %v2010
  %v2333 = vpop.f32.mrf.mxu0
  %v2334 = vadd.f32 0.0, %v2333
  %v2335 = vpop.f32.mrf.mxu0
  %v2336 = vpop.f32.mrf.mxu0
  %v2337 = vadd.f32 0.0, %v2336
  %v2338 = vpop.f32.mrf.mxu0
  %2339 = vmatprep.mubr.bf16.mxu0 0
  %2340 = vmatmul.mubr.bf16.gmra.mxu0 %v2013
  %v2341 = vpop.f32.mrf.mxu0
  %v2342 = vadd.f32 0.0, %v2341
  %v2343 = vpop.f32.mrf.mxu0
  %v2344 = vpop.f32.mrf.mxu0
  %v2345 = vadd.f32 0.0, %v2344
  %v2346 = vpop.f32.mrf.mxu0
  %2347 = vmatprep.mubr.bf16.mxu0 0
  %2348 = vmatmul.mubr.bf16.gmra.mxu0 %v2016
  %v2349 = vpop.f32.mrf.mxu0
  %v2350 = vadd.f32 0.0, %v2349
  %v2351 = vpop.f32.mrf.mxu0
  %v2352 = vpop.f32.mrf.mxu0
  %v2353 = vadd.f32 0.0, %v2352
  %v2354 = vpop.f32.mrf.mxu0
  %2355 = vmatprep.mubr.bf16.mxu0 0
  %2356 = vmatmul.mubr.bf16.gmra.mxu0 %v2019
  %v2357 = vpop.f32.mrf.mxu0
  %v2358 = vadd.f32 0.0, %v2357
  %v2359 = vpop.f32.mrf.mxu0
  %v2360 = vpop.f32.mrf.mxu0
  %v2361 = vadd.f32 0.0, %v2360
  %v2362 = vpop.f32.mrf.mxu0
  %2363 = vmatprep.mubr.bf16.mxu0 0
  %2364 = vmatmul.mubr.bf16.gmra.mxu0 %v2022
  %v2365 = vpop.f32.mrf.mxu0
  %v2366 = vadd.f32 0.0, %v2365
  %v2367 = vpop.f32.mrf.mxu0
  %v2368 = vpop.f32.mrf.mxu0
  %v2369 = vadd.f32 0.0, %v2368
  %v2370 = vpop.f32.mrf.mxu0
  %2371 = vmatprep.mubr.bf16.mxu0 0
  %2372 = vmatmul.mubr.bf16.gmra.mxu0 %v2025
  %v2373 = vpop.f32.mrf.mxu0
  %v2374 = vadd.f32 0.0, %v2373
  %v2375 = vpop.f32.mrf.mxu0
  %v2376 = vpop.f32.mrf.mxu0
  %v2377 = vadd.f32 0.0, %v2376
  %v2378 = vpop.f32.mrf.mxu0
  %2379 = vmatprep.mubr.bf16.mxu0 0
  %2380 = vmatmul.mubr.bf16.gmra.mxu0 %v2028
  %v2381 = vpop.f32.mrf.mxu0
  %v2382 = vadd.f32 0.0, %v2381
  %v2383 = vpop.f32.mrf.mxu0
  %v2384 = vpop.f32.mrf.mxu0
  %v2385 = vadd.f32 0.0, %v2384
  %v2386 = vpop.f32.mrf.mxu0
  %2387 = vmatprep.mubr.bf16.mxu0 0
  %2388 = vmatmul.mubr.bf16.gmra.mxu0 %v2031
  %v2389 = vpop.f32.mrf.mxu0
  %v2390 = vadd.f32 0.0, %v2389
  %v2391 = vpop.f32.mrf.mxu0
  %v2392 = vpop.f32.mrf.mxu0
  %v2393 = vadd.f32 0.0, %v2392
  %v2394 = vpop.f32.mrf.mxu0
  %2395 = vmatprep.mubr.bf16.mxu0 0
  %2396 = vmatmul.mubr.bf16.gmra.mxu0 %v2034
  %v2397 = vpop.f32.mrf.mxu0
  %v2398 = vadd.f32 0.0, %v2397
  %v2399 = vpop.f32.mrf.mxu0
  %v2400 = vpop.f32.mrf.mxu0
  %v2401 = vadd.f32 0.0, %v2400
  %v2402 = vpop.f32.mrf.mxu0
  %2403 = vmatprep.mubr.bf16.mxu0 0
  %2404 = vmatmul.mubr.bf16.gmra.mxu0 %v2037
  %v2405 = vpop.f32.mrf.mxu0
  %v2406 = vadd.f32 0.0, %v2405
  %v2407 = vpop.f32.mrf.mxu0
  %v2408 = vpop.f32.mrf.mxu0
  %v2409 = vadd.f32 0.0, %v2408
  %v2410 = vpop.f32.mrf.mxu0
  %2411 = vmatprep.mubr.bf16.mxu0 0
  %2412 = vmatmul.mubr.bf16.gmra.mxu0 %v2040
  %v2413 = vpop.f32.mrf.mxu0
  %v2414 = vadd.f32 0.0, %v2413
  %v2415 = vpop.f32.mrf.mxu0
  %v2416 = vpop.f32.mrf.mxu0
  %v2417 = vadd.f32 0.0, %v2416
  %v2418 = vpop.f32.mrf.mxu0
  %2419 = vmatprep.mubr.bf16.mxu0 0
  %2420 = vmatmul.mubr.bf16.gmra.mxu0 %v2043
  %v2421 = vpop.f32.mrf.mxu0
  %v2422 = vadd.f32 0.0, %v2421
  %v2423 = vpop.f32.mrf.mxu0
  %v2424 = vpop.f32.mrf.mxu0
  %v2425 = vadd.f32 0.0, %v2424
  %v2426 = vpop.f32.mrf.mxu0
  %2427 = vmatprep.mubr.bf16.mxu0 0
  %2428 = vmatmul.mubr.bf16.gmra.mxu0 %v2046
  %v2429 = vpop.f32.mrf.mxu0
  %v2430 = vadd.f32 0.0, %v2429
  %v2431 = vpop.f32.mrf.mxu0
  %v2432 = vpop.f32.mrf.mxu0
  %v2433 = vadd.f32 0.0, %v2432
  %v2434 = vpop.f32.mrf.mxu0
  %2435 = vdwg.mxu0
  %v2436 = vadd.f32 %v1157, %v2086
  %v2437 = vadd.f32 %v1158, %v2089
  %v2438 = vadd.f32 %v1159, %v2094
  %v2439 = vadd.f32 %v1160, %v2097
  %v2440 = vadd.f32 %v1161, %v2102
  %v2441 = vadd.f32 %v1162, %v2105
  %v2442 = vadd.f32 %v1163, %v2110
  %v2443 = vadd.f32 %v1164, %v2113
  %v2444 = vadd.f32 %v1165, %v2118
  %v2445 = vadd.f32 %v1166, %v2121
  %v2446 = vadd.f32 %v1167, %v2126
  %v2447 = vadd.f32 %v1168, %v2129
  %v2448 = vadd.f32 %v1169, %v2134
  %v2449 = vadd.f32 %v1170, %v2137
  %v2450 = vadd.f32 %v1171, %v2142
  %v2451 = vadd.f32 %v1172, %v2145
  %v2452 = vadd.f32 %v1173, %v2150
  %v2453 = vadd.f32 %v1174, %v2153
  %v2454 = vadd.f32 %v1175, %v2158
  %v2455 = vadd.f32 %v1176, %v2161
  %v2456 = vadd.f32 %v1177, %v2166
  %v2457 = vadd.f32 %v1178, %v2169
  %v2458 = vadd.f32 %v1179, %v2174
  %v2459 = vadd.f32 %v1180, %v2177
  %v2460 = vadd.f32 %v1181, %v2182
  %v2461 = vadd.f32 %v1182, %v2185
  %v2462 = vadd.f32 %v1183, %v2190
  %v2463 = vadd.f32 %v1184, %v2193
  %v2464 = vadd.f32 %v1185, %v2198
  %v2465 = vadd.f32 %v1186, %v2201
  %v2466 = vadd.f32 %v1187, %v2206
  %v2467 = vadd.f32 %v1188, %v2209
  %v2468 = vadd.f32 %v1189, %v2214
  %v2469 = vadd.f32 %v1190, %v2217
  %v2470 = vadd.f32 %v1191, %v2222
  %v2471 = vadd.f32 %v1192, %v2225
  %v2472 = vadd.f32 %v1193, %v2230
  %v2473 = vadd.f32 %v1194, %v2233
  %v2474 = vadd.f32 %v1195, %v2238
  %v2475 = vadd.f32 %v1196, %v2241
  %v2476 = vadd.f32 %v1197, %v2246
  %v2477 = vadd.f32 %v1198, %v2249
  %v2478 = vadd.f32 %v1199, %v2254
  %v2479 = vadd.f32 %v1200, %v2257
  %v2480 = vadd.f32 %v1201, %v2262
  %v2481 = vadd.f32 %v1202, %v2265
  %v2482 = vadd.f32 %v1203, %v2270
  %v2483 = vadd.f32 %v1204, %v2273
  %v2484 = vadd.f32 %v1205, %v2278
  %v2485 = vadd.f32 %v1206, %v2281
  %v2486 = vadd.f32 %v1207, %v2286
  %v2487 = vadd.f32 %v1208, %v2289
  %v2488 = vadd.f32 %v1209, %v2294
  %v2489 = vadd.f32 %v1210, %v2297
  %v2490 = vadd.f32 %v1211, %v2302
  %v2491 = vadd.f32 %v1212, %v2305
  %v2492 = vadd.f32 %v1213, %v2310
  %v2493 = vadd.f32 %v1214, %v2313
  %v2494 = vadd.f32 %v1215, %v2318
  %v2495 = vadd.f32 %v1216, %v2321
  %v2496 = vadd.f32 %v1217, %v2326
  %v2497 = vadd.f32 %v1218, %v2329
  %v2498 = vadd.f32 %v1219, %v2334
  %v2499 = vadd.f32 %v1220, %v2337
  %v2500 = vadd.f32 %v1221, %v2342
  %v2501 = vadd.f32 %v1222, %v2345
  %v2502 = vadd.f32 %v1223, %v2350
  %v2503 = vadd.f32 %v1224, %v2353
  %v2504 = vadd.f32 %v1225, %v2358
  %v2505 = vadd.f32 %v1226, %v2361
  %v2506 = vadd.f32 %v1227, %v2366
  %v2507 = vadd.f32 %v1228, %v2369
  %v2508 = vadd.f32 %v1229, %v2374
  %v2509 = vadd.f32 %v1230, %v2377
  %v2510 = vadd.f32 %v1231, %v2382
  %v2511 = vadd.f32 %v1232, %v2385
  %v2512 = vadd.f32 %v1233, %v2390
  %v2513 = vadd.f32 %v1234, %v2393
  %v2514 = vadd.f32 %v1235, %v2398
  %v2515 = vadd.f32 %v1236, %v2401
  %v2516 = vadd.f32 %v1237, %v2406
  %v2517 = vadd.f32 %v1238, %v2409
  %v2518 = vadd.f32 %v1239, %v2414
  %v2519 = vadd.f32 %v1240, %v2417
  %v2520 = vadd.f32 %v1241, %v2422
  %v2521 = vadd.f32 %v1242, %v2425
  %v2522 = vadd.f32 %v1243, %v2430
  %v2523 = vadd.f32 %v1244, %v2433
  %2524 = vst [vmem:[#allocation3] sm:$0xff] %v2436
  %2525 = vst [vmem:[#allocation3 + $0x8] sm:$0xff] %v2437
  %2526 = vst [vmem:[#allocation3 + $0x10] sm:$0xff] %v2438
  %2527 = vst [vmem:[#allocation3 + $0x18] sm:$0xff] %v2439
  %2528 = vst [vmem:[#allocation3 + $0x20] sm:$0xff] %v2440
  %2529 = vst [vmem:[#allocation3 + $0x28] sm:$0xff] %v2441
  %2530 = vst [vmem:[#allocation3 + $0x30] sm:$0xff] %v2442
  %2531 = vst [vmem:[#allocation3 + $0x38] sm:$0xff] %v2443
  %2532 = vst [vmem:[#allocation3 + $0x40] sm:$0xff] %v2444
  %2533 = vst [vmem:[#allocation3 + $0x48] sm:$0xff] %v2445
  %2534 = vst [vmem:[#allocation3 + $0x50] sm:$0xff] %v2446
  %2535 = vst [vmem:[#allocation3 + $0x58] sm:$0xff] %v2447
  %2536 = vst [vmem:[#allocation3 + $0x60] sm:$0xff] %v2448
  %2537 = vst [vmem:[#allocation3 + $0x68] sm:$0xff] %v2449
  %2538 = vst [vmem:[#allocation3 + $0x70] sm:$0xff] %v2450
  %2539 = vst [vmem:[#allocation3 + $0x78] sm:$0xff] %v2451
  %2540 = vst [vmem:[#allocation3 + $0x80] sm:$0xff] %v2452
  %2541 = vst [vmem:[#allocation3 + $0x88] sm:$0xff] %v2453
  %2542 = vst [vmem:[#allocation3 + $0x90] sm:$0xff] %v2454
  %2543 = vst [vmem:[#allocation3 + $0x98] sm:$0xff] %v2455
  %2544 = vst [vmem:[#allocation3 + $0xa0] sm:$0xff] %v2456
  %2545 = vst [vmem:[#allocation3 + $0xa8] sm:$0xff] %v2457
  %2546 = vst [vmem:[#allocation3 + $0xb0] sm:$0xff] %v2458
  %2547 = vst [vmem:[#allocation3 + $0xb8] sm:$0xff] %v2459
  %2548 = vst [vmem:[#allocation3 + $0xc0] sm:$0xff] %v2460
  %2549 = vst [vmem:[#allocation3 + $0xc8] sm:$0xff] %v2461
  %2550 = vst [vmem:[#allocation3 + $0xd0] sm:$0xff] %v2462
  %2551 = vst [vmem:[#allocation3 + $0xd8] sm:$0xff] %v2463
  %2552 = vst [vmem:[#allocation3 + $0xe0] sm:$0xff] %v2464
  %2553 = vst [vmem:[#allocation3 + $0xe8] sm:$0xff] %v2465
  %2554 = vst [vmem:[#allocation3 + $0xf0] sm:$0xff] %v2466
  %2555 = vst [vmem:[#allocation3 + $0xf8] sm:$0xff] %v2467
  %2556 = vst [vmem:[#allocation3 + $0x100] sm:$0xff] %v2468
  %2557 = vst [vmem:[#allocation3 + $0x108] sm:$0xff] %v2469
  %2558 = vst [vmem:[#allocation3 + $0x110] sm:$0xff] %v2470
  %2559 = vst [vmem:[#allocation3 + $0x118] sm:$0xff] %v2471
  %2560 = vst [vmem:[#allocation3 + $0x120] sm:$0xff] %v2472
  %2561 = vst [vmem:[#allocation3 + $0x128] sm:$0xff] %v2473
  %2562 = vst [vmem:[#allocation3 + $0x130] sm:$0xff] %v2474
  %2563 = vst [vmem:[#allocation3 + $0x138] sm:$0xff] %v2475
  %2564 = vst [vmem:[#allocation3 + $0x140] sm:$0xff] %v2476
  %2565 = vst [vmem:[#allocation3 + $0x148] sm:$0xff] %v2477
  %2566 = vst [vmem:[#allocation3 + $0x150] sm:$0xff] %v2478
  %2567 = vst [vmem:[#allocation3 + $0x158] sm:$0xff] %v2479
  %2568 = vst [vmem:[#allocation3 + $0x160] sm:$0xff] %v2480
  %2569 = vst [vmem:[#allocation3 + $0x168] sm:$0xff] %v2481
  %2570 = vst [vmem:[#allocation3 + $0x170] sm:$0xff] %v2482
  %2571 = vst [vmem:[#allocation3 + $0x178] sm:$0xff] %v2483
  %2572 = vst [vmem:[#allocation3 + $0x180] sm:$0xff] %v2484
  %2573 = vst [vmem:[#allocation3 + $0x188] sm:$0xff] %v2485
  %2574 = vst [vmem:[#allocation3 + $0x190] sm:$0xff] %v2486
  %2575 = vst [vmem:[#allocation3 + $0x198] sm:$0xff] %v2487
  %2576 = vst [vmem:[#allocation3 + $0x1a0] sm:$0xff] %v2488
  %2577 = vst [vmem:[#allocation3 + $0x1a8] sm:$0xff] %v2489
  %2578 = vst [vmem:[#allocation3 + $0x1b0] sm:$0xff] %v2490
  %2579 = vst [vmem:[#allocation3 + $0x1b8] sm:$0xff] %v2491
  %2580 = vst [vmem:[#allocation3 + $0x1c0] sm:$0xff] %v2492
  %2581 = vst [vmem:[#allocation3 + $0x1c8] sm:$0xff] %v2493
  %2582 = vst [vmem:[#allocation3 + $0x1d0] sm:$0xff] %v2494
  %2583 = vst [vmem:[#allocation3 + $0x1d8] sm:$0xff] %v2495
  %2584 = vst [vmem:[#allocation3 + $0x1e0] sm:$0xff] %v2496
  %2585 = vst [vmem:[#allocation3 + $0x1e8] sm:$0xff] %v2497
  %2586 = vst [vmem:[#allocation3 + $0x1f0] sm:$0xff] %v2498
  %2587 = vst [vmem:[#allocation3 + $0x1f8] sm:$0xff] %v2499
  %2588 = vst [vmem:[#allocation3 + $0x200] sm:$0xff] %v2500
  %2589 = vst [vmem:[#allocation3 + $0x208] sm:$0xff] %v2501
  %2590 = vst [vmem:[#allocation3 + $0x210] sm:$0xff] %v2502
  %2591 = vst [vmem:[#allocation3 + $0x218] sm:$0xff] %v2503
  %2592 = vst [vmem:[#allocation3 + $0x220] sm:$0xff] %v2504
  %2593 = vst [vmem:[#allocation3 + $0x228] sm:$0xff] %v2505
  %2594 = vst [vmem:[#allocation3 + $0x230] sm:$0xff] %v2506
  %2595 = vst [vmem:[#allocation3 + $0x238] sm:$0xff] %v2507
  %2596 = vst [vmem:[#allocation3 + $0x240] sm:$0xff] %v2508
  %2597 = vst [vmem:[#allocation3 + $0x248] sm:$0xff] %v2509
  %2598 = vst [vmem:[#allocation3 + $0x250] sm:$0xff] %v2510
  %2599 = vst [vmem:[#allocation3 + $0x258] sm:$0xff] %v2511
  %2600 = vst [vmem:[#allocation3 + $0x260] sm:$0xff] %v2512
  %2601 = vst [vmem:[#allocation3 + $0x268] sm:$0xff] %v2513
  %2602 = vst [vmem:[#allocation3 + $0x270] sm:$0xff] %v2514
  %2603 = vst [vmem:[#allocation3 + $0x278] sm:$0xff] %v2515
  %2604 = vst [vmem:[#allocation3 + $0x280] sm:$0xff] %v2516
  %2605 = vst [vmem:[#allocation3 + $0x288] sm:$0xff] %v2517
  %2606 = vst [vmem:[#allocation3 + $0x290] sm:$0xff] %v2518
  %2607 = vst [vmem:[#allocation3 + $0x298] sm:$0xff] %v2519
  %2608 = vst [vmem:[#allocation3 + $0x2a0] sm:$0xff] %v2520
  %2609 = vst [vmem:[#allocation3 + $0x2a8] sm:$0xff] %v2521
  %2610 = vst [vmem:[#allocation3 + $0x2b0] sm:$0xff] %v2522
  %2611 = vst [vmem:[#allocation3 + $0x2b8] sm:$0xff] %v2523
  %v2612 = vld [vmem:[#allocation3] sm:$0xff]
  %v2613 = vld [vmem:[#allocation3 + $0x8] sm:$0xff]
  %v2614 = vld [vmem:[#allocation3 + $0x10] sm:$0xff]
  %v2615 = vld [vmem:[#allocation3 + $0x18] sm:$0xff]
  %v2616 = vld [vmem:[#allocation3 + $0x20] sm:$0xff]
  %v2617 = vld [vmem:[#allocation3 + $0x28] sm:$0xff]
  %v2618 = vld [vmem:[#allocation3 + $0x30] sm:$0xff]
  %v2619 = vld [vmem:[#allocation3 + $0x38] sm:$0xff]
  %v2620 = vld [vmem:[#allocation3 + $0x40] sm:$0xff]
  %v2621 = vld [vmem:[#allocation3 + $0x48] sm:$0xff]
  %v2622 = vld [vmem:[#allocation3 + $0x50] sm:$0xff]
  %v2623 = vld [vmem:[#allocation3 + $0x58] sm:$0xff]
  %v2624 = vld [vmem:[#allocation3 + $0x60] sm:$0xff]
  %v2625 = vld [vmem:[#allocation3 + $0x68] sm:$0xff]
  %v2626 = vld [vmem:[#allocation3 + $0x70] sm:$0xff]
  %v2627 = vld [vmem:[#allocation3 + $0x78] sm:$0xff]
  %v2628 = vld [vmem:[#allocation3 + $0x80] sm:$0xff]
  %v2629 = vld [vmem:[#allocation3 + $0x88] sm:$0xff]
  %v2630 = vld [vmem:[#allocation3 + $0x90] sm:$0xff]
  %v2631 = vld [vmem:[#allocation3 + $0x98] sm:$0xff]
  %v2632 = vld [vmem:[#allocation3 + $0xa0] sm:$0xff]
  %v2633 = vld [vmem:[#allocation3 + $0xa8] sm:$0xff]
  %v2634 = vld [vmem:[#allocation3 + $0xb0] sm:$0xff]
  %v2635 = vld [vmem:[#allocation3 + $0xb8] sm:$0xff]
  %v2636 = vld [vmem:[#allocation3 + $0xc0] sm:$0xff]
  %v2637 = vld [vmem:[#allocation3 + $0xc8] sm:$0xff]
  %v2638 = vld [vmem:[#allocation3 + $0xd0] sm:$0xff]
  %v2639 = vld [vmem:[#allocation3 + $0xd8] sm:$0xff]
  %v2640 = vld [vmem:[#allocation3 + $0xe0] sm:$0xff]
  %v2641 = vld [vmem:[#allocation3 + $0xe8] sm:$0xff]
  %v2642 = vld [vmem:[#allocation3 + $0xf0] sm:$0xff]
  %v2643 = vld [vmem:[#allocation3 + $0xf8] sm:$0xff]
  %v2644 = vld [vmem:[#allocation3 + $0x100] sm:$0xff]
  %v2645 = vld [vmem:[#allocation3 + $0x108] sm:$0xff]
  %v2646 = vld [vmem:[#allocation3 + $0x110] sm:$0xff]
  %v2647 = vld [vmem:[#allocation3 + $0x118] sm:$0xff]
  %v2648 = vld [vmem:[#allocation3 + $0x120] sm:$0xff]
  %v2649 = vld [vmem:[#allocation3 + $0x128] sm:$0xff]
  %v2650 = vld [vmem:[#allocation3 + $0x130] sm:$0xff]
  %v2651 = vld [vmem:[#allocation3 + $0x138] sm:$0xff]
  %v2652 = vld [vmem:[#allocation3 + $0x140] sm:$0xff]
  %v2653 = vld [vmem:[#allocation3 + $0x148] sm:$0xff]
  %v2654 = vld [vmem:[#allocation3 + $0x150] sm:$0xff]
  %v2655 = vld [vmem:[#allocation3 + $0x158] sm:$0xff]
  %v2656 = vld [vmem:[#allocation3 + $0x160] sm:$0xff]
  %v2657 = vld [vmem:[#allocation3 + $0x168] sm:$0xff]
  %v2658 = vld [vmem:[#allocation3 + $0x170] sm:$0xff]
  %v2659 = vld [vmem:[#allocation3 + $0x178] sm:$0xff]
  %v2660 = vld [vmem:[#allocation3 + $0x180] sm:$0xff]
  %v2661 = vld [vmem:[#allocation3 + $0x188] sm:$0xff]
  %v2662 = vld [vmem:[#allocation3 + $0x190] sm:$0xff]
  %v2663 = vld [vmem:[#allocation3 + $0x198] sm:$0xff]
  %v2664 = vld [vmem:[#allocation3 + $0x1a0] sm:$0xff]
  %v2665 = vld [vmem:[#allocation3 + $0x1a8] sm:$0xff]
  %v2666 = vld [vmem:[#allocation3 + $0x1b0] sm:$0xff]
  %v2667 = vld [vmem:[#allocation3 + $0x1b8] sm:$0xff]
  %v2668 = vld [vmem:[#allocation3 + $0x1c0] sm:$0xff]
  %v2669 = vld [vmem:[#allocation3 + $0x1c8] sm:$0xff]
  %v2670 = vld [vmem:[#allocation3 + $0x1d0] sm:$0xff]
  %v2671 = vld [vmem:[#allocation3 + $0x1d8] sm:$0xff]
  %v2672 = vld [vmem:[#allocation3 + $0x1e0] sm:$0xff]
  %v2673 = vld [vmem:[#allocation3 + $0x1e8] sm:$0xff]
  %v2674 = vld [vmem:[#allocation3 + $0x1f0] sm:$0xff]
  %v2675 = vld [vmem:[#allocation3 + $0x1f8] sm:$0xff]
  %v2676 = vld [vmem:[#allocation3 + $0x200] sm:$0xff]
  %v2677 = vld [vmem:[#allocation3 + $0x208] sm:$0xff]
  %v2678 = vld [vmem:[#allocation3 + $0x210] sm:$0xff]
  %v2679 = vld [vmem:[#allocation3 + $0x218] sm:$0xff]
  %v2680 = vld [vmem:[#allocation3 + $0x220] sm:$0xff]
  %v2681 = vld [vmem:[#allocation3 + $0x228] sm:$0xff]
  %v2682 = vld [vmem:[#allocation3 + $0x230] sm:$0xff]
  %v2683 = vld [vmem:[#allocation3 + $0x238] sm:$0xff]
  %v2684 = vld [vmem:[#allocation3 + $0x240] sm:$0xff]
  %v2685 = vld [vmem:[#allocation3 + $0x248] sm:$0xff]
  %v2686 = vld [vmem:[#allocation3 + $0x250] sm:$0xff]
  %v2687 = vld [vmem:[#allocation3 + $0x258] sm:$0xff]
  %v2688 = vld [vmem:[#allocation3 + $0x260] sm:$0xff]
  %v2689 = vld [vmem:[#allocation3 + $0x268] sm:$0xff]
  %v2690 = vld [vmem:[#allocation3 + $0x270] sm:$0xff]
  %v2691 = vld [vmem:[#allocation3 + $0x278] sm:$0xff]
  %v2692 = vld [vmem:[#allocation3 + $0x280] sm:$0xff]
  %v2693 = vld [vmem:[#allocation3 + $0x288] sm:$0xff]
  %v2694 = vld [vmem:[#allocation3 + $0x290] sm:$0xff]
  %v2695 = vld [vmem:[#allocation3 + $0x298] sm:$0xff]
  %v2696 = vld [vmem:[#allocation3 + $0x2a0] sm:$0xff]
  %v2697 = vld [vmem:[#allocation3 + $0x2a8] sm:$0xff]
  %v2698 = vld [vmem:[#allocation3 + $0x2b0] sm:$0xff]
  %v2699 = vld [vmem:[#allocation3 + $0x2b8] sm:$0xff]
  %v2700 = vld [vmem:[#allocation2] sm:$0xe]
  %v2701 = vld [vmem:[#allocation2 + $0x4] sm:$0xf]
  %v2702 = vld [vmem:[#allocation2 + $0x8] sm:$0xf]
  %v2703 = vld [vmem:[#allocation2 + $0xc] sm:$0xf]
  %v2704 = vld [vmem:[#allocation2 + $0x10] sm:$0xf]
  %v2705 = vld [vmem:[#allocation2 + $0x14] sm:$0xf]
  %v2706 = vld [vmem:[#allocation2 + $0x18] sm:$0xf]
  %v2707 = vld [vmem:[#allocation2 + $0x1c] sm:$0xf]
  %v2708 = vld [vmem:[#allocation2 + $0x20] sm:$0xf]
  %v2709 = vld [vmem:[#allocation2 + $0x24] sm:$0xf]
  %v2710 = vld [vmem:[#allocation2 + $0x28] sm:$0xf]
  %v2711 = vld [vmem:[#allocation2 + $0x2c] sm:$0xf]
  %v2712 = vld [vmem:[#allocation2 + $0x30] sm:$0xf]
  %v2713 = vld [vmem:[#allocation2 + $0x34] sm:$0xf]
  %v2714 = vld [vmem:[#allocation2 + $0x38] sm:$0xf]
  %v2715 = vld [vmem:[#allocation2 + $0x3c] sm:$0xf]
  %v2716 = vld [vmem:[#allocation2 + $0x40] sm:$0xf]
  %v2717 = vld [vmem:[#allocation2 + $0x44] sm:$0xf]
  %v2718 = vld [vmem:[#allocation2 + $0x48] sm:$0xf]
  %v2719 = vld [vmem:[#allocation2 + $0x4c] sm:$0xf]
  %v2720 = vld [vmem:[#allocation2 + $0x50] sm:$0xf]
  %v2721 = vld [vmem:[#allocation2 + $0x54] sm:$0xf]
  %v2722 = vld [vmem:[#allocation2 + $0x58] sm:$0xf]
  %v2723 = vld [vmem:[#allocation2 + $0x5c] sm:$0xf]
  %v2724 = vld [vmem:[#allocation2 + $0x60] sm:$0xf]
  %v2725 = vld [vmem:[#allocation2 + $0x64] sm:$0xf]
  %v2726 = vld [vmem:[#allocation2 + $0x68] sm:$0xf]
  %v2727 = vld [vmem:[#allocation2 + $0x6c] sm:$0xf]
  %v2728 = vld [vmem:[#allocation2 + $0x70] sm:$0xf]
  %v2729 = vld [vmem:[#allocation2 + $0x74] sm:$0xf]
  %v2730 = vld [vmem:[#allocation2 + $0x78] sm:$0xf]
  %v2731 = vld [vmem:[#allocation2 + $0x7c] sm:$0xf]
  %v2732 = vld [vmem:[#allocation2 + $0x80] sm:$0xf]
  %v2733 = vld [vmem:[#allocation2 + $0x84] sm:$0xf]
  %v2734 = vld [vmem:[#allocation2 + $0x88] sm:$0xf]
  %v2735 = vld [vmem:[#allocation2 + $0x8c] sm:$0xf]
  %v2736 = vld [vmem:[#allocation2 + $0x90] sm:$0xf]
  %v2737 = vld [vmem:[#allocation2 + $0x94] sm:$0xf]
  %v2738 = vld [vmem:[#allocation2 + $0x98] sm:$0xf]
  %v2739 = vld [vmem:[#allocation2 + $0x9c] sm:$0xf]
  %v2740 = vld [vmem:[#allocation2 + $0xa0] sm:$0xf]
  %v2741 = vld [vmem:[#allocation2 + $0xa4] sm:$0xf]
  %v2742 = vld [vmem:[#allocation2 + $0xa8] sm:$0xf]
  %v2743 = vld [vmem:[#allocation2 + $0xac] sm:$0xf]
  %v2744 = vld [vmem:[#allocation2 + $0xb0] sm:$0xf]
  %v2745 = vld [vmem:[#allocation2 + $0xb4] sm:$0xf]
  %v2746 = vld [vmem:[#allocation2 + $0xb8] sm:$0xf]
  %v2747 = vld [vmem:[#allocation2 + $0xbc] sm:$0xf]
  %v2748 = vld [vmem:[#allocation2 + $0xc0] sm:$0xf]
  %v2749 = vld [vmem:[#allocation2 + $0xc4] sm:$0xf]
  %v2750 = vld [vmem:[#allocation2 + $0xc8] sm:$0xf]
  %v2751 = vld [vmem:[#allocation2 + $0xcc] sm:$0xf]
  %v2752 = vld [vmem:[#allocation2 + $0xd0] sm:$0xf]
  %v2753 = vld [vmem:[#allocation2 + $0xd4] sm:$0xf]
  %v2754 = vld [vmem:[#allocation2 + $0xd8] sm:$0xf]
  %v2755 = vld [vmem:[#allocation2 + $0xdc] sm:$0xf]
  %v2756 = vld [vmem:[#allocation2 + $0xe0] sm:$0xf]
  %v2757 = vld [vmem:[#allocation2 + $0xe4] sm:$0xf]
  %v2758 = vld [vmem:[#allocation2 + $0xe8] sm:$0xf]
  %v2759 = vld [vmem:[#allocation2 + $0xec] sm:$0xf]
  %v2760 = vld [vmem:[#allocation2 + $0xf0] sm:$0xf]
  %v2761 = vld [vmem:[#allocation2 + $0xf4] sm:$0xf]
  %v2762 = vld [vmem:[#allocation2 + $0xf8] sm:$0xf]
  %v2763 = vld [vmem:[#allocation2 + $0xfc] sm:$0xf]
  %v2764 = vld [vmem:[#allocation2 + $0x100] sm:$0xf]
  %v2765 = vld [vmem:[#allocation2 + $0x104] sm:$0xf]
  %v2766 = vld [vmem:[#allocation2 + $0x108] sm:$0xf]
  %v2767 = vld [vmem:[#allocation2 + $0x10c] sm:$0xf]
  %v2768 = vld [vmem:[#allocation2 + $0x110] sm:$0xf]
  %v2769 = vld [vmem:[#allocation2 + $0x114] sm:$0xf]
  %v2770 = vld [vmem:[#allocation2 + $0x118] sm:$0xf]
  %v2771 = vld [vmem:[#allocation2 + $0x11c] sm:$0xf]
  %v2772 = vld [vmem:[#allocation2 + $0x120] sm:$0xf]
  %v2773 = vld [vmem:[#allocation2 + $0x124] sm:$0xf]
  %v2774 = vld [vmem:[#allocation2 + $0x128] sm:$0xf]
  %v2775 = vld [vmem:[#allocation2 + $0x12c] sm:$0xf]
  %v2776 = vld [vmem:[#allocation2 + $0x130] sm:$0xf]
  %v2777 = vld [vmem:[#allocation2 + $0x134] sm:$0xf]
  %v2778 = vld [vmem:[#allocation2 + $0x138] sm:$0xf]
  %v2779 = vld [vmem:[#allocation2 + $0x13c] sm:$0xf]
  %v2780 = vld [vmem:[#allocation2 + $0x140] sm:$0xf]
  %v2781 = vld [vmem:[#allocation2 + $0x144] sm:$0xf]
  %v2782 = vld [vmem:[#allocation2 + $0x148] sm:$0xf]
  %v2783 = vld [vmem:[#allocation2 + $0x14c] sm:$0xf]
  %v2784 = vld [vmem:[#allocation2 + $0x150] sm:$0xf]
  %v2785 = vld [vmem:[#allocation2 + $0x154] sm:$0xf]
  %v2786 = vld [vmem:[#allocation2 + $0x158] sm:$0xf]
  %v2787 = vld [vmem:[#allocation2 + $0x15c] sm:$0xf]
  %v2788 = vld [vmem:[#allocation2 + $0x160] sm:$0x1]
  %s2789 = scalar_lea.vmem %s2, 8
  %v2790 = vld [vmem:[%s2789] sm:$0xf]
  %v2880 = vunpack.c.l.b16 %v2700
  %v2881 = vunpack.c.l.b16 %v2701
  %v2882 = vunpack.c.l.b16 %v2702
  %v2883 = vunpack.c.l.b16 %v2703
  %v2884 = vunpack.c.l.b16 %v2704
  %v2885 = vunpack.c.l.b16 %v2705
  %v2886 = vunpack.c.l.b16 %v2706
  %v2887 = vunpack.c.l.b16 %v2707
  %v2888 = vunpack.c.l.b16 %v2708
  %v2889 = vunpack.c.l.b16 %v2709
  %v2890 = vunpack.c.l.b16 %v2710
  %v2891 = vunpack.c.l.b16 %v2711
  %v2892 = vunpack.c.l.b16 %v2712
  %v2893 = vunpack.c.l.b16 %v2713
  %v2894 = vunpack.c.l.b16 %v2714
  %v2895 = vunpack.c.l.b16 %v2715
  %v2896 = vunpack.c.l.b16 %v2716
  %v2897 = vunpack.c.l.b16 %v2717
  %v2898 = vunpack.c.l.b16 %v2718
  %v2899 = vunpack.c.l.b16 %v2719
  %v2900 = vunpack.c.l.b16 %v2720
  %v2901 = vunpack.c.l.b16 %v2721
  %v2902 = vunpack.c.l.b16 %v2722
  %v2903 = vunpack.c.l.b16 %v2723
  %v2904 = vunpack.c.l.b16 %v2724
  %v2905 = vunpack.c.l.b16 %v2725
  %v2906 = vunpack.c.l.b16 %v2726
  %v2907 = vunpack.c.l.b16 %v2727
  %v2908 = vunpack.c.l.b16 %v2728
  %v2909 = vunpack.c.l.b16 %v2729
  %v2910 = vunpack.c.l.b16 %v2730
  %v2911 = vunpack.c.l.b16 %v2731
  %v2912 = vunpack.c.l.b16 %v2732
  %v2913 = vunpack.c.l.b16 %v2733
  %v2914 = vunpack.c.l.b16 %v2734
  %v2915 = vunpack.c.l.b16 %v2735
  %v2916 = vunpack.c.l.b16 %v2736
  %v2917 = vunpack.c.l.b16 %v2737
  %v2918 = vunpack.c.l.b16 %v2738
  %v2919 = vunpack.c.l.b16 %v2739
  %v2920 = vunpack.c.l.b16 %v2740
  %v2921 = vunpack.c.l.b16 %v2741
  %v2922 = vunpack.c.l.b16 %v2742
  %v2923 = vunpack.c.l.b16 %v2743
  %v2924 = vunpack.c.l.b16 %v2744
  %v2925 = vunpack.c.l.b16 %v2745
  %v2926 = vunpack.c.l.b16 %v2746
  %v2927 = vunpack.c.l.b16 %v2747
  %v2928 = vunpack.c.l.b16 %v2748
  %v2929 = vunpack.c.l.b16 %v2749
  %v2930 = vunpack.c.l.b16 %v2750
  %v2931 = vunpack.c.l.b16 %v2751
  %v2932 = vunpack.c.l.b16 %v2752
  %v2933 = vunpack.c.l.b16 %v2753
  %v2934 = vunpack.c.l.b16 %v2754
  %v2935 = vunpack.c.l.b16 %v2755
  %v2936 = vunpack.c.l.b16 %v2756
  %v2937 = vunpack.c.l.b16 %v2757
  %v2938 = vunpack.c.l.b16 %v2758
  %v2939 = vunpack.c.l.b16 %v2759
  %v2940 = vunpack.c.l.b16 %v2760
  %v2941 = vunpack.c.l.b16 %v2761
  %v2942 = vunpack.c.l.b16 %v2762
  %v2943 = vunpack.c.l.b16 %v2763
  %v2944 = vunpack.c.l.b16 %v2764
  %v2945 = vunpack.c.l.b16 %v2765
  %v2946 = vunpack.c.l.b16 %v2766
  %v2947 = vunpack.c.l.b16 %v2767
  %v2948 = vunpack.c.l.b16 %v2768
  %v2949 = vunpack.c.l.b16 %v2769
  %v2950 = vunpack.c.l.b16 %v2770
  %v2951 = vunpack.c.l.b16 %v2771
  %v2952 = vunpack.c.l.b16 %v2772
  %v2953 = vunpack.c.l.b16 %v2773
  %v2954 = vunpack.c.l.b16 %v2774
  %v2955 = vunpack.c.l.b16 %v2775
  %v2956 = vunpack.c.l.b16 %v2776
  %v2957 = vunpack.c.l.b16 %v2777
  %v2958 = vunpack.c.l.b16 %v2778
  %v2959 = vunpack.c.l.b16 %v2779
  %v2960 = vunpack.c.l.b16 %v2780
  %v2961 = vunpack.c.l.b16 %v2781
  %v2962 = vunpack.c.l.b16 %v2782
  %v2963 = vunpack.c.l.b16 %v2783
  %v2964 = vunpack.c.l.b16 %v2784
  %v2965 = vunpack.c.l.b16 %v2785
  %v2966 = vunpack.c.l.b16 %v2786
  %v2967 = vunpack.c.l.b16 %v2787
  %v2968 = vunpack.c.l.b16 %v2788
  %v2969 = vpack.c.b16 %v2881, %v2880
  %v2970 = vpack.c.b16 %v2883, %v2882
  %v2971 = vpack.c.b16 %v2885, %v2884
  %v2972 = vpack.c.b16 %v2887, %v2886
  %v2973 = vpack.c.b16 %v2889, %v2888
  %v2974 = vpack.c.b16 %v2891, %v2890
  %v2975 = vpack.c.b16 %v2893, %v2892
  %v2976 = vpack.c.b16 %v2895, %v2894
  %v2977 = vpack.c.b16 %v2897, %v2896
  %v2978 = vpack.c.b16 %v2899, %v2898
  %v2979 = vpack.c.b16 %v2901, %v2900
  %v2980 = vpack.c.b16 %v2903, %v2902
  %v2981 = vpack.c.b16 %v2905, %v2904
  %v2982 = vpack.c.b16 %v2907, %v2906
  %v2983 = vpack.c.b16 %v2909, %v2908
  %v2984 = vpack.c.b16 %v2911, %v2910
  %v2985 = vpack.c.b16 %v2913, %v2912
  %v2986 = vpack.c.b16 %v2915, %v2914
  %v2987 = vpack.c.b16 %v2917, %v2916
  %v2988 = vpack.c.b16 %v2919, %v2918
  %v2989 = vpack.c.b16 %v2921, %v2920
  %v2990 = vpack.c.b16 %v2923, %v2922
  %v2991 = vpack.c.b16 %v2925, %v2924
  %v2992 = vpack.c.b16 %v2927, %v2926
  %v2993 = vpack.c.b16 %v2929, %v2928
  %v2994 = vpack.c.b16 %v2931, %v2930
  %v2995 = vpack.c.b16 %v2933, %v2932
  %v2996 = vpack.c.b16 %v2935, %v2934
  %v2997 = vpack.c.b16 %v2937, %v2936
  %v2998 = vpack.c.b16 %v2939, %v2938
  %v2999 = vpack.c.b16 %v2941, %v2940
  %v3000 = vpack.c.b16 %v2943, %v2942
  %v3001 = vpack.c.b16 %v2945, %v2944
  %v3002 = vpack.c.b16 %v2947, %v2946
  %v3003 = vpack.c.b16 %v2949, %v2948
  %v3004 = vpack.c.b16 %v2951, %v2950
  %v3005 = vpack.c.b16 %v2953, %v2952
  %v3006 = vpack.c.b16 %v2955, %v2954
  %v3007 = vpack.c.b16 %v2957, %v2956
  %v3008 = vpack.c.b16 %v2959, %v2958
  %v3009 = vpack.c.b16 %v2961, %v2960
  %v3010 = vpack.c.b16 %v2963, %v2962
  %v3011 = vpack.c.b16 %v2965, %v2964
  %v3012 = vpack.c.b16 %v2967, %v2966
  %v3013 = vpack.c.b16 %v2968, %v2968
  %vm3014 = vcmask 1046528
  %v3015 = vrot.slane %v2969, 1
  %v3016 = vrot.slane %v2970, 1
  %v3017 = vsel %vm3014, %v3015, %v3016
  %v3018 = vrot.slane %v2971, 1
  %v3019 = vsel %vm3014, %v3016, %v3018
  %v3020 = vrot.slane %v2972, 1
  %v3021 = vsel %vm3014, %v3018, %v3020
  %v3022 = vrot.slane %v2973, 1
  %v3023 = vsel %vm3014, %v3020, %v3022
  %v3024 = vrot.slane %v2974, 1
  %v3025 = vsel %vm3014, %v3022, %v3024
  %v3026 = vrot.slane %v2975, 1
  %v3027 = vsel %vm3014, %v3024, %v3026
  %v3028 = vrot.slane %v2976, 1
  %v3029 = vsel %vm3014, %v3026, %v3028
  %v3030 = vrot.slane %v2977, 1
  %v3031 = vsel %vm3014, %v3028, %v3030
  %v3032 = vrot.slane %v2978, 1
  %v3033 = vsel %vm3014, %v3030, %v3032
  %v3034 = vrot.slane %v2979, 1
  %v3035 = vsel %vm3014, %v3032, %v3034
  %v3036 = vrot.slane %v2980, 1
  %v3037 = vsel %vm3014, %v3034, %v3036
  %v3038 = vrot.slane %v2981, 1
  %v3039 = vsel %vm3014, %v3036, %v3038
  %v3040 = vrot.slane %v2982, 1
  %v3041 = vsel %vm3014, %v3038, %v3040
  %v3042 = vrot.slane %v2983, 1
  %v3043 = vsel %vm3014, %v3040, %v3042
  %v3044 = vrot.slane %v2984, 1
  %v3045 = vsel %vm3014, %v3042, %v3044
  %v3046 = vrot.slane %v2985, 1
  %v3047 = vsel %vm3014, %v3044, %v3046
  %v3048 = vrot.slane %v2986, 1
  %v3049 = vsel %vm3014, %v3046, %v3048
  %v3050 = vrot.slane %v2987, 1
  %v3051 = vsel %vm3014, %v3048, %v3050
  %v3052 = vrot.slane %v2988, 1
  %v3053 = vsel %vm3014, %v3050, %v3052
  %v3054 = vrot.slane %v2989, 1
  %v3055 = vsel %vm3014, %v3052, %v3054
  %v3056 = vrot.slane %v2990, 1
  %v3057 = vsel %vm3014, %v3054, %v3056
  %v3058 = vrot.slane %v2991, 1
  %v3059 = vsel %vm3014, %v3056, %v3058
  %v3060 = vrot.slane %v2992, 1
  %v3061 = vsel %vm3014, %v3058, %v3060
  %v3062 = vrot.slane %v2993, 1
  %v3063 = vsel %vm3014, %v3060, %v3062
  %v3064 = vrot.slane %v2994, 1
  %v3065 = vsel %vm3014, %v3062, %v3064
  %v3066 = vrot.slane %v2995, 1
  %v3067 = vsel %vm3014, %v3064, %v3066
  %v3068 = vrot.slane %v2996, 1
  %v3069 = vsel %vm3014, %v3066, %v3068
  %v3070 = vrot.slane %v2997, 1
  %v3071 = vsel %vm3014, %v3068, %v3070
  %v3072 = vrot.slane %v2998, 1
  %v3073 = vsel %vm3014, %v3070, %v3072
  %v3074 = vrot.slane %v2999, 1
  %v3075 = vsel %vm3014, %v3072, %v3074
  %v3076 = vrot.slane %v3000, 1
  %v3077 = vsel %vm3014, %v3074, %v3076
  %v3078 = vrot.slane %v3001, 1
  %v3079 = vsel %vm3014, %v3076, %v3078
  %v3080 = vrot.slane %v3002, 1
  %v3081 = vsel %vm3014, %v3078, %v3080
  %v3082 = vrot.slane %v3003, 1
  %v3083 = vsel %vm3014, %v3080, %v3082
  %v3084 = vrot.slane %v3004, 1
  %v3085 = vsel %vm3014, %v3082, %v3084
  %v3086 = vrot.slane %v3005, 1
  %v3087 = vsel %vm3014, %v3084, %v3086
  %v3088 = vrot.slane %v3006, 1
  %v3089 = vsel %vm3014, %v3086, %v3088
  %v3090 = vrot.slane %v3007, 1
  %v3091 = vsel %vm3014, %v3088, %v3090
  %v3092 = vrot.slane %v3008, 1
  %v3093 = vsel %vm3014, %v3090, %v3092
  %v3094 = vrot.slane %v3009, 1
  %v3095 = vsel %vm3014, %v3092, %v3094
  %v3096 = vrot.slane %v3010, 1
  %v3097 = vsel %vm3014, %v3094, %v3096
  %v3098 = vrot.slane %v3011, 1
  %v3099 = vsel %vm3014, %v3096, %v3098
  %v3100 = vrot.slane %v3012, 1
  %v3101 = vsel %vm3014, %v3098, %v3100
  %v3102 = vrot.slane %v3013, 1
  %v3103 = vsel %vm3014, %v3100, %v3102
  %v3105 = vsel %vm547, %v3017, 0
  %v3108 = vsel %vm547, %v3019, 0
  %v3111 = vsel %vm547, %v3021, 0
  %v3114 = vsel %vm547, %v3023, 0
  %v3117 = vsel %vm547, %v3025, 0
  %v3120 = vsel %vm547, %v3027, 0
  %v3123 = vsel %vm547, %v3029, 0
  %v3126 = vsel %vm547, %v3031, 0
  %v3129 = vsel %vm547, %v3033, 0
  %v3132 = vsel %vm547, %v3035, 0
  %v3135 = vsel %vm547, %v3037, 0
  %v3138 = vsel %vm547, %v3039, 0
  %v3141 = vsel %vm547, %v3041, 0
  %v3144 = vsel %vm547, %v3043, 0
  %v3147 = vsel %vm547, %v3045, 0
  %v3150 = vsel %vm547, %v3047, 0
  %v3153 = vsel %vm547, %v3049, 0
  %v3156 = vsel %vm547, %v3051, 0
  %v3159 = vsel %vm547, %v3053, 0
  %v3162 = vsel %vm547, %v3055, 0
  %v3165 = vsel %vm547, %v3057, 0
  %v3168 = vsel %vm547, %v3059, 0
  %v3171 = vsel %vm547, %v3061, 0
  %v3174 = vsel %vm547, %v3063, 0
  %v3177 = vsel %vm547, %v3065, 0
  %v3180 = vsel %vm547, %v3067, 0
  %v3183 = vsel %vm547, %v3069, 0
  %v3186 = vsel %vm547, %v3071, 0
  %v3189 = vsel %vm547, %v3073, 0
  %v3192 = vsel %vm547, %v3075, 0
  %v3195 = vsel %vm547, %v3077, 0
  %v3198 = vsel %vm547, %v3079, 0
  %v3201 = vsel %vm547, %v3081, 0
  %v3204 = vsel %vm547, %v3083, 0
  %v3207 = vsel %vm547, %v3085, 0
  %v3210 = vsel %vm547, %v3087, 0
  %v3213 = vsel %vm547, %v3089, 0
  %v3216 = vsel %vm547, %v3091, 0
  %v3219 = vsel %vm547, %v3093, 0
  %v3222 = vsel %vm547, %v3095, 0
  %v3225 = vsel %vm547, %v3097, 0
  %v3228 = vsel %vm547, %v3099, 0
  %v3231 = vsel %vm547, %v3101, 0
  %v3234 = vsel %vm547, %v3103, 0
  %v3237 = vsel %vm680, %v2790, 0
  %3239 = vmatprep.subr.bf16.mxu0 0
  %3240 = vmatpush1.bf16.msra.mxu0 0
  %3241 = vmatprep.subr.bf16.mxu0 0
  %3242 = vmatpush1.bf16.msra.mxu0 0
  %3243 = vmatprep.subr.bf16.mxu0 0
  %3244 = vmatpush1.bf16.msra.mxu0 0
  %3245 = vmatprep.subr.bf16.mxu0 0
  %3246 = vmatpush1.bf16.msra.mxu0 0
  %3247 = vmatprep.subr.bf16.mxu0 0
  %3248 = vmatpush1.bf16.msra.mxu0 0
  %3249 = vmatprep.subr.bf16.mxu0 0
  %3250 = vmatpush1.bf16.msra.mxu0 0
  %3251 = vmatprep.subr.bf16.mxu0 0
  %3252 = vmatpush1.bf16.msra.mxu0 0
  %3253 = vmatprep.subr.bf16.mxu0 0
  %3254 = vmatpush1.bf16.msra.mxu0 %v3237
  %3255 = vmatprep.subr.bf16.mxu0 0
  %3256 = vmatpush2.bf16.msra.mxu0 0
  %3257 = vmatprep.subr.bf16.mxu0 0
  %3258 = vmatpush2.bf16.msra.mxu0 0
  %3259 = vmatprep.subr.bf16.mxu0 0
  %3260 = vmatpush2.bf16.msra.mxu0 0
  %3261 = vmatprep.subr.bf16.mxu0 0
  %3262 = vmatpush2.bf16.msra.mxu0 0
  %3263 = vmatprep.subr.bf16.mxu0 0
  %3264 = vmatpush2.bf16.msra.mxu0 0
  %3265 = vmatprep.subr.bf16.mxu0 0
  %3266 = vmatpush2.bf16.msra.mxu0 0
  %3267 = vmatprep.subr.bf16.mxu0 0
  %3268 = vmatpush2.bf16.msra.mxu0 0
  %3269 = vmatprep.subr.bf16.mxu0 0
  %3270 = vmatpush2.bf16.msra.mxu0 0
  %3271 = vmatprep.mubr.bf16.mxu0 0
  %3272 = vmatmul.mubr.bf16.gmra.mxu0 %v3105
  %v3273 = vpop.f32.mrf.mxu0
  %v3274 = vadd.f32 0.0, %v3273
  %v3275 = vpop.f32.mrf.mxu0
  %v3276 = vpop.f32.mrf.mxu0
  %v3277 = vadd.f32 0.0, %v3276
  %v3278 = vpop.f32.mrf.mxu0
  %3279 = vmatprep.mubr.bf16.mxu0 0
  %3280 = vmatmul.mubr.bf16.gmra.mxu0 %v3108
  %v3281 = vpop.f32.mrf.mxu0
  %v3282 = vadd.f32 0.0, %v3281
  %v3283 = vpop.f32.mrf.mxu0
  %v3284 = vpop.f32.mrf.mxu0
  %v3285 = vadd.f32 0.0, %v3284
  %v3286 = vpop.f32.mrf.mxu0
  %3287 = vmatprep.mubr.bf16.mxu0 0
  %3288 = vmatmul.mubr.bf16.gmra.mxu0 %v3111
  %v3289 = vpop.f32.mrf.mxu0
  %v3290 = vadd.f32 0.0, %v3289
  %v3291 = vpop.f32.mrf.mxu0
  %v3292 = vpop.f32.mrf.mxu0
  %v3293 = vadd.f32 0.0, %v3292
  %v3294 = vpop.f32.mrf.mxu0
  %3295 = vmatprep.mubr.bf16.mxu0 0
  %3296 = vmatmul.mubr.bf16.gmra.mxu0 %v3114
  %v3297 = vpop.f32.mrf.mxu0
  %v3298 = vadd.f32 0.0, %v3297
  %v3299 = vpop.f32.mrf.mxu0
  %v3300 = vpop.f32.mrf.mxu0
  %v3301 = vadd.f32 0.0, %v3300
  %v3302 = vpop.f32.mrf.mxu0
  %3303 = vmatprep.mubr.bf16.mxu0 0
  %3304 = vmatmul.mubr.bf16.gmra.mxu0 %v3117
  %v3305 = vpop.f32.mrf.mxu0
  %v3306 = vadd.f32 0.0, %v3305
  %v3307 = vpop.f32.mrf.mxu0
  %v3308 = vpop.f32.mrf.mxu0
  %v3309 = vadd.f32 0.0, %v3308
  %v3310 = vpop.f32.mrf.mxu0
  %3311 = vmatprep.mubr.bf16.mxu0 0
  %3312 = vmatmul.mubr.bf16.gmra.mxu0 %v3120
  %v3313 = vpop.f32.mrf.mxu0
  %v3314 = vadd.f32 0.0, %v3313
  %v3315 = vpop.f32.mrf.mxu0
  %v3316 = vpop.f32.mrf.mxu0
  %v3317 = vadd.f32 0.0, %v3316
  %v3318 = vpop.f32.mrf.mxu0
  %3319 = vmatprep.mubr.bf16.mxu0 0
  %3320 = vmatmul.mubr.bf16.gmra.mxu0 %v3123
  %v3321 = vpop.f32.mrf.mxu0
  %v3322 = vadd.f32 0.0, %v3321
  %v3323 = vpop.f32.mrf.mxu0
  %v3324 = vpop.f32.mrf.mxu0
  %v3325 = vadd.f32 0.0, %v3324
  %v3326 = vpop.f32.mrf.mxu0
  %3327 = vmatprep.mubr.bf16.mxu0 0
  %3328 = vmatmul.mubr.bf16.gmra.mxu0 %v3126
  %v3329 = vpop.f32.mrf.mxu0
  %v3330 = vadd.f32 0.0, %v3329
  %v3331 = vpop.f32.mrf.mxu0
  %v3332 = vpop.f32.mrf.mxu0
  %v3333 = vadd.f32 0.0, %v3332
  %v3334 = vpop.f32.mrf.mxu0
  %3335 = vmatprep.mubr.bf16.mxu0 0
  %3336 = vmatmul.mubr.bf16.gmra.mxu0 %v3129
  %v3337 = vpop.f32.mrf.mxu0
  %v3338 = vadd.f32 0.0, %v3337
  %v3339 = vpop.f32.mrf.mxu0
  %v3340 = vpop.f32.mrf.mxu0
  %v3341 = vadd.f32 0.0, %v3340
  %v3342 = vpop.f32.mrf.mxu0
  %3343 = vmatprep.mubr.bf16.mxu0 0
  %3344 = vmatmul.mubr.bf16.gmra.mxu0 %v3132
  %v3345 = vpop.f32.mrf.mxu0
  %v3346 = vadd.f32 0.0, %v3345
  %v3347 = vpop.f32.mrf.mxu0
  %v3348 = vpop.f32.mrf.mxu0
  %v3349 = vadd.f32 0.0, %v3348
  %v3350 = vpop.f32.mrf.mxu0
  %3351 = vmatprep.mubr.bf16.mxu0 0
  %3352 = vmatmul.mubr.bf16.gmra.mxu0 %v3135
  %v3353 = vpop.f32.mrf.mxu0
  %v3354 = vadd.f32 0.0, %v3353
  %v3355 = vpop.f32.mrf.mxu0
  %v3356 = vpop.f32.mrf.mxu0
  %v3357 = vadd.f32 0.0, %v3356
  %v3358 = vpop.f32.mrf.mxu0
  %3359 = vmatprep.mubr.bf16.mxu0 0
  %3360 = vmatmul.mubr.bf16.gmra.mxu0 %v3138
  %v3361 = vpop.f32.mrf.mxu0
  %v3362 = vadd.f32 0.0, %v3361
  %v3363 = vpop.f32.mrf.mxu0
  %v3364 = vpop.f32.mrf.mxu0
  %v3365 = vadd.f32 0.0, %v3364
  %v3366 = vpop.f32.mrf.mxu0
  %3367 = vmatprep.mubr.bf16.mxu0 0
  %3368 = vmatmul.mubr.bf16.gmra.mxu0 %v3141
  %v3369 = vpop.f32.mrf.mxu0
  %v3370 = vadd.f32 0.0, %v3369
  %v3371 = vpop.f32.mrf.mxu0
  %v3372 = vpop.f32.mrf.mxu0
  %v3373 = vadd.f32 0.0, %v3372
  %v3374 = vpop.f32.mrf.mxu0
  %3375 = vmatprep.mubr.bf16.mxu0 0
  %3376 = vmatmul.mubr.bf16.gmra.mxu0 %v3144
  %v3377 = vpop.f32.mrf.mxu0
  %v3378 = vadd.f32 0.0, %v3377
  %v3379 = vpop.f32.mrf.mxu0
  %v3380 = vpop.f32.mrf.mxu0
  %v3381 = vadd.f32 0.0, %v3380
  %v3382 = vpop.f32.mrf.mxu0
  %3383 = vmatprep.mubr.bf16.mxu0 0
  %3384 = vmatmul.mubr.bf16.gmra.mxu0 %v3147
  %v3385 = vpop.f32.mrf.mxu0
  %v3386 = vadd.f32 0.0, %v3385
  %v3387 = vpop.f32.mrf.mxu0
  %v3388 = vpop.f32.mrf.mxu0
  %v3389 = vadd.f32 0.0, %v3388
  %v3390 = vpop.f32.mrf.mxu0
  %3391 = vmatprep.mubr.bf16.mxu0 0
  %3392 = vmatmul.mubr.bf16.gmra.mxu0 %v3150
  %v3393 = vpop.f32.mrf.mxu0
  %v3394 = vadd.f32 0.0, %v3393
  %v3395 = vpop.f32.mrf.mxu0
  %v3396 = vpop.f32.mrf.mxu0
  %v3397 = vadd.f32 0.0, %v3396
  %v3398 = vpop.f32.mrf.mxu0
  %3399 = vmatprep.mubr.bf16.mxu0 0
  %3400 = vmatmul.mubr.bf16.gmra.mxu0 %v3153
  %v3401 = vpop.f32.mrf.mxu0
  %v3402 = vadd.f32 0.0, %v3401
  %v3403 = vpop.f32.mrf.mxu0
  %v3404 = vpop.f32.mrf.mxu0
  %v3405 = vadd.f32 0.0, %v3404
  %v3406 = vpop.f32.mrf.mxu0
  %3407 = vmatprep.mubr.bf16.mxu0 0
  %3408 = vmatmul.mubr.bf16.gmra.mxu0 %v3156
  %v3409 = vpop.f32.mrf.mxu0
  %v3410 = vadd.f32 0.0, %v3409
  %v3411 = vpop.f32.mrf.mxu0
  %v3412 = vpop.f32.mrf.mxu0
  %v3413 = vadd.f32 0.0, %v3412
  %v3414 = vpop.f32.mrf.mxu0
  %3415 = vmatprep.mubr.bf16.mxu0 0
  %3416 = vmatmul.mubr.bf16.gmra.mxu0 %v3159
  %v3417 = vpop.f32.mrf.mxu0
  %v3418 = vadd.f32 0.0, %v3417
  %v3419 = vpop.f32.mrf.mxu0
  %v3420 = vpop.f32.mrf.mxu0
  %v3421 = vadd.f32 0.0, %v3420
  %v3422 = vpop.f32.mrf.mxu0
  %3423 = vmatprep.mubr.bf16.mxu0 0
  %3424 = vmatmul.mubr.bf16.gmra.mxu0 %v3162
  %v3425 = vpop.f32.mrf.mxu0
  %v3426 = vadd.f32 0.0, %v3425
  %v3427 = vpop.f32.mrf.mxu0
  %v3428 = vpop.f32.mrf.mxu0
  %v3429 = vadd.f32 0.0, %v3428
  %v3430 = vpop.f32.mrf.mxu0
  %3431 = vmatprep.mubr.bf16.mxu0 0
  %3432 = vmatmul.mubr.bf16.gmra.mxu0 %v3165
  %v3433 = vpop.f32.mrf.mxu0
  %v3434 = vadd.f32 0.0, %v3433
  %v3435 = vpop.f32.mrf.mxu0
  %v3436 = vpop.f32.mrf.mxu0
  %v3437 = vadd.f32 0.0, %v3436
  %v3438 = vpop.f32.mrf.mxu0
  %3439 = vmatprep.mubr.bf16.mxu0 0
  %3440 = vmatmul.mubr.bf16.gmra.mxu0 %v3168
  %v3441 = vpop.f32.mrf.mxu0
  %v3442 = vadd.f32 0.0, %v3441
  %v3443 = vpop.f32.mrf.mxu0
  %v3444 = vpop.f32.mrf.mxu0
  %v3445 = vadd.f32 0.0, %v3444
  %v3446 = vpop.f32.mrf.mxu0
  %3447 = vmatprep.mubr.bf16.mxu0 0
  %3448 = vmatmul.mubr.bf16.gmra.mxu0 %v3171
  %v3449 = vpop.f32.mrf.mxu0
  %v3450 = vadd.f32 0.0, %v3449
  %v3451 = vpop.f32.mrf.mxu0
  %v3452 = vpop.f32.mrf.mxu0
  %v3453 = vadd.f32 0.0, %v3452
  %v3454 = vpop.f32.mrf.mxu0
  %3455 = vmatprep.mubr.bf16.mxu0 0
  %3456 = vmatmul.mubr.bf16.gmra.mxu0 %v3174
  %v3457 = vpop.f32.mrf.mxu0
  %v3458 = vadd.f32 0.0, %v3457
  %v3459 = vpop.f32.mrf.mxu0
  %v3460 = vpop.f32.mrf.mxu0
  %v3461 = vadd.f32 0.0, %v3460
  %v3462 = vpop.f32.mrf.mxu0
  %3463 = vmatprep.mubr.bf16.mxu0 0
  %3464 = vmatmul.mubr.bf16.gmra.mxu0 %v3177
  %v3465 = vpop.f32.mrf.mxu0
  %v3466 = vadd.f32 0.0, %v3465
  %v3467 = vpop.f32.mrf.mxu0
  %v3468 = vpop.f32.mrf.mxu0
  %v3469 = vadd.f32 0.0, %v3468
  %v3470 = vpop.f32.mrf.mxu0
  %3471 = vmatprep.mubr.bf16.mxu0 0
  %3472 = vmatmul.mubr.bf16.gmra.mxu0 %v3180
  %v3473 = vpop.f32.mrf.mxu0
  %v3474 = vadd.f32 0.0, %v3473
  %v3475 = vpop.f32.mrf.mxu0
  %v3476 = vpop.f32.mrf.mxu0
  %v3477 = vadd.f32 0.0, %v3476
  %v3478 = vpop.f32.mrf.mxu0
  %3479 = vmatprep.mubr.bf16.mxu0 0
  %3480 = vmatmul.mubr.bf16.gmra.mxu0 %v3183
  %v3481 = vpop.f32.mrf.mxu0
  %v3482 = vadd.f32 0.0, %v3481
  %v3483 = vpop.f32.mrf.mxu0
  %v3484 = vpop.f32.mrf.mxu0
  %v3485 = vadd.f32 0.0, %v3484
  %v3486 = vpop.f32.mrf.mxu0
  %3487 = vmatprep.mubr.bf16.mxu0 0
  %3488 = vmatmul.mubr.bf16.gmra.mxu0 %v3186
  %v3489 = vpop.f32.mrf.mxu0
  %v3490 = vadd.f32 0.0, %v3489
  %v3491 = vpop.f32.mrf.mxu0
  %v3492 = vpop.f32.mrf.mxu0
  %v3493 = vadd.f32 0.0, %v3492
  %v3494 = vpop.f32.mrf.mxu0
  %3495 = vmatprep.mubr.bf16.mxu0 0
  %3496 = vmatmul.mubr.bf16.gmra.mxu0 %v3189
  %v3497 = vpop.f32.mrf.mxu0
  %v3498 = vadd.f32 0.0, %v3497
  %v3499 = vpop.f32.mrf.mxu0
  %v3500 = vpop.f32.mrf.mxu0
  %v3501 = vadd.f32 0.0, %v3500
  %v3502 = vpop.f32.mrf.mxu0
  %3503 = vmatprep.mubr.bf16.mxu0 0
  %3504 = vmatmul.mubr.bf16.gmra.mxu0 %v3192
  %v3505 = vpop.f32.mrf.mxu0
  %v3506 = vadd.f32 0.0, %v3505
  %v3507 = vpop.f32.mrf.mxu0
  %v3508 = vpop.f32.mrf.mxu0
  %v3509 = vadd.f32 0.0, %v3508
  %v3510 = vpop.f32.mrf.mxu0
  %3511 = vmatprep.mubr.bf16.mxu0 0
  %3512 = vmatmul.mubr.bf16.gmra.mxu0 %v3195
  %v3513 = vpop.f32.mrf.mxu0
  %v3514 = vadd.f32 0.0, %v3513
  %v3515 = vpop.f32.mrf.mxu0
  %v3516 = vpop.f32.mrf.mxu0
  %v3517 = vadd.f32 0.0, %v3516
  %v3518 = vpop.f32.mrf.mxu0
  %3519 = vmatprep.mubr.bf16.mxu0 0
  %3520 = vmatmul.mubr.bf16.gmra.mxu0 %v3198
  %v3521 = vpop.f32.mrf.mxu0
  %v3522 = vadd.f32 0.0, %v3521
  %v3523 = vpop.f32.mrf.mxu0
  %v3524 = vpop.f32.mrf.mxu0
  %v3525 = vadd.f32 0.0, %v3524
  %v3526 = vpop.f32.mrf.mxu0
  %3527 = vmatprep.mubr.bf16.mxu0 0
  %3528 = vmatmul.mubr.bf16.gmra.mxu0 %v3201
  %v3529 = vpop.f32.mrf.mxu0
  %v3530 = vadd.f32 0.0, %v3529
  %v3531 = vpop.f32.mrf.mxu0
  %v3532 = vpop.f32.mrf.mxu0
  %v3533 = vadd.f32 0.0, %v3532
  %v3534 = vpop.f32.mrf.mxu0
  %3535 = vmatprep.mubr.bf16.mxu0 0
  %3536 = vmatmul.mubr.bf16.gmra.mxu0 %v3204
  %v3537 = vpop.f32.mrf.mxu0
  %v3538 = vadd.f32 0.0, %v3537
  %v3539 = vpop.f32.mrf.mxu0
  %v3540 = vpop.f32.mrf.mxu0
  %v3541 = vadd.f32 0.0, %v3540
  %v3542 = vpop.f32.mrf.mxu0
  %3543 = vmatprep.mubr.bf16.mxu0 0
  %3544 = vmatmul.mubr.bf16.gmra.mxu0 %v3207
  %v3545 = vpop.f32.mrf.mxu0
  %v3546 = vadd.f32 0.0, %v3545
  %v3547 = vpop.f32.mrf.mxu0
  %v3548 = vpop.f32.mrf.mxu0
  %v3549 = vadd.f32 0.0, %v3548
  %v3550 = vpop.f32.mrf.mxu0
  %3551 = vmatprep.mubr.bf16.mxu0 0
  %3552 = vmatmul.mubr.bf16.gmra.mxu0 %v3210
  %v3553 = vpop.f32.mrf.mxu0
  %v3554 = vadd.f32 0.0, %v3553
  %v3555 = vpop.f32.mrf.mxu0
  %v3556 = vpop.f32.mrf.mxu0
  %v3557 = vadd.f32 0.0, %v3556
  %v3558 = vpop.f32.mrf.mxu0
  %3559 = vmatprep.mubr.bf16.mxu0 0
  %3560 = vmatmul.mubr.bf16.gmra.mxu0 %v3213
  %v3561 = vpop.f32.mrf.mxu0
  %v3562 = vadd.f32 0.0, %v3561
  %v3563 = vpop.f32.mrf.mxu0
  %v3564 = vpop.f32.mrf.mxu0
  %v3565 = vadd.f32 0.0, %v3564
  %v3566 = vpop.f32.mrf.mxu0
  %3567 = vmatprep.mubr.bf16.mxu0 0
  %3568 = vmatmul.mubr.bf16.gmra.mxu0 %v3216
  %v3569 = vpop.f32.mrf.mxu0
  %v3570 = vadd.f32 0.0, %v3569
  %v3571 = vpop.f32.mrf.mxu0
  %v3572 = vpop.f32.mrf.mxu0
  %v3573 = vadd.f32 0.0, %v3572
  %v3574 = vpop.f32.mrf.mxu0
  %3575 = vmatprep.mubr.bf16.mxu0 0
  %3576 = vmatmul.mubr.bf16.gmra.mxu0 %v3219
  %v3577 = vpop.f32.mrf.mxu0
  %v3578 = vadd.f32 0.0, %v3577
  %v3579 = vpop.f32.mrf.mxu0
  %v3580 = vpop.f32.mrf.mxu0
  %v3581 = vadd.f32 0.0, %v3580
  %v3582 = vpop.f32.mrf.mxu0
  %3583 = vmatprep.mubr.bf16.mxu0 0
  %3584 = vmatmul.mubr.bf16.gmra.mxu0 %v3222
  %v3585 = vpop.f32.mrf.mxu0
  %v3586 = vadd.f32 0.0, %v3585
  %v3587 = vpop.f32.mrf.mxu0
  %v3588 = vpop.f32.mrf.mxu0
  %v3589 = vadd.f32 0.0, %v3588
  %v3590 = vpop.f32.mrf.mxu0
  %3591 = vmatprep.mubr.bf16.mxu0 0
  %3592 = vmatmul.mubr.bf16.gmra.mxu0 %v3225
  %v3593 = vpop.f32.mrf.mxu0
  %v3594 = vadd.f32 0.0, %v3593
  %v3595 = vpop.f32.mrf.mxu0
  %v3596 = vpop.f32.mrf.mxu0
  %v3597 = vadd.f32 0.0, %v3596
  %v3598 = vpop.f32.mrf.mxu0
  %3599 = vmatprep.mubr.bf16.mxu0 0
  %3600 = vmatmul.mubr.bf16.gmra.mxu0 %v3228
  %v3601 = vpop.f32.mrf.mxu0
  %v3602 = vadd.f32 0.0, %v3601
  %v3603 = vpop.f32.mrf.mxu0
  %v3604 = vpop.f32.mrf.mxu0
  %v3605 = vadd.f32 0.0, %v3604
  %v3606 = vpop.f32.mrf.mxu0
  %3607 = vmatprep.mubr.bf16.mxu0 0
  %3608 = vmatmul.mubr.bf16.gmra.mxu0 %v3231
  %v3609 = vpop.f32.mrf.mxu0
  %v3610 = vadd.f32 0.0, %v3609
  %v3611 = vpop.f32.mrf.mxu0
  %v3612 = vpop.f32.mrf.mxu0
  %v3613 = vadd.f32 0.0, %v3612
  %v3614 = vpop.f32.mrf.mxu0
  %3615 = vmatprep.mubr.bf16.mxu0 0
  %3616 = vmatmul.mubr.bf16.gmra.mxu0 %v3234
  %v3617 = vpop.f32.mrf.mxu0
  %v3618 = vadd.f32 0.0, %v3617
  %v3619 = vpop.f32.mrf.mxu0
  %v3620 = vpop.f32.mrf.mxu0
  %v3621 = vadd.f32 0.0, %v3620
  %v3622 = vpop.f32.mrf.mxu0
  %3623 = vdwg.mxu0
  %v3624 = vadd.f32 %v2612, %v3274
  %v3625 = vadd.f32 %v2613, %v3277
  %v3626 = vadd.f32 %v2614, %v3282
  %v3627 = vadd.f32 %v2615, %v3285
  %v3628 = vadd.f32 %v2616, %v3290
  %v3629 = vadd.f32 %v2617, %v3293
  %v3630 = vadd.f32 %v2618, %v3298
  %v3631 = vadd.f32 %v2619, %v3301
  %v3632 = vadd.f32 %v2620, %v3306
  %v3633 = vadd.f32 %v2621, %v3309
  %v3634 = vadd.f32 %v2622, %v3314
  %v3635 = vadd.f32 %v2623, %v3317
  %v3636 = vadd.f32 %v2624, %v3322
  %v3637 = vadd.f32 %v2625, %v3325
  %v3638 = vadd.f32 %v2626, %v3330
  %v3639 = vadd.f32 %v2627, %v3333
  %v3640 = vadd.f32 %v2628, %v3338
  %v3641 = vadd.f32 %v2629, %v3341
  %v3642 = vadd.f32 %v2630, %v3346
  %v3643 = vadd.f32 %v2631, %v3349
  %v3644 = vadd.f32 %v2632, %v3354
  %v3645 = vadd.f32 %v2633, %v3357
  %v3646 = vadd.f32 %v2634, %v3362
  %v3647 = vadd.f32 %v2635, %v3365
  %v3648 = vadd.f32 %v2636, %v3370
  %v3649 = vadd.f32 %v2637, %v3373
  %v3650 = vadd.f32 %v2638, %v3378
  %v3651 = vadd.f32 %v2639, %v3381
  %v3652 = vadd.f32 %v2640, %v3386
  %v3653 = vadd.f32 %v2641, %v3389
  %v3654 = vadd.f32 %v2642, %v3394
  %v3655 = vadd.f32 %v2643, %v3397
  %v3656 = vadd.f32 %v2644, %v3402
  %v3657 = vadd.f32 %v2645, %v3405
  %v3658 = vadd.f32 %v2646, %v3410
  %v3659 = vadd.f32 %v2647, %v3413
  %v3660 = vadd.f32 %v2648, %v3418
  %v3661 = vadd.f32 %v2649, %v3421
  %v3662 = vadd.f32 %v2650, %v3426
  %v3663 = vadd.f32 %v2651, %v3429
  %v3664 = vadd.f32 %v2652, %v3434
  %v3665 = vadd.f32 %v2653, %v3437
  %v3666 = vadd.f32 %v2654, %v3442
  %v3667 = vadd.f32 %v2655, %v3445
  %v3668 = vadd.f32 %v2656, %v3450
  %v3669 = vadd.f32 %v2657, %v3453
  %v3670 = vadd.f32 %v2658, %v3458
  %v3671 = vadd.f32 %v2659, %v3461
  %v3672 = vadd.f32 %v2660, %v3466
  %v3673 = vadd.f32 %v2661, %v3469
  %v3674 = vadd.f32 %v2662, %v3474
  %v3675 = vadd.f32 %v2663, %v3477
  %v3676 = vadd.f32 %v2664, %v3482
  %v3677 = vadd.f32 %v2665, %v3485
  %v3678 = vadd.f32 %v2666, %v3490
  %v3679 = vadd.f32 %v2667, %v3493
  %v3680 = vadd.f32 %v2668, %v3498
  %v3681 = vadd.f32 %v2669, %v3501
  %v3682 = vadd.f32 %v2670, %v3506
  %v3683 = vadd.f32 %v2671, %v3509
  %v3684 = vadd.f32 %v2672, %v3514
  %v3685 = vadd.f32 %v2673, %v3517
  %v3686 = vadd.f32 %v2674, %v3522
  %v3687 = vadd.f32 %v2675, %v3525
  %v3688 = vadd.f32 %v2676, %v3530
  %v3689 = vadd.f32 %v2677, %v3533
  %v3690 = vadd.f32 %v2678, %v3538
  %v3691 = vadd.f32 %v2679, %v3541
  %v3692 = vadd.f32 %v2680, %v3546
  %v3693 = vadd.f32 %v2681, %v3549
  %v3694 = vadd.f32 %v2682, %v3554
  %v3695 = vadd.f32 %v2683, %v3557
  %v3696 = vadd.f32 %v2684, %v3562
  %v3697 = vadd.f32 %v2685, %v3565
  %v3698 = vadd.f32 %v2686, %v3570
  %v3699 = vadd.f32 %v2687, %v3573
  %v3700 = vadd.f32 %v2688, %v3578
  %v3701 = vadd.f32 %v2689, %v3581
  %v3702 = vadd.f32 %v2690, %v3586
  %v3703 = vadd.f32 %v2691, %v3589
  %v3704 = vadd.f32 %v2692, %v3594
  %v3705 = vadd.f32 %v2693, %v3597
  %v3706 = vadd.f32 %v2694, %v3602
  %v3707 = vadd.f32 %v2695, %v3605
  %v3708 = vadd.f32 %v2696, %v3610
  %v3709 = vadd.f32 %v2697, %v3613
  %v3710 = vadd.f32 %v2698, %v3618
  %v3711 = vadd.f32 %v2699, %v3621
  %3712 = vst [vmem:[#allocation3] sm:$0xff] %v3624
  %3713 = vst [vmem:[#allocation3 + $0x8] sm:$0xff] %v3625
  %3714 = vst [vmem:[#allocation3 + $0x10] sm:$0xff] %v3626
  %3715 = vst [vmem:[#allocation3 + $0x18] sm:$0xff] %v3627
  %3716 = vst [vmem:[#allocation3 + $0x20] sm:$0xff] %v3628
  %3717 = vst [vmem:[#allocation3 + $0x28] sm:$0xff] %v3629
  %3718 = vst [vmem:[#allocation3 + $0x30] sm:$0xff] %v3630
  %3719 = vst [vmem:[#allocation3 + $0x38] sm:$0xff] %v3631
  %3720 = vst [vmem:[#allocation3 + $0x40] sm:$0xff] %v3632
  %3721 = vst [vmem:[#allocation3 + $0x48] sm:$0xff] %v3633
  %3722 = vst [vmem:[#allocation3 + $0x50] sm:$0xff] %v3634
  %3723 = vst [vmem:[#allocation3 + $0x58] sm:$0xff] %v3635
  %3724 = vst [vmem:[#allocation3 + $0x60] sm:$0xff] %v3636
  %3725 = vst [vmem:[#allocation3 + $0x68] sm:$0xff] %v3637
  %3726 = vst [vmem:[#allocation3 + $0x70] sm:$0xff] %v3638
  %3727 = vst [vmem:[#allocation3 + $0x78] sm:$0xff] %v3639
  %3728 = vst [vmem:[#allocation3 + $0x80] sm:$0xff] %v3640
  %3729 = vst [vmem:[#allocation3 + $0x88] sm:$0xff] %v3641
  %3730 = vst [vmem:[#allocation3 + $0x90] sm:$0xff] %v3642
  %3731 = vst [vmem:[#allocation3 + $0x98] sm:$0xff] %v3643
  %3732 = vst [vmem:[#allocation3 + $0xa0] sm:$0xff] %v3644
  %3733 = vst [vmem:[#allocation3 + $0xa8] sm:$0xff] %v3645
  %3734 = vst [vmem:[#allocation3 + $0xb0] sm:$0xff] %v3646
  %3735 = vst [vmem:[#allocation3 + $0xb8] sm:$0xff] %v3647
  %3736 = vst [vmem:[#allocation3 + $0xc0] sm:$0xff] %v3648
  %3737 = vst [vmem:[#allocation3 + $0xc8] sm:$0xff] %v3649
  %3738 = vst [vmem:[#allocation3 + $0xd0] sm:$0xff] %v3650
  %3739 = vst [vmem:[#allocation3 + $0xd8] sm:$0xff] %v3651
  %3740 = vst [vmem:[#allocation3 + $0xe0] sm:$0xff] %v3652
  %3741 = vst [vmem:[#allocation3 + $0xe8] sm:$0xff] %v3653
  %3742 = vst [vmem:[#allocation3 + $0xf0] sm:$0xff] %v3654
  %3743 = vst [vmem:[#allocation3 + $0xf8] sm:$0xff] %v3655
  %3744 = vst [vmem:[#allocation3 + $0x100] sm:$0xff] %v3656
  %3745 = vst [vmem:[#allocation3 + $0x108] sm:$0xff] %v3657
  %3746 = vst [vmem:[#allocation3 + $0x110] sm:$0xff] %v3658
  %3747 = vst [vmem:[#allocation3 + $0x118] sm:$0xff] %v3659
  %3748 = vst [vmem:[#allocation3 + $0x120] sm:$0xff] %v3660
  %3749 = vst [vmem:[#allocation3 + $0x128] sm:$0xff] %v3661
  %3750 = vst [vmem:[#allocation3 + $0x130] sm:$0xff] %v3662
  %3751 = vst [vmem:[#allocation3 + $0x138] sm:$0xff] %v3663
  %3752 = vst [vmem:[#allocation3 + $0x140] sm:$0xff] %v3664
  %3753 = vst [vmem:[#allocation3 + $0x148] sm:$0xff] %v3665
  %3754 = vst [vmem:[#allocation3 + $0x150] sm:$0xff] %v3666
  %3755 = vst [vmem:[#allocation3 + $0x158] sm:$0xff] %v3667
  %3756 = vst [vmem:[#allocation3 + $0x160] sm:$0xff] %v3668
  %3757 = vst [vmem:[#allocation3 + $0x168] sm:$0xff] %v3669
  %3758 = vst [vmem:[#allocation3 + $0x170] sm:$0xff] %v3670
  %3759 = vst [vmem:[#allocation3 + $0x178] sm:$0xff] %v3671
  %3760 = vst [vmem:[#allocation3 + $0x180] sm:$0xff] %v3672
  %3761 = vst [vmem:[#allocation3 + $0x188] sm:$0xff] %v3673
  %3762 = vst [vmem:[#allocation3 + $0x190] sm:$0xff] %v3674
  %3763 = vst [vmem:[#allocation3 + $0x198] sm:$0xff] %v3675
  %3764 = vst [vmem:[#allocation3 + $0x1a0] sm:$0xff] %v3676
  %3765 = vst [vmem:[#allocation3 + $0x1a8] sm:$0xff] %v3677
  %3766 = vst [vmem:[#allocation3 + $0x1b0] sm:$0xff] %v3678
  %3767 = vst [vmem:[#allocation3 + $0x1b8] sm:$0xff] %v3679
  %3768 = vst [vmem:[#allocation3 + $0x1c0] sm:$0xff] %v3680
  %3769 = vst [vmem:[#allocation3 + $0x1c8] sm:$0xff] %v3681
  %3770 = vst [vmem:[#allocation3 + $0x1d0] sm:$0xff] %v3682
  %3771 = vst [vmem:[#allocation3 + $0x1d8] sm:$0xff] %v3683
  %3772 = vst [vmem:[#allocation3 + $0x1e0] sm:$0xff] %v3684
  %3773 = vst [vmem:[#allocation3 + $0x1e8] sm:$0xff] %v3685
  %3774 = vst [vmem:[#allocation3 + $0x1f0] sm:$0xff] %v3686
  %3775 = vst [vmem:[#allocation3 + $0x1f8] sm:$0xff] %v3687
  %3776 = vst [vmem:[#allocation3 + $0x200] sm:$0xff] %v3688
  %3777 = vst [vmem:[#allocation3 + $0x208] sm:$0xff] %v3689
  %3778 = vst [vmem:[#allocation3 + $0x210] sm:$0xff] %v3690
  %3779 = vst [vmem:[#allocation3 + $0x218] sm:$0xff] %v3691
  %3780 = vst [vmem:[#allocation3 + $0x220] sm:$0xff] %v3692
  %3781 = vst [vmem:[#allocation3 + $0x228] sm:$0xff] %v3693
  %3782 = vst [vmem:[#allocation3 + $0x230] sm:$0xff] %v3694
  %3783 = vst [vmem:[#allocation3 + $0x238] sm:$0xff] %v3695
  %3784 = vst [vmem:[#allocation3 + $0x240] sm:$0xff] %v3696
  %3785 = vst [vmem:[#allocation3 + $0x248] sm:$0xff] %v3697
  %3786 = vst [vmem:[#allocation3 + $0x250] sm:$0xff] %v3698
  %3787 = vst [vmem:[#allocation3 + $0x258] sm:$0xff] %v3699
  %3788 = vst [vmem:[#allocation3 + $0x260] sm:$0xff] %v3700
  %3789 = vst [vmem:[#allocation3 + $0x268] sm:$0xff] %v3701
  %3790 = vst [vmem:[#allocation3 + $0x270] sm:$0xff] %v3702
  %3791 = vst [vmem:[#allocation3 + $0x278] sm:$0xff] %v3703
  %3792 = vst [vmem:[#allocation3 + $0x280] sm:$0xff] %v3704
  %3793 = vst [vmem:[#allocation3 + $0x288] sm:$0xff] %v3705
  %3794 = vst [vmem:[#allocation3 + $0x290] sm:$0xff] %v3706
  %3795 = vst [vmem:[#allocation3 + $0x298] sm:$0xff] %v3707
  %3796 = vst [vmem:[#allocation3 + $0x2a0] sm:$0xff] %v3708
  %3797 = vst [vmem:[#allocation3 + $0x2a8] sm:$0xff] %v3709
  %3798 = vst [vmem:[#allocation3 + $0x2b0] sm:$0xff] %v3710
  %3799 = vst [vmem:[#allocation3 + $0x2b8] sm:$0xff] %v3711
  %v3800 = vld [vmem:[#allocation3] sm:$0xff]
  %v3801 = vld [vmem:[#allocation3 + $0x8] sm:$0xff]
  %v3802 = vld [vmem:[#allocation3 + $0x10] sm:$0xff]
  %v3803 = vld [vmem:[#allocation3 + $0x18] sm:$0xff]
  %v3804 = vld [vmem:[#allocation3 + $0x20] sm:$0xff]
  %v3805 = vld [vmem:[#allocation3 + $0x28] sm:$0xff]
  %v3806 = vld [vmem:[#allocation3 + $0x30] sm:$0xff]
  %v3807 = vld [vmem:[#allocation3 + $0x38] sm:$0xff]
  %v3808 = vld [vmem:[#allocation3 + $0x40] sm:$0xff]
  %v3809 = vld [vmem:[#allocation3 + $0x48] sm:$0xff]
  %v3810 = vld [vmem:[#allocation3 + $0x50] sm:$0xff]
  %v3811 = vld [vmem:[#allocation3 + $0x58] sm:$0xff]
  %v3812 = vld [vmem:[#allocation3 + $0x60] sm:$0xff]
  %v3813 = vld [vmem:[#allocation3 + $0x68] sm:$0xff]
  %v3814 = vld [vmem:[#allocation3 + $0x70] sm:$0xff]
  %v3815 = vld [vmem:[#allocation3 + $0x78] sm:$0xff]
  %v3816 = vld [vmem:[#allocation3 + $0x80] sm:$0xff]
  %v3817 = vld [vmem:[#allocation3 + $0x88] sm:$0xff]
  %v3818 = vld [vmem:[#allocation3 + $0x90] sm:$0xff]
  %v3819 = vld [vmem:[#allocation3 + $0x98] sm:$0xff]
  %v3820 = vld [vmem:[#allocation3 + $0xa0] sm:$0xff]
  %v3821 = vld [vmem:[#allocation3 + $0xa8] sm:$0xff]
  %v3822 = vld [vmem:[#allocation3 + $0xb0] sm:$0xff]
  %v3823 = vld [vmem:[#allocation3 + $0xb8] sm:$0xff]
  %v3824 = vld [vmem:[#allocation3 + $0xc0] sm:$0xff]
  %v3825 = vld [vmem:[#allocation3 + $0xc8] sm:$0xff]
  %v3826 = vld [vmem:[#allocation3 + $0xd0] sm:$0xff]
  %v3827 = vld [vmem:[#allocation3 + $0xd8] sm:$0xff]
  %v3828 = vld [vmem:[#allocation3 + $0xe0] sm:$0xff]
  %v3829 = vld [vmem:[#allocation3 + $0xe8] sm:$0xff]
  %v3830 = vld [vmem:[#allocation3 + $0xf0] sm:$0xff]
  %v3831 = vld [vmem:[#allocation3 + $0xf8] sm:$0xff]
  %v3832 = vld [vmem:[#allocation3 + $0x100] sm:$0xff]
  %v3833 = vld [vmem:[#allocation3 + $0x108] sm:$0xff]
  %v3834 = vld [vmem:[#allocation3 + $0x110] sm:$0xff]
  %v3835 = vld [vmem:[#allocation3 + $0x118] sm:$0xff]
  %v3836 = vld [vmem:[#allocation3 + $0x120] sm:$0xff]
  %v3837 = vld [vmem:[#allocation3 + $0x128] sm:$0xff]
  %v3838 = vld [vmem:[#allocation3 + $0x130] sm:$0xff]
  %v3839 = vld [vmem:[#allocation3 + $0x138] sm:$0xff]
  %v3840 = vld [vmem:[#allocation3 + $0x140] sm:$0xff]
  %v3841 = vld [vmem:[#allocation3 + $0x148] sm:$0xff]
  %v3842 = vld [vmem:[#allocation3 + $0x150] sm:$0xff]
  %v3843 = vld [vmem:[#allocation3 + $0x158] sm:$0xff]
  %v3844 = vld [vmem:[#allocation3 + $0x160] sm:$0xff]
  %v3845 = vld [vmem:[#allocation3 + $0x168] sm:$0xff]
  %v3846 = vld [vmem:[#allocation3 + $0x170] sm:$0xff]
  %v3847 = vld [vmem:[#allocation3 + $0x178] sm:$0xff]
  %v3848 = vld [vmem:[#allocation3 + $0x180] sm:$0xff]
  %v3849 = vld [vmem:[#allocation3 + $0x188] sm:$0xff]
  %v3850 = vld [vmem:[#allocation3 + $0x190] sm:$0xff]
  %v3851 = vld [vmem:[#allocation3 + $0x198] sm:$0xff]
  %v3852 = vld [vmem:[#allocation3 + $0x1a0] sm:$0xff]
  %v3853 = vld [vmem:[#allocation3 + $0x1a8] sm:$0xff]
  %v3854 = vld [vmem:[#allocation3 + $0x1b0] sm:$0xff]
  %v3855 = vld [vmem:[#allocation3 + $0x1b8] sm:$0xff]
  %v3856 = vld [vmem:[#allocation3 + $0x1c0] sm:$0xff]
  %v3857 = vld [vmem:[#allocation3 + $0x1c8] sm:$0xff]
  %v3858 = vld [vmem:[#allocation3 + $0x1d0] sm:$0xff]
  %v3859 = vld [vmem:[#allocation3 + $0x1d8] sm:$0xff]
  %v3860 = vld [vmem:[#allocation3 + $0x1e0] sm:$0xff]
  %v3861 = vld [vmem:[#allocation3 + $0x1e8] sm:$0xff]
  %v3862 = vld [vmem:[#allocation3 + $0x1f0] sm:$0xff]
  %v3863 = vld [vmem:[#allocation3 + $0x1f8] sm:$0xff]
  %v3864 = vld [vmem:[#allocation3 + $0x200] sm:$0xff]
  %v3865 = vld [vmem:[#allocation3 + $0x208] sm:$0xff]
  %v3866 = vld [vmem:[#allocation3 + $0x210] sm:$0xff]
  %v3867 = vld [vmem:[#allocation3 + $0x218] sm:$0xff]
  %v3868 = vld [vmem:[#allocation3 + $0x220] sm:$0xff]
  %v3869 = vld [vmem:[#allocation3 + $0x228] sm:$0xff]
  %v3870 = vld [vmem:[#allocation3 + $0x230] sm:$0xff]
  %v3871 = vld [vmem:[#allocation3 + $0x238] sm:$0xff]
  %v3872 = vld [vmem:[#allocation3 + $0x240] sm:$0xff]
  %v3873 = vld [vmem:[#allocation3 + $0x248] sm:$0xff]
  %v3874 = vld [vmem:[#allocation3 + $0x250] sm:$0xff]
  %v3875 = vld [vmem:[#allocation3 + $0x258] sm:$0xff]
  %v3876 = vld [vmem:[#allocation3 + $0x260] sm:$0xff]
  %v3877 = vld [vmem:[#allocation3 + $0x268] sm:$0xff]
  %v3878 = vld [vmem:[#allocation3 + $0x270] sm:$0xff]
  %v3879 = vld [vmem:[#allocation3 + $0x278] sm:$0xff]
  %v3880 = vld [vmem:[#allocation3 + $0x280] sm:$0xff]
  %v3881 = vld [vmem:[#allocation3 + $0x288] sm:$0xff]
  %v3882 = vld [vmem:[#allocation3 + $0x290] sm:$0xff]
  %v3883 = vld [vmem:[#allocation3 + $0x298] sm:$0xff]
  %v3884 = vld [vmem:[#allocation3 + $0x2a0] sm:$0xff]
  %v3885 = vld [vmem:[#allocation3 + $0x2a8] sm:$0xff]
  %v3886 = vld [vmem:[#allocation3 + $0x2b0] sm:$0xff]
  %v3887 = vld [vmem:[#allocation3 + $0x2b8] sm:$0xff]
  %v3888 = vld [vmem:[#allocation2 + $0x8] sm:$0xe]
  %v3889 = vld [vmem:[#allocation2 + $0xc] sm:$0xf]
  %v3890 = vld [vmem:[#allocation2 + $0x10] sm:$0xf]
  %v3891 = vld [vmem:[#allocation2 + $0x14] sm:$0xf]
  %v3892 = vld [vmem:[#allocation2 + $0x18] sm:$0xf]
  %v3893 = vld [vmem:[#allocation2 + $0x1c] sm:$0xf]
  %v3894 = vld [vmem:[#allocation2 + $0x20] sm:$0xf]
  %v3895 = vld [vmem:[#allocation2 + $0x24] sm:$0xf]
  %v3896 = vld [vmem:[#allocation2 + $0x28] sm:$0xf]
  %v3897 = vld [vmem:[#allocation2 + $0x2c] sm:$0xf]
  %v3898 = vld [vmem:[#allocation2 + $0x30] sm:$0xf]
  %v3899 = vld [vmem:[#allocation2 + $0x34] sm:$0xf]
  %v3900 = vld [vmem:[#allocation2 + $0x38] sm:$0xf]
  %v3901 = vld [vmem:[#allocation2 + $0x3c] sm:$0xf]
  %v3902 = vld [vmem:[#allocation2 + $0x40] sm:$0xf]
  %v3903 = vld [vmem:[#allocation2 + $0x44] sm:$0xf]
  %v3904 = vld [vmem:[#allocation2 + $0x48] sm:$0xf]
  %v3905 = vld [vmem:[#allocation2 + $0x4c] sm:$0xf]
  %v3906 = vld [vmem:[#allocation2 + $0x50] sm:$0xf]
  %v3907 = vld [vmem:[#allocation2 + $0x54] sm:$0xf]
  %v3908 = vld [vmem:[#allocation2 + $0x58] sm:$0xf]
  %v3909 = vld [vmem:[#allocation2 + $0x5c] sm:$0xf]
  %v3910 = vld [vmem:[#allocation2 + $0x60] sm:$0xf]
  %v3911 = vld [vmem:[#allocation2 + $0x64] sm:$0xf]
  %v3912 = vld [vmem:[#allocation2 + $0x68] sm:$0xf]
  %v3913 = vld [vmem:[#allocation2 + $0x6c] sm:$0xf]
  %v3914 = vld [vmem:[#allocation2 + $0x70] sm:$0xf]
  %v3915 = vld [vmem:[#allocation2 + $0x74] sm:$0xf]
  %v3916 = vld [vmem:[#allocation2 + $0x78] sm:$0xf]
  %v3917 = vld [vmem:[#allocation2 + $0x7c] sm:$0xf]
  %v3918 = vld [vmem:[#allocation2 + $0x80] sm:$0xf]
  %v3919 = vld [vmem:[#allocation2 + $0x84] sm:$0xf]
  %v3920 = vld [vmem:[#allocation2 + $0x88] sm:$0xf]
  %v3921 = vld [vmem:[#allocation2 + $0x8c] sm:$0xf]
  %v3922 = vld [vmem:[#allocation2 + $0x90] sm:$0xf]
  %v3923 = vld [vmem:[#allocation2 + $0x94] sm:$0xf]
  %v3924 = vld [vmem:[#allocation2 + $0x98] sm:$0xf]
  %v3925 = vld [vmem:[#allocation2 + $0x9c] sm:$0xf]
  %v3926 = vld [vmem:[#allocation2 + $0xa0] sm:$0xf]
  %v3927 = vld [vmem:[#allocation2 + $0xa4] sm:$0xf]
  %v3928 = vld [vmem:[#allocation2 + $0xa8] sm:$0xf]
  %v3929 = vld [vmem:[#allocation2 + $0xac] sm:$0xf]
  %v3930 = vld [vmem:[#allocation2 + $0xb0] sm:$0xf]
  %v3931 = vld [vmem:[#allocation2 + $0xb4] sm:$0xf]
  %v3932 = vld [vmem:[#allocation2 + $0xb8] sm:$0xf]
  %v3933 = vld [vmem:[#allocation2 + $0xbc] sm:$0xf]
  %v3934 = vld [vmem:[#allocation2 + $0xc0] sm:$0xf]
  %v3935 = vld [vmem:[#allocation2 + $0xc4] sm:$0xf]
  %v3936 = vld [vmem:[#allocation2 + $0xc8] sm:$0xf]
  %v3937 = vld [vmem:[#allocation2 + $0xcc] sm:$0xf]
  %v3938 = vld [vmem:[#allocation2 + $0xd0] sm:$0xf]
  %v3939 = vld [vmem:[#allocation2 + $0xd4] sm:$0xf]
  %v3940 = vld [vmem:[#allocation2 + $0xd8] sm:$0xf]
  %v3941 = vld [vmem:[#allocation2 + $0xdc] sm:$0xf]
  %v3942 = vld [vmem:[#allocation2 + $0xe0] sm:$0xf]
  %v3943 = vld [vmem:[#allocation2 + $0xe4] sm:$0xf]
  %v3944 = vld [vmem:[#allocation2 + $0xe8] sm:$0xf]
  %v3945 = vld [vmem:[#allocation2 + $0xec] sm:$0xf]
  %v3946 = vld [vmem:[#allocation2 + $0xf0] sm:$0xf]
  %v3947 = vld [vmem:[#allocation2 + $0xf4] sm:$0xf]
  %v3948 = vld [vmem:[#allocation2 + $0xf8] sm:$0xf]
  %v3949 = vld [vmem:[#allocation2 + $0xfc] sm:$0xf]
  %v3950 = vld [vmem:[#allocation2 + $0x100] sm:$0xf]
  %v3951 = vld [vmem:[#allocation2 + $0x104] sm:$0xf]
  %v3952 = vld [vmem:[#allocation2 + $0x108] sm:$0xf]
  %v3953 = vld [vmem:[#allocation2 + $0x10c] sm:$0xf]
  %v3954 = vld [vmem:[#allocation2 + $0x110] sm:$0xf]
  %v3955 = vld [vmem:[#allocation2 + $0x114] sm:$0xf]
  %v3956 = vld [vmem:[#allocation2 + $0x118] sm:$0xf]
  %v3957 = vld [vmem:[#allocation2 + $0x11c] sm:$0xf]
  %v3958 = vld [vmem:[#allocation2 + $0x120] sm:$0xf]
  %v3959 = vld [vmem:[#allocation2 + $0x124] sm:$0xf]
  %v3960 = vld [vmem:[#allocation2 + $0x128] sm:$0xf]
  %v3961 = vld [vmem:[#allocation2 + $0x12c] sm:$0xf]
  %v3962 = vld [vmem:[#allocation2 + $0x130] sm:$0xf]
  %v3963 = vld [vmem:[#allocation2 + $0x134] sm:$0xf]
  %v3964 = vld [vmem:[#allocation2 + $0x138] sm:$0xf]
  %v3965 = vld [vmem:[#allocation2 + $0x13c] sm:$0xf]
  %v3966 = vld [vmem:[#allocation2 + $0x140] sm:$0xf]
  %v3967 = vld [vmem:[#allocation2 + $0x144] sm:$0xf]
  %v3968 = vld [vmem:[#allocation2 + $0x148] sm:$0xf]
  %v3969 = vld [vmem:[#allocation2 + $0x14c] sm:$0xf]
  %v3970 = vld [vmem:[#allocation2 + $0x150] sm:$0xf]
  %v3971 = vld [vmem:[#allocation2 + $0x154] sm:$0xf]
  %v3972 = vld [vmem:[#allocation2 + $0x158] sm:$0xf]
  %v3973 = vld [vmem:[#allocation2 + $0x15c] sm:$0xf]
  %v3974 = vld [vmem:[#allocation2 + $0x160] sm:$0xf]
  %v3975 = vld [vmem:[#allocation2 + $0x164] sm:$0xf]
  %v3976 = vld [vmem:[#allocation2 + $0x168] sm:$0x1]
  %s3977 = scalar_lea.vmem %s2, 12
  %v3978 = vld [vmem:[%s3977] sm:$0xf]
  %v4068 = vunpack.c.l.b16 %v3888
  %v4069 = vunpack.c.l.b16 %v3889
  %v4070 = vunpack.c.l.b16 %v3890
  %v4071 = vunpack.c.l.b16 %v3891
  %v4072 = vunpack.c.l.b16 %v3892
  %v4073 = vunpack.c.l.b16 %v3893
  %v4074 = vunpack.c.l.b16 %v3894
  %v4075 = vunpack.c.l.b16 %v3895
  %v4076 = vunpack.c.l.b16 %v3896
  %v4077 = vunpack.c.l.b16 %v3897
  %v4078 = vunpack.c.l.b16 %v3898
  %v4079 = vunpack.c.l.b16 %v3899
  %v4080 = vunpack.c.l.b16 %v3900
  %v4081 = vunpack.c.l.b16 %v3901
  %v4082 = vunpack.c.l.b16 %v3902
  %v4083 = vunpack.c.l.b16 %v3903
  %v4084 = vunpack.c.l.b16 %v3904
  %v4085 = vunpack.c.l.b16 %v3905
  %v4086 = vunpack.c.l.b16 %v3906
  %v4087 = vunpack.c.l.b16 %v3907
  %v4088 = vunpack.c.l.b16 %v3908
  %v4089 = vunpack.c.l.b16 %v3909
  %v4090 = vunpack.c.l.b16 %v3910
  %v4091 = vunpack.c.l.b16 %v3911
  %v4092 = vunpack.c.l.b16 %v3912
  %v4093 = vunpack.c.l.b16 %v3913
  %v4094 = vunpack.c.l.b16 %v3914
  %v4095 = vunpack.c.l.b16 %v3915
  %v4096 = vunpack.c.l.b16 %v3916
  %v4097 = vunpack.c.l.b16 %v3917
  %v4098 = vunpack.c.l.b16 %v3918
  %v4099 = vunpack.c.l.b16 %v3919
  %v4100 = vunpack.c.l.b16 %v3920
  %v4101 = vunpack.c.l.b16 %v3921
  %v4102 = vunpack.c.l.b16 %v3922
  %v4103 = vunpack.c.l.b16 %v3923
  %v4104 = vunpack.c.l.b16 %v3924
  %v4105 = vunpack.c.l.b16 %v3925
  %v4106 = vunpack.c.l.b16 %v3926
  %v4107 = vunpack.c.l.b16 %v3927
  %v4108 = vunpack.c.l.b16 %v3928
  %v4109 = vunpack.c.l.b16 %v3929
  %v4110 = vunpack.c.l.b16 %v3930
  %v4111 = vunpack.c.l.b16 %v3931
  %v4112 = vunpack.c.l.b16 %v3932
  %v4113 = vunpack.c.l.b16 %v3933
  %v4114 = vunpack.c.l.b16 %v3934
  %v4115 = vunpack.c.l.b16 %v3935
  %v4116 = vunpack.c.l.b16 %v3936
  %v4117 = vunpack.c.l.b16 %v3937
  %v4118 = vunpack.c.l.b16 %v3938
  %v4119 = vunpack.c.l.b16 %v3939
  %v4120 = vunpack.c.l.b16 %v3940
  %v4121 = vunpack.c.l.b16 %v3941
  %v4122 = vunpack.c.l.b16 %v3942
  %v4123 = vunpack.c.l.b16 %v3943
  %v4124 = vunpack.c.l.b16 %v3944
  %v4125 = vunpack.c.l.b16 %v3945
  %v4126 = vunpack.c.l.b16 %v3946
  %v4127 = vunpack.c.l.b16 %v3947
  %v4128 = vunpack.c.l.b16 %v3948
  %v4129 = vunpack.c.l.b16 %v3949
  %v4130 = vunpack.c.l.b16 %v3950
  %v4131 = vunpack.c.l.b16 %v3951
  %v4132 = vunpack.c.l.b16 %v3952
  %v4133 = vunpack.c.l.b16 %v3953
  %v4134 = vunpack.c.l.b16 %v3954
  %v4135 = vunpack.c.l.b16 %v3955
  %v4136 = vunpack.c.l.b16 %v3956
  %v4137 = vunpack.c.l.b16 %v3957
  %v4138 = vunpack.c.l.b16 %v3958
  %v4139 = vunpack.c.l.b16 %v3959
  %v4140 = vunpack.c.l.b16 %v3960
  %v4141 = vunpack.c.l.b16 %v3961
  %v4142 = vunpack.c.l.b16 %v3962
  %v4143 = vunpack.c.l.b16 %v3963
  %v4144 = vunpack.c.l.b16 %v3964
  %v4145 = vunpack.c.l.b16 %v3965
  %v4146 = vunpack.c.l.b16 %v3966
  %v4147 = vunpack.c.l.b16 %v3967
  %v4148 = vunpack.c.l.b16 %v3968
  %v4149 = vunpack.c.l.b16 %v3969
  %v4150 = vunpack.c.l.b16 %v3970
  %v4151 = vunpack.c.l.b16 %v3971
  %v4152 = vunpack.c.l.b16 %v3972
  %v4153 = vunpack.c.l.b16 %v3973
  %v4154 = vunpack.c.l.b16 %v3974
  %v4155 = vunpack.c.l.b16 %v3975
  %v4156 = vunpack.c.l.b16 %v3976
  %v4157 = vpack.c.b16 %v4069, %v4068
  %v4158 = vpack.c.b16 %v4071, %v4070
  %v4159 = vpack.c.b16 %v4073, %v4072
  %v4160 = vpack.c.b16 %v4075, %v4074
  %v4161 = vpack.c.b16 %v4077, %v4076
  %v4162 = vpack.c.b16 %v4079, %v4078
  %v4163 = vpack.c.b16 %v4081, %v4080
  %v4164 = vpack.c.b16 %v4083, %v4082
  %v4165 = vpack.c.b16 %v4085, %v4084
  %v4166 = vpack.c.b16 %v4087, %v4086
  %v4167 = vpack.c.b16 %v4089, %v4088
  %v4168 = vpack.c.b16 %v4091, %v4090
  %v4169 = vpack.c.b16 %v4093, %v4092
  %v4170 = vpack.c.b16 %v4095, %v4094
  %v4171 = vpack.c.b16 %v4097, %v4096
  %v4172 = vpack.c.b16 %v4099, %v4098
  %v4173 = vpack.c.b16 %v4101, %v4100
  %v4174 = vpack.c.b16 %v4103, %v4102
  %v4175 = vpack.c.b16 %v4105, %v4104
  %v4176 = vpack.c.b16 %v4107, %v4106
  %v4177 = vpack.c.b16 %v4109, %v4108
  %v4178 = vpack.c.b16 %v4111, %v4110
  %v4179 = vpack.c.b16 %v4113, %v4112
  %v4180 = vpack.c.b16 %v4115, %v4114
  %v4181 = vpack.c.b16 %v4117, %v4116
  %v4182 = vpack.c.b16 %v4119, %v4118
  %v4183 = vpack.c.b16 %v4121, %v4120
  %v4184 = vpack.c.b16 %v4123, %v4122
  %v4185 = vpack.c.b16 %v4125, %v4124
  %v4186 = vpack.c.b16 %v4127, %v4126
  %v4187 = vpack.c.b16 %v4129, %v4128
  %v4188 = vpack.c.b16 %v4131, %v4130
  %v4189 = vpack.c.b16 %v4133, %v4132
  %v4190 = vpack.c.b16 %v4135, %v4134
  %v4191 = vpack.c.b16 %v4137, %v4136
  %v4192 = vpack.c.b16 %v4139, %v4138
  %v4193 = vpack.c.b16 %v4141, %v4140
  %v4194 = vpack.c.b16 %v4143, %v4142
  %v4195 = vpack.c.b16 %v4145, %v4144
  %v4196 = vpack.c.b16 %v4147, %v4146
  %v4197 = vpack.c.b16 %v4149, %v4148
  %v4198 = vpack.c.b16 %v4151, %v4150
  %v4199 = vpack.c.b16 %v4153, %v4152
  %v4200 = vpack.c.b16 %v4155, %v4154
  %v4201 = vpack.c.b16 %v4156, %v4156
  %v4202 = vrot.slane %v4157, 1
  %v4203 = vrot.slane %v4158, 1
  %v4204 = vsel %vm3014, %v4202, %v4203
  %v4205 = vrot.slane %v4159, 1
  %v4206 = vsel %vm3014, %v4203, %v4205
  %v4207 = vrot.slane %v4160, 1
  %v4208 = vsel %vm3014, %v4205, %v4207
  %v4209 = vrot.slane %v4161, 1
  %v4210 = vsel %vm3014, %v4207, %v4209
  %v4211 = vrot.slane %v4162, 1
  %v4212 = vsel %vm3014, %v4209, %v4211
  %v4213 = vrot.slane %v4163, 1
  %v4214 = vsel %vm3014, %v4211, %v4213
  %v4215 = vrot.slane %v4164, 1
  %v4216 = vsel %vm3014, %v4213, %v4215
  %v4217 = vrot.slane %v4165, 1
  %v4218 = vsel %vm3014, %v4215, %v4217
  %v4219 = vrot.slane %v4166, 1
  %v4220 = vsel %vm3014, %v4217, %v4219
  %v4221 = vrot.slane %v4167, 1
  %v4222 = vsel %vm3014, %v4219, %v4221
  %v4223 = vrot.slane %v4168, 1
  %v4224 = vsel %vm3014, %v4221, %v4223
  %v4225 = vrot.slane %v4169, 1
  %v4226 = vsel %vm3014, %v4223, %v4225
  %v4227 = vrot.slane %v4170, 1
  %v4228 = vsel %vm3014, %v4225, %v4227
  %v4229 = vrot.slane %v4171, 1
  %v4230 = vsel %vm3014, %v4227, %v4229
  %v4231 = vrot.slane %v4172, 1
  %v4232 = vsel %vm3014, %v4229, %v4231
  %v4233 = vrot.slane %v4173, 1
  %v4234 = vsel %vm3014, %v4231, %v4233
  %v4235 = vrot.slane %v4174, 1
  %v4236 = vsel %vm3014, %v4233, %v4235
  %v4237 = vrot.slane %v4175, 1
  %v4238 = vsel %vm3014, %v4235, %v4237
  %v4239 = vrot.slane %v4176, 1
  %v4240 = vsel %vm3014, %v4237, %v4239
  %v4241 = vrot.slane %v4177, 1
  %v4242 = vsel %vm3014, %v4239, %v4241
  %v4243 = vrot.slane %v4178, 1
  %v4244 = vsel %vm3014, %v4241, %v4243
  %v4245 = vrot.slane %v4179, 1
  %v4246 = vsel %vm3014, %v4243, %v4245
  %v4247 = vrot.slane %v4180, 1
  %v4248 = vsel %vm3014, %v4245, %v4247
  %v4249 = vrot.slane %v4181, 1
  %v4250 = vsel %vm3014, %v4247, %v4249
  %v4251 = vrot.slane %v4182, 1
  %v4252 = vsel %vm3014, %v4249, %v4251
  %v4253 = vrot.slane %v4183, 1
  %v4254 = vsel %vm3014, %v4251, %v4253
  %v4255 = vrot.slane %v4184, 1
  %v4256 = vsel %vm3014, %v4253, %v4255
  %v4257 = vrot.slane %v4185, 1
  %v4258 = vsel %vm3014, %v4255, %v4257
  %v4259 = vrot.slane %v4186, 1
  %v4260 = vsel %vm3014, %v4257, %v4259
  %v4261 = vrot.slane %v4187, 1
  %v4262 = vsel %vm3014, %v4259, %v4261
  %v4263 = vrot.slane %v4188, 1
  %v4264 = vsel %vm3014, %v4261, %v4263
  %v4265 = vrot.slane %v4189, 1
  %v4266 = vsel %vm3014, %v4263, %v4265
  %v4267 = vrot.slane %v4190, 1
  %v4268 = vsel %vm3014, %v4265, %v4267
  %v4269 = vrot.slane %v4191, 1
  %v4270 = vsel %vm3014, %v4267, %v4269
  %v4271 = vrot.slane %v4192, 1
  %v4272 = vsel %vm3014, %v4269, %v4271
  %v4273 = vrot.slane %v4193, 1
  %v4274 = vsel %vm3014, %v4271, %v4273
  %v4275 = vrot.slane %v4194, 1
  %v4276 = vsel %vm3014, %v4273, %v4275
  %v4277 = vrot.slane %v4195, 1
  %v4278 = vsel %vm3014, %v4275, %v4277
  %v4279 = vrot.slane %v4196, 1
  %v4280 = vsel %vm3014, %v4277, %v4279
  %v4281 = vrot.slane %v4197, 1
  %v4282 = vsel %vm3014, %v4279, %v4281
  %v4283 = vrot.slane %v4198, 1
  %v4284 = vsel %vm3014, %v4281, %v4283
  %v4285 = vrot.slane %v4199, 1
  %v4286 = vsel %vm3014, %v4283, %v4285
  %v4287 = vrot.slane %v4200, 1
  %v4288 = vsel %vm3014, %v4285, %v4287
  %v4289 = vrot.slane %v4201, 1
  %v4290 = vsel %vm3014, %v4287, %v4289
  %v4292 = vsel %vm547, %v4204, 0
  %v4295 = vsel %vm547, %v4206, 0
  %v4298 = vsel %vm547, %v4208, 0
  %v4301 = vsel %vm547, %v4210, 0
  %v4304 = vsel %vm547, %v4212, 0
  %v4307 = vsel %vm547, %v4214, 0
  %v4310 = vsel %vm547, %v4216, 0
  %v4313 = vsel %vm547, %v4218, 0
  %v4316 = vsel %vm547, %v4220, 0
  %v4319 = vsel %vm547, %v4222, 0
  %v4322 = vsel %vm547, %v4224, 0
  %v4325 = vsel %vm547, %v4226, 0
  %v4328 = vsel %vm547, %v4228, 0
  %v4331 = vsel %vm547, %v4230, 0
  %v4334 = vsel %vm547, %v4232, 0
  %v4337 = vsel %vm547, %v4234, 0
  %v4340 = vsel %vm547, %v4236, 0
  %v4343 = vsel %vm547, %v4238, 0
  %v4346 = vsel %vm547, %v4240, 0
  %v4349 = vsel %vm547, %v4242, 0
  %v4352 = vsel %vm547, %v4244, 0
  %v4355 = vsel %vm547, %v4246, 0
  %v4358 = vsel %vm547, %v4248, 0
  %v4361 = vsel %vm547, %v4250, 0
  %v4364 = vsel %vm547, %v4252, 0
  %v4367 = vsel %vm547, %v4254, 0
  %v4370 = vsel %vm547, %v4256, 0
  %v4373 = vsel %vm547, %v4258, 0
  %v4376 = vsel %vm547, %v4260, 0
  %v4379 = vsel %vm547, %v4262, 0
  %v4382 = vsel %vm547, %v4264, 0
  %v4385 = vsel %vm547, %v4266, 0
  %v4388 = vsel %vm547, %v4268, 0
  %v4391 = vsel %vm547, %v4270, 0
  %v4394 = vsel %vm547, %v4272, 0
  %v4397 = vsel %vm547, %v4274, 0
  %v4400 = vsel %vm547, %v4276, 0
  %v4403 = vsel %vm547, %v4278, 0
  %v4406 = vsel %vm547, %v4280, 0
  %v4409 = vsel %vm547, %v4282, 0
  %v4412 = vsel %vm547, %v4284, 0
  %v4415 = vsel %vm547, %v4286, 0
  %v4418 = vsel %vm547, %v4288, 0
  %v4421 = vsel %vm547, %v4290, 0
  %v4424 = vsel %vm680, %v3978, 0
  %4426 = vmatprep.subr.bf16.mxu0 0
  %4427 = vmatpush1.bf16.msra.mxu0 0
  %4428 = vmatprep.subr.bf16.mxu0 0
  %4429 = vmatpush1.bf16.msra.mxu0 0
  %4430 = vmatprep.subr.bf16.mxu0 0
  %4431 = vmatpush1.bf16.msra.mxu0 0
  %4432 = vmatprep.subr.bf16.mxu0 0
  %4433 = vmatpush1.bf16.msra.mxu0 0
  %4434 = vmatprep.subr.bf16.mxu0 0
  %4435 = vmatpush1.bf16.msra.mxu0 0
  %4436 = vmatprep.subr.bf16.mxu0 0
  %4437 = vmatpush1.bf16.msra.mxu0 0
  %4438 = vmatprep.subr.bf16.mxu0 0
  %4439 = vmatpush1.bf16.msra.mxu0 0
  %4440 = vmatprep.subr.bf16.mxu0 0
  %4441 = vmatpush1.bf16.msra.mxu0 %v4424
  %4442 = vmatprep.subr.bf16.mxu0 0
  %4443 = vmatpush2.bf16.msra.mxu0 0
  %4444 = vmatprep.subr.bf16.mxu0 0
  %4445 = vmatpush2.bf16.msra.mxu0 0
  %4446 = vmatprep.subr.bf16.mxu0 0
  %4447 = vmatpush2.bf16.msra.mxu0 0
  %4448 = vmatprep.subr.bf16.mxu0 0
  %4449 = vmatpush2.bf16.msra.mxu0 0
  %4450 = vmatprep.subr.bf16.mxu0 0
  %4451 = vmatpush2.bf16.msra.mxu0 0
  %4452 = vmatprep.subr.bf16.mxu0 0
  %4453 = vmatpush2.bf16.msra.mxu0 0
  %4454 = vmatprep.subr.bf16.mxu0 0
  %4455 = vmatpush2.bf16.msra.mxu0 0
  %4456 = vmatprep.subr.bf16.mxu0 0
  %4457 = vmatpush2.bf16.msra.mxu0 0
  %4458 = vmatprep.mubr.bf16.mxu0 0
  %4459 = vmatmul.mubr.bf16.gmra.mxu0 %v4292
  %v4460 = vpop.f32.mrf.mxu0
  %v4461 = vadd.f32 0.0, %v4460
  %v4462 = vpop.f32.mrf.mxu0
  %v4463 = vpop.f32.mrf.mxu0
  %v4464 = vadd.f32 0.0, %v4463
  %v4465 = vpop.f32.mrf.mxu0
  %4466 = vmatprep.mubr.bf16.mxu0 0
  %4467 = vmatmul.mubr.bf16.gmra.mxu0 %v4295
  %v4468 = vpop.f32.mrf.mxu0
  %v4469 = vadd.f32 0.0, %v4468
  %v4470 = vpop.f32.mrf.mxu0
  %v4471 = vpop.f32.mrf.mxu0
  %v4472 = vadd.f32 0.0, %v4471
  %v4473 = vpop.f32.mrf.mxu0
  %4474 = vmatprep.mubr.bf16.mxu0 0
  %4475 = vmatmul.mubr.bf16.gmra.mxu0 %v4298
  %v4476 = vpop.f32.mrf.mxu0
  %v4477 = vadd.f32 0.0, %v4476
  %v4478 = vpop.f32.mrf.mxu0
  %v4479 = vpop.f32.mrf.mxu0
  %v4480 = vadd.f32 0.0, %v4479
  %v4481 = vpop.f32.mrf.mxu0
  %4482 = vmatprep.mubr.bf16.mxu0 0
  %4483 = vmatmul.mubr.bf16.gmra.mxu0 %v4301
  %v4484 = vpop.f32.mrf.mxu0
  %v4485 = vadd.f32 0.0, %v4484
  %v4486 = vpop.f32.mrf.mxu0
  %v4487 = vpop.f32.mrf.mxu0
  %v4488 = vadd.f32 0.0, %v4487
  %v4489 = vpop.f32.mrf.mxu0
  %4490 = vmatprep.mubr.bf16.mxu0 0
  %4491 = vmatmul.mubr.bf16.gmra.mxu0 %v4304
  %v4492 = vpop.f32.mrf.mxu0
  %v4493 = vadd.f32 0.0, %v4492
  %v4494 = vpop.f32.mrf.mxu0
  %v4495 = vpop.f32.mrf.mxu0
  %v4496 = vadd.f32 0.0, %v4495
  %v4497 = vpop.f32.mrf.mxu0
  %4498 = vmatprep.mubr.bf16.mxu0 0
  %4499 = vmatmul.mubr.bf16.gmra.mxu0 %v4307
  %v4500 = vpop.f32.mrf.mxu0
  %v4501 = vadd.f32 0.0, %v4500
  %v4502 = vpop.f32.mrf.mxu0
  %v4503 = vpop.f32.mrf.mxu0
  %v4504 = vadd.f32 0.0, %v4503
  %v4505 = vpop.f32.mrf.mxu0
  %4506 = vmatprep.mubr.bf16.mxu0 0
  %4507 = vmatmul.mubr.bf16.gmra.mxu0 %v4310
  %v4508 = vpop.f32.mrf.mxu0
  %v4509 = vadd.f32 0.0, %v4508
  %v4510 = vpop.f32.mrf.mxu0
  %v4511 = vpop.f32.mrf.mxu0
  %v4512 = vadd.f32 0.0, %v4511
  %v4513 = vpop.f32.mrf.mxu0
  %4514 = vmatprep.mubr.bf16.mxu0 0
  %4515 = vmatmul.mubr.bf16.gmra.mxu0 %v4313
  %v4516 = vpop.f32.mrf.mxu0
  %v4517 = vadd.f32 0.0, %v4516
  %v4518 = vpop.f32.mrf.mxu0
  %v4519 = vpop.f32.mrf.mxu0
  %v4520 = vadd.f32 0.0, %v4519
  %v4521 = vpop.f32.mrf.mxu0
  %4522 = vmatprep.mubr.bf16.mxu0 0
  %4523 = vmatmul.mubr.bf16.gmra.mxu0 %v4316
  %v4524 = vpop.f32.mrf.mxu0
  %v4525 = vadd.f32 0.0, %v4524
  %v4526 = vpop.f32.mrf.mxu0
  %v4527 = vpop.f32.mrf.mxu0
  %v4528 = vadd.f32 0.0, %v4527
  %v4529 = vpop.f32.mrf.mxu0
  %4530 = vmatprep.mubr.bf16.mxu0 0
  %4531 = vmatmul.mubr.bf16.gmra.mxu0 %v4319
  %v4532 = vpop.f32.mrf.mxu0
  %v4533 = vadd.f32 0.0, %v4532
  %v4534 = vpop.f32.mrf.mxu0
  %v4535 = vpop.f32.mrf.mxu0
  %v4536 = vadd.f32 0.0, %v4535
  %v4537 = vpop.f32.mrf.mxu0
  %4538 = vmatprep.mubr.bf16.mxu0 0
  %4539 = vmatmul.mubr.bf16.gmra.mxu0 %v4322
  %v4540 = vpop.f32.mrf.mxu0
  %v4541 = vadd.f32 0.0, %v4540
  %v4542 = vpop.f32.mrf.mxu0
  %v4543 = vpop.f32.mrf.mxu0
  %v4544 = vadd.f32 0.0, %v4543
  %v4545 = vpop.f32.mrf.mxu0
  %4546 = vmatprep.mubr.bf16.mxu0 0
  %4547 = vmatmul.mubr.bf16.gmra.mxu0 %v4325
  %v4548 = vpop.f32.mrf.mxu0
  %v4549 = vadd.f32 0.0, %v4548
  %v4550 = vpop.f32.mrf.mxu0
  %v4551 = vpop.f32.mrf.mxu0
  %v4552 = vadd.f32 0.0, %v4551
  %v4553 = vpop.f32.mrf.mxu0
  %4554 = vmatprep.mubr.bf16.mxu0 0
  %4555 = vmatmul.mubr.bf16.gmra.mxu0 %v4328
  %v4556 = vpop.f32.mrf.mxu0
  %v4557 = vadd.f32 0.0, %v4556
  %v4558 = vpop.f32.mrf.mxu0
  %v4559 = vpop.f32.mrf.mxu0
  %v4560 = vadd.f32 0.0, %v4559
  %v4561 = vpop.f32.mrf.mxu0
  %4562 = vmatprep.mubr.bf16.mxu0 0
  %4563 = vmatmul.mubr.bf16.gmra.mxu0 %v4331
  %v4564 = vpop.f32.mrf.mxu0
  %v4565 = vadd.f32 0.0, %v4564
  %v4566 = vpop.f32.mrf.mxu0
  %v4567 = vpop.f32.mrf.mxu0
  %v4568 = vadd.f32 0.0, %v4567
  %v4569 = vpop.f32.mrf.mxu0
  %4570 = vmatprep.mubr.bf16.mxu0 0
  %4571 = vmatmul.mubr.bf16.gmra.mxu0 %v4334
  %v4572 = vpop.f32.mrf.mxu0
  %v4573 = vadd.f32 0.0, %v4572
  %v4574 = vpop.f32.mrf.mxu0
  %v4575 = vpop.f32.mrf.mxu0
  %v4576 = vadd.f32 0.0, %v4575
  %v4577 = vpop.f32.mrf.mxu0
  %4578 = vmatprep.mubr.bf16.mxu0 0
  %4579 = vmatmul.mubr.bf16.gmra.mxu0 %v4337
  %v4580 = vpop.f32.mrf.mxu0
  %v4581 = vadd.f32 0.0, %v4580
  %v4582 = vpop.f32.mrf.mxu0
  %v4583 = vpop.f32.mrf.mxu0
  %v4584 = vadd.f32 0.0, %v4583
  %v4585 = vpop.f32.mrf.mxu0
  %4586 = vmatprep.mubr.bf16.mxu0 0
  %4587 = vmatmul.mubr.bf16.gmra.mxu0 %v4340
  %v4588 = vpop.f32.mrf.mxu0
  %v4589 = vadd.f32 0.0, %v4588
  %v4590 = vpop.f32.mrf.mxu0
  %v4591 = vpop.f32.mrf.mxu0
  %v4592 = vadd.f32 0.0, %v4591
  %v4593 = vpop.f32.mrf.mxu0
  %4594 = vmatprep.mubr.bf16.mxu0 0
  %4595 = vmatmul.mubr.bf16.gmra.mxu0 %v4343
  %v4596 = vpop.f32.mrf.mxu0
  %v4597 = vadd.f32 0.0, %v4596
  %v4598 = vpop.f32.mrf.mxu0
  %v4599 = vpop.f32.mrf.mxu0
  %v4600 = vadd.f32 0.0, %v4599
  %v4601 = vpop.f32.mrf.mxu0
  %4602 = vmatprep.mubr.bf16.mxu0 0
  %4603 = vmatmul.mubr.bf16.gmra.mxu0 %v4346
  %v4604 = vpop.f32.mrf.mxu0
  %v4605 = vadd.f32 0.0, %v4604
  %v4606 = vpop.f32.mrf.mxu0
  %v4607 = vpop.f32.mrf.mxu0
  %v4608 = vadd.f32 0.0, %v4607
  %v4609 = vpop.f32.mrf.mxu0
  %4610 = vmatprep.mubr.bf16.mxu0 0
  %4611 = vmatmul.mubr.bf16.gmra.mxu0 %v4349
  %v4612 = vpop.f32.mrf.mxu0
  %v4613 = vadd.f32 0.0, %v4612
  %v4614 = vpop.f32.mrf.mxu0
  %v4615 = vpop.f32.mrf.mxu0
  %v4616 = vadd.f32 0.0, %v4615
  %v4617 = vpop.f32.mrf.mxu0
  %4618 = vmatprep.mubr.bf16.mxu0 0
  %4619 = vmatmul.mubr.bf16.gmra.mxu0 %v4352
  %v4620 = vpop.f32.mrf.mxu0
  %v4621 = vadd.f32 0.0, %v4620
  %v4622 = vpop.f32.mrf.mxu0
  %v4623 = vpop.f32.mrf.mxu0
  %v4624 = vadd.f32 0.0, %v4623
  %v4625 = vpop.f32.mrf.mxu0
  %4626 = vmatprep.mubr.bf16.mxu0 0
  %4627 = vmatmul.mubr.bf16.gmra.mxu0 %v4355
  %v4628 = vpop.f32.mrf.mxu0
  %v4629 = vadd.f32 0.0, %v4628
  %v4630 = vpop.f32.mrf.mxu0
  %v4631 = vpop.f32.mrf.mxu0
  %v4632 = vadd.f32 0.0, %v4631
  %v4633 = vpop.f32.mrf.mxu0
  %4634 = vmatprep.mubr.bf16.mxu0 0
  %4635 = vmatmul.mubr.bf16.gmra.mxu0 %v4358
  %v4636 = vpop.f32.mrf.mxu0
  %v4637 = vadd.f32 0.0, %v4636
  %v4638 = vpop.f32.mrf.mxu0
  %v4639 = vpop.f32.mrf.mxu0
  %v4640 = vadd.f32 0.0, %v4639
  %v4641 = vpop.f32.mrf.mxu0
  %4642 = vmatprep.mubr.bf16.mxu0 0
  %4643 = vmatmul.mubr.bf16.gmra.mxu0 %v4361
  %v4644 = vpop.f32.mrf.mxu0
  %v4645 = vadd.f32 0.0, %v4644
  %v4646 = vpop.f32.mrf.mxu0
  %v4647 = vpop.f32.mrf.mxu0
  %v4648 = vadd.f32 0.0, %v4647
  %v4649 = vpop.f32.mrf.mxu0
  %4650 = vmatprep.mubr.bf16.mxu0 0
  %4651 = vmatmul.mubr.bf16.gmra.mxu0 %v4364
  %v4652 = vpop.f32.mrf.mxu0
  %v4653 = vadd.f32 0.0, %v4652
  %v4654 = vpop.f32.mrf.mxu0
  %v4655 = vpop.f32.mrf.mxu0
  %v4656 = vadd.f32 0.0, %v4655
  %v4657 = vpop.f32.mrf.mxu0
  %4658 = vmatprep.mubr.bf16.mxu0 0
  %4659 = vmatmul.mubr.bf16.gmra.mxu0 %v4367
  %v4660 = vpop.f32.mrf.mxu0
  %v4661 = vadd.f32 0.0, %v4660
  %v4662 = vpop.f32.mrf.mxu0
  %v4663 = vpop.f32.mrf.mxu0
  %v4664 = vadd.f32 0.0, %v4663
  %v4665 = vpop.f32.mrf.mxu0
  %4666 = vmatprep.mubr.bf16.mxu0 0
  %4667 = vmatmul.mubr.bf16.gmra.mxu0 %v4370
  %v4668 = vpop.f32.mrf.mxu0
  %v4669 = vadd.f32 0.0, %v4668
  %v4670 = vpop.f32.mrf.mxu0
  %v4671 = vpop.f32.mrf.mxu0
  %v4672 = vadd.f32 0.0, %v4671
  %v4673 = vpop.f32.mrf.mxu0
  %4674 = vmatprep.mubr.bf16.mxu0 0
  %4675 = vmatmul.mubr.bf16.gmra.mxu0 %v4373
  %v4676 = vpop.f32.mrf.mxu0
  %v4677 = vadd.f32 0.0, %v4676
  %v4678 = vpop.f32.mrf.mxu0
  %v4679 = vpop.f32.mrf.mxu0
  %v4680 = vadd.f32 0.0, %v4679
  %v4681 = vpop.f32.mrf.mxu0
  %4682 = vmatprep.mubr.bf16.mxu0 0
  %4683 = vmatmul.mubr.bf16.gmra.mxu0 %v4376
  %v4684 = vpop.f32.mrf.mxu0
  %v4685 = vadd.f32 0.0, %v4684
  %v4686 = vpop.f32.mrf.mxu0
  %v4687 = vpop.f32.mrf.mxu0
  %v4688 = vadd.f32 0.0, %v4687
  %v4689 = vpop.f32.mrf.mxu0
  %4690 = vmatprep.mubr.bf16.mxu0 0
  %4691 = vmatmul.mubr.bf16.gmra.mxu0 %v4379
  %v4692 = vpop.f32.mrf.mxu0
  %v4693 = vadd.f32 0.0, %v4692
  %v4694 = vpop.f32.mrf.mxu0
  %v4695 = vpop.f32.mrf.mxu0
  %v4696 = vadd.f32 0.0, %v4695
  %v4697 = vpop.f32.mrf.mxu0
  %4698 = vmatprep.mubr.bf16.mxu0 0
  %4699 = vmatmul.mubr.bf16.gmra.mxu0 %v4382
  %v4700 = vpop.f32.mrf.mxu0
  %v4701 = vadd.f32 0.0, %v4700
  %v4702 = vpop.f32.mrf.mxu0
  %v4703 = vpop.f32.mrf.mxu0
  %v4704 = vadd.f32 0.0, %v4703
  %v4705 = vpop.f32.mrf.mxu0
  %4706 = vmatprep.mubr.bf16.mxu0 0
  %4707 = vmatmul.mubr.bf16.gmra.mxu0 %v4385
  %v4708 = vpop.f32.mrf.mxu0
  %v4709 = vadd.f32 0.0, %v4708
  %v4710 = vpop.f32.mrf.mxu0
  %v4711 = vpop.f32.mrf.mxu0
  %v4712 = vadd.f32 0.0, %v4711
  %v4713 = vpop.f32.mrf.mxu0
  %4714 = vmatprep.mubr.bf16.mxu0 0
  %4715 = vmatmul.mubr.bf16.gmra.mxu0 %v4388
  %v4716 = vpop.f32.mrf.mxu0
  %v4717 = vadd.f32 0.0, %v4716
  %v4718 = vpop.f32.mrf.mxu0
  %v4719 = vpop.f32.mrf.mxu0
  %v4720 = vadd.f32 0.0, %v4719
  %v4721 = vpop.f32.mrf.mxu0
  %4722 = vmatprep.mubr.bf16.mxu0 0
  %4723 = vmatmul.mubr.bf16.gmra.mxu0 %v4391
  %v4724 = vpop.f32.mrf.mxu0
  %v4725 = vadd.f32 0.0, %v4724
  %v4726 = vpop.f32.mrf.mxu0
  %v4727 = vpop.f32.mrf.mxu0
  %v4728 = vadd.f32 0.0, %v4727
  %v4729 = vpop.f32.mrf.mxu0
  %4730 = vmatprep.mubr.bf16.mxu0 0
  %4731 = vmatmul.mubr.bf16.gmra.mxu0 %v4394
  %v4732 = vpop.f32.mrf.mxu0
  %v4733 = vadd.f32 0.0, %v4732
  %v4734 = vpop.f32.mrf.mxu0
  %v4735 = vpop.f32.mrf.mxu0
  %v4736 = vadd.f32 0.0, %v4735
  %v4737 = vpop.f32.mrf.mxu0
  %4738 = vmatprep.mubr.bf16.mxu0 0
  %4739 = vmatmul.mubr.bf16.gmra.mxu0 %v4397
  %v4740 = vpop.f32.mrf.mxu0
  %v4741 = vadd.f32 0.0, %v4740
  %v4742 = vpop.f32.mrf.mxu0
  %v4743 = vpop.f32.mrf.mxu0
  %v4744 = vadd.f32 0.0, %v4743
  %v4745 = vpop.f32.mrf.mxu0
  %4746 = vmatprep.mubr.bf16.mxu0 0
  %4747 = vmatmul.mubr.bf16.gmra.mxu0 %v4400
  %v4748 = vpop.f32.mrf.mxu0
  %v4749 = vadd.f32 0.0, %v4748
  %v4750 = vpop.f32.mrf.mxu0
  %v4751 = vpop.f32.mrf.mxu0
  %v4752 = vadd.f32 0.0, %v4751
  %v4753 = vpop.f32.mrf.mxu0
  %4754 = vmatprep.mubr.bf16.mxu0 0
  %4755 = vmatmul.mubr.bf16.gmra.mxu0 %v4403
  %v4756 = vpop.f32.mrf.mxu0
  %v4757 = vadd.f32 0.0, %v4756
  %v4758 = vpop.f32.mrf.mxu0
  %v4759 = vpop.f32.mrf.mxu0
  %v4760 = vadd.f32 0.0, %v4759
  %v4761 = vpop.f32.mrf.mxu0
  %4762 = vmatprep.mubr.bf16.mxu0 0
  %4763 = vmatmul.mubr.bf16.gmra.mxu0 %v4406
  %v4764 = vpop.f32.mrf.mxu0
  %v4765 = vadd.f32 0.0, %v4764
  %v4766 = vpop.f32.mrf.mxu0
  %v4767 = vpop.f32.mrf.mxu0
  %v4768 = vadd.f32 0.0, %v4767
  %v4769 = vpop.f32.mrf.mxu0
  %4770 = vmatprep.mubr.bf16.mxu0 0
  %4771 = vmatmul.mubr.bf16.gmra.mxu0 %v4409
  %v4772 = vpop.f32.mrf.mxu0
  %v4773 = vadd.f32 0.0, %v4772
  %v4774 = vpop.f32.mrf.mxu0
  %v4775 = vpop.f32.mrf.mxu0
  %v4776 = vadd.f32 0.0, %v4775
  %v4777 = vpop.f32.mrf.mxu0
  %4778 = vmatprep.mubr.bf16.mxu0 0
  %4779 = vmatmul.mubr.bf16.gmra.mxu0 %v4412
  %v4780 = vpop.f32.mrf.mxu0
  %v4781 = vadd.f32 0.0, %v4780
  %v4782 = vpop.f32.mrf.mxu0
  %v4783 = vpop.f32.mrf.mxu0
  %v4784 = vadd.f32 0.0, %v4783
  %v4785 = vpop.f32.mrf.mxu0
  %4786 = vmatprep.mubr.bf16.mxu0 0
  %4787 = vmatmul.mubr.bf16.gmra.mxu0 %v4415
  %v4788 = vpop.f32.mrf.mxu0
  %v4789 = vadd.f32 0.0, %v4788
  %v4790 = vpop.f32.mrf.mxu0
  %v4791 = vpop.f32.mrf.mxu0
  %v4792 = vadd.f32 0.0, %v4791
  %v4793 = vpop.f32.mrf.mxu0
  %4794 = vmatprep.mubr.bf16.mxu0 0
  %4795 = vmatmul.mubr.bf16.gmra.mxu0 %v4418
  %v4796 = vpop.f32.mrf.mxu0
  %v4797 = vadd.f32 0.0, %v4796
  %v4798 = vpop.f32.mrf.mxu0
  %v4799 = vpop.f32.mrf.mxu0
  %v4800 = vadd.f32 0.0, %v4799
  %v4801 = vpop.f32.mrf.mxu0
  %4802 = vmatprep.mubr.bf16.mxu0 0
  %4803 = vmatmul.mubr.bf16.gmra.mxu0 %v4421
  %v4804 = vpop.f32.mrf.mxu0
  %v4805 = vadd.f32 0.0, %v4804
  %v4806 = vpop.f32.mrf.mxu0
  %v4807 = vpop.f32.mrf.mxu0
  %v4808 = vadd.f32 0.0, %v4807
  %v4809 = vpop.f32.mrf.mxu0
  %4810 = vdwg.mxu0
  %v4811 = vadd.f32 %v3800, %v4461
  %v4812 = vadd.f32 %v3801, %v4464
  %v4813 = vadd.f32 %v3802, %v4469
  %v4814 = vadd.f32 %v3803, %v4472
  %v4815 = vadd.f32 %v3804, %v4477
  %v4816 = vadd.f32 %v3805, %v4480
  %v4817 = vadd.f32 %v3806, %v4485
  %v4818 = vadd.f32 %v3807, %v4488
  %v4819 = vadd.f32 %v3808, %v4493
  %v4820 = vadd.f32 %v3809, %v4496
  %v4821 = vadd.f32 %v3810, %v4501
  %v4822 = vadd.f32 %v3811, %v4504
  %v4823 = vadd.f32 %v3812, %v4509
  %v4824 = vadd.f32 %v3813, %v4512
  %v4825 = vadd.f32 %v3814, %v4517
  %v4826 = vadd.f32 %v3815, %v4520
  %v4827 = vadd.f32 %v3816, %v4525
  %v4828 = vadd.f32 %v3817, %v4528
  %v4829 = vadd.f32 %v3818, %v4533
  %v4830 = vadd.f32 %v3819, %v4536
  %v4831 = vadd.f32 %v3820, %v4541
  %v4832 = vadd.f32 %v3821, %v4544
  %v4833 = vadd.f32 %v3822, %v4549
  %v4834 = vadd.f32 %v3823, %v4552
  %v4835 = vadd.f32 %v3824, %v4557
  %v4836 = vadd.f32 %v3825, %v4560
  %v4837 = vadd.f32 %v3826, %v4565
  %v4838 = vadd.f32 %v3827, %v4568
  %v4839 = vadd.f32 %v3828, %v4573
  %v4840 = vadd.f32 %v3829, %v4576
  %v4841 = vadd.f32 %v3830, %v4581
  %v4842 = vadd.f32 %v3831, %v4584
  %v4843 = vadd.f32 %v3832, %v4589
  %v4844 = vadd.f32 %v3833, %v4592
  %v4845 = vadd.f32 %v3834, %v4597
  %v4846 = vadd.f32 %v3835, %v4600
  %v4847 = vadd.f32 %v3836, %v4605
  %v4848 = vadd.f32 %v3837, %v4608
  %v4849 = vadd.f32 %v3838, %v4613
  %v4850 = vadd.f32 %v3839, %v4616
  %v4851 = vadd.f32 %v3840, %v4621
  %v4852 = vadd.f32 %v3841, %v4624
  %v4853 = vadd.f32 %v3842, %v4629
  %v4854 = vadd.f32 %v3843, %v4632
  %v4855 = vadd.f32 %v3844, %v4637
  %v4856 = vadd.f32 %v3845, %v4640
  %v4857 = vadd.f32 %v3846, %v4645
  %v4858 = vadd.f32 %v3847, %v4648
  %v4859 = vadd.f32 %v3848, %v4653
  %v4860 = vadd.f32 %v3849, %v4656
  %v4861 = vadd.f32 %v3850, %v4661
  %v4862 = vadd.f32 %v3851, %v4664
  %v4863 = vadd.f32 %v3852, %v4669
  %v4864 = vadd.f32 %v3853, %v4672
  %v4865 = vadd.f32 %v3854, %v4677
  %v4866 = vadd.f32 %v3855, %v4680
  %v4867 = vadd.f32 %v3856, %v4685
  %v4868 = vadd.f32 %v3857, %v4688
  %v4869 = vadd.f32 %v3858, %v4693
  %v4870 = vadd.f32 %v3859, %v4696
  %v4871 = vadd.f32 %v3860, %v4701
  %v4872 = vadd.f32 %v3861, %v4704
  %v4873 = vadd.f32 %v3862, %v4709
  %v4874 = vadd.f32 %v3863, %v4712
  %v4875 = vadd.f32 %v3864, %v4717
  %v4876 = vadd.f32 %v3865, %v4720
  %v4877 = vadd.f32 %v3866, %v4725
  %v4878 = vadd.f32 %v3867, %v4728
  %v4879 = vadd.f32 %v3868, %v4733
  %v4880 = vadd.f32 %v3869, %v4736
  %v4881 = vadd.f32 %v3870, %v4741
  %v4882 = vadd.f32 %v3871, %v4744
  %v4883 = vadd.f32 %v3872, %v4749
  %v4884 = vadd.f32 %v3873, %v4752
  %v4885 = vadd.f32 %v3874, %v4757
  %v4886 = vadd.f32 %v3875, %v4760
  %v4887 = vadd.f32 %v3876, %v4765
  %v4888 = vadd.f32 %v3877, %v4768
  %v4889 = vadd.f32 %v3878, %v4773
  %v4890 = vadd.f32 %v3879, %v4776
  %v4891 = vadd.f32 %v3880, %v4781
  %v4892 = vadd.f32 %v3881, %v4784
  %v4893 = vadd.f32 %v3882, %v4789
  %v4894 = vadd.f32 %v3883, %v4792
  %v4895 = vadd.f32 %v3884, %v4797
  %v4896 = vadd.f32 %v3885, %v4800
  %v4897 = vadd.f32 %v3886, %v4805
  %v4898 = vadd.f32 %v3887, %v4808
  %4899 = vst [vmem:[#allocation3] sm:$0xff] %v4811
  %4900 = vst [vmem:[#allocation3 + $0x8] sm:$0xff] %v4812
  %4901 = vst [vmem:[#allocation3 + $0x10] sm:$0xff] %v4813
  %4902 = vst [vmem:[#allocation3 + $0x18] sm:$0xff] %v4814
  %4903 = vst [vmem:[#allocation3 + $0x20] sm:$0xff] %v4815
  %4904 = vst [vmem:[#allocation3 + $0x28] sm:$0xff] %v4816
  %4905 = vst [vmem:[#allocation3 + $0x30] sm:$0xff] %v4817
  %4906 = vst [vmem:[#allocation3 + $0x38] sm:$0xff] %v4818
  %4907 = vst [vmem:[#allocation3 + $0x40] sm:$0xff] %v4819
  %4908 = vst [vmem:[#allocation3 + $0x48] sm:$0xff] %v4820
  %4909 = vst [vmem:[#allocation3 + $0x50] sm:$0xff] %v4821
  %4910 = vst [vmem:[#allocation3 + $0x58] sm:$0xff] %v4822
  %4911 = vst [vmem:[#allocation3 + $0x60] sm:$0xff] %v4823
  %4912 = vst [vmem:[#allocation3 + $0x68] sm:$0xff] %v4824
  %4913 = vst [vmem:[#allocation3 + $0x70] sm:$0xff] %v4825
  %4914 = vst [vmem:[#allocation3 + $0x78] sm:$0xff] %v4826
  %4915 = vst [vmem:[#allocation3 + $0x80] sm:$0xff] %v4827
  %4916 = vst [vmem:[#allocation3 + $0x88] sm:$0xff] %v4828
  %4917 = vst [vmem:[#allocation3 + $0x90] sm:$0xff] %v4829
  %4918 = vst [vmem:[#allocation3 + $0x98] sm:$0xff] %v4830
  %4919 = vst [vmem:[#allocation3 + $0xa0] sm:$0xff] %v4831
  %4920 = vst [vmem:[#allocation3 + $0xa8] sm:$0xff] %v4832
  %4921 = vst [vmem:[#allocation3 + $0xb0] sm:$0xff] %v4833
  %4922 = vst [vmem:[#allocation3 + $0xb8] sm:$0xff] %v4834
  %4923 = vst [vmem:[#allocation3 + $0xc0] sm:$0xff] %v4835
  %4924 = vst [vmem:[#allocation3 + $0xc8] sm:$0xff] %v4836
  %4925 = vst [vmem:[#allocation3 + $0xd0] sm:$0xff] %v4837
  %4926 = vst [vmem:[#allocation3 + $0xd8] sm:$0xff] %v4838
  %4927 = vst [vmem:[#allocation3 + $0xe0] sm:$0xff] %v4839
  %4928 = vst [vmem:[#allocation3 + $0xe8] sm:$0xff] %v4840
  %4929 = vst [vmem:[#allocation3 + $0xf0] sm:$0xff] %v4841
  %4930 = vst [vmem:[#allocation3 + $0xf8] sm:$0xff] %v4842
  %4931 = vst [vmem:[#allocation3 + $0x100] sm:$0xff] %v4843
  %4932 = vst [vmem:[#allocation3 + $0x108] sm:$0xff] %v4844
  %4933 = vst [vmem:[#allocation3 + $0x110] sm:$0xff] %v4845
  %4934 = vst [vmem:[#allocation3 + $0x118] sm:$0xff] %v4846
  %4935 = vst [vmem:[#allocation3 + $0x120] sm:$0xff] %v4847
  %4936 = vst [vmem:[#allocation3 + $0x128] sm:$0xff] %v4848
  %4937 = vst [vmem:[#allocation3 + $0x130] sm:$0xff] %v4849
  %4938 = vst [vmem:[#allocation3 + $0x138] sm:$0xff] %v4850
  %4939 = vst [vmem:[#allocation3 + $0x140] sm:$0xff] %v4851
  %4940 = vst [vmem:[#allocation3 + $0x148] sm:$0xff] %v4852
  %4941 = vst [vmem:[#allocation3 + $0x150] sm:$0xff] %v4853
  %4942 = vst [vmem:[#allocation3 + $0x158] sm:$0xff] %v4854
  %4943 = vst [vmem:[#allocation3 + $0x160] sm:$0xff] %v4855
  %4944 = vst [vmem:[#allocation3 + $0x168] sm:$0xff] %v4856
  %4945 = vst [vmem:[#allocation3 + $0x170] sm:$0xff] %v4857
  %4946 = vst [vmem:[#allocation3 + $0x178] sm:$0xff] %v4858
  %4947 = vst [vmem:[#allocation3 + $0x180] sm:$0xff] %v4859
  %4948 = vst [vmem:[#allocation3 + $0x188] sm:$0xff] %v4860
  %4949 = vst [vmem:[#allocation3 + $0x190] sm:$0xff] %v4861
  %4950 = vst [vmem:[#allocation3 + $0x198] sm:$0xff] %v4862
  %4951 = vst [vmem:[#allocation3 + $0x1a0] sm:$0xff] %v4863
  %4952 = vst [vmem:[#allocation3 + $0x1a8] sm:$0xff] %v4864
  %4953 = vst [vmem:[#allocation3 + $0x1b0] sm:$0xff] %v4865
  %4954 = vst [vmem:[#allocation3 + $0x1b8] sm:$0xff] %v4866
  %4955 = vst [vmem:[#allocation3 + $0x1c0] sm:$0xff] %v4867
  %4956 = vst [vmem:[#allocation3 + $0x1c8] sm:$0xff] %v4868
  %4957 = vst [vmem:[#allocation3 + $0x1d0] sm:$0xff] %v4869
  %4958 = vst [vmem:[#allocation3 + $0x1d8] sm:$0xff] %v4870
  %4959 = vst [vmem:[#allocation3 + $0x1e0] sm:$0xff] %v4871
  %4960 = vst [vmem:[#allocation3 + $0x1e8] sm:$0xff] %v4872
  %4961 = vst [vmem:[#allocation3 + $0x1f0] sm:$0xff] %v4873
  %4962 = vst [vmem:[#allocation3 + $0x1f8] sm:$0xff] %v4874
  %4963 = vst [vmem:[#allocation3 + $0x200] sm:$0xff] %v4875
  %4964 = vst [vmem:[#allocation3 + $0x208] sm:$0xff] %v4876
  %4965 = vst [vmem:[#allocation3 + $0x210] sm:$0xff] %v4877
  %4966 = vst [vmem:[#allocation3 + $0x218] sm:$0xff] %v4878
  %4967 = vst [vmem:[#allocation3 + $0x220] sm:$0xff] %v4879
  %4968 = vst [vmem:[#allocation3 + $0x228] sm:$0xff] %v4880
  %4969 = vst [vmem:[#allocation3 + $0x230] sm:$0xff] %v4881
  %4970 = vst [vmem:[#allocation3 + $0x238] sm:$0xff] %v4882
  %4971 = vst [vmem:[#allocation3 + $0x240] sm:$0xff] %v4883
  %4972 = vst [vmem:[#allocation3 + $0x248] sm:$0xff] %v4884
  %4973 = vst [vmem:[#allocation3 + $0x250] sm:$0xff] %v4885
  %4974 = vst [vmem:[#allocation3 + $0x258] sm:$0xff] %v4886
  %4975 = vst [vmem:[#allocation3 + $0x260] sm:$0xff] %v4887
  %4976 = vst [vmem:[#allocation3 + $0x268] sm:$0xff] %v4888
  %4977 = vst [vmem:[#allocation3 + $0x270] sm:$0xff] %v4889
  %4978 = vst [vmem:[#allocation3 + $0x278] sm:$0xff] %v4890
  %4979 = vst [vmem:[#allocation3 + $0x280] sm:$0xff] %v4891
  %4980 = vst [vmem:[#allocation3 + $0x288] sm:$0xff] %v4892
  %4981 = vst [vmem:[#allocation3 + $0x290] sm:$0xff] %v4893
  %4982 = vst [vmem:[#allocation3 + $0x298] sm:$0xff] %v4894
  %4983 = vst [vmem:[#allocation3 + $0x2a0] sm:$0xff] %v4895
  %4984 = vst [vmem:[#allocation3 + $0x2a8] sm:$0xff] %v4896
  %4985 = vst [vmem:[#allocation3 + $0x2b0] sm:$0xff] %v4897
  %4986 = vst [vmem:[#allocation3 + $0x2b8] sm:$0xff] %v4898
  %v4987 = vld [vmem:[#allocation3] sm:$0xff]
  %v4988 = vld [vmem:[#allocation3 + $0x8] sm:$0xff]
  %v4989 = vld [vmem:[#allocation3 + $0x10] sm:$0xff]
  %v4990 = vld [vmem:[#allocation3 + $0x18] sm:$0xff]
  %v4991 = vld [vmem:[#allocation3 + $0x20] sm:$0xff]
  %v4992 = vld [vmem:[#allocation3 + $0x28] sm:$0xff]
  %v4993 = vld [vmem:[#allocation3 + $0x30] sm:$0xff]
  %v4994 = vld [vmem:[#allocation3 + $0x38] sm:$0xff]
  %v4995 = vld [vmem:[#allocation3 + $0x40] sm:$0xff]
  %v4996 = vld [vmem:[#allocation3 + $0x48] sm:$0xff]
  %v4997 = vld [vmem:[#allocation3 + $0x50] sm:$0xff]
  %v4998 = vld [vmem:[#allocation3 + $0x58] sm:$0xff]
  %v4999 = vld [vmem:[#allocation3 + $0x60] sm:$0xff]
  %v5000 = vld [vmem:[#allocation3 + $0x68] sm:$0xff]
  %v5001 = vld [vmem:[#allocation3 + $0x70] sm:$0xff]
  %v5002 = vld [vmem:[#allocation3 + $0x78] sm:$0xff]
  %v5003 = vld [vmem:[#allocation3 + $0x80] sm:$0xff]
  %v5004 = vld [vmem:[#allocation3 + $0x88] sm:$0xff]
  %v5005 = vld [vmem:[#allocation3 + $0x90] sm:$0xff]
  %v5006 = vld [vmem:[#allocation3 + $0x98] sm:$0xff]
  %v5007 = vld [vmem:[#allocation3 + $0xa0] sm:$0xff]
  %v5008 = vld [vmem:[#allocation3 + $0xa8] sm:$0xff]
  %v5009 = vld [vmem:[#allocation3 + $0xb0] sm:$0xff]
  %v5010 = vld [vmem:[#allocation3 + $0xb8] sm:$0xff]
  %v5011 = vld [vmem:[#allocation3 + $0xc0] sm:$0xff]
  %v5012 = vld [vmem:[#allocation3 + $0xc8] sm:$0xff]
  %v5013 = vld [vmem:[#allocation3 + $0xd0] sm:$0xff]
  %v5014 = vld [vmem:[#allocation3 + $0xd8] sm:$0xff]
  %v5015 = vld [vmem:[#allocation3 + $0xe0] sm:$0xff]
  %v5016 = vld [vmem:[#allocation3 + $0xe8] sm:$0xff]
  %v5017 = vld [vmem:[#allocation3 + $0xf0] sm:$0xff]
  %v5018 = vld [vmem:[#allocation3 + $0xf8] sm:$0xff]
  %v5019 = vld [vmem:[#allocation3 + $0x100] sm:$0xff]
  %v5020 = vld [vmem:[#allocation3 + $0x108] sm:$0xff]
  %v5021 = vld [vmem:[#allocation3 + $0x110] sm:$0xff]
  %v5022 = vld [vmem:[#allocation3 + $0x118] sm:$0xff]
  %v5023 = vld [vmem:[#allocation3 + $0x120] sm:$0xff]
  %v5024 = vld [vmem:[#allocation3 + $0x128] sm:$0xff]
  %v5025 = vld [vmem:[#allocation3 + $0x130] sm:$0xff]
  %v5026 = vld [vmem:[#allocation3 + $0x138] sm:$0xff]
  %v5027 = vld [vmem:[#allocation3 + $0x140] sm:$0xff]
  %v5028 = vld [vmem:[#allocation3 + $0x148] sm:$0xff]
  %v5029 = vld [vmem:[#allocation3 + $0x150] sm:$0xff]
  %v5030 = vld [vmem:[#allocation3 + $0x158] sm:$0xff]
  %v5031 = vld [vmem:[#allocation3 + $0x160] sm:$0xff]
  %v5032 = vld [vmem:[#allocation3 + $0x168] sm:$0xff]
  %v5033 = vld [vmem:[#allocation3 + $0x170] sm:$0xff]
  %v5034 = vld [vmem:[#allocation3 + $0x178] sm:$0xff]
  %v5035 = vld [vmem:[#allocation3 + $0x180] sm:$0xff]
  %v5036 = vld [vmem:[#allocation3 + $0x188] sm:$0xff]
  %v5037 = vld [vmem:[#allocation3 + $0x190] sm:$0xff]
  %v5038 = vld [vmem:[#allocation3 + $0x198] sm:$0xff]
  %v5039 = vld [vmem:[#allocation3 + $0x1a0] sm:$0xff]
  %v5040 = vld [vmem:[#allocation3 + $0x1a8] sm:$0xff]
  %v5041 = vld [vmem:[#allocation3 + $0x1b0] sm:$0xff]
  %v5042 = vld [vmem:[#allocation3 + $0x1b8] sm:$0xff]
  %v5043 = vld [vmem:[#allocation3 + $0x1c0] sm:$0xff]
  %v5044 = vld [vmem:[#allocation3 + $0x1c8] sm:$0xff]
  %v5045 = vld [vmem:[#allocation3 + $0x1d0] sm:$0xff]
  %v5046 = vld [vmem:[#allocation3 + $0x1d8] sm:$0xff]
  %v5047 = vld [vmem:[#allocation3 + $0x1e0] sm:$0xff]
  %v5048 = vld [vmem:[#allocation3 + $0x1e8] sm:$0xff]
  %v5049 = vld [vmem:[#allocation3 + $0x1f0] sm:$0xff]
  %v5050 = vld [vmem:[#allocation3 + $0x1f8] sm:$0xff]
  %v5051 = vld [vmem:[#allocation3 + $0x200] sm:$0xff]
  %v5052 = vld [vmem:[#allocation3 + $0x208] sm:$0xff]
  %v5053 = vld [vmem:[#allocation3 + $0x210] sm:$0xff]
  %v5054 = vld [vmem:[#allocation3 + $0x218] sm:$0xff]
  %v5055 = vld [vmem:[#allocation3 + $0x220] sm:$0xff]
  %v5056 = vld [vmem:[#allocation3 + $0x228] sm:$0xff]
  %v5057 = vld [vmem:[#allocation3 + $0x230] sm:$0xff]
  %v5058 = vld [vmem:[#allocation3 + $0x238] sm:$0xff]
  %v5059 = vld [vmem:[#allocation3 + $0x240] sm:$0xff]
  %v5060 = vld [vmem:[#allocation3 + $0x248] sm:$0xff]
  %v5061 = vld [vmem:[#allocation3 + $0x250] sm:$0xff]
  %v5062 = vld [vmem:[#allocation3 + $0x258] sm:$0xff]
  %v5063 = vld [vmem:[#allocation3 + $0x260] sm:$0xff]
  %v5064 = vld [vmem:[#allocation3 + $0x268] sm:$0xff]
  %v5065 = vld [vmem:[#allocation3 + $0x270] sm:$0xff]
  %v5066 = vld [vmem:[#allocation3 + $0x278] sm:$0xff]
  %v5067 = vld [vmem:[#allocation3 + $0x280] sm:$0xff]
  %v5068 = vld [vmem:[#allocation3 + $0x288] sm:$0xff]
  %v5069 = vld [vmem:[#allocation3 + $0x290] sm:$0xff]
  %v5070 = vld [vmem:[#allocation3 + $0x298] sm:$0xff]
  %v5071 = vld [vmem:[#allocation3 + $0x2a0] sm:$0xff]
  %v5072 = vld [vmem:[#allocation3 + $0x2a8] sm:$0xff]
  %v5073 = vld [vmem:[#allocation3 + $0x2b0] sm:$0xff]
  %v5074 = vld [vmem:[#allocation3 + $0x2b8] sm:$0xff]
  %v5075 = vld [vmem:[#allocation2 + $0x8] sm:$0xe]
  %v5076 = vld [vmem:[#allocation2 + $0xc] sm:$0xf]
  %v5077 = vld [vmem:[#allocation2 + $0x10] sm:$0xf]
  %v5078 = vld [vmem:[#allocation2 + $0x14] sm:$0xf]
  %v5079 = vld [vmem:[#allocation2 + $0x18] sm:$0xf]
  %v5080 = vld [vmem:[#allocation2 + $0x1c] sm:$0xf]
  %v5081 = vld [vmem:[#allocation2 + $0x20] sm:$0xf]
  %v5082 = vld [vmem:[#allocation2 + $0x24] sm:$0xf]
  %v5083 = vld [vmem:[#allocation2 + $0x28] sm:$0xf]
  %v5084 = vld [vmem:[#allocation2 + $0x2c] sm:$0xf]
  %v5085 = vld [vmem:[#allocation2 + $0x30] sm:$0xf]
  %v5086 = vld [vmem:[#allocation2 + $0x34] sm:$0xf]
  %v5087 = vld [vmem:[#allocation2 + $0x38] sm:$0xf]
  %v5088 = vld [vmem:[#allocation2 + $0x3c] sm:$0xf]
  %v5089 = vld [vmem:[#allocation2 + $0x40] sm:$0xf]
  %v5090 = vld [vmem:[#allocation2 + $0x44] sm:$0xf]
  %v5091 = vld [vmem:[#allocation2 + $0x48] sm:$0xf]
  %v5092 = vld [vmem:[#allocation2 + $0x4c] sm:$0xf]
  %v5093 = vld [vmem:[#allocation2 + $0x50] sm:$0xf]
  %v5094 = vld [vmem:[#allocation2 + $0x54] sm:$0xf]
  %v5095 = vld [vmem:[#allocation2 + $0x58] sm:$0xf]
  %v5096 = vld [vmem:[#allocation2 + $0x5c] sm:$0xf]
  %v5097 = vld [vmem:[#allocation2 + $0x60] sm:$0xf]
  %v5098 = vld [vmem:[#allocation2 + $0x64] sm:$0xf]
  %v5099 = vld [vmem:[#allocation2 + $0x68] sm:$0xf]
  %v5100 = vld [vmem:[#allocation2 + $0x6c] sm:$0xf]
  %v5101 = vld [vmem:[#allocation2 + $0x70] sm:$0xf]
  %v5102 = vld [vmem:[#allocation2 + $0x74] sm:$0xf]
  %v5103 = vld [vmem:[#allocation2 + $0x78] sm:$0xf]
  %v5104 = vld [vmem:[#allocation2 + $0x7c] sm:$0xf]
  %v5105 = vld [vmem:[#allocation2 + $0x80] sm:$0xf]
  %v5106 = vld [vmem:[#allocation2 + $0x84] sm:$0xf]
  %v5107 = vld [vmem:[#allocation2 + $0x88] sm:$0xf]
  %v5108 = vld [vmem:[#allocation2 + $0x8c] sm:$0xf]
  %v5109 = vld [vmem:[#allocation2 + $0x90] sm:$0xf]
  %v5110 = vld [vmem:[#allocation2 + $0x94] sm:$0xf]
  %v5111 = vld [vmem:[#allocation2 + $0x98] sm:$0xf]
  %v5112 = vld [vmem:[#allocation2 + $0x9c] sm:$0xf]
  %v5113 = vld [vmem:[#allocation2 + $0xa0] sm:$0xf]
  %v5114 = vld [vmem:[#allocation2 + $0xa4] sm:$0xf]
  %v5115 = vld [vmem:[#allocation2 + $0xa8] sm:$0xf]
  %v5116 = vld [vmem:[#allocation2 + $0xac] sm:$0xf]
  %v5117 = vld [vmem:[#allocation2 + $0xb0] sm:$0xf]
  %v5118 = vld [vmem:[#allocation2 + $0xb4] sm:$0xf]
  %v5119 = vld [vmem:[#allocation2 + $0xb8] sm:$0xf]
  %v5120 = vld [vmem:[#allocation2 + $0xbc] sm:$0xf]
  %v5121 = vld [vmem:[#allocation2 + $0xc0] sm:$0xf]
  %v5122 = vld [vmem:[#allocation2 + $0xc4] sm:$0xf]
  %v5123 = vld [vmem:[#allocation2 + $0xc8] sm:$0xf]
  %v5124 = vld [vmem:[#allocation2 + $0xcc] sm:$0xf]
  %v5125 = vld [vmem:[#allocation2 + $0xd0] sm:$0xf]
  %v5126 = vld [vmem:[#allocation2 + $0xd4] sm:$0xf]
  %v5127 = vld [vmem:[#allocation2 + $0xd8] sm:$0xf]
  %v5128 = vld [vmem:[#allocation2 + $0xdc] sm:$0xf]
  %v5129 = vld [vmem:[#allocation2 + $0xe0] sm:$0xf]
  %v5130 = vld [vmem:[#allocation2 + $0xe4] sm:$0xf]
  %v5131 = vld [vmem:[#allocation2 + $0xe8] sm:$0xf]
  %v5132 = vld [vmem:[#allocation2 + $0xec] sm:$0xf]
  %v5133 = vld [vmem:[#allocation2 + $0xf0] sm:$0xf]
  %v5134 = vld [vmem:[#allocation2 + $0xf4] sm:$0xf]
  %v5135 = vld [vmem:[#allocation2 + $0xf8] sm:$0xf]
  %v5136 = vld [vmem:[#allocation2 + $0xfc] sm:$0xf]
  %v5137 = vld [vmem:[#allocation2 + $0x100] sm:$0xf]
  %v5138 = vld [vmem:[#allocation2 + $0x104] sm:$0xf]
  %v5139 = vld [vmem:[#allocation2 + $0x108] sm:$0xf]
  %v5140 = vld [vmem:[#allocation2 + $0x10c] sm:$0xf]
  %v5141 = vld [vmem:[#allocation2 + $0x110] sm:$0xf]
  %v5142 = vld [vmem:[#allocation2 + $0x114] sm:$0xf]
  %v5143 = vld [vmem:[#allocation2 + $0x118] sm:$0xf]
  %v5144 = vld [vmem:[#allocation2 + $0x11c] sm:$0xf]
  %v5145 = vld [vmem:[#allocation2 + $0x120] sm:$0xf]
  %v5146 = vld [vmem:[#allocation2 + $0x124] sm:$0xf]
  %v5147 = vld [vmem:[#allocation2 + $0x128] sm:$0xf]
  %v5148 = vld [vmem:[#allocation2 + $0x12c] sm:$0xf]
  %v5149 = vld [vmem:[#allocation2 + $0x130] sm:$0xf]
  %v5150 = vld [vmem:[#allocation2 + $0x134] sm:$0xf]
  %v5151 = vld [vmem:[#allocation2 + $0x138] sm:$0xf]
  %v5152 = vld [vmem:[#allocation2 + $0x13c] sm:$0xf]
  %v5153 = vld [vmem:[#allocation2 + $0x140] sm:$0xf]
  %v5154 = vld [vmem:[#allocation2 + $0x144] sm:$0xf]
  %v5155 = vld [vmem:[#allocation2 + $0x148] sm:$0xf]
  %v5156 = vld [vmem:[#allocation2 + $0x14c] sm:$0xf]
  %v5157 = vld [vmem:[#allocation2 + $0x150] sm:$0xf]
  %v5158 = vld [vmem:[#allocation2 + $0x154] sm:$0xf]
  %v5159 = vld [vmem:[#allocation2 + $0x158] sm:$0xf]
  %v5160 = vld [vmem:[#allocation2 + $0x15c] sm:$0xf]
  %v5161 = vld [vmem:[#allocation2 + $0x160] sm:$0xf]
  %v5162 = vld [vmem:[#allocation2 + $0x164] sm:$0xf]
  %v5163 = vld [vmem:[#allocation2 + $0x168] sm:$0x3]
  %s5164 = scalar_lea.vmem %s2, 16
  %v5165 = vld [vmem:[%s5164] sm:$0xf]
  %v5255 = vunpack.c.l.b16 %v5075
  %v5256 = vunpack.c.l.b16 %v5076
  %v5257 = vunpack.c.l.b16 %v5077
  %v5258 = vunpack.c.l.b16 %v5078
  %v5259 = vunpack.c.l.b16 %v5079
  %v5260 = vunpack.c.l.b16 %v5080
  %v5261 = vunpack.c.l.b16 %v5081
  %v5262 = vunpack.c.l.b16 %v5082
  %v5263 = vunpack.c.l.b16 %v5083
  %v5264 = vunpack.c.l.b16 %v5084
  %v5265 = vunpack.c.l.b16 %v5085
  %v5266 = vunpack.c.l.b16 %v5086
  %v5267 = vunpack.c.l.b16 %v5087
  %v5268 = vunpack.c.l.b16 %v5088
  %v5269 = vunpack.c.l.b16 %v5089
  %v5270 = vunpack.c.l.b16 %v5090
  %v5271 = vunpack.c.l.b16 %v5091
  %v5272 = vunpack.c.l.b16 %v5092
  %v5273 = vunpack.c.l.b16 %v5093
  %v5274 = vunpack.c.l.b16 %v5094
  %v5275 = vunpack.c.l.b16 %v5095
  %v5276 = vunpack.c.l.b16 %v5096
  %v5277 = vunpack.c.l.b16 %v5097
  %v5278 = vunpack.c.l.b16 %v5098
  %v5279 = vunpack.c.l.b16 %v5099
  %v5280 = vunpack.c.l.b16 %v5100
  %v5281 = vunpack.c.l.b16 %v5101
  %v5282 = vunpack.c.l.b16 %v5102
  %v5283 = vunpack.c.l.b16 %v5103
  %v5284 = vunpack.c.l.b16 %v5104
  %v5285 = vunpack.c.l.b16 %v5105
  %v5286 = vunpack.c.l.b16 %v5106
  %v5287 = vunpack.c.l.b16 %v5107
  %v5288 = vunpack.c.l.b16 %v5108
  %v5289 = vunpack.c.l.b16 %v5109
  %v5290 = vunpack.c.l.b16 %v5110
  %v5291 = vunpack.c.l.b16 %v5111
  %v5292 = vunpack.c.l.b16 %v5112
  %v5293 = vunpack.c.l.b16 %v5113
  %v5294 = vunpack.c.l.b16 %v5114
  %v5295 = vunpack.c.l.b16 %v5115
  %v5296 = vunpack.c.l.b16 %v5116
  %v5297 = vunpack.c.l.b16 %v5117
  %v5298 = vunpack.c.l.b16 %v5118
  %v5299 = vunpack.c.l.b16 %v5119
  %v5300 = vunpack.c.l.b16 %v5120
  %v5301 = vunpack.c.l.b16 %v5121
  %v5302 = vunpack.c.l.b16 %v5122
  %v5303 = vunpack.c.l.b16 %v5123
  %v5304 = vunpack.c.l.b16 %v5124
  %v5305 = vunpack.c.l.b16 %v5125
  %v5306 = vunpack.c.l.b16 %v5126
  %v5307 = vunpack.c.l.b16 %v5127
  %v5308 = vunpack.c.l.b16 %v5128
  %v5309 = vunpack.c.l.b16 %v5129
  %v5310 = vunpack.c.l.b16 %v5130
  %v5311 = vunpack.c.l.b16 %v5131
  %v5312 = vunpack.c.l.b16 %v5132
  %v5313 = vunpack.c.l.b16 %v5133
  %v5314 = vunpack.c.l.b16 %v5134
  %v5315 = vunpack.c.l.b16 %v5135
  %v5316 = vunpack.c.l.b16 %v5136
  %v5317 = vunpack.c.l.b16 %v5137
  %v5318 = vunpack.c.l.b16 %v5138
  %v5319 = vunpack.c.l.b16 %v5139
  %v5320 = vunpack.c.l.b16 %v5140
  %v5321 = vunpack.c.l.b16 %v5141
  %v5322 = vunpack.c.l.b16 %v5142
  %v5323 = vunpack.c.l.b16 %v5143
  %v5324 = vunpack.c.l.b16 %v5144
  %v5325 = vunpack.c.l.b16 %v5145
  %v5326 = vunpack.c.l.b16 %v5146
  %v5327 = vunpack.c.l.b16 %v5147
  %v5328 = vunpack.c.l.b16 %v5148
  %v5329 = vunpack.c.l.b16 %v5149
  %v5330 = vunpack.c.l.b16 %v5150
  %v5331 = vunpack.c.l.b16 %v5151
  %v5332 = vunpack.c.l.b16 %v5152
  %v5333 = vunpack.c.l.b16 %v5153
  %v5334 = vunpack.c.l.b16 %v5154
  %v5335 = vunpack.c.l.b16 %v5155
  %v5336 = vunpack.c.l.b16 %v5156
  %v5337 = vunpack.c.l.b16 %v5157
  %v5338 = vunpack.c.l.b16 %v5158
  %v5339 = vunpack.c.l.b16 %v5159
  %v5340 = vunpack.c.l.b16 %v5160
  %v5341 = vunpack.c.l.b16 %v5161
  %v5342 = vunpack.c.l.b16 %v5162
  %v5343 = vunpack.c.l.b16 %v5163
  %v5344 = vpack.c.b16 %v5256, %v5255
  %v5345 = vpack.c.b16 %v5258, %v5257
  %v5346 = vpack.c.b16 %v5260, %v5259
  %v5347 = vpack.c.b16 %v5262, %v5261
  %v5348 = vpack.c.b16 %v5264, %v5263
  %v5349 = vpack.c.b16 %v5266, %v5265
  %v5350 = vpack.c.b16 %v5268, %v5267
  %v5351 = vpack.c.b16 %v5270, %v5269
  %v5352 = vpack.c.b16 %v5272, %v5271
  %v5353 = vpack.c.b16 %v5274, %v5273
  %v5354 = vpack.c.b16 %v5276, %v5275
  %v5355 = vpack.c.b16 %v5278, %v5277
  %v5356 = vpack.c.b16 %v5280, %v5279
  %v5357 = vpack.c.b16 %v5282, %v5281
  %v5358 = vpack.c.b16 %v5284, %v5283
  %v5359 = vpack.c.b16 %v5286, %v5285
  %v5360 = vpack.c.b16 %v5288, %v5287
  %v5361 = vpack.c.b16 %v5290, %v5289
  %v5362 = vpack.c.b16 %v5292, %v5291
  %v5363 = vpack.c.b16 %v5294, %v5293
  %v5364 = vpack.c.b16 %v5296, %v5295
  %v5365 = vpack.c.b16 %v5298, %v5297
  %v5366 = vpack.c.b16 %v5300, %v5299
  %v5367 = vpack.c.b16 %v5302, %v5301
  %v5368 = vpack.c.b16 %v5304, %v5303
  %v5369 = vpack.c.b16 %v5306, %v5305
  %v5370 = vpack.c.b16 %v5308, %v5307
  %v5371 = vpack.c.b16 %v5310, %v5309
  %v5372 = vpack.c.b16 %v5312, %v5311
  %v5373 = vpack.c.b16 %v5314, %v5313
  %v5374 = vpack.c.b16 %v5316, %v5315
  %v5375 = vpack.c.b16 %v5318, %v5317
  %v5376 = vpack.c.b16 %v5320, %v5319
  %v5377 = vpack.c.b16 %v5322, %v5321
  %v5378 = vpack.c.b16 %v5324, %v5323
  %v5379 = vpack.c.b16 %v5326, %v5325
  %v5380 = vpack.c.b16 %v5328, %v5327
  %v5381 = vpack.c.b16 %v5330, %v5329
  %v5382 = vpack.c.b16 %v5332, %v5331
  %v5383 = vpack.c.b16 %v5334, %v5333
  %v5384 = vpack.c.b16 %v5336, %v5335
  %v5385 = vpack.c.b16 %v5338, %v5337
  %v5386 = vpack.c.b16 %v5340, %v5339
  %v5387 = vpack.c.b16 %v5342, %v5341
  %v5388 = vpack.c.b16 %v5343, %v5343
  %vm5389 = vsmask.f32 6400
  %v5391 = vshrl.u32 %v5344, 16
  %v5393 = vrot.slane %v5391, 1
  %v5394 = vshll.u32 %v5344, 16
  %v5396 = vrot.slane %v5394, 2
  %v5397 = vor.u32 %v5393, %v5396
  %v5399 = vshrl.u32 %v5345, 16
  %v5401 = vrot.slane %v5399, 1
  %v5402 = vshll.u32 %v5345, 16
  %v5404 = vrot.slane %v5402, 2
  %v5405 = vor.u32 %v5401, %v5404
  %v5406 = vsel %vm5389, %v5397, %v5405
  %v5408 = vshrl.u32 %v5346, 16
  %v5410 = vrot.slane %v5408, 1
  %v5411 = vshll.u32 %v5346, 16
  %v5413 = vrot.slane %v5411, 2
  %v5414 = vor.u32 %v5410, %v5413
  %v5415 = vsel %vm5389, %v5405, %v5414
  %v5417 = vshrl.u32 %v5347, 16
  %v5419 = vrot.slane %v5417, 1
  %v5420 = vshll.u32 %v5347, 16
  %v5422 = vrot.slane %v5420, 2
  %v5423 = vor.u32 %v5419, %v5422
  %v5424 = vsel %vm5389, %v5414, %v5423
  %v5426 = vshrl.u32 %v5348, 16
  %v5428 = vrot.slane %v5426, 1
  %v5429 = vshll.u32 %v5348, 16
  %v5431 = vrot.slane %v5429, 2
  %v5432 = vor.u32 %v5428, %v5431
  %v5433 = vsel %vm5389, %v5423, %v5432
  %v5435 = vshrl.u32 %v5349, 16
  %v5437 = vrot.slane %v5435, 1
  %v5438 = vshll.u32 %v5349, 16
  %v5440 = vrot.slane %v5438, 2
  %v5441 = vor.u32 %v5437, %v5440
  %v5442 = vsel %vm5389, %v5432, %v5441
  %v5444 = vshrl.u32 %v5350, 16
  %v5446 = vrot.slane %v5444, 1
  %v5447 = vshll.u32 %v5350, 16
  %v5449 = vrot.slane %v5447, 2
  %v5450 = vor.u32 %v5446, %v5449
  %v5451 = vsel %vm5389, %v5441, %v5450
  %v5453 = vshrl.u32 %v5351, 16
  %v5455 = vrot.slane %v5453, 1
  %v5456 = vshll.u32 %v5351, 16
  %v5458 = vrot.slane %v5456, 2
  %v5459 = vor.u32 %v5455, %v5458
  %v5460 = vsel %vm5389, %v5450, %v5459
  %v5462 = vshrl.u32 %v5352, 16
  %v5464 = vrot.slane %v5462, 1
  %v5465 = vshll.u32 %v5352, 16
  %v5467 = vrot.slane %v5465, 2
  %v5468 = vor.u32 %v5464, %v5467
  %v5469 = vsel %vm5389, %v5459, %v5468
  %v5471 = vshrl.u32 %v5353, 16
  %v5473 = vrot.slane %v5471, 1
  %v5474 = vshll.u32 %v5353, 16
  %v5476 = vrot.slane %v5474, 2
  %v5477 = vor.u32 %v5473, %v5476
  %v5478 = vsel %vm5389, %v5468, %v5477
  %v5480 = vshrl.u32 %v5354, 16
  %v5482 = vrot.slane %v5480, 1
  %v5483 = vshll.u32 %v5354, 16
  %v5485 = vrot.slane %v5483, 2
  %v5486 = vor.u32 %v5482, %v5485
  %v5487 = vsel %vm5389, %v5477, %v5486
  %v5489 = vshrl.u32 %v5355, 16
  %v5491 = vrot.slane %v5489, 1
  %v5492 = vshll.u32 %v5355, 16
  %v5494 = vrot.slane %v5492, 2
  %v5495 = vor.u32 %v5491, %v5494
  %v5496 = vsel %vm5389, %v5486, %v5495
  %v5498 = vshrl.u32 %v5356, 16
  %v5500 = vrot.slane %v5498, 1
  %v5501 = vshll.u32 %v5356, 16
  %v5503 = vrot.slane %v5501, 2
  %v5504 = vor.u32 %v5500, %v5503
  %v5505 = vsel %vm5389, %v5495, %v5504
  %v5507 = vshrl.u32 %v5357, 16
  %v5509 = vrot.slane %v5507, 1
  %v5510 = vshll.u32 %v5357, 16
  %v5512 = vrot.slane %v5510, 2
  %v5513 = vor.u32 %v5509, %v5512
  %v5514 = vsel %vm5389, %v5504, %v5513
  %v5516 = vshrl.u32 %v5358, 16
  %v5518 = vrot.slane %v5516, 1
  %v5519 = vshll.u32 %v5358, 16
  %v5521 = vrot.slane %v5519, 2
  %v5522 = vor.u32 %v5518, %v5521
  %v5523 = vsel %vm5389, %v5513, %v5522
  %v5525 = vshrl.u32 %v5359, 16
  %v5527 = vrot.slane %v5525, 1
  %v5528 = vshll.u32 %v5359, 16
  %v5530 = vrot.slane %v5528, 2
  %v5531 = vor.u32 %v5527, %v5530
  %v5532 = vsel %vm5389, %v5522, %v5531
  %v5534 = vshrl.u32 %v5360, 16
  %v5536 = vrot.slane %v5534, 1
  %v5537 = vshll.u32 %v5360, 16
  %v5539 = vrot.slane %v5537, 2
  %v5540 = vor.u32 %v5536, %v5539
  %v5541 = vsel %vm5389, %v5531, %v5540
  %v5543 = vshrl.u32 %v5361, 16
  %v5545 = vrot.slane %v5543, 1
  %v5546 = vshll.u32 %v5361, 16
  %v5548 = vrot.slane %v5546, 2
  %v5549 = vor.u32 %v5545, %v5548
  %v5550 = vsel %vm5389, %v5540, %v5549
  %v5552 = vshrl.u32 %v5362, 16
  %v5554 = vrot.slane %v5552, 1
  %v5555 = vshll.u32 %v5362, 16
  %v5557 = vrot.slane %v5555, 2
  %v5558 = vor.u32 %v5554, %v5557
  %v5559 = vsel %vm5389, %v5549, %v5558
  %v5561 = vshrl.u32 %v5363, 16
  %v5563 = vrot.slane %v5561, 1
  %v5564 = vshll.u32 %v5363, 16
  %v5566 = vrot.slane %v5564, 2
  %v5567 = vor.u32 %v5563, %v5566
  %v5568 = vsel %vm5389, %v5558, %v5567
  %v5570 = vshrl.u32 %v5364, 16
  %v5572 = vrot.slane %v5570, 1
  %v5573 = vshll.u32 %v5364, 16
  %v5575 = vrot.slane %v5573, 2
  %v5576 = vor.u32 %v5572, %v5575
  %v5577 = vsel %vm5389, %v5567, %v5576
  %v5579 = vshrl.u32 %v5365, 16
  %v5581 = vrot.slane %v5579, 1
  %v5582 = vshll.u32 %v5365, 16
  %v5584 = vrot.slane %v5582, 2
  %v5585 = vor.u32 %v5581, %v5584
  %v5586 = vsel %vm5389, %v5576, %v5585
  %v5588 = vshrl.u32 %v5366, 16
  %v5590 = vrot.slane %v5588, 1
  %v5591 = vshll.u32 %v5366, 16
  %v5593 = vrot.slane %v5591, 2
  %v5594 = vor.u32 %v5590, %v5593
  %v5595 = vsel %vm5389, %v5585, %v5594
  %v5597 = vshrl.u32 %v5367, 16
  %v5599 = vrot.slane %v5597, 1
  %v5600 = vshll.u32 %v5367, 16
  %v5602 = vrot.slane %v5600, 2
  %v5603 = vor.u32 %v5599, %v5602
  %v5604 = vsel %vm5389, %v5594, %v5603
  %v5606 = vshrl.u32 %v5368, 16
  %v5608 = vrot.slane %v5606, 1
  %v5609 = vshll.u32 %v5368, 16
  %v5611 = vrot.slane %v5609, 2
  %v5612 = vor.u32 %v5608, %v5611
  %v5613 = vsel %vm5389, %v5603, %v5612
  %v5615 = vshrl.u32 %v5369, 16
  %v5617 = vrot.slane %v5615, 1
  %v5618 = vshll.u32 %v5369, 16
  %v5620 = vrot.slane %v5618, 2
  %v5621 = vor.u32 %v5617, %v5620
  %v5622 = vsel %vm5389, %v5612, %v5621
  %v5624 = vshrl.u32 %v5370, 16
  %v5626 = vrot.slane %v5624, 1
  %v5627 = vshll.u32 %v5370, 16
  %v5629 = vrot.slane %v5627, 2
  %v5630 = vor.u32 %v5626, %v5629
  %v5631 = vsel %vm5389, %v5621, %v5630
  %v5633 = vshrl.u32 %v5371, 16
  %v5635 = vrot.slane %v5633, 1
  %v5636 = vshll.u32 %v5371, 16
  %v5638 = vrot.slane %v5636, 2
  %v5639 = vor.u32 %v5635, %v5638
  %v5640 = vsel %vm5389, %v5630, %v5639
  %v5642 = vshrl.u32 %v5372, 16
  %v5644 = vrot.slane %v5642, 1
  %v5645 = vshll.u32 %v5372, 16
  %v5647 = vrot.slane %v5645, 2
  %v5648 = vor.u32 %v5644, %v5647
  %v5649 = vsel %vm5389, %v5639, %v5648
  %v5651 = vshrl.u32 %v5373, 16
  %v5653 = vrot.slane %v5651, 1
  %v5654 = vshll.u32 %v5373, 16
  %v5656 = vrot.slane %v5654, 2
  %v5657 = vor.u32 %v5653, %v5656
  %v5658 = vsel %vm5389, %v5648, %v5657
  %v5660 = vshrl.u32 %v5374, 16
  %v5662 = vrot.slane %v5660, 1
  %v5663 = vshll.u32 %v5374, 16
  %v5665 = vrot.slane %v5663, 2
  %v5666 = vor.u32 %v5662, %v5665
  %v5667 = vsel %vm5389, %v5657, %v5666
  %v5669 = vshrl.u32 %v5375, 16
  %v5671 = vrot.slane %v5669, 1
  %v5672 = vshll.u32 %v5375, 16
  %v5674 = vrot.slane %v5672, 2
  %v5675 = vor.u32 %v5671, %v5674
  %v5676 = vsel %vm5389, %v5666, %v5675
  %v5678 = vshrl.u32 %v5376, 16
  %v5680 = vrot.slane %v5678, 1
  %v5681 = vshll.u32 %v5376, 16
  %v5683 = vrot.slane %v5681, 2
  %v5684 = vor.u32 %v5680, %v5683
  %v5685 = vsel %vm5389, %v5675, %v5684
  %v5687 = vshrl.u32 %v5377, 16
  %v5689 = vrot.slane %v5687, 1
  %v5690 = vshll.u32 %v5377, 16
  %v5692 = vrot.slane %v5690, 2
  %v5693 = vor.u32 %v5689, %v5692
  %v5694 = vsel %vm5389, %v5684, %v5693
  %v5696 = vshrl.u32 %v5378, 16
  %v5698 = vrot.slane %v5696, 1
  %v5699 = vshll.u32 %v5378, 16
  %v5701 = vrot.slane %v5699, 2
  %v5702 = vor.u32 %v5698, %v5701
  %v5703 = vsel %vm5389, %v5693, %v5702
  %v5705 = vshrl.u32 %v5379, 16
  %v5707 = vrot.slane %v5705, 1
  %v5708 = vshll.u32 %v5379, 16
  %v5710 = vrot.slane %v5708, 2
  %v5711 = vor.u32 %v5707, %v5710
  %v5712 = vsel %vm5389, %v5702, %v5711
  %v5714 = vshrl.u32 %v5380, 16
  %v5716 = vrot.slane %v5714, 1
  %v5717 = vshll.u32 %v5380, 16
  %v5719 = vrot.slane %v5717, 2
  %v5720 = vor.u32 %v5716, %v5719
  %v5721 = vsel %vm5389, %v5711, %v5720
  %v5723 = vshrl.u32 %v5381, 16
  %v5725 = vrot.slane %v5723, 1
  %v5726 = vshll.u32 %v5381, 16
  %v5728 = vrot.slane %v5726, 2
  %v5729 = vor.u32 %v5725, %v5728
  %v5730 = vsel %vm5389, %v5720, %v5729
  %v5732 = vshrl.u32 %v5382, 16
  %v5734 = vrot.slane %v5732, 1
  %v5735 = vshll.u32 %v5382, 16
  %v5737 = vrot.slane %v5735, 2
  %v5738 = vor.u32 %v5734, %v5737
  %v5739 = vsel %vm5389, %v5729, %v5738
  %v5741 = vshrl.u32 %v5383, 16
  %v5743 = vrot.slane %v5741, 1
  %v5744 = vshll.u32 %v5383, 16
  %v5746 = vrot.slane %v5744, 2
  %v5747 = vor.u32 %v5743, %v5746
  %v5748 = vsel %vm5389, %v5738, %v5747
  %v5750 = vshrl.u32 %v5384, 16
  %v5752 = vrot.slane %v5750, 1
  %v5753 = vshll.u32 %v5384, 16
  %v5755 = vrot.slane %v5753, 2
  %v5756 = vor.u32 %v5752, %v5755
  %v5757 = vsel %vm5389, %v5747, %v5756
  %v5759 = vshrl.u32 %v5385, 16
  %v5761 = vrot.slane %v5759, 1
  %v5762 = vshll.u32 %v5385, 16
  %v5764 = vrot.slane %v5762, 2
  %v5765 = vor.u32 %v5761, %v5764
  %v5766 = vsel %vm5389, %v5756, %v5765
  %v5768 = vshrl.u32 %v5386, 16
  %v5770 = vrot.slane %v5768, 1
  %v5771 = vshll.u32 %v5386, 16
  %v5773 = vrot.slane %v5771, 2
  %v5774 = vor.u32 %v5770, %v5773
  %v5775 = vsel %vm5389, %v5765, %v5774
  %v5777 = vshrl.u32 %v5387, 16
  %v5779 = vrot.slane %v5777, 1
  %v5780 = vshll.u32 %v5387, 16
  %v5782 = vrot.slane %v5780, 2
  %v5783 = vor.u32 %v5779, %v5782
  %v5784 = vsel %vm5389, %v5774, %v5783
  %v5786 = vshrl.u32 %v5388, 16
  %v5788 = vrot.slane %v5786, 1
  %v5789 = vshll.u32 %v5388, 16
  %v5791 = vrot.slane %v5789, 2
  %v5792 = vor.u32 %v5788, %v5791
  %v5793 = vsel %vm5389, %v5783, %v5792
  %v5795 = vsel %vm547, %v5406, 0
  %v5798 = vsel %vm547, %v5415, 0
  %v5801 = vsel %vm547, %v5424, 0
  %v5804 = vsel %vm547, %v5433, 0
  %v5807 = vsel %vm547, %v5442, 0
  %v5810 = vsel %vm547, %v5451, 0
  %v5813 = vsel %vm547, %v5460, 0
  %v5816 = vsel %vm547, %v5469, 0
  %v5819 = vsel %vm547, %v5478, 0
  %v5822 = vsel %vm547, %v5487, 0
  %v5825 = vsel %vm547, %v5496, 0
  %v5828 = vsel %vm547, %v5505, 0
  %v5831 = vsel %vm547, %v5514, 0
  %v5834 = vsel %vm547, %v5523, 0
  %v5837 = vsel %vm547, %v5532, 0
  %v5840 = vsel %vm547, %v5541, 0
  %v5843 = vsel %vm547, %v5550, 0
  %v5846 = vsel %vm547, %v5559, 0
  %v5849 = vsel %vm547, %v5568, 0
  %v5852 = vsel %vm547, %v5577, 0
  %v5855 = vsel %vm547, %v5586, 0
  %v5858 = vsel %vm547, %v5595, 0
  %v5861 = vsel %vm547, %v5604, 0
  %v5864 = vsel %vm547, %v5613, 0
  %v5867 = vsel %vm547, %v5622, 0
  %v5870 = vsel %vm547, %v5631, 0
  %v5873 = vsel %vm547, %v5640, 0
  %v5876 = vsel %vm547, %v5649, 0
  %v5879 = vsel %vm547, %v5658, 0
  %v5882 = vsel %vm547, %v5667, 0
  %v5885 = vsel %vm547, %v5676, 0
  %v5888 = vsel %vm547, %v5685, 0
  %v5891 = vsel %vm547, %v5694, 0
  %v5894 = vsel %vm547, %v5703, 0
  %v5897 = vsel %vm547, %v5712, 0
  %v5900 = vsel %vm547, %v5721, 0
  %v5903 = vsel %vm547, %v5730, 0
  %v5906 = vsel %vm547, %v5739, 0
  %v5909 = vsel %vm547, %v5748, 0
  %v5912 = vsel %vm547, %v5757, 0
  %v5915 = vsel %vm547, %v5766, 0
  %v5918 = vsel %vm547, %v5775, 0
  %v5921 = vsel %vm547, %v5784, 0
  %v5924 = vsel %vm547, %v5793, 0
  %v5927 = vsel %vm680, %v5165, 0
  %5929 = vmatprep.subr.bf16.mxu0 0
  %5930 = vmatpush1.bf16.msra.mxu0 0
  %5931 = vmatprep.subr.bf16.mxu0 0
  %5932 = vmatpush1.bf16.msra.mxu0 0
  %5933 = vmatprep.subr.bf16.mxu0 0
  %5934 = vmatpush1.bf16.msra.mxu0 0
  %5935 = vmatprep.subr.bf16.mxu0 0
  %5936 = vmatpush1.bf16.msra.mxu0 0
  %5937 = vmatprep.subr.bf16.mxu0 0
  %5938 = vmatpush1.bf16.msra.mxu0 0
  %5939 = vmatprep.subr.bf16.mxu0 0
  %5940 = vmatpush1.bf16.msra.mxu0 0
  %5941 = vmatprep.subr.bf16.mxu0 0
  %5942 = vmatpush1.bf16.msra.mxu0 0
  %5943 = vmatprep.subr.bf16.mxu0 0
  %5944 = vmatpush1.bf16.msra.mxu0 %v5927
  %5945 = vmatprep.subr.bf16.mxu0 0
  %5946 = vmatpush2.bf16.msra.mxu0 0
  %5947 = vmatprep.subr.bf16.mxu0 0
  %5948 = vmatpush2.bf16.msra.mxu0 0
  %5949 = vmatprep.subr.bf16.mxu0 0
  %5950 = vmatpush2.bf16.msra.mxu0 0
  %5951 = vmatprep.subr.bf16.mxu0 0
  %5952 = vmatpush2.bf16.msra.mxu0 0
  %5953 = vmatprep.subr.bf16.mxu0 0
  %5954 = vmatpush2.bf16.msra.mxu0 0
  %5955 = vmatprep.subr.bf16.mxu0 0
  %5956 = vmatpush2.bf16.msra.mxu0 0
  %5957 = vmatprep.subr.bf16.mxu0 0
  %5958 = vmatpush2.bf16.msra.mxu0 0
  %5959 = vmatprep.subr.bf16.mxu0 0
  %5960 = vmatpush2.bf16.msra.mxu0 0
  %5961 = vmatprep.mubr.bf16.mxu0 0
  %5962 = vmatmul.mubr.bf16.gmra.mxu0 %v5795
  %v5963 = vpop.f32.mrf.mxu0
  %v5964 = vadd.f32 0.0, %v5963
  %v5965 = vpop.f32.mrf.mxu0
  %v5966 = vpop.f32.mrf.mxu0
  %v5967 = vadd.f32 0.0, %v5966
  %v5968 = vpop.f32.mrf.mxu0
  %5969 = vmatprep.mubr.bf16.mxu0 0
  %5970 = vmatmul.mubr.bf16.gmra.mxu0 %v5798
  %v5971 = vpop.f32.mrf.mxu0
  %v5972 = vadd.f32 0.0, %v5971
  %v5973 = vpop.f32.mrf.mxu0
  %v5974 = vpop.f32.mrf.mxu0
  %v5975 = vadd.f32 0.0, %v5974
  %v5976 = vpop.f32.mrf.mxu0
  %5977 = vmatprep.mubr.bf16.mxu0 0
  %5978 = vmatmul.mubr.bf16.gmra.mxu0 %v5801
  %v5979 = vpop.f32.mrf.mxu0
  %v5980 = vadd.f32 0.0, %v5979
  %v5981 = vpop.f32.mrf.mxu0
  %v5982 = vpop.f32.mrf.mxu0
  %v5983 = vadd.f32 0.0, %v5982
  %v5984 = vpop.f32.mrf.mxu0
  %5985 = vmatprep.mubr.bf16.mxu0 0
  %5986 = vmatmul.mubr.bf16.gmra.mxu0 %v5804
  %v5987 = vpop.f32.mrf.mxu0
  %v5988 = vadd.f32 0.0, %v5987
  %v5989 = vpop.f32.mrf.mxu0
  %v5990 = vpop.f32.mrf.mxu0
  %v5991 = vadd.f32 0.0, %v5990
  %v5992 = vpop.f32.mrf.mxu0
  %5993 = vmatprep.mubr.bf16.mxu0 0
  %5994 = vmatmul.mubr.bf16.gmra.mxu0 %v5807
  %v5995 = vpop.f32.mrf.mxu0
  %v5996 = vadd.f32 0.0, %v5995
  %v5997 = vpop.f32.mrf.mxu0
  %v5998 = vpop.f32.mrf.mxu0
  %v5999 = vadd.f32 0.0, %v5998
  %v6000 = vpop.f32.mrf.mxu0
  %6001 = vmatprep.mubr.bf16.mxu0 0
  %6002 = vmatmul.mubr.bf16.gmra.mxu0 %v5810
  %v6003 = vpop.f32.mrf.mxu0
  %v6004 = vadd.f32 0.0, %v6003
  %v6005 = vpop.f32.mrf.mxu0
  %v6006 = vpop.f32.mrf.mxu0
  %v6007 = vadd.f32 0.0, %v6006
  %v6008 = vpop.f32.mrf.mxu0
  %6009 = vmatprep.mubr.bf16.mxu0 0
  %6010 = vmatmul.mubr.bf16.gmra.mxu0 %v5813
  %v6011 = vpop.f32.mrf.mxu0
  %v6012 = vadd.f32 0.0, %v6011
  %v6013 = vpop.f32.mrf.mxu0
  %v6014 = vpop.f32.mrf.mxu0
  %v6015 = vadd.f32 0.0, %v6014
  %v6016 = vpop.f32.mrf.mxu0
  %6017 = vmatprep.mubr.bf16.mxu0 0
  %6018 = vmatmul.mubr.bf16.gmra.mxu0 %v5816
  %v6019 = vpop.f32.mrf.mxu0
  %v6020 = vadd.f32 0.0, %v6019
  %v6021 = vpop.f32.mrf.mxu0
  %v6022 = vpop.f32.mrf.mxu0
  %v6023 = vadd.f32 0.0, %v6022
  %v6024 = vpop.f32.mrf.mxu0
  %6025 = vmatprep.mubr.bf16.mxu0 0
  %6026 = vmatmul.mubr.bf16.gmra.mxu0 %v5819
  %v6027 = vpop.f32.mrf.mxu0
  %v6028 = vadd.f32 0.0, %v6027
  %v6029 = vpop.f32.mrf.mxu0
  %v6030 = vpop.f32.mrf.mxu0
  %v6031 = vadd.f32 0.0, %v6030
  %v6032 = vpop.f32.mrf.mxu0
  %6033 = vmatprep.mubr.bf16.mxu0 0
  %6034 = vmatmul.mubr.bf16.gmra.mxu0 %v5822
  %v6035 = vpop.f32.mrf.mxu0
  %v6036 = vadd.f32 0.0, %v6035
  %v6037 = vpop.f32.mrf.mxu0
  %v6038 = vpop.f32.mrf.mxu0
  %v6039 = vadd.f32 0.0, %v6038
  %v6040 = vpop.f32.mrf.mxu0
  %6041 = vmatprep.mubr.bf16.mxu0 0
  %6042 = vmatmul.mubr.bf16.gmra.mxu0 %v5825
  %v6043 = vpop.f32.mrf.mxu0
  %v6044 = vadd.f32 0.0, %v6043
  %v6045 = vpop.f32.mrf.mxu0
  %v6046 = vpop.f32.mrf.mxu0
  %v6047 = vadd.f32 0.0, %v6046
  %v6048 = vpop.f32.mrf.mxu0
  %6049 = vmatprep.mubr.bf16.mxu0 0
  %6050 = vmatmul.mubr.bf16.gmra.mxu0 %v5828
  %v6051 = vpop.f32.mrf.mxu0
  %v6052 = vadd.f32 0.0, %v6051
  %v6053 = vpop.f32.mrf.mxu0
  %v6054 = vpop.f32.mrf.mxu0
  %v6055 = vadd.f32 0.0, %v6054
  %v6056 = vpop.f32.mrf.mxu0
  %6057 = vmatprep.mubr.bf16.mxu0 0
  %6058 = vmatmul.mubr.bf16.gmra.mxu0 %v5831
  %v6059 = vpop.f32.mrf.mxu0
  %v6060 = vadd.f32 0.0, %v6059
  %v6061 = vpop.f32.mrf.mxu0
  %v6062 = vpop.f32.mrf.mxu0
  %v6063 = vadd.f32 0.0, %v6062
  %v6064 = vpop.f32.mrf.mxu0
  %6065 = vmatprep.mubr.bf16.mxu0 0
  %6066 = vmatmul.mubr.bf16.gmra.mxu0 %v5834
  %v6067 = vpop.f32.mrf.mxu0
  %v6068 = vadd.f32 0.0, %v6067
  %v6069 = vpop.f32.mrf.mxu0
  %v6070 = vpop.f32.mrf.mxu0
  %v6071 = vadd.f32 0.0, %v6070
  %v6072 = vpop.f32.mrf.mxu0
  %6073 = vmatprep.mubr.bf16.mxu0 0
  %6074 = vmatmul.mubr.bf16.gmra.mxu0 %v5837
  %v6075 = vpop.f32.mrf.mxu0
  %v6076 = vadd.f32 0.0, %v6075
  %v6077 = vpop.f32.mrf.mxu0
  %v6078 = vpop.f32.mrf.mxu0
  %v6079 = vadd.f32 0.0, %v6078
  %v6080 = vpop.f32.mrf.mxu0
  %6081 = vmatprep.mubr.bf16.mxu0 0
  %6082 = vmatmul.mubr.bf16.gmra.mxu0 %v5840
  %v6083 = vpop.f32.mrf.mxu0
  %v6084 = vadd.f32 0.0, %v6083
  %v6085 = vpop.f32.mrf.mxu0
  %v6086 = vpop.f32.mrf.mxu0
  %v6087 = vadd.f32 0.0, %v6086
  %v6088 = vpop.f32.mrf.mxu0
  %6089 = vmatprep.mubr.bf16.mxu0 0
  %6090 = vmatmul.mubr.bf16.gmra.mxu0 %v5843
  %v6091 = vpop.f32.mrf.mxu0
  %v6092 = vadd.f32 0.0, %v6091
  %v6093 = vpop.f32.mrf.mxu0
  %v6094 = vpop.f32.mrf.mxu0
  %v6095 = vadd.f32 0.0, %v6094
  %v6096 = vpop.f32.mrf.mxu0
  %6097 = vmatprep.mubr.bf16.mxu0 0
  %6098 = vmatmul.mubr.bf16.gmra.mxu0 %v5846
  %v6099 = vpop.f32.mrf.mxu0
  %v6100 = vadd.f32 0.0, %v6099
  %v6101 = vpop.f32.mrf.mxu0
  %v6102 = vpop.f32.mrf.mxu0
  %v6103 = vadd.f32 0.0, %v6102
  %v6104 = vpop.f32.mrf.mxu0
  %6105 = vmatprep.mubr.bf16.mxu0 0
  %6106 = vmatmul.mubr.bf16.gmra.mxu0 %v5849
  %v6107 = vpop.f32.mrf.mxu0
  %v6108 = vadd.f32 0.0, %v6107
  %v6109 = vpop.f32.mrf.mxu0
  %v6110 = vpop.f32.mrf.mxu0
  %v6111 = vadd.f32 0.0, %v6110
  %v6112 = vpop.f32.mrf.mxu0
  %6113 = vmatprep.mubr.bf16.mxu0 0
  %6114 = vmatmul.mubr.bf16.gmra.mxu0 %v5852
  %v6115 = vpop.f32.mrf.mxu0
  %v6116 = vadd.f32 0.0, %v6115
  %v6117 = vpop.f32.mrf.mxu0
  %v6118 = vpop.f32.mrf.mxu0
  %v6119 = vadd.f32 0.0, %v6118
  %v6120 = vpop.f32.mrf.mxu0
  %6121 = vmatprep.mubr.bf16.mxu0 0
  %6122 = vmatmul.mubr.bf16.gmra.mxu0 %v5855
  %v6123 = vpop.f32.mrf.mxu0
  %v6124 = vadd.f32 0.0, %v6123
  %v6125 = vpop.f32.mrf.mxu0
  %v6126 = vpop.f32.mrf.mxu0
  %v6127 = vadd.f32 0.0, %v6126
  %v6128 = vpop.f32.mrf.mxu0
  %6129 = vmatprep.mubr.bf16.mxu0 0
  %6130 = vmatmul.mubr.bf16.gmra.mxu0 %v5858
  %v6131 = vpop.f32.mrf.mxu0
  %v6132 = vadd.f32 0.0, %v6131
  %v6133 = vpop.f32.mrf.mxu0
  %v6134 = vpop.f32.mrf.mxu0
  %v6135 = vadd.f32 0.0, %v6134
  %v6136 = vpop.f32.mrf.mxu0
  %6137 = vmatprep.mubr.bf16.mxu0 0
  %6138 = vmatmul.mubr.bf16.gmra.mxu0 %v5861
  %v6139 = vpop.f32.mrf.mxu0
  %v6140 = vadd.f32 0.0, %v6139
  %v6141 = vpop.f32.mrf.mxu0
  %v6142 = vpop.f32.mrf.mxu0
  %v6143 = vadd.f32 0.0, %v6142
  %v6144 = vpop.f32.mrf.mxu0
  %6145 = vmatprep.mubr.bf16.mxu0 0
  %6146 = vmatmul.mubr.bf16.gmra.mxu0 %v5864
  %v6147 = vpop.f32.mrf.mxu0
  %v6148 = vadd.f32 0.0, %v6147
  %v6149 = vpop.f32.mrf.mxu0
  %v6150 = vpop.f32.mrf.mxu0
  %v6151 = vadd.f32 0.0, %v6150
  %v6152 = vpop.f32.mrf.mxu0
  %6153 = vmatprep.mubr.bf16.mxu0 0
  %6154 = vmatmul.mubr.bf16.gmra.mxu0 %v5867
  %v6155 = vpop.f32.mrf.mxu0
  %v6156 = vadd.f32 0.0, %v6155
  %v6157 = vpop.f32.mrf.mxu0
  %v6158 = vpop.f32.mrf.mxu0
  %v6159 = vadd.f32 0.0, %v6158
  %v6160 = vpop.f32.mrf.mxu0
  %6161 = vmatprep.mubr.bf16.mxu0 0
  %6162 = vmatmul.mubr.bf16.gmra.mxu0 %v5870
  %v6163 = vpop.f32.mrf.mxu0
  %v6164 = vadd.f32 0.0, %v6163
  %v6165 = vpop.f32.mrf.mxu0
  %v6166 = vpop.f32.mrf.mxu0
  %v6167 = vadd.f32 0.0, %v6166
  %v6168 = vpop.f32.mrf.mxu0
  %6169 = vmatprep.mubr.bf16.mxu0 0
  %6170 = vmatmul.mubr.bf16.gmra.mxu0 %v5873
  %v6171 = vpop.f32.mrf.mxu0
  %v6172 = vadd.f32 0.0, %v6171
  %v6173 = vpop.f32.mrf.mxu0
  %v6174 = vpop.f32.mrf.mxu0
  %v6175 = vadd.f32 0.0, %v6174
  %v6176 = vpop.f32.mrf.mxu0
  %6177 = vmatprep.mubr.bf16.mxu0 0
  %6178 = vmatmul.mubr.bf16.gmra.mxu0 %v5876
  %v6179 = vpop.f32.mrf.mxu0
  %v6180 = vadd.f32 0.0, %v6179
  %v6181 = vpop.f32.mrf.mxu0
  %v6182 = vpop.f32.mrf.mxu0
  %v6183 = vadd.f32 0.0, %v6182
  %v6184 = vpop.f32.mrf.mxu0
  %6185 = vmatprep.mubr.bf16.mxu0 0
  %6186 = vmatmul.mubr.bf16.gmra.mxu0 %v5879
  %v6187 = vpop.f32.mrf.mxu0
  %v6188 = vadd.f32 0.0, %v6187
  %v6189 = vpop.f32.mrf.mxu0
  %v6190 = vpop.f32.mrf.mxu0
  %v6191 = vadd.f32 0.0, %v6190
  %v6192 = vpop.f32.mrf.mxu0
  %6193 = vmatprep.mubr.bf16.mxu0 0
  %6194 = vmatmul.mubr.bf16.gmra.mxu0 %v5882
  %v6195 = vpop.f32.mrf.mxu0
  %v6196 = vadd.f32 0.0, %v6195
  %v6197 = vpop.f32.mrf.mxu0
  %v6198 = vpop.f32.mrf.mxu0
  %v6199 = vadd.f32 0.0, %v6198
  %v6200 = vpop.f32.mrf.mxu0
  %6201 = vmatprep.mubr.bf16.mxu0 0
  %6202 = vmatmul.mubr.bf16.gmra.mxu0 %v5885
  %v6203 = vpop.f32.mrf.mxu0
  %v6204 = vadd.f32 0.0, %v6203
  %v6205 = vpop.f32.mrf.mxu0
  %v6206 = vpop.f32.mrf.mxu0
  %v6207 = vadd.f32 0.0, %v6206
  %v6208 = vpop.f32.mrf.mxu0
  %6209 = vmatprep.mubr.bf16.mxu0 0
  %6210 = vmatmul.mubr.bf16.gmra.mxu0 %v5888
  %v6211 = vpop.f32.mrf.mxu0
  %v6212 = vadd.f32 0.0, %v6211
  %v6213 = vpop.f32.mrf.mxu0
  %v6214 = vpop.f32.mrf.mxu0
  %v6215 = vadd.f32 0.0, %v6214
  %v6216 = vpop.f32.mrf.mxu0
  %6217 = vmatprep.mubr.bf16.mxu0 0
  %6218 = vmatmul.mubr.bf16.gmra.mxu0 %v5891
  %v6219 = vpop.f32.mrf.mxu0
  %v6220 = vadd.f32 0.0, %v6219
  %v6221 = vpop.f32.mrf.mxu0
  %v6222 = vpop.f32.mrf.mxu0
  %v6223 = vadd.f32 0.0, %v6222
  %v6224 = vpop.f32.mrf.mxu0
  %6225 = vmatprep.mubr.bf16.mxu0 0
  %6226 = vmatmul.mubr.bf16.gmra.mxu0 %v5894
  %v6227 = vpop.f32.mrf.mxu0
  %v6228 = vadd.f32 0.0, %v6227
  %v6229 = vpop.f32.mrf.mxu0
  %v6230 = vpop.f32.mrf.mxu0
  %v6231 = vadd.f32 0.0, %v6230
  %v6232 = vpop.f32.mrf.mxu0
  %6233 = vmatprep.mubr.bf16.mxu0 0
  %6234 = vmatmul.mubr.bf16.gmra.mxu0 %v5897
  %v6235 = vpop.f32.mrf.mxu0
  %v6236 = vadd.f32 0.0, %v6235
  %v6237 = vpop.f32.mrf.mxu0
  %v6238 = vpop.f32.mrf.mxu0
  %v6239 = vadd.f32 0.0, %v6238
  %v6240 = vpop.f32.mrf.mxu0
  %6241 = vmatprep.mubr.bf16.mxu0 0
  %6242 = vmatmul.mubr.bf16.gmra.mxu0 %v5900
  %v6243 = vpop.f32.mrf.mxu0
  %v6244 = vadd.f32 0.0, %v6243
  %v6245 = vpop.f32.mrf.mxu0
  %v6246 = vpop.f32.mrf.mxu0
  %v6247 = vadd.f32 0.0, %v6246
  %v6248 = vpop.f32.mrf.mxu0
  %6249 = vmatprep.mubr.bf16.mxu0 0
  %6250 = vmatmul.mubr.bf16.gmra.mxu0 %v5903
  %v6251 = vpop.f32.mrf.mxu0
  %v6252 = vadd.f32 0.0, %v6251
  %v6253 = vpop.f32.mrf.mxu0
  %v6254 = vpop.f32.mrf.mxu0
  %v6255 = vadd.f32 0.0, %v6254
  %v6256 = vpop.f32.mrf.mxu0
  %6257 = vmatprep.mubr.bf16.mxu0 0
  %6258 = vmatmul.mubr.bf16.gmra.mxu0 %v5906
  %v6259 = vpop.f32.mrf.mxu0
  %v6260 = vadd.f32 0.0, %v6259
  %v6261 = vpop.f32.mrf.mxu0
  %v6262 = vpop.f32.mrf.mxu0
  %v6263 = vadd.f32 0.0, %v6262
  %v6264 = vpop.f32.mrf.mxu0
  %6265 = vmatprep.mubr.bf16.mxu0 0
  %6266 = vmatmul.mubr.bf16.gmra.mxu0 %v5909
  %v6267 = vpop.f32.mrf.mxu0
  %v6268 = vadd.f32 0.0, %v6267
  %v6269 = vpop.f32.mrf.mxu0
  %v6270 = vpop.f32.mrf.mxu0
  %v6271 = vadd.f32 0.0, %v6270
  %v6272 = vpop.f32.mrf.mxu0
  %6273 = vmatprep.mubr.bf16.mxu0 0
  %6274 = vmatmul.mubr.bf16.gmra.mxu0 %v5912
  %v6275 = vpop.f32.mrf.mxu0
  %v6276 = vadd.f32 0.0, %v6275
  %v6277 = vpop.f32.mrf.mxu0
  %v6278 = vpop.f32.mrf.mxu0
  %v6279 = vadd.f32 0.0, %v6278
  %v6280 = vpop.f32.mrf.mxu0
  %6281 = vmatprep.mubr.bf16.mxu0 0
  %6282 = vmatmul.mubr.bf16.gmra.mxu0 %v5915
  %v6283 = vpop.f32.mrf.mxu0
  %v6284 = vadd.f32 0.0, %v6283
  %v6285 = vpop.f32.mrf.mxu0
  %v6286 = vpop.f32.mrf.mxu0
  %v6287 = vadd.f32 0.0, %v6286
  %v6288 = vpop.f32.mrf.mxu0
  %6289 = vmatprep.mubr.bf16.mxu0 0
  %6290 = vmatmul.mubr.bf16.gmra.mxu0 %v5918
  %v6291 = vpop.f32.mrf.mxu0
  %v6292 = vadd.f32 0.0, %v6291
  %v6293 = vpop.f32.mrf.mxu0
  %v6294 = vpop.f32.mrf.mxu0
  %v6295 = vadd.f32 0.0, %v6294
  %v6296 = vpop.f32.mrf.mxu0
  %6297 = vmatprep.mubr.bf16.mxu0 0
  %6298 = vmatmul.mubr.bf16.gmra.mxu0 %v5921
  %v6299 = vpop.f32.mrf.mxu0
  %v6300 = vadd.f32 0.0, %v6299
  %v6301 = vpop.f32.mrf.mxu0
  %v6302 = vpop.f32.mrf.mxu0
  %v6303 = vadd.f32 0.0, %v6302
  %v6304 = vpop.f32.mrf.mxu0
  %6305 = vmatprep.mubr.bf16.mxu0 0
  %6306 = vmatmul.mubr.bf16.gmra.mxu0 %v5924
  %v6307 = vpop.f32.mrf.mxu0
  %v6308 = vadd.f32 0.0, %v6307
  %v6309 = vpop.f32.mrf.mxu0
  %v6310 = vpop.f32.mrf.mxu0
  %v6311 = vadd.f32 0.0, %v6310
  %v6312 = vpop.f32.mrf.mxu0
  %6313 = vdwg.mxu0
  %v6314 = vadd.f32 %v4987, %v5964
  %v6315 = vadd.f32 %v4988, %v5967
  %v6316 = vadd.f32 %v4989, %v5972
  %v6317 = vadd.f32 %v4990, %v5975
  %v6318 = vadd.f32 %v4991, %v5980
  %v6319 = vadd.f32 %v4992, %v5983
  %v6320 = vadd.f32 %v4993, %v5988
  %v6321 = vadd.f32 %v4994, %v5991
  %v6322 = vadd.f32 %v4995, %v5996
  %v6323 = vadd.f32 %v4996, %v5999
  %v6324 = vadd.f32 %v4997, %v6004
  %v6325 = vadd.f32 %v4998, %v6007
  %v6326 = vadd.f32 %v4999, %v6012
  %v6327 = vadd.f32 %v5000, %v6015
  %v6328 = vadd.f32 %v5001, %v6020
  %v6329 = vadd.f32 %v5002, %v6023
  %v6330 = vadd.f32 %v5003, %v6028
  %v6331 = vadd.f32 %v5004, %v6031
  %v6332 = vadd.f32 %v5005, %v6036
  %v6333 = vadd.f32 %v5006, %v6039
  %v6334 = vadd.f32 %v5007, %v6044
  %v6335 = vadd.f32 %v5008, %v6047
  %v6336 = vadd.f32 %v5009, %v6052
  %v6337 = vadd.f32 %v5010, %v6055
  %v6338 = vadd.f32 %v5011, %v6060
  %v6339 = vadd.f32 %v5012, %v6063
  %v6340 = vadd.f32 %v5013, %v6068
  %v6341 = vadd.f32 %v5014, %v6071
  %v6342 = vadd.f32 %v5015, %v6076
  %v6343 = vadd.f32 %v5016, %v6079
  %v6344 = vadd.f32 %v5017, %v6084
  %v6345 = vadd.f32 %v5018, %v6087
  %v6346 = vadd.f32 %v5019, %v6092
  %v6347 = vadd.f32 %v5020, %v6095
  %v6348 = vadd.f32 %v5021, %v6100
  %v6349 = vadd.f32 %v5022, %v6103
  %v6350 = vadd.f32 %v5023, %v6108
  %v6351 = vadd.f32 %v5024, %v6111
  %v6352 = vadd.f32 %v5025, %v6116
  %v6353 = vadd.f32 %v5026, %v6119
  %v6354 = vadd.f32 %v5027, %v6124
  %v6355 = vadd.f32 %v5028, %v6127
  %v6356 = vadd.f32 %v5029, %v6132
  %v6357 = vadd.f32 %v5030, %v6135
  %v6358 = vadd.f32 %v5031, %v6140
  %v6359 = vadd.f32 %v5032, %v6143
  %v6360 = vadd.f32 %v5033, %v6148
  %v6361 = vadd.f32 %v5034, %v6151
  %v6362 = vadd.f32 %v5035, %v6156
  %v6363 = vadd.f32 %v5036, %v6159
  %v6364 = vadd.f32 %v5037, %v6164
  %v6365 = vadd.f32 %v5038, %v6167
  %v6366 = vadd.f32 %v5039, %v6172
  %v6367 = vadd.f32 %v5040, %v6175
  %v6368 = vadd.f32 %v5041, %v6180
  %v6369 = vadd.f32 %v5042, %v6183
  %v6370 = vadd.f32 %v5043, %v6188
  %v6371 = vadd.f32 %v5044, %v6191
  %v6372 = vadd.f32 %v5045, %v6196
  %v6373 = vadd.f32 %v5046, %v6199
  %v6374 = vadd.f32 %v5047, %v6204
  %v6375 = vadd.f32 %v5048, %v6207
  %v6376 = vadd.f32 %v5049, %v6212
  %v6377 = vadd.f32 %v5050, %v6215
  %v6378 = vadd.f32 %v5051, %v6220
  %v6379 = vadd.f32 %v5052, %v6223
  %v6380 = vadd.f32 %v5053, %v6228
  %v6381 = vadd.f32 %v5054, %v6231
  %v6382 = vadd.f32 %v5055, %v6236
  %v6383 = vadd.f32 %v5056, %v6239
  %v6384 = vadd.f32 %v5057, %v6244
  %v6385 = vadd.f32 %v5058, %v6247
  %v6386 = vadd.f32 %v5059, %v6252
  %v6387 = vadd.f32 %v5060, %v6255
  %v6388 = vadd.f32 %v5061, %v6260
  %v6389 = vadd.f32 %v5062, %v6263
  %v6390 = vadd.f32 %v5063, %v6268
  %v6391 = vadd.f32 %v5064, %v6271
  %v6392 = vadd.f32 %v5065, %v6276
  %v6393 = vadd.f32 %v5066, %v6279
  %v6394 = vadd.f32 %v5067, %v6284
  %v6395 = vadd.f32 %v5068, %v6287
  %v6396 = vadd.f32 %v5069, %v6292
  %v6397 = vadd.f32 %v5070, %v6295
  %v6398 = vadd.f32 %v5071, %v6300
  %v6399 = vadd.f32 %v5072, %v6303
  %v6400 = vadd.f32 %v5073, %v6308
  %v6401 = vadd.f32 %v5074, %v6311
  %6402 = vst [vmem:[#allocation3] sm:$0xff] %v6314
  %6403 = vst [vmem:[#allocation3 + $0x8] sm:$0xff] %v6315
  %6404 = vst [vmem:[#allocation3 + $0x10] sm:$0xff] %v6316
  %6405 = vst [vmem:[#allocation3 + $0x18] sm:$0xff] %v6317
  %6406 = vst [vmem:[#allocation3 + $0x20] sm:$0xff] %v6318
  %6407 = vst [vmem:[#allocation3 + $0x28] sm:$0xff] %v6319
  %6408 = vst [vmem:[#allocation3 + $0x30] sm:$0xff] %v6320
  %6409 = vst [vmem:[#allocation3 + $0x38] sm:$0xff] %v6321
  %6410 = vst [vmem:[#allocation3 + $0x40] sm:$0xff] %v6322
  %6411 = vst [vmem:[#allocation3 + $0x48] sm:$0xff] %v6323
  %6412 = vst [vmem:[#allocation3 + $0x50] sm:$0xff] %v6324
  %6413 = vst [vmem:[#allocation3 + $0x58] sm:$0xff] %v6325
  %6414 = vst [vmem:[#allocation3 + $0x60] sm:$0xff] %v6326
  %6415 = vst [vmem:[#allocation3 + $0x68] sm:$0xff] %v6327
  %6416 = vst [vmem:[#allocation3 + $0x70] sm:$0xff] %v6328
  %6417 = vst [vmem:[#allocation3 + $0x78] sm:$0xff] %v6329
  %6418 = vst [vmem:[#allocation3 + $0x80] sm:$0xff] %v6330
  %6419 = vst [vmem:[#allocation3 + $0x88] sm:$0xff] %v6331
  %6420 = vst [vmem:[#allocation3 + $0x90] sm:$0xff] %v6332
  %6421 = vst [vmem:[#allocation3 + $0x98] sm:$0xff] %v6333
  %6422 = vst [vmem:[#allocation3 + $0xa0] sm:$0xff] %v6334
  %6423 = vst [vmem:[#allocation3 + $0xa8] sm:$0xff] %v6335
  %6424 = vst [vmem:[#allocation3 + $0xb0] sm:$0xff] %v6336
  %6425 = vst [vmem:[#allocation3 + $0xb8] sm:$0xff] %v6337
  %6426 = vst [vmem:[#allocation3 + $0xc0] sm:$0xff] %v6338
  %6427 = vst [vmem:[#allocation3 + $0xc8] sm:$0xff] %v6339
  %6428 = vst [vmem:[#allocation3 + $0xd0] sm:$0xff] %v6340
  %6429 = vst [vmem:[#allocation3 + $0xd8] sm:$0xff] %v6341
  %6430 = vst [vmem:[#allocation3 + $0xe0] sm:$0xff] %v6342
  %6431 = vst [vmem:[#allocation3 + $0xe8] sm:$0xff] %v6343
  %6432 = vst [vmem:[#allocation3 + $0xf0] sm:$0xff] %v6344
  %6433 = vst [vmem:[#allocation3 + $0xf8] sm:$0xff] %v6345
  %6434 = vst [vmem:[#allocation3 + $0x100] sm:$0xff] %v6346
  %6435 = vst [vmem:[#allocation3 + $0x108] sm:$0xff] %v6347
  %6436 = vst [vmem:[#allocation3 + $0x110] sm:$0xff] %v6348
  %6437 = vst [vmem:[#allocation3 + $0x118] sm:$0xff] %v6349
  %6438 = vst [vmem:[#allocation3 + $0x120] sm:$0xff] %v6350
  %6439 = vst [vmem:[#allocation3 + $0x128] sm:$0xff] %v6351
  %6440 = vst [vmem:[#allocation3 + $0x130] sm:$0xff] %v6352
  %6441 = vst [vmem:[#allocation3 + $0x138] sm:$0xff] %v6353
  %6442 = vst [vmem:[#allocation3 + $0x140] sm:$0xff] %v6354
  %6443 = vst [vmem:[#allocation3 + $0x148] sm:$0xff] %v6355
  %6444 = vst [vmem:[#allocation3 + $0x150] sm:$0xff] %v6356
  %6445 = vst [vmem:[#allocation3 + $0x158] sm:$0xff] %v6357
  %6446 = vst [vmem:[#allocation3 + $0x160] sm:$0xff] %v6358
  %6447 = vst [vmem:[#allocation3 + $0x168] sm:$0xff] %v6359
  %6448 = vst [vmem:[#allocation3 + $0x170] sm:$0xff] %v6360
  %6449 = vst [vmem:[#allocation3 + $0x178] sm:$0xff] %v6361
  %6450 = vst [vmem:[#allocation3 + $0x180] sm:$0xff] %v6362
  %6451 = vst [vmem:[#allocation3 + $0x188] sm:$0xff] %v6363
  %6452 = vst [vmem:[#allocation3 + $0x190] sm:$0xff] %v6364
  %6453 = vst [vmem:[#allocation3 + $0x198] sm:$0xff] %v6365
  %6454 = vst [vmem:[#allocation3 + $0x1a0] sm:$0xff] %v6366
  %6455 = vst [vmem:[#allocation3 + $0x1a8] sm:$0xff] %v6367
  %6456 = vst [vmem:[#allocation3 + $0x1b0] sm:$0xff] %v6368
  %6457 = vst [vmem:[#allocation3 + $0x1b8] sm:$0xff] %v6369
  %6458 = vst [vmem:[#allocation3 + $0x1c0] sm:$0xff] %v6370
  %6459 = vst [vmem:[#allocation3 + $0x1c8] sm:$0xff] %v6371
  %6460 = vst [vmem:[#allocation3 + $0x1d0] sm:$0xff] %v6372
  %6461 = vst [vmem:[#allocation3 + $0x1d8] sm:$0xff] %v6373
  %6462 = vst [vmem:[#allocation3 + $0x1e0] sm:$0xff] %v6374
  %6463 = vst [vmem:[#allocation3 + $0x1e8] sm:$0xff] %v6375
  %6464 = vst [vmem:[#allocation3 + $0x1f0] sm:$0xff] %v6376
  %6465 = vst [vmem:[#allocation3 + $0x1f8] sm:$0xff] %v6377
  %6466 = vst [vmem:[#allocation3 + $0x200] sm:$0xff] %v6378
  %6467 = vst [vmem:[#allocation3 + $0x208] sm:$0xff] %v6379
  %6468 = vst [vmem:[#allocation3 + $0x210] sm:$0xff] %v6380
  %6469 = vst [vmem:[#allocation3 + $0x218] sm:$0xff] %v6381
  %6470 = vst [vmem:[#allocation3 + $0x220] sm:$0xff] %v6382
  %6471 = vst [vmem:[#allocation3 + $0x228] sm:$0xff] %v6383
  %6472 = vst [vmem:[#allocation3 + $0x230] sm:$0xff] %v6384
  %6473 = vst [vmem:[#allocation3 + $0x238] sm:$0xff] %v6385
  %6474 = vst [vmem:[#allocation3 + $0x240] sm:$0xff] %v6386
  %6475 = vst [vmem:[#allocation3 + $0x248] sm:$0xff] %v6387
  %6476 = vst [vmem:[#allocation3 + $0x250] sm:$0xff] %v6388
  %6477 = vst [vmem:[#allocation3 + $0x258] sm:$0xff] %v6389
  %6478 = vst [vmem:[#allocation3 + $0x260] sm:$0xff] %v6390
  %6479 = vst [vmem:[#allocation3 + $0x268] sm:$0xff] %v6391
  %6480 = vst [vmem:[#allocation3 + $0x270] sm:$0xff] %v6392
  %6481 = vst [vmem:[#allocation3 + $0x278] sm:$0xff] %v6393
  %6482 = vst [vmem:[#allocation3 + $0x280] sm:$0xff] %v6394
  %6483 = vst [vmem:[#allocation3 + $0x288] sm:$0xff] %v6395
  %6484 = vst [vmem:[#allocation3 + $0x290] sm:$0xff] %v6396
  %6485 = vst [vmem:[#allocation3 + $0x298] sm:$0xff] %v6397
  %6486 = vst [vmem:[#allocation3 + $0x2a0] sm:$0xff] %v6398
  %6487 = vst [vmem:[#allocation3 + $0x2a8] sm:$0xff] %v6399
  %6488 = vst [vmem:[#allocation3 + $0x2b0] sm:$0xff] %v6400
  %6489 = vst [vmem:[#allocation3 + $0x2b8] sm:$0xff] %v6401
  %v6490 = vld [vmem:[#allocation3] sm:$0xff]
  %v6491 = vld [vmem:[#allocation3 + $0x8] sm:$0xff]
  %v6492 = vld [vmem:[#allocation3 + $0x10] sm:$0xff]
  %v6493 = vld [vmem:[#allocation3 + $0x18] sm:$0xff]
  %v6494 = vld [vmem:[#allocation3 + $0x20] sm:$0xff]
  %v6495 = vld [vmem:[#allocation3 + $0x28] sm:$0xff]
  %v6496 = vld [vmem:[#allocation3 + $0x30] sm:$0xff]
  %v6497 = vld [vmem:[#allocation3 + $0x38] sm:$0xff]
  %v6498 = vld [vmem:[#allocation3 + $0x40] sm:$0xff]
  %v6499 = vld [vmem:[#allocation3 + $0x48] sm:$0xff]
  %v6500 = vld [vmem:[#allocation3 + $0x50] sm:$0xff]
  %v6501 = vld [vmem:[#allocation3 + $0x58] sm:$0xff]
  %v6502 = vld [vmem:[#allocation3 + $0x60] sm:$0xff]
  %v6503 = vld [vmem:[#allocation3 + $0x68] sm:$0xff]
  %v6504 = vld [vmem:[#allocation3 + $0x70] sm:$0xff]
  %v6505 = vld [vmem:[#allocation3 + $0x78] sm:$0xff]
  %v6506 = vld [vmem:[#allocation3 + $0x80] sm:$0xff]
  %v6507 = vld [vmem:[#allocation3 + $0x88] sm:$0xff]
  %v6508 = vld [vmem:[#allocation3 + $0x90] sm:$0xff]
  %v6509 = vld [vmem:[#allocation3 + $0x98] sm:$0xff]
  %v6510 = vld [vmem:[#allocation3 + $0xa0] sm:$0xff]
  %v6511 = vld [vmem:[#allocation3 + $0xa8] sm:$0xff]
  %v6512 = vld [vmem:[#allocation3 + $0xb0] sm:$0xff]
  %v6513 = vld [vmem:[#allocation3 + $0xb8] sm:$0xff]
  %v6514 = vld [vmem:[#allocation3 + $0xc0] sm:$0xff]
  %v6515 = vld [vmem:[#allocation3 + $0xc8] sm:$0xff]
  %v6516 = vld [vmem:[#allocation3 + $0xd0] sm:$0xff]
  %v6517 = vld [vmem:[#allocation3 + $0xd8] sm:$0xff]
  %v6518 = vld [vmem:[#allocation3 + $0xe0] sm:$0xff]
  %v6519 = vld [vmem:[#allocation3 + $0xe8] sm:$0xff]
  %v6520 = vld [vmem:[#allocation3 + $0xf0] sm:$0xff]
  %v6521 = vld [vmem:[#allocation3 + $0xf8] sm:$0xff]
  %v6522 = vld [vmem:[#allocation3 + $0x100] sm:$0xff]
  %v6523 = vld [vmem:[#allocation3 + $0x108] sm:$0xff]
  %v6524 = vld [vmem:[#allocation3 + $0x110] sm:$0xff]
  %v6525 = vld [vmem:[#allocation3 + $0x118] sm:$0xff]
  %v6526 = vld [vmem:[#allocation3 + $0x120] sm:$0xff]
  %v6527 = vld [vmem:[#allocation3 + $0x128] sm:$0xff]
  %v6528 = vld [vmem:[#allocation3 + $0x130] sm:$0xff]
  %v6529 = vld [vmem:[#allocation3 + $0x138] sm:$0xff]
  %v6530 = vld [vmem:[#allocation3 + $0x140] sm:$0xff]
  %v6531 = vld [vmem:[#allocation3 + $0x148] sm:$0xff]
  %v6532 = vld [vmem:[#allocation3 + $0x150] sm:$0xff]
  %v6533 = vld [vmem:[#allocation3 + $0x158] sm:$0xff]
  %v6534 = vld [vmem:[#allocation3 + $0x160] sm:$0xff]
  %v6535 = vld [vmem:[#allocation3 + $0x168] sm:$0xff]
  %v6536 = vld [vmem:[#allocation3 + $0x170] sm:$0xff]
  %v6537 = vld [vmem:[#allocation3 + $0x178] sm:$0xff]
  %v6538 = vld [vmem:[#allocation3 + $0x180] sm:$0xff]
  %v6539 = vld [vmem:[#allocation3 + $0x188] sm:$0xff]
  %v6540 = vld [vmem:[#allocation3 + $0x190] sm:$0xff]
  %v6541 = vld [vmem:[#allocation3 + $0x198] sm:$0xff]
  %v6542 = vld [vmem:[#allocation3 + $0x1a0] sm:$0xff]
  %v6543 = vld [vmem:[#allocation3 + $0x1a8] sm:$0xff]
  %v6544 = vld [vmem:[#allocation3 + $0x1b0] sm:$0xff]
  %v6545 = vld [vmem:[#allocation3 + $0x1b8] sm:$0xff]
  %v6546 = vld [vmem:[#allocation3 + $0x1c0] sm:$0xff]
  %v6547 = vld [vmem:[#allocation3 + $0x1c8] sm:$0xff]
  %v6548 = vld [vmem:[#allocation3 + $0x1d0] sm:$0xff]
  %v6549 = vld [vmem:[#allocation3 + $0x1d8] sm:$0xff]
  %v6550 = vld [vmem:[#allocation3 + $0x1e0] sm:$0xff]
  %v6551 = vld [vmem:[#allocation3 + $0x1e8] sm:$0xff]
  %v6552 = vld [vmem:[#allocation3 + $0x1f0] sm:$0xff]
  %v6553 = vld [vmem:[#allocation3 + $0x1f8] sm:$0xff]
  %v6554 = vld [vmem:[#allocation3 + $0x200] sm:$0xff]
  %v6555 = vld [vmem:[#allocation3 + $0x208] sm:$0xff]
  %v6556 = vld [vmem:[#allocation3 + $0x210] sm:$0xff]
  %v6557 = vld [vmem:[#allocation3 + $0x218] sm:$0xff]
  %v6558 = vld [vmem:[#allocation3 + $0x220] sm:$0xff]
  %v6559 = vld [vmem:[#allocation3 + $0x228] sm:$0xff]
  %v6560 = vld [vmem:[#allocation3 + $0x230] sm:$0xff]
  %v6561 = vld [vmem:[#allocation3 + $0x238] sm:$0xff]
  %v6562 = vld [vmem:[#allocation3 + $0x240] sm:$0xff]
  %v6563 = vld [vmem:[#allocation3 + $0x248] sm:$0xff]
  %v6564 = vld [vmem:[#allocation3 + $0x250] sm:$0xff]
  %v6565 = vld [vmem:[#allocation3 + $0x258] sm:$0xff]
  %v6566 = vld [vmem:[#allocation3 + $0x260] sm:$0xff]
  %v6567 = vld [vmem:[#allocation3 + $0x268] sm:$0xff]
  %v6568 = vld [vmem:[#allocation3 + $0x270] sm:$0xff]
  %v6569 = vld [vmem:[#allocation3 + $0x278] sm:$0xff]
  %v6570 = vld [vmem:[#allocation3 + $0x280] sm:$0xff]
  %v6571 = vld [vmem:[#allocation3 + $0x288] sm:$0xff]
  %v6572 = vld [vmem:[#allocation3 + $0x290] sm:$0xff]
  %v6573 = vld [vmem:[#allocation3 + $0x298] sm:$0xff]
  %v6574 = vld [vmem:[#allocation3 + $0x2a0] sm:$0xff]
  %v6575 = vld [vmem:[#allocation3 + $0x2a8] sm:$0xff]
  %v6576 = vld [vmem:[#allocation3 + $0x2b0] sm:$0xff]
  %v6577 = vld [vmem:[#allocation3 + $0x2b8] sm:$0xff]
  %v6578 = vld [vmem:[#allocation2 + $0x8] sm:$0xc]
  %v6579 = vld [vmem:[#allocation2 + $0xc] sm:$0xf]
  %v6580 = vld [vmem:[#allocation2 + $0x10] sm:$0xf]
  %v6581 = vld [vmem:[#allocation2 + $0x14] sm:$0xf]
  %v6582 = vld [vmem:[#allocation2 + $0x18] sm:$0xf]
  %v6583 = vld [vmem:[#allocation2 + $0x1c] sm:$0xf]
  %v6584 = vld [vmem:[#allocation2 + $0x20] sm:$0xf]
  %v6585 = vld [vmem:[#allocation2 + $0x24] sm:$0xf]
  %v6586 = vld [vmem:[#allocation2 + $0x28] sm:$0xf]
  %v6587 = vld [vmem:[#allocation2 + $0x2c] sm:$0xf]
  %v6588 = vld [vmem:[#allocation2 + $0x30] sm:$0xf]
  %v6589 = vld [vmem:[#allocation2 + $0x34] sm:$0xf]
  %v6590 = vld [vmem:[#allocation2 + $0x38] sm:$0xf]
  %v6591 = vld [vmem:[#allocation2 + $0x3c] sm:$0xf]
  %v6592 = vld [vmem:[#allocation2 + $0x40] sm:$0xf]
  %v6593 = vld [vmem:[#allocation2 + $0x44] sm:$0xf]
  %v6594 = vld [vmem:[#allocation2 + $0x48] sm:$0xf]
  %v6595 = vld [vmem:[#allocation2 + $0x4c] sm:$0xf]
  %v6596 = vld [vmem:[#allocation2 + $0x50] sm:$0xf]
  %v6597 = vld [vmem:[#allocation2 + $0x54] sm:$0xf]
  %v6598 = vld [vmem:[#allocation2 + $0x58] sm:$0xf]
  %v6599 = vld [vmem:[#allocation2 + $0x5c] sm:$0xf]
  %v6600 = vld [vmem:[#allocation2 + $0x60] sm:$0xf]
  %v6601 = vld [vmem:[#allocation2 + $0x64] sm:$0xf]
  %v6602 = vld [vmem:[#allocation2 + $0x68] sm:$0xf]
  %v6603 = vld [vmem:[#allocation2 + $0x6c] sm:$0xf]
  %v6604 = vld [vmem:[#allocation2 + $0x70] sm:$0xf]
  %v6605 = vld [vmem:[#allocation2 + $0x74] sm:$0xf]
  %v6606 = vld [vmem:[#allocation2 + $0x78] sm:$0xf]
  %v6607 = vld [vmem:[#allocation2 + $0x7c] sm:$0xf]
  %v6608 = vld [vmem:[#allocation2 + $0x80] sm:$0xf]
  %v6609 = vld [vmem:[#allocation2 + $0x84] sm:$0xf]
  %v6610 = vld [vmem:[#allocation2 + $0x88] sm:$0xf]
  %v6611 = vld [vmem:[#allocation2 + $0x8c] sm:$0xf]
  %v6612 = vld [vmem:[#allocation2 + $0x90] sm:$0xf]
  %v6613 = vld [vmem:[#allocation2 + $0x94] sm:$0xf]
  %v6614 = vld [vmem:[#allocation2 + $0x98] sm:$0xf]
  %v6615 = vld [vmem:[#allocation2 + $0x9c] sm:$0xf]
  %v6616 = vld [vmem:[#allocation2 + $0xa0] sm:$0xf]
  %v6617 = vld [vmem:[#allocation2 + $0xa4] sm:$0xf]
  %v6618 = vld [vmem:[#allocation2 + $0xa8] sm:$0xf]
  %v6619 = vld [vmem:[#allocation2 + $0xac] sm:$0xf]
  %v6620 = vld [vmem:[#allocation2 + $0xb0] sm:$0xf]
  %v6621 = vld [vmem:[#allocation2 + $0xb4] sm:$0xf]
  %v6622 = vld [vmem:[#allocation2 + $0xb8] sm:$0xf]
  %v6623 = vld [vmem:[#allocation2 + $0xbc] sm:$0xf]
  %v6624 = vld [vmem:[#allocation2 + $0xc0] sm:$0xf]
  %v6625 = vld [vmem:[#allocation2 + $0xc4] sm:$0xf]
  %v6626 = vld [vmem:[#allocation2 + $0xc8] sm:$0xf]
  %v6627 = vld [vmem:[#allocation2 + $0xcc] sm:$0xf]
  %v6628 = vld [vmem:[#allocation2 + $0xd0] sm:$0xf]
  %v6629 = vld [vmem:[#allocation2 + $0xd4] sm:$0xf]
  %v6630 = vld [vmem:[#allocation2 + $0xd8] sm:$0xf]
  %v6631 = vld [vmem:[#allocation2 + $0xdc] sm:$0xf]
  %v6632 = vld [vmem:[#allocation2 + $0xe0] sm:$0xf]
  %v6633 = vld [vmem:[#allocation2 + $0xe4] sm:$0xf]
  %v6634 = vld [vmem:[#allocation2 + $0xe8] sm:$0xf]
  %v6635 = vld [vmem:[#allocation2 + $0xec] sm:$0xf]
  %v6636 = vld [vmem:[#allocation2 + $0xf0] sm:$0xf]
  %v6637 = vld [vmem:[#allocation2 + $0xf4] sm:$0xf]
  %v6638 = vld [vmem:[#allocation2 + $0xf8] sm:$0xf]
  %v6639 = vld [vmem:[#allocation2 + $0xfc] sm:$0xf]
  %v6640 = vld [vmem:[#allocation2 + $0x100] sm:$0xf]
  %v6641 = vld [vmem:[#allocation2 + $0x104] sm:$0xf]
  %v6642 = vld [vmem:[#allocation2 + $0x108] sm:$0xf]
  %v6643 = vld [vmem:[#allocation2 + $0x10c] sm:$0xf]
  %v6644 = vld [vmem:[#allocation2 + $0x110] sm:$0xf]
  %v6645 = vld [vmem:[#allocation2 + $0x114] sm:$0xf]
  %v6646 = vld [vmem:[#allocation2 + $0x118] sm:$0xf]
  %v6647 = vld [vmem:[#allocation2 + $0x11c] sm:$0xf]
  %v6648 = vld [vmem:[#allocation2 + $0x120] sm:$0xf]
  %v6649 = vld [vmem:[#allocation2 + $0x124] sm:$0xf]
  %v6650 = vld [vmem:[#allocation2 + $0x128] sm:$0xf]
  %v6651 = vld [vmem:[#allocation2 + $0x12c] sm:$0xf]
  %v6652 = vld [vmem:[#allocation2 + $0x130] sm:$0xf]
  %v6653 = vld [vmem:[#allocation2 + $0x134] sm:$0xf]
  %v6654 = vld [vmem:[#allocation2 + $0x138] sm:$0xf]
  %v6655 = vld [vmem:[#allocation2 + $0x13c] sm:$0xf]
  %v6656 = vld [vmem:[#allocation2 + $0x140] sm:$0xf]
  %v6657 = vld [vmem:[#allocation2 + $0x144] sm:$0xf]
  %v6658 = vld [vmem:[#allocation2 + $0x148] sm:$0xf]
  %v6659 = vld [vmem:[#allocation2 + $0x14c] sm:$0xf]
  %v6660 = vld [vmem:[#allocation2 + $0x150] sm:$0xf]
  %v6661 = vld [vmem:[#allocation2 + $0x154] sm:$0xf]
  %v6662 = vld [vmem:[#allocation2 + $0x158] sm:$0xf]
  %v6663 = vld [vmem:[#allocation2 + $0x15c] sm:$0xf]
  %v6664 = vld [vmem:[#allocation2 + $0x160] sm:$0xf]
  %v6665 = vld [vmem:[#allocation2 + $0x164] sm:$0xf]
  %v6666 = vld [vmem:[#allocation2 + $0x168] sm:$0x3]
  %s6667 = scalar_lea.vmem %s2, 20
  %v6668 = vld [vmem:[%s6667] sm:$0xf]
  %v6758 = vunpack.c.l.b16 %v6578
  %v6759 = vunpack.c.l.b16 %v6579
  %v6760 = vunpack.c.l.b16 %v6580
  %v6761 = vunpack.c.l.b16 %v6581
  %v6762 = vunpack.c.l.b16 %v6582
  %v6763 = vunpack.c.l.b16 %v6583
  %v6764 = vunpack.c.l.b16 %v6584
  %v6765 = vunpack.c.l.b16 %v6585
  %v6766 = vunpack.c.l.b16 %v6586
  %v6767 = vunpack.c.l.b16 %v6587
  %v6768 = vunpack.c.l.b16 %v6588
  %v6769 = vunpack.c.l.b16 %v6589
  %v6770 = vunpack.c.l.b16 %v6590
  %v6771 = vunpack.c.l.b16 %v6591
  %v6772 = vunpack.c.l.b16 %v6592
  %v6773 = vunpack.c.l.b16 %v6593
  %v6774 = vunpack.c.l.b16 %v6594
  %v6775 = vunpack.c.l.b16 %v6595
  %v6776 = vunpack.c.l.b16 %v6596
  %v6777 = vunpack.c.l.b16 %v6597
  %v6778 = vunpack.c.l.b16 %v6598
  %v6779 = vunpack.c.l.b16 %v6599
  %v6780 = vunpack.c.l.b16 %v6600
  %v6781 = vunpack.c.l.b16 %v6601
  %v6782 = vunpack.c.l.b16 %v6602
  %v6783 = vunpack.c.l.b16 %v6603
  %v6784 = vunpack.c.l.b16 %v6604
  %v6785 = vunpack.c.l.b16 %v6605
  %v6786 = vunpack.c.l.b16 %v6606
  %v6787 = vunpack.c.l.b16 %v6607
  %v6788 = vunpack.c.l.b16 %v6608
  %v6789 = vunpack.c.l.b16 %v6609
  %v6790 = vunpack.c.l.b16 %v6610
  %v6791 = vunpack.c.l.b16 %v6611
  %v6792 = vunpack.c.l.b16 %v6612
  %v6793 = vunpack.c.l.b16 %v6613
  %v6794 = vunpack.c.l.b16 %v6614
  %v6795 = vunpack.c.l.b16 %v6615
  %v6796 = vunpack.c.l.b16 %v6616
  %v6797 = vunpack.c.l.b16 %v6617
  %v6798 = vunpack.c.l.b16 %v6618
  %v6799 = vunpack.c.l.b16 %v6619
  %v6800 = vunpack.c.l.b16 %v6620
  %v6801 = vunpack.c.l.b16 %v6621
  %v6802 = vunpack.c.l.b16 %v6622
  %v6803 = vunpack.c.l.b16 %v6623
  %v6804 = vunpack.c.l.b16 %v6624
  %v6805 = vunpack.c.l.b16 %v6625
  %v6806 = vunpack.c.l.b16 %v6626
  %v6807 = vunpack.c.l.b16 %v6627
  %v6808 = vunpack.c.l.b16 %v6628
  %v6809 = vunpack.c.l.b16 %v6629
  %v6810 = vunpack.c.l.b16 %v6630
  %v6811 = vunpack.c.l.b16 %v6631
  %v6812 = vunpack.c.l.b16 %v6632
  %v6813 = vunpack.c.l.b16 %v6633
  %v6814 = vunpack.c.l.b16 %v6634
  %v6815 = vunpack.c.l.b16 %v6635
  %v6816 = vunpack.c.l.b16 %v6636
  %v6817 = vunpack.c.l.b16 %v6637
  %v6818 = vunpack.c.l.b16 %v6638
  %v6819 = vunpack.c.l.b16 %v6639
  %v6820 = vunpack.c.l.b16 %v6640
  %v6821 = vunpack.c.l.b16 %v6641
  %v6822 = vunpack.c.l.b16 %v6642
  %v6823 = vunpack.c.l.b16 %v6643
  %v6824 = vunpack.c.l.b16 %v6644
  %v6825 = vunpack.c.l.b16 %v6645
  %v6826 = vunpack.c.l.b16 %v6646
  %v6827 = vunpack.c.l.b16 %v6647
  %v6828 = vunpack.c.l.b16 %v6648
  %v6829 = vunpack.c.l.b16 %v6649
  %v6830 = vunpack.c.l.b16 %v6650
  %v6831 = vunpack.c.l.b16 %v6651
  %v6832 = vunpack.c.l.b16 %v6652
  %v6833 = vunpack.c.l.b16 %v6653
  %v6834 = vunpack.c.l.b16 %v6654
  %v6835 = vunpack.c.l.b16 %v6655
  %v6836 = vunpack.c.l.b16 %v6656
  %v6837 = vunpack.c.l.b16 %v6657
  %v6838 = vunpack.c.l.b16 %v6658
  %v6839 = vunpack.c.l.b16 %v6659
  %v6840 = vunpack.c.l.b16 %v6660
  %v6841 = vunpack.c.l.b16 %v6661
  %v6842 = vunpack.c.l.b16 %v6662
  %v6843 = vunpack.c.l.b16 %v6663
  %v6844 = vunpack.c.l.b16 %v6664
  %v6845 = vunpack.c.l.b16 %v6665
  %v6846 = vunpack.c.l.b16 %v6666
  %v6847 = vpack.c.b16 %v6759, %v6758
  %v6848 = vpack.c.b16 %v6761, %v6760
  %v6849 = vpack.c.b16 %v6763, %v6762
  %v6850 = vpack.c.b16 %v6765, %v6764
  %v6851 = vpack.c.b16 %v6767, %v6766
  %v6852 = vpack.c.b16 %v6769, %v6768
  %v6853 = vpack.c.b16 %v6771, %v6770
  %v6854 = vpack.c.b16 %v6773, %v6772
  %v6855 = vpack.c.b16 %v6775, %v6774
  %v6856 = vpack.c.b16 %v6777, %v6776
  %v6857 = vpack.c.b16 %v6779, %v6778
  %v6858 = vpack.c.b16 %v6781, %v6780
  %v6859 = vpack.c.b16 %v6783, %v6782
  %v6860 = vpack.c.b16 %v6785, %v6784
  %v6861 = vpack.c.b16 %v6787, %v6786
  %v6862 = vpack.c.b16 %v6789, %v6788
  %v6863 = vpack.c.b16 %v6791, %v6790
  %v6864 = vpack.c.b16 %v6793, %v6792
  %v6865 = vpack.c.b16 %v6795, %v6794
  %v6866 = vpack.c.b16 %v6797, %v6796
  %v6867 = vpack.c.b16 %v6799, %v6798
  %v6868 = vpack.c.b16 %v6801, %v6800
  %v6869 = vpack.c.b16 %v6803, %v6802
  %v6870 = vpack.c.b16 %v6805, %v6804
  %v6871 = vpack.c.b16 %v6807, %v6806
  %v6872 = vpack.c.b16 %v6809, %v6808
  %v6873 = vpack.c.b16 %v6811, %v6810
  %v6874 = vpack.c.b16 %v6813, %v6812
  %v6875 = vpack.c.b16 %v6815, %v6814
  %v6876 = vpack.c.b16 %v6817, %v6816
  %v6877 = vpack.c.b16 %v6819, %v6818
  %v6878 = vpack.c.b16 %v6821, %v6820
  %v6879 = vpack.c.b16 %v6823, %v6822
  %v6880 = vpack.c.b16 %v6825, %v6824
  %v6881 = vpack.c.b16 %v6827, %v6826
  %v6882 = vpack.c.b16 %v6829, %v6828
  %v6883 = vpack.c.b16 %v6831, %v6830
  %v6884 = vpack.c.b16 %v6833, %v6832
  %v6885 = vpack.c.b16 %v6835, %v6834
  %v6886 = vpack.c.b16 %v6837, %v6836
  %v6887 = vpack.c.b16 %v6839, %v6838
  %v6888 = vpack.c.b16 %v6841, %v6840
  %v6889 = vpack.c.b16 %v6843, %v6842
  %v6890 = vpack.c.b16 %v6845, %v6844
  %v6891 = vpack.c.b16 %v6846, %v6846
  %vm6892 = vcmask 1045504
  %v6893 = vrot.slane %v6847, 2
  %v6894 = vrot.slane %v6848, 2
  %v6895 = vsel %vm6892, %v6893, %v6894
  %v6896 = vrot.slane %v6849, 2
  %v6897 = vsel %vm6892, %v6894, %v6896
  %v6898 = vrot.slane %v6850, 2
  %v6899 = vsel %vm6892, %v6896, %v6898
  %v6900 = vrot.slane %v6851, 2
  %v6901 = vsel %vm6892, %v6898, %v6900
  %v6902 = vrot.slane %v6852, 2
  %v6903 = vsel %vm6892, %v6900, %v6902
  %v6904 = vrot.slane %v6853, 2
  %v6905 = vsel %vm6892, %v6902, %v6904
  %v6906 = vrot.slane %v6854, 2
  %v6907 = vsel %vm6892, %v6904, %v6906
  %v6908 = vrot.slane %v6855, 2
  %v6909 = vsel %vm6892, %v6906, %v6908
  %v6910 = vrot.slane %v6856, 2
  %v6911 = vsel %vm6892, %v6908, %v6910
  %v6912 = vrot.slane %v6857, 2
  %v6913 = vsel %vm6892, %v6910, %v6912
  %v6914 = vrot.slane %v6858, 2
  %v6915 = vsel %vm6892, %v6912, %v6914
  %v6916 = vrot.slane %v6859, 2
  %v6917 = vsel %vm6892, %v6914, %v6916
  %v6918 = vrot.slane %v6860, 2
  %v6919 = vsel %vm6892, %v6916, %v6918
  %v6920 = vrot.slane %v6861, 2
  %v6921 = vsel %vm6892, %v6918, %v6920
  %v6922 = vrot.slane %v6862, 2
  %v6923 = vsel %vm6892, %v6920, %v6922
  %v6924 = vrot.slane %v6863, 2
  %v6925 = vsel %vm6892, %v6922, %v6924
  %v6926 = vrot.slane %v6864, 2
  %v6927 = vsel %vm6892, %v6924, %v6926
  %v6928 = vrot.slane %v6865, 2
  %v6929 = vsel %vm6892, %v6926, %v6928
  %v6930 = vrot.slane %v6866, 2
  %v6931 = vsel %vm6892, %v6928, %v6930
  %v6932 = vrot.slane %v6867, 2
  %v6933 = vsel %vm6892, %v6930, %v6932
  %v6934 = vrot.slane %v6868, 2
  %v6935 = vsel %vm6892, %v6932, %v6934
  %v6936 = vrot.slane %v6869, 2
  %v6937 = vsel %vm6892, %v6934, %v6936
  %v6938 = vrot.slane %v6870, 2
  %v6939 = vsel %vm6892, %v6936, %v6938
  %v6940 = vrot.slane %v6871, 2
  %v6941 = vsel %vm6892, %v6938, %v6940
  %v6942 = vrot.slane %v6872, 2
  %v6943 = vsel %vm6892, %v6940, %v6942
  %v6944 = vrot.slane %v6873, 2
  %v6945 = vsel %vm6892, %v6942, %v6944
  %v6946 = vrot.slane %v6874, 2
  %v6947 = vsel %vm6892, %v6944, %v6946
  %v6948 = vrot.slane %v6875, 2
  %v6949 = vsel %vm6892, %v6946, %v6948
  %v6950 = vrot.slane %v6876, 2
  %v6951 = vsel %vm6892, %v6948, %v6950
  %v6952 = vrot.slane %v6877, 2
  %v6953 = vsel %vm6892, %v6950, %v6952
  %v6954 = vrot.slane %v6878, 2
  %v6955 = vsel %vm6892, %v6952, %v6954
  %v6956 = vrot.slane %v6879, 2
  %v6957 = vsel %vm6892, %v6954, %v6956
  %v6958 = vrot.slane %v6880, 2
  %v6959 = vsel %vm6892, %v6956, %v6958
  %v6960 = vrot.slane %v6881, 2
  %v6961 = vsel %vm6892, %v6958, %v6960
  %v6962 = vrot.slane %v6882, 2
  %v6963 = vsel %vm6892, %v6960, %v6962
  %v6964 = vrot.slane %v6883, 2
  %v6965 = vsel %vm6892, %v6962, %v6964
  %v6966 = vrot.slane %v6884, 2
  %v6967 = vsel %vm6892, %v6964, %v6966
  %v6968 = vrot.slane %v6885, 2
  %v6969 = vsel %vm6892, %v6966, %v6968
  %v6970 = vrot.slane %v6886, 2
  %v6971 = vsel %vm6892, %v6968, %v6970
  %v6972 = vrot.slane %v6887, 2
  %v6973 = vsel %vm6892, %v6970, %v6972
  %v6974 = vrot.slane %v6888, 2
  %v6975 = vsel %vm6892, %v6972, %v6974
  %v6976 = vrot.slane %v6889, 2
  %v6977 = vsel %vm6892, %v6974, %v6976
  %v6978 = vrot.slane %v6890, 2
  %v6979 = vsel %vm6892, %v6976, %v6978
  %v6980 = vrot.slane %v6891, 2
  %v6981 = vsel %vm6892, %v6978, %v6980
  %v6983 = vsel %vm547, %v6895, 0
  %v6986 = vsel %vm547, %v6897, 0
  %v6989 = vsel %vm547, %v6899, 0
  %v6992 = vsel %vm547, %v6901, 0
  %v6995 = vsel %vm547, %v6903, 0
  %v6998 = vsel %vm547, %v6905, 0
  %v7001 = vsel %vm547, %v6907, 0
  %v7004 = vsel %vm547, %v6909, 0
  %v7007 = vsel %vm547, %v6911, 0
  %v7010 = vsel %vm547, %v6913, 0
  %v7013 = vsel %vm547, %v6915, 0
  %v7016 = vsel %vm547, %v6917, 0
  %v7019 = vsel %vm547, %v6919, 0
  %v7022 = vsel %vm547, %v6921, 0
  %v7025 = vsel %vm547, %v6923, 0
  %v7028 = vsel %vm547, %v6925, 0
  %v7031 = vsel %vm547, %v6927, 0
  %v7034 = vsel %vm547, %v6929, 0
  %v7037 = vsel %vm547, %v6931, 0
  %v7040 = vsel %vm547, %v6933, 0
  %v7043 = vsel %vm547, %v6935, 0
  %v7046 = vsel %vm547, %v6937, 0
  %v7049 = vsel %vm547, %v6939, 0
  %v7052 = vsel %vm547, %v6941, 0
  %v7055 = vsel %vm547, %v6943, 0
  %v7058 = vsel %vm547, %v6945, 0
  %v7061 = vsel %vm547, %v6947, 0
  %v7064 = vsel %vm547, %v6949, 0
  %v7067 = vsel %vm547, %v6951, 0
  %v7070 = vsel %vm547, %v6953, 0
  %v7073 = vsel %vm547, %v6955, 0
  %v7076 = vsel %vm547, %v6957, 0
  %v7079 = vsel %vm547, %v6959, 0
  %v7082 = vsel %vm547, %v6961, 0
  %v7085 = vsel %vm547, %v6963, 0
  %v7088 = vsel %vm547, %v6965, 0
  %v7091 = vsel %vm547, %v6967, 0
  %v7094 = vsel %vm547, %v6969, 0
  %v7097 = vsel %vm547, %v6971, 0
  %v7100 = vsel %vm547, %v6973, 0
  %v7103 = vsel %vm547, %v6975, 0
  %v7106 = vsel %vm547, %v6977, 0
  %v7109 = vsel %vm547, %v6979, 0
  %v7112 = vsel %vm547, %v6981, 0
  %v7115 = vsel %vm680, %v6668, 0
  %7117 = vmatprep.subr.bf16.mxu0 0
  %7118 = vmatpush1.bf16.msra.mxu0 0
  %7119 = vmatprep.subr.bf16.mxu0 0
  %7120 = vmatpush1.bf16.msra.mxu0 0
  %7121 = vmatprep.subr.bf16.mxu0 0
  %7122 = vmatpush1.bf16.msra.mxu0 0
  %7123 = vmatprep.subr.bf16.mxu0 0
  %7124 = vmatpush1.bf16.msra.mxu0 0
  %7125 = vmatprep.subr.bf16.mxu0 0
  %7126 = vmatpush1.bf16.msra.mxu0 0
  %7127 = vmatprep.subr.bf16.mxu0 0
  %7128 = vmatpush1.bf16.msra.mxu0 0
  %7129 = vmatprep.subr.bf16.mxu0 0
  %7130 = vmatpush1.bf16.msra.mxu0 0
  %7131 = vmatprep.subr.bf16.mxu0 0
  %7132 = vmatpush1.bf16.msra.mxu0 %v7115
  %7133 = vmatprep.subr.bf16.mxu0 0
  %7134 = vmatpush2.bf16.msra.mxu0 0
  %7135 = vmatprep.subr.bf16.mxu0 0
  %7136 = vmatpush2.bf16.msra.mxu0 0
  %7137 = vmatprep.subr.bf16.mxu0 0
  %7138 = vmatpush2.bf16.msra.mxu0 0
  %7139 = vmatprep.subr.bf16.mxu0 0
  %7140 = vmatpush2.bf16.msra.mxu0 0
  %7141 = vmatprep.subr.bf16.mxu0 0
  %7142 = vmatpush2.bf16.msra.mxu0 0
  %7143 = vmatprep.subr.bf16.mxu0 0
  %7144 = vmatpush2.bf16.msra.mxu0 0
  %7145 = vmatprep.subr.bf16.mxu0 0
  %7146 = vmatpush2.bf16.msra.mxu0 0
  %7147 = vmatprep.subr.bf16.mxu0 0
  %7148 = vmatpush2.bf16.msra.mxu0 0
  %7149 = vmatprep.mubr.bf16.mxu0 0
  %7150 = vmatmul.mubr.bf16.gmra.mxu0 %v6983
  %v7151 = vpop.f32.mrf.mxu0
  %v7152 = vadd.f32 0.0, %v7151
  %v7153 = vpop.f32.mrf.mxu0
  %v7154 = vpop.f32.mrf.mxu0
  %v7155 = vadd.f32 0.0, %v7154
  %v7156 = vpop.f32.mrf.mxu0
  %7157 = vmatprep.mubr.bf16.mxu0 0
  %7158 = vmatmul.mubr.bf16.gmra.mxu0 %v6986
  %v7159 = vpop.f32.mrf.mxu0
  %v7160 = vadd.f32 0.0, %v7159
  %v7161 = vpop.f32.mrf.mxu0
  %v7162 = vpop.f32.mrf.mxu0
  %v7163 = vadd.f32 0.0, %v7162
  %v7164 = vpop.f32.mrf.mxu0
  %7165 = vmatprep.mubr.bf16.mxu0 0
  %7166 = vmatmul.mubr.bf16.gmra.mxu0 %v6989
  %v7167 = vpop.f32.mrf.mxu0
  %v7168 = vadd.f32 0.0, %v7167
  %v7169 = vpop.f32.mrf.mxu0
  %v7170 = vpop.f32.mrf.mxu0
  %v7171 = vadd.f32 0.0, %v7170
  %v7172 = vpop.f32.mrf.mxu0
  %7173 = vmatprep.mubr.bf16.mxu0 0
  %7174 = vmatmul.mubr.bf16.gmra.mxu0 %v6992
  %v7175 = vpop.f32.mrf.mxu0
  %v7176 = vadd.f32 0.0, %v7175
  %v7177 = vpop.f32.mrf.mxu0
  %v7178 = vpop.f32.mrf.mxu0
  %v7179 = vadd.f32 0.0, %v7178
  %v7180 = vpop.f32.mrf.mxu0
  %7181 = vmatprep.mubr.bf16.mxu0 0
  %7182 = vmatmul.mubr.bf16.gmra.mxu0 %v6995
  %v7183 = vpop.f32.mrf.mxu0
  %v7184 = vadd.f32 0.0, %v7183
  %v7185 = vpop.f32.mrf.mxu0
  %v7186 = vpop.f32.mrf.mxu0
  %v7187 = vadd.f32 0.0, %v7186
  %v7188 = vpop.f32.mrf.mxu0
  %7189 = vmatprep.mubr.bf16.mxu0 0
  %7190 = vmatmul.mubr.bf16.gmra.mxu0 %v6998
  %v7191 = vpop.f32.mrf.mxu0
  %v7192 = vadd.f32 0.0, %v7191
  %v7193 = vpop.f32.mrf.mxu0
  %v7194 = vpop.f32.mrf.mxu0
  %v7195 = vadd.f32 0.0, %v7194
  %v7196 = vpop.f32.mrf.mxu0
  %7197 = vmatprep.mubr.bf16.mxu0 0
  %7198 = vmatmul.mubr.bf16.gmra.mxu0 %v7001
  %v7199 = vpop.f32.mrf.mxu0
  %v7200 = vadd.f32 0.0, %v7199
  %v7201 = vpop.f32.mrf.mxu0
  %v7202 = vpop.f32.mrf.mxu0
  %v7203 = vadd.f32 0.0, %v7202
  %v7204 = vpop.f32.mrf.mxu0
  %7205 = vmatprep.mubr.bf16.mxu0 0
  %7206 = vmatmul.mubr.bf16.gmra.mxu0 %v7004
  %v7207 = vpop.f32.mrf.mxu0
  %v7208 = vadd.f32 0.0, %v7207
  %v7209 = vpop.f32.mrf.mxu0
  %v7210 = vpop.f32.mrf.mxu0
  %v7211 = vadd.f32 0.0, %v7210
  %v7212 = vpop.f32.mrf.mxu0
  %7213 = vmatprep.mubr.bf16.mxu0 0
  %7214 = vmatmul.mubr.bf16.gmra.mxu0 %v7007
  %v7215 = vpop.f32.mrf.mxu0
  %v7216 = vadd.f32 0.0, %v7215
  %v7217 = vpop.f32.mrf.mxu0
  %v7218 = vpop.f32.mrf.mxu0
  %v7219 = vadd.f32 0.0, %v7218
  %v7220 = vpop.f32.mrf.mxu0
  %7221 = vmatprep.mubr.bf16.mxu0 0
  %7222 = vmatmul.mubr.bf16.gmra.mxu0 %v7010
  %v7223 = vpop.f32.mrf.mxu0
  %v7224 = vadd.f32 0.0, %v7223
  %v7225 = vpop.f32.mrf.mxu0
  %v7226 = vpop.f32.mrf.mxu0
  %v7227 = vadd.f32 0.0, %v7226
  %v7228 = vpop.f32.mrf.mxu0
  %7229 = vmatprep.mubr.bf16.mxu0 0
  %7230 = vmatmul.mubr.bf16.gmra.mxu0 %v7013
  %v7231 = vpop.f32.mrf.mxu0
  %v7232 = vadd.f32 0.0, %v7231
  %v7233 = vpop.f32.mrf.mxu0
  %v7234 = vpop.f32.mrf.mxu0
  %v7235 = vadd.f32 0.0, %v7234
  %v7236 = vpop.f32.mrf.mxu0
  %7237 = vmatprep.mubr.bf16.mxu0 0
  %7238 = vmatmul.mubr.bf16.gmra.mxu0 %v7016
  %v7239 = vpop.f32.mrf.mxu0
  %v7240 = vadd.f32 0.0, %v7239
  %v7241 = vpop.f32.mrf.mxu0
  %v7242 = vpop.f32.mrf.mxu0
  %v7243 = vadd.f32 0.0, %v7242
  %v7244 = vpop.f32.mrf.mxu0
  %7245 = vmatprep.mubr.bf16.mxu0 0
  %7246 = vmatmul.mubr.bf16.gmra.mxu0 %v7019
  %v7247 = vpop.f32.mrf.mxu0
  %v7248 = vadd.f32 0.0, %v7247
  %v7249 = vpop.f32.mrf.mxu0
  %v7250 = vpop.f32.mrf.mxu0
  %v7251 = vadd.f32 0.0, %v7250
  %v7252 = vpop.f32.mrf.mxu0
  %7253 = vmatprep.mubr.bf16.mxu0 0
  %7254 = vmatmul.mubr.bf16.gmra.mxu0 %v7022
  %v7255 = vpop.f32.mrf.mxu0
  %v7256 = vadd.f32 0.0, %v7255
  %v7257 = vpop.f32.mrf.mxu0
  %v7258 = vpop.f32.mrf.mxu0
  %v7259 = vadd.f32 0.0, %v7258
  %v7260 = vpop.f32.mrf.mxu0
  %7261 = vmatprep.mubr.bf16.mxu0 0
  %7262 = vmatmul.mubr.bf16.gmra.mxu0 %v7025
  %v7263 = vpop.f32.mrf.mxu0
  %v7264 = vadd.f32 0.0, %v7263
  %v7265 = vpop.f32.mrf.mxu0
  %v7266 = vpop.f32.mrf.mxu0
  %v7267 = vadd.f32 0.0, %v7266
  %v7268 = vpop.f32.mrf.mxu0
  %7269 = vmatprep.mubr.bf16.mxu0 0
  %7270 = vmatmul.mubr.bf16.gmra.mxu0 %v7028
  %v7271 = vpop.f32.mrf.mxu0
  %v7272 = vadd.f32 0.0, %v7271
  %v7273 = vpop.f32.mrf.mxu0
  %v7274 = vpop.f32.mrf.mxu0
  %v7275 = vadd.f32 0.0, %v7274
  %v7276 = vpop.f32.mrf.mxu0
  %7277 = vmatprep.mubr.bf16.mxu0 0
  %7278 = vmatmul.mubr.bf16.gmra.mxu0 %v7031
  %v7279 = vpop.f32.mrf.mxu0
  %v7280 = vadd.f32 0.0, %v7279
  %v7281 = vpop.f32.mrf.mxu0
  %v7282 = vpop.f32.mrf.mxu0
  %v7283 = vadd.f32 0.0, %v7282
  %v7284 = vpop.f32.mrf.mxu0
  %7285 = vmatprep.mubr.bf16.mxu0 0
  %7286 = vmatmul.mubr.bf16.gmra.mxu0 %v7034
  %v7287 = vpop.f32.mrf.mxu0
  %v7288 = vadd.f32 0.0, %v7287
  %v7289 = vpop.f32.mrf.mxu0
  %v7290 = vpop.f32.mrf.mxu0
  %v7291 = vadd.f32 0.0, %v7290
  %v7292 = vpop.f32.mrf.mxu0
  %7293 = vmatprep.mubr.bf16.mxu0 0
  %7294 = vmatmul.mubr.bf16.gmra.mxu0 %v7037
  %v7295 = vpop.f32.mrf.mxu0
  %v7296 = vadd.f32 0.0, %v7295
  %v7297 = vpop.f32.mrf.mxu0
  %v7298 = vpop.f32.mrf.mxu0
  %v7299 = vadd.f32 0.0, %v7298
  %v7300 = vpop.f32.mrf.mxu0
  %7301 = vmatprep.mubr.bf16.mxu0 0
  %7302 = vmatmul.mubr.bf16.gmra.mxu0 %v7040
  %v7303 = vpop.f32.mrf.mxu0
  %v7304 = vadd.f32 0.0, %v7303
  %v7305 = vpop.f32.mrf.mxu0
  %v7306 = vpop.f32.mrf.mxu0
  %v7307 = vadd.f32 0.0, %v7306
  %v7308 = vpop.f32.mrf.mxu0
  %7309 = vmatprep.mubr.bf16.mxu0 0
  %7310 = vmatmul.mubr.bf16.gmra.mxu0 %v7043
  %v7311 = vpop.f32.mrf.mxu0
  %v7312 = vadd.f32 0.0, %v7311
  %v7313 = vpop.f32.mrf.mxu0
  %v7314 = vpop.f32.mrf.mxu0
  %v7315 = vadd.f32 0.0, %v7314
  %v7316 = vpop.f32.mrf.mxu0
  %7317 = vmatprep.mubr.bf16.mxu0 0
  %7318 = vmatmul.mubr.bf16.gmra.mxu0 %v7046
  %v7319 = vpop.f32.mrf.mxu0
  %v7320 = vadd.f32 0.0, %v7319
  %v7321 = vpop.f32.mrf.mxu0
  %v7322 = vpop.f32.mrf.mxu0
  %v7323 = vadd.f32 0.0, %v7322
  %v7324 = vpop.f32.mrf.mxu0
  %7325 = vmatprep.mubr.bf16.mxu0 0
  %7326 = vmatmul.mubr.bf16.gmra.mxu0 %v7049
  %v7327 = vpop.f32.mrf.mxu0
  %v7328 = vadd.f32 0.0, %v7327
  %v7329 = vpop.f32.mrf.mxu0
  %v7330 = vpop.f32.mrf.mxu0
  %v7331 = vadd.f32 0.0, %v7330
  %v7332 = vpop.f32.mrf.mxu0
  %7333 = vmatprep.mubr.bf16.mxu0 0
  %7334 = vmatmul.mubr.bf16.gmra.mxu0 %v7052
  %v7335 = vpop.f32.mrf.mxu0
  %v7336 = vadd.f32 0.0, %v7335
  %v7337 = vpop.f32.mrf.mxu0
  %v7338 = vpop.f32.mrf.mxu0
  %v7339 = vadd.f32 0.0, %v7338
  %v7340 = vpop.f32.mrf.mxu0
  %7341 = vmatprep.mubr.bf16.mxu0 0
  %7342 = vmatmul.mubr.bf16.gmra.mxu0 %v7055
  %v7343 = vpop.f32.mrf.mxu0
  %v7344 = vadd.f32 0.0, %v7343
  %v7345 = vpop.f32.mrf.mxu0
  %v7346 = vpop.f32.mrf.mxu0
  %v7347 = vadd.f32 0.0, %v7346
  %v7348 = vpop.f32.mrf.mxu0
  %7349 = vmatprep.mubr.bf16.mxu0 0
  %7350 = vmatmul.mubr.bf16.gmra.mxu0 %v7058
  %v7351 = vpop.f32.mrf.mxu0
  %v7352 = vadd.f32 0.0, %v7351
  %v7353 = vpop.f32.mrf.mxu0
  %v7354 = vpop.f32.mrf.mxu0
  %v7355 = vadd.f32 0.0, %v7354
  %v7356 = vpop.f32.mrf.mxu0
  %7357 = vmatprep.mubr.bf16.mxu0 0
  %7358 = vmatmul.mubr.bf16.gmra.mxu0 %v7061
  %v7359 = vpop.f32.mrf.mxu0
  %v7360 = vadd.f32 0.0, %v7359
  %v7361 = vpop.f32.mrf.mxu0
  %v7362 = vpop.f32.mrf.mxu0
  %v7363 = vadd.f32 0.0, %v7362
  %v7364 = vpop.f32.mrf.mxu0
  %7365 = vmatprep.mubr.bf16.mxu0 0
  %7366 = vmatmul.mubr.bf16.gmra.mxu0 %v7064
  %v7367 = vpop.f32.mrf.mxu0
  %v7368 = vadd.f32 0.0, %v7367
  %v7369 = vpop.f32.mrf.mxu0
  %v7370 = vpop.f32.mrf.mxu0
  %v7371 = vadd.f32 0.0, %v7370
  %v7372 = vpop.f32.mrf.mxu0
  %7373 = vmatprep.mubr.bf16.mxu0 0
  %7374 = vmatmul.mubr.bf16.gmra.mxu0 %v7067
  %v7375 = vpop.f32.mrf.mxu0
  %v7376 = vadd.f32 0.0, %v7375
  %v7377 = vpop.f32.mrf.mxu0
  %v7378 = vpop.f32.mrf.mxu0
  %v7379 = vadd.f32 0.0, %v7378
  %v7380 = vpop.f32.mrf.mxu0
  %7381 = vmatprep.mubr.bf16.mxu0 0
  %7382 = vmatmul.mubr.bf16.gmra.mxu0 %v7070
  %v7383 = vpop.f32.mrf.mxu0
  %v7384 = vadd.f32 0.0, %v7383
  %v7385 = vpop.f32.mrf.mxu0
  %v7386 = vpop.f32.mrf.mxu0
  %v7387 = vadd.f32 0.0, %v7386
  %v7388 = vpop.f32.mrf.mxu0
  %7389 = vmatprep.mubr.bf16.mxu0 0
  %7390 = vmatmul.mubr.bf16.gmra.mxu0 %v7073
  %v7391 = vpop.f32.mrf.mxu0
  %v7392 = vadd.f32 0.0, %v7391
  %v7393 = vpop.f32.mrf.mxu0
  %v7394 = vpop.f32.mrf.mxu0
  %v7395 = vadd.f32 0.0, %v7394
  %v7396 = vpop.f32.mrf.mxu0
  %7397 = vmatprep.mubr.bf16.mxu0 0
  %7398 = vmatmul.mubr.bf16.gmra.mxu0 %v7076
  %v7399 = vpop.f32.mrf.mxu0
  %v7400 = vadd.f32 0.0, %v7399
  %v7401 = vpop.f32.mrf.mxu0
  %v7402 = vpop.f32.mrf.mxu0
  %v7403 = vadd.f32 0.0, %v7402
  %v7404 = vpop.f32.mrf.mxu0
  %7405 = vmatprep.mubr.bf16.mxu0 0
  %7406 = vmatmul.mubr.bf16.gmra.mxu0 %v7079
  %v7407 = vpop.f32.mrf.mxu0
  %v7408 = vadd.f32 0.0, %v7407
  %v7409 = vpop.f32.mrf.mxu0
  %v7410 = vpop.f32.mrf.mxu0
  %v7411 = vadd.f32 0.0, %v7410
  %v7412 = vpop.f32.mrf.mxu0
  %7413 = vmatprep.mubr.bf16.mxu0 0
  %7414 = vmatmul.mubr.bf16.gmra.mxu0 %v7082
  %v7415 = vpop.f32.mrf.mxu0
  %v7416 = vadd.f32 0.0, %v7415
  %v7417 = vpop.f32.mrf.mxu0
  %v7418 = vpop.f32.mrf.mxu0
  %v7419 = vadd.f32 0.0, %v7418
  %v7420 = vpop.f32.mrf.mxu0
  %7421 = vmatprep.mubr.bf16.mxu0 0
  %7422 = vmatmul.mubr.bf16.gmra.mxu0 %v7085
  %v7423 = vpop.f32.mrf.mxu0
  %v7424 = vadd.f32 0.0, %v7423
  %v7425 = vpop.f32.mrf.mxu0
  %v7426 = vpop.f32.mrf.mxu0
  %v7427 = vadd.f32 0.0, %v7426
  %v7428 = vpop.f32.mrf.mxu0
  %7429 = vmatprep.mubr.bf16.mxu0 0
  %7430 = vmatmul.mubr.bf16.gmra.mxu0 %v7088
  %v7431 = vpop.f32.mrf.mxu0
  %v7432 = vadd.f32 0.0, %v7431
  %v7433 = vpop.f32.mrf.mxu0
  %v7434 = vpop.f32.mrf.mxu0
  %v7435 = vadd.f32 0.0, %v7434
  %v7436 = vpop.f32.mrf.mxu0
  %7437 = vmatprep.mubr.bf16.mxu0 0
  %7438 = vmatmul.mubr.bf16.gmra.mxu0 %v7091
  %v7439 = vpop.f32.mrf.mxu0
  %v7440 = vadd.f32 0.0, %v7439
  %v7441 = vpop.f32.mrf.mxu0
  %v7442 = vpop.f32.mrf.mxu0
  %v7443 = vadd.f32 0.0, %v7442
  %v7444 = vpop.f32.mrf.mxu0
  %7445 = vmatprep.mubr.bf16.mxu0 0
  %7446 = vmatmul.mubr.bf16.gmra.mxu0 %v7094
  %v7447 = vpop.f32.mrf.mxu0
  %v7448 = vadd.f32 0.0, %v7447
  %v7449 = vpop.f32.mrf.mxu0
  %v7450 = vpop.f32.mrf.mxu0
  %v7451 = vadd.f32 0.0, %v7450
  %v7452 = vpop.f32.mrf.mxu0
  %7453 = vmatprep.mubr.bf16.mxu0 0
  %7454 = vmatmul.mubr.bf16.gmra.mxu0 %v7097
  %v7455 = vpop.f32.mrf.mxu0
  %v7456 = vadd.f32 0.0, %v7455
  %v7457 = vpop.f32.mrf.mxu0
  %v7458 = vpop.f32.mrf.mxu0
  %v7459 = vadd.f32 0.0, %v7458
  %v7460 = vpop.f32.mrf.mxu0
  %7461 = vmatprep.mubr.bf16.mxu0 0
  %7462 = vmatmul.mubr.bf16.gmra.mxu0 %v7100
  %v7463 = vpop.f32.mrf.mxu0
  %v7464 = vadd.f32 0.0, %v7463
  %v7465 = vpop.f32.mrf.mxu0
  %v7466 = vpop.f32.mrf.mxu0
  %v7467 = vadd.f32 0.0, %v7466
  %v7468 = vpop.f32.mrf.mxu0
  %7469 = vmatprep.mubr.bf16.mxu0 0
  %7470 = vmatmul.mubr.bf16.gmra.mxu0 %v7103
  %v7471 = vpop.f32.mrf.mxu0
  %v7472 = vadd.f32 0.0, %v7471
  %v7473 = vpop.f32.mrf.mxu0
  %v7474 = vpop.f32.mrf.mxu0
  %v7475 = vadd.f32 0.0, %v7474
  %v7476 = vpop.f32.mrf.mxu0
  %7477 = vmatprep.mubr.bf16.mxu0 0
  %7478 = vmatmul.mubr.bf16.gmra.mxu0 %v7106
  %v7479 = vpop.f32.mrf.mxu0
  %v7480 = vadd.f32 0.0, %v7479
  %v7481 = vpop.f32.mrf.mxu0
  %v7482 = vpop.f32.mrf.mxu0
  %v7483 = vadd.f32 0.0, %v7482
  %v7484 = vpop.f32.mrf.mxu0
  %7485 = vmatprep.mubr.bf16.mxu0 0
  %7486 = vmatmul.mubr.bf16.gmra.mxu0 %v7109
  %v7487 = vpop.f32.mrf.mxu0
  %v7488 = vadd.f32 0.0, %v7487
  %v7489 = vpop.f32.mrf.mxu0
  %v7490 = vpop.f32.mrf.mxu0
  %v7491 = vadd.f32 0.0, %v7490
  %v7492 = vpop.f32.mrf.mxu0
  %7493 = vmatprep.mubr.bf16.mxu0 0
  %7494 = vmatmul.mubr.bf16.gmra.mxu0 %v7112
  %v7495 = vpop.f32.mrf.mxu0
  %v7496 = vadd.f32 0.0, %v7495
  %v7497 = vpop.f32.mrf.mxu0
  %v7498 = vpop.f32.mrf.mxu0
  %v7499 = vadd.f32 0.0, %v7498
  %v7500 = vpop.f32.mrf.mxu0
  %7501 = vdwg.mxu0
  %v7502 = vadd.f32 %v6490, %v7152
  %v7503 = vadd.f32 %v6491, %v7155
  %v7504 = vadd.f32 %v6492, %v7160
  %v7505 = vadd.f32 %v6493, %v7163
  %v7506 = vadd.f32 %v6494, %v7168
  %v7507 = vadd.f32 %v6495, %v7171
  %v7508 = vadd.f32 %v6496, %v7176
  %v7509 = vadd.f32 %v6497, %v7179
  %v7510 = vadd.f32 %v6498, %v7184
  %v7511 = vadd.f32 %v6499, %v7187
  %v7512 = vadd.f32 %v6500, %v7192
  %v7513 = vadd.f32 %v6501, %v7195
  %v7514 = vadd.f32 %v6502, %v7200
  %v7515 = vadd.f32 %v6503, %v7203
  %v7516 = vadd.f32 %v6504, %v7208
  %v7517 = vadd.f32 %v6505, %v7211
  %v7518 = vadd.f32 %v6506, %v7216
  %v7519 = vadd.f32 %v6507, %v7219
  %v7520 = vadd.f32 %v6508, %v7224
  %v7521 = vadd.f32 %v6509, %v7227
  %v7522 = vadd.f32 %v6510, %v7232
  %v7523 = vadd.f32 %v6511, %v7235
  %v7524 = vadd.f32 %v6512, %v7240
  %v7525 = vadd.f32 %v6513, %v7243
  %v7526 = vadd.f32 %v6514, %v7248
  %v7527 = vadd.f32 %v6515, %v7251
  %v7528 = vadd.f32 %v6516, %v7256
  %v7529 = vadd.f32 %v6517, %v7259
  %v7530 = vadd.f32 %v6518, %v7264
  %v7531 = vadd.f32 %v6519, %v7267
  %v7532 = vadd.f32 %v6520, %v7272
  %v7533 = vadd.f32 %v6521, %v7275
  %v7534 = vadd.f32 %v6522, %v7280
  %v7535 = vadd.f32 %v6523, %v7283
  %v7536 = vadd.f32 %v6524, %v7288
  %v7537 = vadd.f32 %v6525, %v7291
  %v7538 = vadd.f32 %v6526, %v7296
  %v7539 = vadd.f32 %v6527, %v7299
  %v7540 = vadd.f32 %v6528, %v7304
  %v7541 = vadd.f32 %v6529, %v7307
  %v7542 = vadd.f32 %v6530, %v7312
  %v7543 = vadd.f32 %v6531, %v7315
  %v7544 = vadd.f32 %v6532, %v7320
  %v7545 = vadd.f32 %v6533, %v7323
  %v7546 = vadd.f32 %v6534, %v7328
  %v7547 = vadd.f32 %v6535, %v7331
  %v7548 = vadd.f32 %v6536, %v7336
  %v7549 = vadd.f32 %v6537, %v7339
  %v7550 = vadd.f32 %v6538, %v7344
  %v7551 = vadd.f32 %v6539, %v7347
  %v7552 = vadd.f32 %v6540, %v7352
  %v7553 = vadd.f32 %v6541, %v7355
  %v7554 = vadd.f32 %v6542, %v7360
  %v7555 = vadd.f32 %v6543, %v7363
  %v7556 = vadd.f32 %v6544, %v7368
  %v7557 = vadd.f32 %v6545, %v7371
  %v7558 = vadd.f32 %v6546, %v7376
  %v7559 = vadd.f32 %v6547, %v7379
  %v7560 = vadd.f32 %v6548, %v7384
  %v7561 = vadd.f32 %v6549, %v7387
  %v7562 = vadd.f32 %v6550, %v7392
  %v7563 = vadd.f32 %v6551, %v7395
  %v7564 = vadd.f32 %v6552, %v7400
  %v7565 = vadd.f32 %v6553, %v7403
  %v7566 = vadd.f32 %v6554, %v7408
  %v7567 = vadd.f32 %v6555, %v7411
  %v7568 = vadd.f32 %v6556, %v7416
  %v7569 = vadd.f32 %v6557, %v7419
  %v7570 = vadd.f32 %v6558, %v7424
  %v7571 = vadd.f32 %v6559, %v7427
  %v7572 = vadd.f32 %v6560, %v7432
  %v7573 = vadd.f32 %v6561, %v7435
  %v7574 = vadd.f32 %v6562, %v7440
  %v7575 = vadd.f32 %v6563, %v7443
  %v7576 = vadd.f32 %v6564, %v7448
  %v7577 = vadd.f32 %v6565, %v7451
  %v7578 = vadd.f32 %v6566, %v7456
  %v7579 = vadd.f32 %v6567, %v7459
  %v7580 = vadd.f32 %v6568, %v7464
  %v7581 = vadd.f32 %v6569, %v7467
  %v7582 = vadd.f32 %v6570, %v7472
  %v7583 = vadd.f32 %v6571, %v7475
  %v7584 = vadd.f32 %v6572, %v7480
  %v7585 = vadd.f32 %v6573, %v7483
  %v7586 = vadd.f32 %v6574, %v7488
  %v7587 = vadd.f32 %v6575, %v7491
  %v7588 = vadd.f32 %v6576, %v7496
  %v7589 = vadd.f32 %v6577, %v7499
  %7590 = vst [vmem:[#allocation3] sm:$0xff] %v7502
  %7591 = vst [vmem:[#allocation3 + $0x8] sm:$0xff] %v7503
  %7592 = vst [vmem:[#allocation3 + $0x10] sm:$0xff] %v7504
  %7593 = vst [vmem:[#allocation3 + $0x18] sm:$0xff] %v7505
  %7594 = vst [vmem:[#allocation3 + $0x20] sm:$0xff] %v7506
  %7595 = vst [vmem:[#allocation3 + $0x28] sm:$0xff] %v7507
  %7596 = vst [vmem:[#allocation3 + $0x30] sm:$0xff] %v7508
  %7597 = vst [vmem:[#allocation3 + $0x38] sm:$0xff] %v7509
  %7598 = vst [vmem:[#allocation3 + $0x40] sm:$0xff] %v7510
  %7599 = vst [vmem:[#allocation3 + $0x48] sm:$0xff] %v7511
  %7600 = vst [vmem:[#allocation3 + $0x50] sm:$0xff] %v7512
  %7601 = vst [vmem:[#allocation3 + $0x58] sm:$0xff] %v7513
  %7602 = vst [vmem:[#allocation3 + $0x60] sm:$0xff] %v7514
  %7603 = vst [vmem:[#allocation3 + $0x68] sm:$0xff] %v7515
  %7604 = vst [vmem:[#allocation3 + $0x70] sm:$0xff] %v7516
  %7605 = vst [vmem:[#allocation3 + $0x78] sm:$0xff] %v7517
  %7606 = vst [vmem:[#allocation3 + $0x80] sm:$0xff] %v7518
  %7607 = vst [vmem:[#allocation3 + $0x88] sm:$0xff] %v7519
  %7608 = vst [vmem:[#allocation3 + $0x90] sm:$0xff] %v7520
  %7609 = vst [vmem:[#allocation3 + $0x98] sm:$0xff] %v7521
  %7610 = vst [vmem:[#allocation3 + $0xa0] sm:$0xff] %v7522
  %7611 = vst [vmem:[#allocation3 + $0xa8] sm:$0xff] %v7523
  %7612 = vst [vmem:[#allocation3 + $0xb0] sm:$0xff] %v7524
  %7613 = vst [vmem:[#allocation3 + $0xb8] sm:$0xff] %v7525
  %7614 = vst [vmem:[#allocation3 + $0xc0] sm:$0xff] %v7526
  %7615 = vst [vmem:[#allocation3 + $0xc8] sm:$0xff] %v7527
  %7616 = vst [vmem:[#allocation3 + $0xd0] sm:$0xff] %v7528
  %7617 = vst [vmem:[#allocation3 + $0xd8] sm:$0xff] %v7529
  %7618 = vst [vmem:[#allocation3 + $0xe0] sm:$0xff] %v7530
  %7619 = vst [vmem:[#allocation3 + $0xe8] sm:$0xff] %v7531
  %7620 = vst [vmem:[#allocation3 + $0xf0] sm:$0xff] %v7532
  %7621 = vst [vmem:[#allocation3 + $0xf8] sm:$0xff] %v7533
  %7622 = vst [vmem:[#allocation3 + $0x100] sm:$0xff] %v7534
  %7623 = vst [vmem:[#allocation3 + $0x108] sm:$0xff] %v7535
  %7624 = vst [vmem:[#allocation3 + $0x110] sm:$0xff] %v7536
  %7625 = vst [vmem:[#allocation3 + $0x118] sm:$0xff] %v7537
  %7626 = vst [vmem:[#allocation3 + $0x120] sm:$0xff] %v7538
  %7627 = vst [vmem:[#allocation3 + $0x128] sm:$0xff] %v7539
  %7628 = vst [vmem:[#allocation3 + $0x130] sm:$0xff] %v7540
  %7629 = vst [vmem:[#allocation3 + $0x138] sm:$0xff] %v7541
  %7630 = vst [vmem:[#allocation3 + $0x140] sm:$0xff] %v7542
  %7631 = vst [vmem:[#allocation3 + $0x148] sm:$0xff] %v7543
  %7632 = vst [vmem:[#allocation3 + $0x150] sm:$0xff] %v7544
  %7633 = vst [vmem:[#allocation3 + $0x158] sm:$0xff] %v7545
  %7634 = vst [vmem:[#allocation3 + $0x160] sm:$0xff] %v7546
  %7635 = vst [vmem:[#allocation3 + $0x168] sm:$0xff] %v7547
  %7636 = vst [vmem:[#allocation3 + $0x170] sm:$0xff] %v7548
  %7637 = vst [vmem:[#allocation3 + $0x178] sm:$0xff] %v7549
  %7638 = vst [vmem:[#allocation3 + $0x180] sm:$0xff] %v7550
  %7639 = vst [vmem:[#allocation3 + $0x188] sm:$0xff] %v7551
  %7640 = vst [vmem:[#allocation3 + $0x190] sm:$0xff] %v7552
  %7641 = vst [vmem:[#allocation3 + $0x198] sm:$0xff] %v7553
  %7642 = vst [vmem:[#allocation3 + $0x1a0] sm:$0xff] %v7554
  %7643 = vst [vmem:[#allocation3 + $0x1a8] sm:$0xff] %v7555
  %7644 = vst [vmem:[#allocation3 + $0x1b0] sm:$0xff] %v7556
  %7645 = vst [vmem:[#allocation3 + $0x1b8] sm:$0xff] %v7557
  %7646 = vst [vmem:[#allocation3 + $0x1c0] sm:$0xff] %v7558
  %7647 = vst [vmem:[#allocation3 + $0x1c8] sm:$0xff] %v7559
  %7648 = vst [vmem:[#allocation3 + $0x1d0] sm:$0xff] %v7560
  %7649 = vst [vmem:[#allocation3 + $0x1d8] sm:$0xff] %v7561
  %7650 = vst [vmem:[#allocation3 + $0x1e0] sm:$0xff] %v7562
  %7651 = vst [vmem:[#allocation3 + $0x1e8] sm:$0xff] %v7563
  %7652 = vst [vmem:[#allocation3 + $0x1f0] sm:$0xff] %v7564
  %7653 = vst [vmem:[#allocation3 + $0x1f8] sm:$0xff] %v7565
  %7654 = vst [vmem:[#allocation3 + $0x200] sm:$0xff] %v7566
  %7655 = vst [vmem:[#allocation3 + $0x208] sm:$0xff] %v7567
  %7656 = vst [vmem:[#allocation3 + $0x210] sm:$0xff] %v7568
  %7657 = vst [vmem:[#allocation3 + $0x218] sm:$0xff] %v7569
  %7658 = vst [vmem:[#allocation3 + $0x220] sm:$0xff] %v7570
  %7659 = vst [vmem:[#allocation3 + $0x228] sm:$0xff] %v7571
  %7660 = vst [vmem:[#allocation3 + $0x230] sm:$0xff] %v7572
  %7661 = vst [vmem:[#allocation3 + $0x238] sm:$0xff] %v7573
  %7662 = vst [vmem:[#allocation3 + $0x240] sm:$0xff] %v7574
  %7663 = vst [vmem:[#allocation3 + $0x248] sm:$0xff] %v7575
  %7664 = vst [vmem:[#allocation3 + $0x250] sm:$0xff] %v7576
  %7665 = vst [vmem:[#allocation3 + $0x258] sm:$0xff] %v7577
  %7666 = vst [vmem:[#allocation3 + $0x260] sm:$0xff] %v7578
  %7667 = vst [vmem:[#allocation3 + $0x268] sm:$0xff] %v7579
  %7668 = vst [vmem:[#allocation3 + $0x270] sm:$0xff] %v7580
  %7669 = vst [vmem:[#allocation3 + $0x278] sm:$0xff] %v7581
  %7670 = vst [vmem:[#allocation3 + $0x280] sm:$0xff] %v7582
  %7671 = vst [vmem:[#allocation3 + $0x288] sm:$0xff] %v7583
  %7672 = vst [vmem:[#allocation3 + $0x290] sm:$0xff] %v7584
  %7673 = vst [vmem:[#allocation3 + $0x298] sm:$0xff] %v7585
  %7674 = vst [vmem:[#allocation3 + $0x2a0] sm:$0xff] %v7586
  %7675 = vst [vmem:[#allocation3 + $0x2a8] sm:$0xff] %v7587
  %7676 = vst [vmem:[#allocation3 + $0x2b0] sm:$0xff] %v7588
  %7677 = vst [vmem:[#allocation3 + $0x2b8] sm:$0xff] %v7589
  %v7678 = vld [vmem:[#allocation3] sm:$0xff]
  %v7679 = vld [vmem:[#allocation3 + $0x8] sm:$0xff]
  %v7680 = vld [vmem:[#allocation3 + $0x10] sm:$0xff]
  %v7681 = vld [vmem:[#allocation3 + $0x18] sm:$0xff]
  %v7682 = vld [vmem:[#allocation3 + $0x20] sm:$0xff]
  %v7683 = vld [vmem:[#allocation3 + $0x28] sm:$0xff]
  %v7684 = vld [vmem:[#allocation3 + $0x30] sm:$0xff]
  %v7685 = vld [vmem:[#allocation3 + $0x38] sm:$0xff]
  %v7686 = vld [vmem:[#allocation3 + $0x40] sm:$0xff]
  %v7687 = vld [vmem:[#allocation3 + $0x48] sm:$0xff]
  %v7688 = vld [vmem:[#allocation3 + $0x50] sm:$0xff]
  %v7689 = vld [vmem:[#allocation3 + $0x58] sm:$0xff]
  %v7690 = vld [vmem:[#allocation3 + $0x60] sm:$0xff]
  %v7691 = vld [vmem:[#allocation3 + $0x68] sm:$0xff]
  %v7692 = vld [vmem:[#allocation3 + $0x70] sm:$0xff]
  %v7693 = vld [vmem:[#allocation3 + $0x78] sm:$0xff]
  %v7694 = vld [vmem:[#allocation3 + $0x80] sm:$0xff]
  %v7695 = vld [vmem:[#allocation3 + $0x88] sm:$0xff]
  %v7696 = vld [vmem:[#allocation3 + $0x90] sm:$0xff]
  %v7697 = vld [vmem:[#allocation3 + $0x98] sm:$0xff]
  %v7698 = vld [vmem:[#allocation3 + $0xa0] sm:$0xff]
  %v7699 = vld [vmem:[#allocation3 + $0xa8] sm:$0xff]
  %v7700 = vld [vmem:[#allocation3 + $0xb0] sm:$0xff]
  %v7701 = vld [vmem:[#allocation3 + $0xb8] sm:$0xff]
  %v7702 = vld [vmem:[#allocation3 + $0xc0] sm:$0xff]
  %v7703 = vld [vmem:[#allocation3 + $0xc8] sm:$0xff]
  %v7704 = vld [vmem:[#allocation3 + $0xd0] sm:$0xff]
  %v7705 = vld [vmem:[#allocation3 + $0xd8] sm:$0xff]
  %v7706 = vld [vmem:[#allocation3 + $0xe0] sm:$0xff]
  %v7707 = vld [vmem:[#allocation3 + $0xe8] sm:$0xff]
  %v7708 = vld [vmem:[#allocation3 + $0xf0] sm:$0xff]
  %v7709 = vld [vmem:[#allocation3 + $0xf8] sm:$0xff]
  %v7710 = vld [vmem:[#allocation3 + $0x100] sm:$0xff]
  %v7711 = vld [vmem:[#allocation3 + $0x108] sm:$0xff]
  %v7712 = vld [vmem:[#allocation3 + $0x110] sm:$0xff]
  %v7713 = vld [vmem:[#allocation3 + $0x118] sm:$0xff]
  %v7714 = vld [vmem:[#allocation3 + $0x120] sm:$0xff]
  %v7715 = vld [vmem:[#allocation3 + $0x128] sm:$0xff]
  %v7716 = vld [vmem:[#allocation3 + $0x130] sm:$0xff]
  %v7717 = vld [vmem:[#allocation3 + $0x138] sm:$0xff]
  %v7718 = vld [vmem:[#allocation3 + $0x140] sm:$0xff]
  %v7719 = vld [vmem:[#allocation3 + $0x148] sm:$0xff]
  %v7720 = vld [vmem:[#allocation3 + $0x150] sm:$0xff]
  %v7721 = vld [vmem:[#allocation3 + $0x158] sm:$0xff]
  %v7722 = vld [vmem:[#allocation3 + $0x160] sm:$0xff]
  %v7723 = vld [vmem:[#allocation3 + $0x168] sm:$0xff]
  %v7724 = vld [vmem:[#allocation3 + $0x170] sm:$0xff]
  %v7725 = vld [vmem:[#allocation3 + $0x178] sm:$0xff]
  %v7726 = vld [vmem:[#allocation3 + $0x180] sm:$0xff]
  %v7727 = vld [vmem:[#allocation3 + $0x188] sm:$0xff]
  %v7728 = vld [vmem:[#allocation3 + $0x190] sm:$0xff]
  %v7729 = vld [vmem:[#allocation3 + $0x198] sm:$0xff]
  %v7730 = vld [vmem:[#allocation3 + $0x1a0] sm:$0xff]
  %v7731 = vld [vmem:[#allocation3 + $0x1a8] sm:$0xff]
  %v7732 = vld [vmem:[#allocation3 + $0x1b0] sm:$0xff]
  %v7733 = vld [vmem:[#allocation3 + $0x1b8] sm:$0xff]
  %v7734 = vld [vmem:[#allocation3 + $0x1c0] sm:$0xff]
  %v7735 = vld [vmem:[#allocation3 + $0x1c8] sm:$0xff]
  %v7736 = vld [vmem:[#allocation3 + $0x1d0] sm:$0xff]
  %v7737 = vld [vmem:[#allocation3 + $0x1d8] sm:$0xff]
  %v7738 = vld [vmem:[#allocation3 + $0x1e0] sm:$0xff]
  %v7739 = vld [vmem:[#allocation3 + $0x1e8] sm:$0xff]
  %v7740 = vld [vmem:[#allocation3 + $0x1f0] sm:$0xff]
  %v7741 = vld [vmem:[#allocation3 + $0x1f8] sm:$0xff]
  %v7742 = vld [vmem:[#allocation3 + $0x200] sm:$0xff]
  %v7743 = vld [vmem:[#allocation3 + $0x208] sm:$0xff]
  %v7744 = vld [vmem:[#allocation3 + $0x210] sm:$0xff]
  %v7745 = vld [vmem:[#allocation3 + $0x218] sm:$0xff]
  %v7746 = vld [vmem:[#allocation3 + $0x220] sm:$0xff]
  %v7747 = vld [vmem:[#allocation3 + $0x228] sm:$0xff]
  %v7748 = vld [vmem:[#allocation3 + $0x230] sm:$0xff]
  %v7749 = vld [vmem:[#allocation3 + $0x238] sm:$0xff]
  %v7750 = vld [vmem:[#allocation3 + $0x240] sm:$0xff]
  %v7751 = vld [vmem:[#allocation3 + $0x248] sm:$0xff]
  %v7752 = vld [vmem:[#allocation3 + $0x250] sm:$0xff]
  %v7753 = vld [vmem:[#allocation3 + $0x258] sm:$0xff]
  %v7754 = vld [vmem:[#allocation3 + $0x260] sm:$0xff]
  %v7755 = vld [vmem:[#allocation3 + $0x268] sm:$0xff]
  %v7756 = vld [vmem:[#allocation3 + $0x270] sm:$0xff]
  %v7757 = vld [vmem:[#allocation3 + $0x278] sm:$0xff]
  %v7758 = vld [vmem:[#allocation3 + $0x280] sm:$0xff]
  %v7759 = vld [vmem:[#allocation3 + $0x288] sm:$0xff]
  %v7760 = vld [vmem:[#allocation3 + $0x290] sm:$0xff]
  %v7761 = vld [vmem:[#allocation3 + $0x298] sm:$0xff]
  %v7762 = vld [vmem:[#allocation3 + $0x2a0] sm:$0xff]
  %v7763 = vld [vmem:[#allocation3 + $0x2a8] sm:$0xff]
  %v7764 = vld [vmem:[#allocation3 + $0x2b0] sm:$0xff]
  %v7765 = vld [vmem:[#allocation3 + $0x2b8] sm:$0xff]
  %v7766 = vld [vmem:[#allocation2 + $0x10] sm:$0xc]
  %v7767 = vld [vmem:[#allocation2 + $0x14] sm:$0xf]
  %v7768 = vld [vmem:[#allocation2 + $0x18] sm:$0xf]
  %v7769 = vld [vmem:[#allocation2 + $0x1c] sm:$0xf]
  %v7770 = vld [vmem:[#allocation2 + $0x20] sm:$0xf]
  %v7771 = vld [vmem:[#allocation2 + $0x24] sm:$0xf]
  %v7772 = vld [vmem:[#allocation2 + $0x28] sm:$0xf]
  %v7773 = vld [vmem:[#allocation2 + $0x2c] sm:$0xf]
  %v7774 = vld [vmem:[#allocation2 + $0x30] sm:$0xf]
  %v7775 = vld [vmem:[#allocation2 + $0x34] sm:$0xf]
  %v7776 = vld [vmem:[#allocation2 + $0x38] sm:$0xf]
  %v7777 = vld [vmem:[#allocation2 + $0x3c] sm:$0xf]
  %v7778 = vld [vmem:[#allocation2 + $0x40] sm:$0xf]
  %v7779 = vld [vmem:[#allocation2 + $0x44] sm:$0xf]
  %v7780 = vld [vmem:[#allocation2 + $0x48] sm:$0xf]
  %v7781 = vld [vmem:[#allocation2 + $0x4c] sm:$0xf]
  %v7782 = vld [vmem:[#allocation2 + $0x50] sm:$0xf]
  %v7783 = vld [vmem:[#allocation2 + $0x54] sm:$0xf]
  %v7784 = vld [vmem:[#allocation2 + $0x58] sm:$0xf]
  %v7785 = vld [vmem:[#allocation2 + $0x5c] sm:$0xf]
  %v7786 = vld [vmem:[#allocation2 + $0x60] sm:$0xf]
  %v7787 = vld [vmem:[#allocation2 + $0x64] sm:$0xf]
  %v7788 = vld [vmem:[#allocation2 + $0x68] sm:$0xf]
  %v7789 = vld [vmem:[#allocation2 + $0x6c] sm:$0xf]
  %v7790 = vld [vmem:[#allocation2 + $0x70] sm:$0xf]
  %v7791 = vld [vmem:[#allocation2 + $0x74] sm:$0xf]
  %v7792 = vld [vmem:[#allocation2 + $0x78] sm:$0xf]
  %v7793 = vld [vmem:[#allocation2 + $0x7c] sm:$0xf]
  %v7794 = vld [vmem:[#allocation2 + $0x80] sm:$0xf]
  %v7795 = vld [vmem:[#allocation2 + $0x84] sm:$0xf]
  %v7796 = vld [vmem:[#allocation2 + $0x88] sm:$0xf]
  %v7797 = vld [vmem:[#allocation2 + $0x8c] sm:$0xf]
  %v7798 = vld [vmem:[#allocation2 + $0x90] sm:$0xf]
  %v7799 = vld [vmem:[#allocation2 + $0x94] sm:$0xf]
  %v7800 = vld [vmem:[#allocation2 + $0x98] sm:$0xf]
  %v7801 = vld [vmem:[#allocation2 + $0x9c] sm:$0xf]
  %v7802 = vld [vmem:[#allocation2 + $0xa0] sm:$0xf]
  %v7803 = vld [vmem:[#allocation2 + $0xa4] sm:$0xf]
  %v7804 = vld [vmem:[#allocation2 + $0xa8] sm:$0xf]
  %v7805 = vld [vmem:[#allocation2 + $0xac] sm:$0xf]
  %v7806 = vld [vmem:[#allocation2 + $0xb0] sm:$0xf]
  %v7807 = vld [vmem:[#allocation2 + $0xb4] sm:$0xf]
  %v7808 = vld [vmem:[#allocation2 + $0xb8] sm:$0xf]
  %v7809 = vld [vmem:[#allocation2 + $0xbc] sm:$0xf]
  %v7810 = vld [vmem:[#allocation2 + $0xc0] sm:$0xf]
  %v7811 = vld [vmem:[#allocation2 + $0xc4] sm:$0xf]
  %v7812 = vld [vmem:[#allocation2 + $0xc8] sm:$0xf]
  %v7813 = vld [vmem:[#allocation2 + $0xcc] sm:$0xf]
  %v7814 = vld [vmem:[#allocation2 + $0xd0] sm:$0xf]
  %v7815 = vld [vmem:[#allocation2 + $0xd4] sm:$0xf]
  %v7816 = vld [vmem:[#allocation2 + $0xd8] sm:$0xf]
  %v7817 = vld [vmem:[#allocation2 + $0xdc] sm:$0xf]
  %v7818 = vld [vmem:[#allocation2 + $0xe0] sm:$0xf]
  %v7819 = vld [vmem:[#allocation2 + $0xe4] sm:$0xf]
  %v7820 = vld [vmem:[#allocation2 + $0xe8] sm:$0xf]
  %v7821 = vld [vmem:[#allocation2 + $0xec] sm:$0xf]
  %v7822 = vld [vmem:[#allocation2 + $0xf0] sm:$0xf]
  %v7823 = vld [vmem:[#allocation2 + $0xf4] sm:$0xf]
  %v7824 = vld [vmem:[#allocation2 + $0xf8] sm:$0xf]
  %v7825 = vld [vmem:[#allocation2 + $0xfc] sm:$0xf]
  %v7826 = vld [vmem:[#allocation2 + $0x100] sm:$0xf]
  %v7827 = vld [vmem:[#allocation2 + $0x104] sm:$0xf]
  %v7828 = vld [vmem:[#allocation2 + $0x108] sm:$0xf]
  %v7829 = vld [vmem:[#allocation2 + $0x10c] sm:$0xf]
  %v7830 = vld [vmem:[#allocation2 + $0x110] sm:$0xf]
  %v7831 = vld [vmem:[#allocation2 + $0x114] sm:$0xf]
  %v7832 = vld [vmem:[#allocation2 + $0x118] sm:$0xf]
  %v7833 = vld [vmem:[#allocation2 + $0x11c] sm:$0xf]
  %v7834 = vld [vmem:[#allocation2 + $0x120] sm:$0xf]
  %v7835 = vld [vmem:[#allocation2 + $0x124] sm:$0xf]
  %v7836 = vld [vmem:[#allocation2 + $0x128] sm:$0xf]
  %v7837 = vld [vmem:[#allocation2 + $0x12c] sm:$0xf]
  %v7838 = vld [vmem:[#allocation2 + $0x130] sm:$0xf]
  %v7839 = vld [vmem:[#allocation2 + $0x134] sm:$0xf]
  %v7840 = vld [vmem:[#allocation2 + $0x138] sm:$0xf]
  %v7841 = vld [vmem:[#allocation2 + $0x13c] sm:$0xf]
  %v7842 = vld [vmem:[#allocation2 + $0x140] sm:$0xf]
  %v7843 = vld [vmem:[#allocation2 + $0x144] sm:$0xf]
  %v7844 = vld [vmem:[#allocation2 + $0x148] sm:$0xf]
  %v7845 = vld [vmem:[#allocation2 + $0x14c] sm:$0xf]
  %v7846 = vld [vmem:[#allocation2 + $0x150] sm:$0xf]
  %v7847 = vld [vmem:[#allocation2 + $0x154] sm:$0xf]
  %v7848 = vld [vmem:[#allocation2 + $0x158] sm:$0xf]
  %v7849 = vld [vmem:[#allocation2 + $0x15c] sm:$0xf]
  %v7850 = vld [vmem:[#allocation2 + $0x160] sm:$0xf]
  %v7851 = vld [vmem:[#allocation2 + $0x164] sm:$0xf]
  %v7852 = vld [vmem:[#allocation2 + $0x168] sm:$0xf]
  %v7853 = vld [vmem:[#allocation2 + $0x16c] sm:$0xf]
  %v7854 = vld [vmem:[#allocation2 + $0x170] sm:$0x3]
  %s7855 = scalar_lea.vmem %s2, 24
  %v7856 = vld [vmem:[%s7855] sm:$0xf]
  %v7946 = vunpack.c.l.b16 %v7766
  %v7947 = vunpack.c.l.b16 %v7767
  %v7948 = vunpack.c.l.b16 %v7768
  %v7949 = vunpack.c.l.b16 %v7769
  %v7950 = vunpack.c.l.b16 %v7770
  %v7951 = vunpack.c.l.b16 %v7771
  %v7952 = vunpack.c.l.b16 %v7772
  %v7953 = vunpack.c.l.b16 %v7773
  %v7954 = vunpack.c.l.b16 %v7774
  %v7955 = vunpack.c.l.b16 %v7775
  %v7956 = vunpack.c.l.b16 %v7776
  %v7957 = vunpack.c.l.b16 %v7777
  %v7958 = vunpack.c.l.b16 %v7778
  %v7959 = vunpack.c.l.b16 %v7779
  %v7960 = vunpack.c.l.b16 %v7780
  %v7961 = vunpack.c.l.b16 %v7781
  %v7962 = vunpack.c.l.b16 %v7782
  %v7963 = vunpack.c.l.b16 %v7783
  %v7964 = vunpack.c.l.b16 %v7784
  %v7965 = vunpack.c.l.b16 %v7785
  %v7966 = vunpack.c.l.b16 %v7786
  %v7967 = vunpack.c.l.b16 %v7787
  %v7968 = vunpack.c.l.b16 %v7788
  %v7969 = vunpack.c.l.b16 %v7789
  %v7970 = vunpack.c.l.b16 %v7790
  %v7971 = vunpack.c.l.b16 %v7791
  %v7972 = vunpack.c.l.b16 %v7792
  %v7973 = vunpack.c.l.b16 %v7793
  %v7974 = vunpack.c.l.b16 %v7794
  %v7975 = vunpack.c.l.b16 %v7795
  %v7976 = vunpack.c.l.b16 %v7796
  %v7977 = vunpack.c.l.b16 %v7797
  %v7978 = vunpack.c.l.b16 %v7798
  %v7979 = vunpack.c.l.b16 %v7799
  %v7980 = vunpack.c.l.b16 %v7800
  %v7981 = vunpack.c.l.b16 %v7801
  %v7982 = vunpack.c.l.b16 %v7802
  %v7983 = vunpack.c.l.b16 %v7803
  %v7984 = vunpack.c.l.b16 %v7804
  %v7985 = vunpack.c.l.b16 %v7805
  %v7986 = vunpack.c.l.b16 %v7806
  %v7987 = vunpack.c.l.b16 %v7807
  %v7988 = vunpack.c.l.b16 %v7808
  %v7989 = vunpack.c.l.b16 %v7809
  %v7990 = vunpack.c.l.b16 %v7810
  %v7991 = vunpack.c.l.b16 %v7811
  %v7992 = vunpack.c.l.b16 %v7812
  %v7993 = vunpack.c.l.b16 %v7813
  %v7994 = vunpack.c.l.b16 %v7814
  %v7995 = vunpack.c.l.b16 %v7815
  %v7996 = vunpack.c.l.b16 %v7816
  %v7997 = vunpack.c.l.b16 %v7817
  %v7998 = vunpack.c.l.b16 %v7818
  %v7999 = vunpack.c.l.b16 %v7819
  %v8000 = vunpack.c.l.b16 %v7820
  %v8001 = vunpack.c.l.b16 %v7821
  %v8002 = vunpack.c.l.b16 %v7822
  %v8003 = vunpack.c.l.b16 %v7823
  %v8004 = vunpack.c.l.b16 %v7824
  %v8005 = vunpack.c.l.b16 %v7825
  %v8006 = vunpack.c.l.b16 %v7826
  %v8007 = vunpack.c.l.b16 %v7827
  %v8008 = vunpack.c.l.b16 %v7828
  %v8009 = vunpack.c.l.b16 %v7829
  %v8010 = vunpack.c.l.b16 %v7830
  %v8011 = vunpack.c.l.b16 %v7831
  %v8012 = vunpack.c.l.b16 %v7832
  %v8013 = vunpack.c.l.b16 %v7833
  %v8014 = vunpack.c.l.b16 %v7834
  %v8015 = vunpack.c.l.b16 %v7835
  %v8016 = vunpack.c.l.b16 %v7836
  %v8017 = vunpack.c.l.b16 %v7837
  %v8018 = vunpack.c.l.b16 %v7838
  %v8019 = vunpack.c.l.b16 %v7839
  %v8020 = vunpack.c.l.b16 %v7840
  %v8021 = vunpack.c.l.b16 %v7841
  %v8022 = vunpack.c.l.b16 %v7842
  %v8023 = vunpack.c.l.b16 %v7843
  %v8024 = vunpack.c.l.b16 %v7844
  %v8025 = vunpack.c.l.b16 %v7845
  %v8026 = vunpack.c.l.b16 %v7846
  %v8027 = vunpack.c.l.b16 %v7847
  %v8028 = vunpack.c.l.b16 %v7848
  %v8029 = vunpack.c.l.b16 %v7849
  %v8030 = vunpack.c.l.b16 %v7850
  %v8031 = vunpack.c.l.b16 %v7851
  %v8032 = vunpack.c.l.b16 %v7852
  %v8033 = vunpack.c.l.b16 %v7853
  %v8034 = vunpack.c.l.b16 %v7854
  %v8035 = vpack.c.b16 %v7947, %v7946
  %v8036 = vpack.c.b16 %v7949, %v7948
  %v8037 = vpack.c.b16 %v7951, %v7950
  %v8038 = vpack.c.b16 %v7953, %v7952
  %v8039 = vpack.c.b16 %v7955, %v7954
  %v8040 = vpack.c.b16 %v7957, %v7956
  %v8041 = vpack.c.b16 %v7959, %v7958
  %v8042 = vpack.c.b16 %v7961, %v7960
  %v8043 = vpack.c.b16 %v7963, %v7962
  %v8044 = vpack.c.b16 %v7965, %v7964
  %v8045 = vpack.c.b16 %v7967, %v7966
  %v8046 = vpack.c.b16 %v7969, %v7968
  %v8047 = vpack.c.b16 %v7971, %v7970
  %v8048 = vpack.c.b16 %v7973, %v7972
  %v8049 = vpack.c.b16 %v7975, %v7974
  %v8050 = vpack.c.b16 %v7977, %v7976
  %v8051 = vpack.c.b16 %v7979, %v7978
  %v8052 = vpack.c.b16 %v7981, %v7980
  %v8053 = vpack.c.b16 %v7983, %v7982
  %v8054 = vpack.c.b16 %v7985, %v7984
  %v8055 = vpack.c.b16 %v7987, %v7986
  %v8056 = vpack.c.b16 %v7989, %v7988
  %v8057 = vpack.c.b16 %v7991, %v7990
  %v8058 = vpack.c.b16 %v7993, %v7992
  %v8059 = vpack.c.b16 %v7995, %v7994
  %v8060 = vpack.c.b16 %v7997, %v7996
  %v8061 = vpack.c.b16 %v7999, %v7998
  %v8062 = vpack.c.b16 %v8001, %v8000
  %v8063 = vpack.c.b16 %v8003, %v8002
  %v8064 = vpack.c.b16 %v8005, %v8004
  %v8065 = vpack.c.b16 %v8007, %v8006
  %v8066 = vpack.c.b16 %v8009, %v8008
  %v8067 = vpack.c.b16 %v8011, %v8010
  %v8068 = vpack.c.b16 %v8013, %v8012
  %v8069 = vpack.c.b16 %v8015, %v8014
  %v8070 = vpack.c.b16 %v8017, %v8016
  %v8071 = vpack.c.b16 %v8019, %v8018
  %v8072 = vpack.c.b16 %v8021, %v8020
  %v8073 = vpack.c.b16 %v8023, %v8022
  %v8074 = vpack.c.b16 %v8025, %v8024
  %v8075 = vpack.c.b16 %v8027, %v8026
  %v8076 = vpack.c.b16 %v8029, %v8028
  %v8077 = vpack.c.b16 %v8031, %v8030
  %v8078 = vpack.c.b16 %v8033, %v8032
  %v8079 = vpack.c.b16 %v8034, %v8034
  %v8080 = vrot.slane %v8035, 2
  %v8081 = vrot.slane %v8036, 2
  %v8082 = vsel %vm6892, %v8080, %v8081
  %v8083 = vrot.slane %v8037, 2
  %v8084 = vsel %vm6892, %v8081, %v8083
  %v8085 = vrot.slane %v8038, 2
  %v8086 = vsel %vm6892, %v8083, %v8085
  %v8087 = vrot.slane %v8039, 2
  %v8088 = vsel %vm6892, %v8085, %v8087
  %v8089 = vrot.slane %v8040, 2
  %v8090 = vsel %vm6892, %v8087, %v8089
  %v8091 = vrot.slane %v8041, 2
  %v8092 = vsel %vm6892, %v8089, %v8091
  %v8093 = vrot.slane %v8042, 2
  %v8094 = vsel %vm6892, %v8091, %v8093
  %v8095 = vrot.slane %v8043, 2
  %v8096 = vsel %vm6892, %v8093, %v8095
  %v8097 = vrot.slane %v8044, 2
  %v8098 = vsel %vm6892, %v8095, %v8097
  %v8099 = vrot.slane %v8045, 2
  %v8100 = vsel %vm6892, %v8097, %v8099
  %v8101 = vrot.slane %v8046, 2
  %v8102 = vsel %vm6892, %v8099, %v8101
  %v8103 = vrot.slane %v8047, 2
  %v8104 = vsel %vm6892, %v8101, %v8103
  %v8105 = vrot.slane %v8048, 2
  %v8106 = vsel %vm6892, %v8103, %v8105
  %v8107 = vrot.slane %v8049, 2
  %v8108 = vsel %vm6892, %v8105, %v8107
  %v8109 = vrot.slane %v8050, 2
  %v8110 = vsel %vm6892, %v8107, %v8109
  %v8111 = vrot.slane %v8051, 2
  %v8112 = vsel %vm6892, %v8109, %v8111
  %v8113 = vrot.slane %v8052, 2
  %v8114 = vsel %vm6892, %v8111, %v8113
  %v8115 = vrot.slane %v8053, 2
  %v8116 = vsel %vm6892, %v8113, %v8115
  %v8117 = vrot.slane %v8054, 2
  %v8118 = vsel %vm6892, %v8115, %v8117
  %v8119 = vrot.slane %v8055, 2
  %v8120 = vsel %vm6892, %v8117, %v8119
  %v8121 = vrot.slane %v8056, 2
  %v8122 = vsel %vm6892, %v8119, %v8121
  %v8123 = vrot.slane %v8057, 2
  %v8124 = vsel %vm6892, %v8121, %v8123
  %v8125 = vrot.slane %v8058, 2
  %v8126 = vsel %vm6892, %v8123, %v8125
  %v8127 = vrot.slane %v8059, 2
  %v8128 = vsel %vm6892, %v8125, %v8127
  %v8129 = vrot.slane %v8060, 2
  %v8130 = vsel %vm6892, %v8127, %v8129
  %v8131 = vrot.slane %v8061, 2
  %v8132 = vsel %vm6892, %v8129, %v8131
  %v8133 = vrot.slane %v8062, 2
  %v8134 = vsel %vm6892, %v8131, %v8133
  %v8135 = vrot.slane %v8063, 2
  %v8136 = vsel %vm6892, %v8133, %v8135
  %v8137 = vrot.slane %v8064, 2
  %v8138 = vsel %vm6892, %v8135, %v8137
  %v8139 = vrot.slane %v8065, 2
  %v8140 = vsel %vm6892, %v8137, %v8139
  %v8141 = vrot.slane %v8066, 2
  %v8142 = vsel %vm6892, %v8139, %v8141
  %v8143 = vrot.slane %v8067, 2
  %v8144 = vsel %vm6892, %v8141, %v8143
  %v8145 = vrot.slane %v8068, 2
  %v8146 = vsel %vm6892, %v8143, %v8145
  %v8147 = vrot.slane %v8069, 2
  %v8148 = vsel %vm6892, %v8145, %v8147
  %v8149 = vrot.slane %v8070, 2
  %v8150 = vsel %vm6892, %v8147, %v8149
  %v8151 = vrot.slane %v8071, 2
  %v8152 = vsel %vm6892, %v8149, %v8151
  %v8153 = vrot.slane %v8072, 2
  %v8154 = vsel %vm6892, %v8151, %v8153
  %v8155 = vrot.slane %v8073, 2
  %v8156 = vsel %vm6892, %v8153, %v8155
  %v8157 = vrot.slane %v8074, 2
  %v8158 = vsel %vm6892, %v8155, %v8157
  %v8159 = vrot.slane %v8075, 2
  %v8160 = vsel %vm6892, %v8157, %v8159
  %v8161 = vrot.slane %v8076, 2
  %v8162 = vsel %vm6892, %v8159, %v8161
  %v8163 = vrot.slane %v8077, 2
  %v8164 = vsel %vm6892, %v8161, %v8163
  %v8165 = vrot.slane %v8078, 2
  %v8166 = vsel %vm6892, %v8163, %v8165
  %v8167 = vrot.slane %v8079, 2
  %v8168 = vsel %vm6892, %v8165, %v8167
  %v8170 = vsel %vm547, %v8082, 0
  %v8173 = vsel %vm547, %v8084, 0
  %v8176 = vsel %vm547, %v8086, 0
  %v8179 = vsel %vm547, %v8088, 0
  %v8182 = vsel %vm547, %v8090, 0
  %v8185 = vsel %vm547, %v8092, 0
  %v8188 = vsel %vm547, %v8094, 0
  %v8191 = vsel %vm547, %v8096, 0
  %v8194 = vsel %vm547, %v8098, 0
  %v8197 = vsel %vm547, %v8100, 0
  %v8200 = vsel %vm547, %v8102, 0
  %v8203 = vsel %vm547, %v8104, 0
  %v8206 = vsel %vm547, %v8106, 0
  %v8209 = vsel %vm547, %v8108, 0
  %v8212 = vsel %vm547, %v8110, 0
  %v8215 = vsel %vm547, %v8112, 0
  %v8218 = vsel %vm547, %v8114, 0
  %v8221 = vsel %vm547, %v8116, 0
  %v8224 = vsel %vm547, %v8118, 0
  %v8227 = vsel %vm547, %v8120, 0
  %v8230 = vsel %vm547, %v8122, 0
  %v8233 = vsel %vm547, %v8124, 0
  %v8236 = vsel %vm547, %v8126, 0
  %v8239 = vsel %vm547, %v8128, 0
  %v8242 = vsel %vm547, %v8130, 0
  %v8245 = vsel %vm547, %v8132, 0
  %v8248 = vsel %vm547, %v8134, 0
  %v8251 = vsel %vm547, %v8136, 0
  %v8254 = vsel %vm547, %v8138, 0
  %v8257 = vsel %vm547, %v8140, 0
  %v8260 = vsel %vm547, %v8142, 0
  %v8263 = vsel %vm547, %v8144, 0
  %v8266 = vsel %vm547, %v8146, 0
  %v8269 = vsel %vm547, %v8148, 0
  %v8272 = vsel %vm547, %v8150, 0
  %v8275 = vsel %vm547, %v8152, 0
  %v8278 = vsel %vm547, %v8154, 0
  %v8281 = vsel %vm547, %v8156, 0
  %v8284 = vsel %vm547, %v8158, 0
  %v8287 = vsel %vm547, %v8160, 0
  %v8290 = vsel %vm547, %v8162, 0
  %v8293 = vsel %vm547, %v8164, 0
  %v8296 = vsel %vm547, %v8166, 0
  %v8299 = vsel %vm547, %v8168, 0
  %v8302 = vsel %vm680, %v7856, 0
  %8304 = vmatprep.subr.bf16.mxu0 0
  %8305 = vmatpush1.bf16.msra.mxu0 0
  %8306 = vmatprep.subr.bf16.mxu0 0
  %8307 = vmatpush1.bf16.msra.mxu0 0
  %8308 = vmatprep.subr.bf16.mxu0 0
  %8309 = vmatpush1.bf16.msra.mxu0 0
  %8310 = vmatprep.subr.bf16.mxu0 0
  %8311 = vmatpush1.bf16.msra.mxu0 0
  %8312 = vmatprep.subr.bf16.mxu0 0
  %8313 = vmatpush1.bf16.msra.mxu0 0
  %8314 = vmatprep.subr.bf16.mxu0 0
  %8315 = vmatpush1.bf16.msra.mxu0 0
  %8316 = vmatprep.subr.bf16.mxu0 0
  %8317 = vmatpush1.bf16.msra.mxu0 0
  %8318 = vmatprep.subr.bf16.mxu0 0
  %8319 = vmatpush1.bf16.msra.mxu0 %v8302
  %8320 = vmatprep.subr.bf16.mxu0 0
  %8321 = vmatpush2.bf16.msra.mxu0 0
  %8322 = vmatprep.subr.bf16.mxu0 0
  %8323 = vmatpush2.bf16.msra.mxu0 0
  %8324 = vmatprep.subr.bf16.mxu0 0
  %8325 = vmatpush2.bf16.msra.mxu0 0
  %8326 = vmatprep.subr.bf16.mxu0 0
  %8327 = vmatpush2.bf16.msra.mxu0 0
  %8328 = vmatprep.subr.bf16.mxu0 0
  %8329 = vmatpush2.bf16.msra.mxu0 0
  %8330 = vmatprep.subr.bf16.mxu0 0
  %8331 = vmatpush2.bf16.msra.mxu0 0
  %8332 = vmatprep.subr.bf16.mxu0 0
  %8333 = vmatpush2.bf16.msra.mxu0 0
  %8334 = vmatprep.subr.bf16.mxu0 0
  %8335 = vmatpush2.bf16.msra.mxu0 0
  %8336 = vmatprep.mubr.bf16.mxu0 0
  %8337 = vmatmul.mubr.bf16.gmra.mxu0 %v8170
  %v8338 = vpop.f32.mrf.mxu0
  %v8339 = vadd.f32 0.0, %v8338
  %v8340 = vpop.f32.mrf.mxu0
  %v8341 = vpop.f32.mrf.mxu0
  %v8342 = vadd.f32 0.0, %v8341
  %v8343 = vpop.f32.mrf.mxu0
  %8344 = vmatprep.mubr.bf16.mxu0 0
  %8345 = vmatmul.mubr.bf16.gmra.mxu0 %v8173
  %v8346 = vpop.f32.mrf.mxu0
  %v8347 = vadd.f32 0.0, %v8346
  %v8348 = vpop.f32.mrf.mxu0
  %v8349 = vpop.f32.mrf.mxu0
  %v8350 = vadd.f32 0.0, %v8349
  %v8351 = vpop.f32.mrf.mxu0
  %8352 = vmatprep.mubr.bf16.mxu0 0
  %8353 = vmatmul.mubr.bf16.gmra.mxu0 %v8176
  %v8354 = vpop.f32.mrf.mxu0
  %v8355 = vadd.f32 0.0, %v8354
  %v8356 = vpop.f32.mrf.mxu0
  %v8357 = vpop.f32.mrf.mxu0
  %v8358 = vadd.f32 0.0, %v8357
  %v8359 = vpop.f32.mrf.mxu0
  %8360 = vmatprep.mubr.bf16.mxu0 0
  %8361 = vmatmul.mubr.bf16.gmra.mxu0 %v8179
  %v8362 = vpop.f32.mrf.mxu0
  %v8363 = vadd.f32 0.0, %v8362
  %v8364 = vpop.f32.mrf.mxu0
  %v8365 = vpop.f32.mrf.mxu0
  %v8366 = vadd.f32 0.0, %v8365
  %v8367 = vpop.f32.mrf.mxu0
  %8368 = vmatprep.mubr.bf16.mxu0 0
  %8369 = vmatmul.mubr.bf16.gmra.mxu0 %v8182
  %v8370 = vpop.f32.mrf.mxu0
  %v8371 = vadd.f32 0.0, %v8370
  %v8372 = vpop.f32.mrf.mxu0
  %v8373 = vpop.f32.mrf.mxu0
  %v8374 = vadd.f32 0.0, %v8373
  %v8375 = vpop.f32.mrf.mxu0
  %8376 = vmatprep.mubr.bf16.mxu0 0
  %8377 = vmatmul.mubr.bf16.gmra.mxu0 %v8185
  %v8378 = vpop.f32.mrf.mxu0
  %v8379 = vadd.f32 0.0, %v8378
  %v8380 = vpop.f32.mrf.mxu0
  %v8381 = vpop.f32.mrf.mxu0
  %v8382 = vadd.f32 0.0, %v8381
  %v8383 = vpop.f32.mrf.mxu0
  %8384 = vmatprep.mubr.bf16.mxu0 0
  %8385 = vmatmul.mubr.bf16.gmra.mxu0 %v8188
  %v8386 = vpop.f32.mrf.mxu0
  %v8387 = vadd.f32 0.0, %v8386
  %v8388 = vpop.f32.mrf.mxu0
  %v8389 = vpop.f32.mrf.mxu0
  %v8390 = vadd.f32 0.0, %v8389
  %v8391 = vpop.f32.mrf.mxu0
  %8392 = vmatprep.mubr.bf16.mxu0 0
  %8393 = vmatmul.mubr.bf16.gmra.mxu0 %v8191
  %v8394 = vpop.f32.mrf.mxu0
  %v8395 = vadd.f32 0.0, %v8394
  %v8396 = vpop.f32.mrf.mxu0
  %v8397 = vpop.f32.mrf.mxu0
  %v8398 = vadd.f32 0.0, %v8397
  %v8399 = vpop.f32.mrf.mxu0
  %8400 = vmatprep.mubr.bf16.mxu0 0
  %8401 = vmatmul.mubr.bf16.gmra.mxu0 %v8194
  %v8402 = vpop.f32.mrf.mxu0
  %v8403 = vadd.f32 0.0, %v8402
  %v8404 = vpop.f32.mrf.mxu0
  %v8405 = vpop.f32.mrf.mxu0
  %v8406 = vadd.f32 0.0, %v8405
  %v8407 = vpop.f32.mrf.mxu0
  %8408 = vmatprep.mubr.bf16.mxu0 0
  %8409 = vmatmul.mubr.bf16.gmra.mxu0 %v8197
  %v8410 = vpop.f32.mrf.mxu0
  %v8411 = vadd.f32 0.0, %v8410
  %v8412 = vpop.f32.mrf.mxu0
  %v8413 = vpop.f32.mrf.mxu0
  %v8414 = vadd.f32 0.0, %v8413
  %v8415 = vpop.f32.mrf.mxu0
  %8416 = vmatprep.mubr.bf16.mxu0 0
  %8417 = vmatmul.mubr.bf16.gmra.mxu0 %v8200
  %v8418 = vpop.f32.mrf.mxu0
  %v8419 = vadd.f32 0.0, %v8418
  %v8420 = vpop.f32.mrf.mxu0
  %v8421 = vpop.f32.mrf.mxu0
  %v8422 = vadd.f32 0.0, %v8421
  %v8423 = vpop.f32.mrf.mxu0
  %8424 = vmatprep.mubr.bf16.mxu0 0
  %8425 = vmatmul.mubr.bf16.gmra.mxu0 %v8203
  %v8426 = vpop.f32.mrf.mxu0
  %v8427 = vadd.f32 0.0, %v8426
  %v8428 = vpop.f32.mrf.mxu0
  %v8429 = vpop.f32.mrf.mxu0
  %v8430 = vadd.f32 0.0, %v8429
  %v8431 = vpop.f32.mrf.mxu0
  %8432 = vmatprep.mubr.bf16.mxu0 0
  %8433 = vmatmul.mubr.bf16.gmra.mxu0 %v8206
  %v8434 = vpop.f32.mrf.mxu0
  %v8435 = vadd.f32 0.0, %v8434
  %v8436 = vpop.f32.mrf.mxu0
  %v8437 = vpop.f32.mrf.mxu0
  %v8438 = vadd.f32 0.0, %v8437
  %v8439 = vpop.f32.mrf.mxu0
  %8440 = vmatprep.mubr.bf16.mxu0 0
  %8441 = vmatmul.mubr.bf16.gmra.mxu0 %v8209
  %v8442 = vpop.f32.mrf.mxu0
  %v8443 = vadd.f32 0.0, %v8442
  %v8444 = vpop.f32.mrf.mxu0
  %v8445 = vpop.f32.mrf.mxu0
  %v8446 = vadd.f32 0.0, %v8445
  %v8447 = vpop.f32.mrf.mxu0
  %8448 = vmatprep.mubr.bf16.mxu0 0
  %8449 = vmatmul.mubr.bf16.gmra.mxu0 %v8212
  %v8450 = vpop.f32.mrf.mxu0
  %v8451 = vadd.f32 0.0, %v8450
  %v8452 = vpop.f32.mrf.mxu0
  %v8453 = vpop.f32.mrf.mxu0
  %v8454 = vadd.f32 0.0, %v8453
  %v8455 = vpop.f32.mrf.mxu0
  %8456 = vmatprep.mubr.bf16.mxu0 0
  %8457 = vmatmul.mubr.bf16.gmra.mxu0 %v8215
  %v8458 = vpop.f32.mrf.mxu0
  %v8459 = vadd.f32 0.0, %v8458
  %v8460 = vpop.f32.mrf.mxu0
  %v8461 = vpop.f32.mrf.mxu0
  %v8462 = vadd.f32 0.0, %v8461
  %v8463 = vpop.f32.mrf.mxu0
  %8464 = vmatprep.mubr.bf16.mxu0 0
  %8465 = vmatmul.mubr.bf16.gmra.mxu0 %v8218
  %v8466 = vpop.f32.mrf.mxu0
  %v8467 = vadd.f32 0.0, %v8466
  %v8468 = vpop.f32.mrf.mxu0
  %v8469 = vpop.f32.mrf.mxu0
  %v8470 = vadd.f32 0.0, %v8469
  %v8471 = vpop.f32.mrf.mxu0
  %8472 = vmatprep.mubr.bf16.mxu0 0
  %8473 = vmatmul.mubr.bf16.gmra.mxu0 %v8221
  %v8474 = vpop.f32.mrf.mxu0
  %v8475 = vadd.f32 0.0, %v8474
  %v8476 = vpop.f32.mrf.mxu0
  %v8477 = vpop.f32.mrf.mxu0
  %v8478 = vadd.f32 0.0, %v8477
  %v8479 = vpop.f32.mrf.mxu0
  %8480 = vmatprep.mubr.bf16.mxu0 0
  %8481 = vmatmul.mubr.bf16.gmra.mxu0 %v8224
  %v8482 = vpop.f32.mrf.mxu0
  %v8483 = vadd.f32 0.0, %v8482
  %v8484 = vpop.f32.mrf.mxu0
  %v8485 = vpop.f32.mrf.mxu0
  %v8486 = vadd.f32 0.0, %v8485
  %v8487 = vpop.f32.mrf.mxu0
  %8488 = vmatprep.mubr.bf16.mxu0 0
  %8489 = vmatmul.mubr.bf16.gmra.mxu0 %v8227
  %v8490 = vpop.f32.mrf.mxu0
  %v8491 = vadd.f32 0.0, %v8490
  %v8492 = vpop.f32.mrf.mxu0
  %v8493 = vpop.f32.mrf.mxu0
  %v8494 = vadd.f32 0.0, %v8493
  %v8495 = vpop.f32.mrf.mxu0
  %8496 = vmatprep.mubr.bf16.mxu0 0
  %8497 = vmatmul.mubr.bf16.gmra.mxu0 %v8230
  %v8498 = vpop.f32.mrf.mxu0
  %v8499 = vadd.f32 0.0, %v8498
  %v8500 = vpop.f32.mrf.mxu0
  %v8501 = vpop.f32.mrf.mxu0
  %v8502 = vadd.f32 0.0, %v8501
  %v8503 = vpop.f32.mrf.mxu0
  %8504 = vmatprep.mubr.bf16.mxu0 0
  %8505 = vmatmul.mubr.bf16.gmra.mxu0 %v8233
  %v8506 = vpop.f32.mrf.mxu0
  %v8507 = vadd.f32 0.0, %v8506
  %v8508 = vpop.f32.mrf.mxu0
  %v8509 = vpop.f32.mrf.mxu0
  %v8510 = vadd.f32 0.0, %v8509
  %v8511 = vpop.f32.mrf.mxu0
  %8512 = vmatprep.mubr.bf16.mxu0 0
  %8513 = vmatmul.mubr.bf16.gmra.mxu0 %v8236
  %v8514 = vpop.f32.mrf.mxu0
  %v8515 = vadd.f32 0.0, %v8514
  %v8516 = vpop.f32.mrf.mxu0
  %v8517 = vpop.f32.mrf.mxu0
  %v8518 = vadd.f32 0.0, %v8517
  %v8519 = vpop.f32.mrf.mxu0
  %8520 = vmatprep.mubr.bf16.mxu0 0
  %8521 = vmatmul.mubr.bf16.gmra.mxu0 %v8239
  %v8522 = vpop.f32.mrf.mxu0
  %v8523 = vadd.f32 0.0, %v8522
  %v8524 = vpop.f32.mrf.mxu0
  %v8525 = vpop.f32.mrf.mxu0
  %v8526 = vadd.f32 0.0, %v8525
  %v8527 = vpop.f32.mrf.mxu0
  %8528 = vmatprep.mubr.bf16.mxu0 0
  %8529 = vmatmul.mubr.bf16.gmra.mxu0 %v8242
  %v8530 = vpop.f32.mrf.mxu0
  %v8531 = vadd.f32 0.0, %v8530
  %v8532 = vpop.f32.mrf.mxu0
  %v8533 = vpop.f32.mrf.mxu0
  %v8534 = vadd.f32 0.0, %v8533
  %v8535 = vpop.f32.mrf.mxu0
  %8536 = vmatprep.mubr.bf16.mxu0 0
  %8537 = vmatmul.mubr.bf16.gmra.mxu0 %v8245
  %v8538 = vpop.f32.mrf.mxu0
  %v8539 = vadd.f32 0.0, %v8538
  %v8540 = vpop.f32.mrf.mxu0
  %v8541 = vpop.f32.mrf.mxu0
  %v8542 = vadd.f32 0.0, %v8541
  %v8543 = vpop.f32.mrf.mxu0
  %8544 = vmatprep.mubr.bf16.mxu0 0
  %8545 = vmatmul.mubr.bf16.gmra.mxu0 %v8248
  %v8546 = vpop.f32.mrf.mxu0
  %v8547 = vadd.f32 0.0, %v8546
  %v8548 = vpop.f32.mrf.mxu0
  %v8549 = vpop.f32.mrf.mxu0
  %v8550 = vadd.f32 0.0, %v8549
  %v8551 = vpop.f32.mrf.mxu0
  %8552 = vmatprep.mubr.bf16.mxu0 0
  %8553 = vmatmul.mubr.bf16.gmra.mxu0 %v8251
  %v8554 = vpop.f32.mrf.mxu0
  %v8555 = vadd.f32 0.0, %v8554
  %v8556 = vpop.f32.mrf.mxu0
  %v8557 = vpop.f32.mrf.mxu0
  %v8558 = vadd.f32 0.0, %v8557
  %v8559 = vpop.f32.mrf.mxu0
  %8560 = vmatprep.mubr.bf16.mxu0 0
  %8561 = vmatmul.mubr.bf16.gmra.mxu0 %v8254
  %v8562 = vpop.f32.mrf.mxu0
  %v8563 = vadd.f32 0.0, %v8562
  %v8564 = vpop.f32.mrf.mxu0
  %v8565 = vpop.f32.mrf.mxu0
  %v8566 = vadd.f32 0.0, %v8565
  %v8567 = vpop.f32.mrf.mxu0
  %8568 = vmatprep.mubr.bf16.mxu0 0
  %8569 = vmatmul.mubr.bf16.gmra.mxu0 %v8257
  %v8570 = vpop.f32.mrf.mxu0
  %v8571 = vadd.f32 0.0, %v8570
  %v8572 = vpop.f32.mrf.mxu0
  %v8573 = vpop.f32.mrf.mxu0
  %v8574 = vadd.f32 0.0, %v8573
  %v8575 = vpop.f32.mrf.mxu0
  %8576 = vmatprep.mubr.bf16.mxu0 0
  %8577 = vmatmul.mubr.bf16.gmra.mxu0 %v8260
  %v8578 = vpop.f32.mrf.mxu0
  %v8579 = vadd.f32 0.0, %v8578
  %v8580 = vpop.f32.mrf.mxu0
  %v8581 = vpop.f32.mrf.mxu0
  %v8582 = vadd.f32 0.0, %v8581
  %v8583 = vpop.f32.mrf.mxu0
  %8584 = vmatprep.mubr.bf16.mxu0 0
  %8585 = vmatmul.mubr.bf16.gmra.mxu0 %v8263
  %v8586 = vpop.f32.mrf.mxu0
  %v8587 = vadd.f32 0.0, %v8586
  %v8588 = vpop.f32.mrf.mxu0
  %v8589 = vpop.f32.mrf.mxu0
  %v8590 = vadd.f32 0.0, %v8589
  %v8591 = vpop.f32.mrf.mxu0
  %8592 = vmatprep.mubr.bf16.mxu0 0
  %8593 = vmatmul.mubr.bf16.gmra.mxu0 %v8266
  %v8594 = vpop.f32.mrf.mxu0
  %v8595 = vadd.f32 0.0, %v8594
  %v8596 = vpop.f32.mrf.mxu0
  %v8597 = vpop.f32.mrf.mxu0
  %v8598 = vadd.f32 0.0, %v8597
  %v8599 = vpop.f32.mrf.mxu0
  %8600 = vmatprep.mubr.bf16.mxu0 0
  %8601 = vmatmul.mubr.bf16.gmra.mxu0 %v8269
  %v8602 = vpop.f32.mrf.mxu0
  %v8603 = vadd.f32 0.0, %v8602
  %v8604 = vpop.f32.mrf.mxu0
  %v8605 = vpop.f32.mrf.mxu0
  %v8606 = vadd.f32 0.0, %v8605
  %v8607 = vpop.f32.mrf.mxu0
  %8608 = vmatprep.mubr.bf16.mxu0 0
  %8609 = vmatmul.mubr.bf16.gmra.mxu0 %v8272
  %v8610 = vpop.f32.mrf.mxu0
  %v8611 = vadd.f32 0.0, %v8610
  %v8612 = vpop.f32.mrf.mxu0
  %v8613 = vpop.f32.mrf.mxu0
  %v8614 = vadd.f32 0.0, %v8613
  %v8615 = vpop.f32.mrf.mxu0
  %8616 = vmatprep.mubr.bf16.mxu0 0
  %8617 = vmatmul.mubr.bf16.gmra.mxu0 %v8275
  %v8618 = vpop.f32.mrf.mxu0
  %v8619 = vadd.f32 0.0, %v8618
  %v8620 = vpop.f32.mrf.mxu0
  %v8621 = vpop.f32.mrf.mxu0
  %v8622 = vadd.f32 0.0, %v8621
  %v8623 = vpop.f32.mrf.mxu0
  %8624 = vmatprep.mubr.bf16.mxu0 0
  %8625 = vmatmul.mubr.bf16.gmra.mxu0 %v8278
  %v8626 = vpop.f32.mrf.mxu0
  %v8627 = vadd.f32 0.0, %v8626
  %v8628 = vpop.f32.mrf.mxu0
  %v8629 = vpop.f32.mrf.mxu0
  %v8630 = vadd.f32 0.0, %v8629
  %v8631 = vpop.f32.mrf.mxu0
  %8632 = vmatprep.mubr.bf16.mxu0 0
  %8633 = vmatmul.mubr.bf16.gmra.mxu0 %v8281
  %v8634 = vpop.f32.mrf.mxu0
  %v8635 = vadd.f32 0.0, %v8634
  %v8636 = vpop.f32.mrf.mxu0
  %v8637 = vpop.f32.mrf.mxu0
  %v8638 = vadd.f32 0.0, %v8637
  %v8639 = vpop.f32.mrf.mxu0
  %8640 = vmatprep.mubr.bf16.mxu0 0
  %8641 = vmatmul.mubr.bf16.gmra.mxu0 %v8284
  %v8642 = vpop.f32.mrf.mxu0
  %v8643 = vadd.f32 0.0, %v8642
  %v8644 = vpop.f32.mrf.mxu0
  %v8645 = vpop.f32.mrf.mxu0
  %v8646 = vadd.f32 0.0, %v8645
  %v8647 = vpop.f32.mrf.mxu0
  %8648 = vmatprep.mubr.bf16.mxu0 0
  %8649 = vmatmul.mubr.bf16.gmra.mxu0 %v8287
  %v8650 = vpop.f32.mrf.mxu0
  %v8651 = vadd.f32 0.0, %v8650
  %v8652 = vpop.f32.mrf.mxu0
  %v8653 = vpop.f32.mrf.mxu0
  %v8654 = vadd.f32 0.0, %v8653
  %v8655 = vpop.f32.mrf.mxu0
  %8656 = vmatprep.mubr.bf16.mxu0 0
  %8657 = vmatmul.mubr.bf16.gmra.mxu0 %v8290
  %v8658 = vpop.f32.mrf.mxu0
  %v8659 = vadd.f32 0.0, %v8658
  %v8660 = vpop.f32.mrf.mxu0
  %v8661 = vpop.f32.mrf.mxu0
  %v8662 = vadd.f32 0.0, %v8661
  %v8663 = vpop.f32.mrf.mxu0
  %8664 = vmatprep.mubr.bf16.mxu0 0
  %8665 = vmatmul.mubr.bf16.gmra.mxu0 %v8293
  %v8666 = vpop.f32.mrf.mxu0
  %v8667 = vadd.f32 0.0, %v8666
  %v8668 = vpop.f32.mrf.mxu0
  %v8669 = vpop.f32.mrf.mxu0
  %v8670 = vadd.f32 0.0, %v8669
  %v8671 = vpop.f32.mrf.mxu0
  %8672 = vmatprep.mubr.bf16.mxu0 0
  %8673 = vmatmul.mubr.bf16.gmra.mxu0 %v8296
  %v8674 = vpop.f32.mrf.mxu0
  %v8675 = vadd.f32 0.0, %v8674
  %v8676 = vpop.f32.mrf.mxu0
  %v8677 = vpop.f32.mrf.mxu0
  %v8678 = vadd.f32 0.0, %v8677
  %v8679 = vpop.f32.mrf.mxu0
  %8680 = vmatprep.mubr.bf16.mxu0 0
  %8681 = vmatmul.mubr.bf16.gmra.mxu0 %v8299
  %v8682 = vpop.f32.mrf.mxu0
  %v8683 = vadd.f32 0.0, %v8682
  %v8684 = vpop.f32.mrf.mxu0
  %v8685 = vpop.f32.mrf.mxu0
  %v8686 = vadd.f32 0.0, %v8685
  %v8687 = vpop.f32.mrf.mxu0
  %8688 = vdwg.mxu0
  %v8689 = vadd.f32 %v7678, %v8339
  %v8690 = vadd.f32 %v7679, %v8342
  %v8691 = vadd.f32 %v7680, %v8347
  %v8692 = vadd.f32 %v7681, %v8350
  %v8693 = vadd.f32 %v7682, %v8355
  %v8694 = vadd.f32 %v7683, %v8358
  %v8695 = vadd.f32 %v7684, %v8363
  %v8696 = vadd.f32 %v7685, %v8366
  %v8697 = vadd.f32 %v7686, %v8371
  %v8698 = vadd.f32 %v7687, %v8374
  %v8699 = vadd.f32 %v7688, %v8379
  %v8700 = vadd.f32 %v7689, %v8382
  %v8701 = vadd.f32 %v7690, %v8387
  %v8702 = vadd.f32 %v7691, %v8390
  %v8703 = vadd.f32 %v7692, %v8395
  %v8704 = vadd.f32 %v7693, %v8398
  %v8705 = vadd.f32 %v7694, %v8403
  %v8706 = vadd.f32 %v7695, %v8406
  %v8707 = vadd.f32 %v7696, %v8411
  %v8708 = vadd.f32 %v7697, %v8414
  %v8709 = vadd.f32 %v7698, %v8419
  %v8710 = vadd.f32 %v7699, %v8422
  %v8711 = vadd.f32 %v7700, %v8427
  %v8712 = vadd.f32 %v7701, %v8430
  %v8713 = vadd.f32 %v7702, %v8435
  %v8714 = vadd.f32 %v7703, %v8438
  %v8715 = vadd.f32 %v7704, %v8443
  %v8716 = vadd.f32 %v7705, %v8446
  %v8717 = vadd.f32 %v7706, %v8451
  %v8718 = vadd.f32 %v7707, %v8454
  %v8719 = vadd.f32 %v7708, %v8459
  %v8720 = vadd.f32 %v7709, %v8462
  %v8721 = vadd.f32 %v7710, %v8467
  %v8722 = vadd.f32 %v7711, %v8470
  %v8723 = vadd.f32 %v7712, %v8475
  %v8724 = vadd.f32 %v7713, %v8478
  %v8725 = vadd.f32 %v7714, %v8483
  %v8726 = vadd.f32 %v7715, %v8486
  %v8727 = vadd.f32 %v7716, %v8491
  %v8728 = vadd.f32 %v7717, %v8494
  %v8729 = vadd.f32 %v7718, %v8499
  %v8730 = vadd.f32 %v7719, %v8502
  %v8731 = vadd.f32 %v7720, %v8507
  %v8732 = vadd.f32 %v7721, %v8510
  %v8733 = vadd.f32 %v7722, %v8515
  %v8734 = vadd.f32 %v7723, %v8518
  %v8735 = vadd.f32 %v7724, %v8523
  %v8736 = vadd.f32 %v7725, %v8526
  %v8737 = vadd.f32 %v7726, %v8531
  %v8738 = vadd.f32 %v7727, %v8534
  %v8739 = vadd.f32 %v7728, %v8539
  %v8740 = vadd.f32 %v7729, %v8542
  %v8741 = vadd.f32 %v7730, %v8547
  %v8742 = vadd.f32 %v7731, %v8550
  %v8743 = vadd.f32 %v7732, %v8555
  %v8744 = vadd.f32 %v7733, %v8558
  %v8745 = vadd.f32 %v7734, %v8563
  %v8746 = vadd.f32 %v7735, %v8566
  %v8747 = vadd.f32 %v7736, %v8571
  %v8748 = vadd.f32 %v7737, %v8574
  %v8749 = vadd.f32 %v7738, %v8579
  %v8750 = vadd.f32 %v7739, %v8582
  %v8751 = vadd.f32 %v7740, %v8587
  %v8752 = vadd.f32 %v7741, %v8590
  %v8753 = vadd.f32 %v7742, %v8595
  %v8754 = vadd.f32 %v7743, %v8598
  %v8755 = vadd.f32 %v7744, %v8603
  %v8756 = vadd.f32 %v7745, %v8606
  %v8757 = vadd.f32 %v7746, %v8611
  %v8758 = vadd.f32 %v7747, %v8614
  %v8759 = vadd.f32 %v7748, %v8619
  %v8760 = vadd.f32 %v7749, %v8622
  %v8761 = vadd.f32 %v7750, %v8627
  %v8762 = vadd.f32 %v7751, %v8630
  %v8763 = vadd.f32 %v7752, %v8635
  %v8764 = vadd.f32 %v7753, %v8638
  %v8765 = vadd.f32 %v7754, %v8643
  %v8766 = vadd.f32 %v7755, %v8646
  %v8767 = vadd.f32 %v7756, %v8651
  %v8768 = vadd.f32 %v7757, %v8654
  %v8769 = vadd.f32 %v7758, %v8659
  %v8770 = vadd.f32 %v7759, %v8662
  %v8771 = vadd.f32 %v7760, %v8667
  %v8772 = vadd.f32 %v7761, %v8670
  %v8773 = vadd.f32 %v7762, %v8675
  %v8774 = vadd.f32 %v7763, %v8678
  %v8775 = vadd.f32 %v7764, %v8683
  %v8776 = vadd.f32 %v7765, %v8686
  %8777 = vst [vmem:[#allocation3] sm:$0xff] %v8689
  %8778 = vst [vmem:[#allocation3 + $0x8] sm:$0xff] %v8690
  %8779 = vst [vmem:[#allocation3 + $0x10] sm:$0xff] %v8691
  %8780 = vst [vmem:[#allocation3 + $0x18] sm:$0xff] %v8692
  %8781 = vst [vmem:[#allocation3 + $0x20] sm:$0xff] %v8693
  %8782 = vst [vmem:[#allocation3 + $0x28] sm:$0xff] %v8694
  %8783 = vst [vmem:[#allocation3 + $0x30] sm:$0xff] %v8695
  %8784 = vst [vmem:[#allocation3 + $0x38] sm:$0xff] %v8696
  %8785 = vst [vmem:[#allocation3 + $0x40] sm:$0xff] %v8697
  %8786 = vst [vmem:[#allocation3 + $0x48] sm:$0xff] %v8698
  %8787 = vst [vmem:[#allocation3 + $0x50] sm:$0xff] %v8699
  %8788 = vst [vmem:[#allocation3 + $0x58] sm:$0xff] %v8700
  %8789 = vst [vmem:[#allocation3 + $0x60] sm:$0xff] %v8701
  %8790 = vst [vmem:[#allocation3 + $0x68] sm:$0xff] %v8702
  %8791 = vst [vmem:[#allocation3 + $0x70] sm:$0xff] %v8703
  %8792 = vst [vmem:[#allocation3 + $0x78] sm:$0xff] %v8704
  %8793 = vst [vmem:[#allocation3 + $0x80] sm:$0xff] %v8705
  %8794 = vst [vmem:[#allocation3 + $0x88] sm:$0xff] %v8706
  %8795 = vst [vmem:[#allocation3 + $0x90] sm:$0xff] %v8707
  %8796 = vst [vmem:[#allocation3 + $0x98] sm:$0xff] %v8708
  %8797 = vst [vmem:[#allocation3 + $0xa0] sm:$0xff] %v8709
  %8798 = vst [vmem:[#allocation3 + $0xa8] sm:$0xff] %v8710
  %8799 = vst [vmem:[#allocation3 + $0xb0] sm:$0xff] %v8711
  %8800 = vst [vmem:[#allocation3 + $0xb8] sm:$0xff] %v8712
  %8801 = vst [vmem:[#allocation3 + $0xc0] sm:$0xff] %v8713
  %8802 = vst [vmem:[#allocation3 + $0xc8] sm:$0xff] %v8714
  %8803 = vst [vmem:[#allocation3 + $0xd0] sm:$0xff] %v8715
  %8804 = vst [vmem:[#allocation3 + $0xd8] sm:$0xff] %v8716
  %8805 = vst [vmem:[#allocation3 + $0xe0] sm:$0xff] %v8717
  %8806 = vst [vmem:[#allocation3 + $0xe8] sm:$0xff] %v8718
  %8807 = vst [vmem:[#allocation3 + $0xf0] sm:$0xff] %v8719
  %8808 = vst [vmem:[#allocation3 + $0xf8] sm:$0xff] %v8720
  %8809 = vst [vmem:[#allocation3 + $0x100] sm:$0xff] %v8721
  %8810 = vst [vmem:[#allocation3 + $0x108] sm:$0xff] %v8722
  %8811 = vst [vmem:[#allocation3 + $0x110] sm:$0xff] %v8723
  %8812 = vst [vmem:[#allocation3 + $0x118] sm:$0xff] %v8724
  %8813 = vst [vmem:[#allocation3 + $0x120] sm:$0xff] %v8725
  %8814 = vst [vmem:[#allocation3 + $0x128] sm:$0xff] %v8726
  %8815 = vst [vmem:[#allocation3 + $0x130] sm:$0xff] %v8727
  %8816 = vst [vmem:[#allocation3 + $0x138] sm:$0xff] %v8728
  %8817 = vst [vmem:[#allocation3 + $0x140] sm:$0xff] %v8729
  %8818 = vst [vmem:[#allocation3 + $0x148] sm:$0xff] %v8730
  %8819 = vst [vmem:[#allocation3 + $0x150] sm:$0xff] %v8731
  %8820 = vst [vmem:[#allocation3 + $0x158] sm:$0xff] %v8732
  %8821 = vst [vmem:[#allocation3 + $0x160] sm:$0xff] %v8733
  %8822 = vst [vmem:[#allocation3 + $0x168] sm:$0xff] %v8734
  %8823 = vst [vmem:[#allocation3 + $0x170] sm:$0xff] %v8735
  %8824 = vst [vmem:[#allocation3 + $0x178] sm:$0xff] %v8736
  %8825 = vst [vmem:[#allocation3 + $0x180] sm:$0xff] %v8737
  %8826 = vst [vmem:[#allocation3 + $0x188] sm:$0xff] %v8738
  %8827 = vst [vmem:[#allocation3 + $0x190] sm:$0xff] %v8739
  %8828 = vst [vmem:[#allocation3 + $0x198] sm:$0xff] %v8740
  %8829 = vst [vmem:[#allocation3 + $0x1a0] sm:$0xff] %v8741
  %8830 = vst [vmem:[#allocation3 + $0x1a8] sm:$0xff] %v8742
  %8831 = vst [vmem:[#allocation3 + $0x1b0] sm:$0xff] %v8743
  %8832 = vst [vmem:[#allocation3 + $0x1b8] sm:$0xff] %v8744
  %8833 = vst [vmem:[#allocation3 + $0x1c0] sm:$0xff] %v8745
  %8834 = vst [vmem:[#allocation3 + $0x1c8] sm:$0xff] %v8746
  %8835 = vst [vmem:[#allocation3 + $0x1d0] sm:$0xff] %v8747
  %8836 = vst [vmem:[#allocation3 + $0x1d8] sm:$0xff] %v8748
  %8837 = vst [vmem:[#allocation3 + $0x1e0] sm:$0xff] %v8749
  %8838 = vst [vmem:[#allocation3 + $0x1e8] sm:$0xff] %v8750
  %8839 = vst [vmem:[#allocation3 + $0x1f0] sm:$0xff] %v8751
  %8840 = vst [vmem:[#allocation3 + $0x1f8] sm:$0xff] %v8752
  %8841 = vst [vmem:[#allocation3 + $0x200] sm:$0xff] %v8753
  %8842 = vst [vmem:[#allocation3 + $0x208] sm:$0xff] %v8754
  %8843 = vst [vmem:[#allocation3 + $0x210] sm:$0xff] %v8755
  %8844 = vst [vmem:[#allocation3 + $0x218] sm:$0xff] %v8756
  %8845 = vst [vmem:[#allocation3 + $0x220] sm:$0xff] %v8757
  %8846 = vst [vmem:[#allocation3 + $0x228] sm:$0xff] %v8758
  %8847 = vst [vmem:[#allocation3 + $0x230] sm:$0xff] %v8759
  %8848 = vst [vmem:[#allocation3 + $0x238] sm:$0xff] %v8760
  %8849 = vst [vmem:[#allocation3 + $0x240] sm:$0xff] %v8761
  %8850 = vst [vmem:[#allocation3 + $0x248] sm:$0xff] %v8762
  %8851 = vst [vmem:[#allocation3 + $0x250] sm:$0xff] %v8763
  %8852 = vst [vmem:[#allocation3 + $0x258] sm:$0xff] %v8764
  %8853 = vst [vmem:[#allocation3 + $0x260] sm:$0xff] %v8765
  %8854 = vst [vmem:[#allocation3 + $0x268] sm:$0xff] %v8766
  %8855 = vst [vmem:[#allocation3 + $0x270] sm:$0xff] %v8767
  %8856 = vst [vmem:[#allocation3 + $0x278] sm:$0xff] %v8768
  %8857 = vst [vmem:[#allocation3 + $0x280] sm:$0xff] %v8769
  %8858 = vst [vmem:[#allocation3 + $0x288] sm:$0xff] %v8770
  %8859 = vst [vmem:[#allocation3 + $0x290] sm:$0xff] %v8771
  %8860 = vst [vmem:[#allocation3 + $0x298] sm:$0xff] %v8772
  %8861 = vst [vmem:[#allocation3 + $0x2a0] sm:$0xff] %v8773
  %8862 = vst [vmem:[#allocation3 + $0x2a8] sm:$0xff] %v8774
  %8863 = vst [vmem:[#allocation3 + $0x2b0] sm:$0xff] %v8775
  %8864 = vst [vmem:[#allocation3 + $0x2b8] sm:$0xff] %v8776
  %v8865 = vld [vmem:[#allocation3] sm:$0xff]
  %v8866 = vld [vmem:[#allocation3 + $0x8] sm:$0xff]
  %v8867 = vld [vmem:[#allocation3 + $0x10] sm:$0xff]
  %v8868 = vld [vmem:[#allocation3 + $0x18] sm:$0xff]
  %v8869 = vld [vmem:[#allocation3 + $0x20] sm:$0xff]
  %v8870 = vld [vmem:[#allocation3 + $0x28] sm:$0xff]
  %v8871 = vld [vmem:[#allocation3 + $0x30] sm:$0xff]
  %v8872 = vld [vmem:[#allocation3 + $0x38] sm:$0xff]
  %v8873 = vld [vmem:[#allocation3 + $0x40] sm:$0xff]
  %v8874 = vld [vmem:[#allocation3 + $0x48] sm:$0xff]
  %v8875 = vld [vmem:[#allocation3 + $0x50] sm:$0xff]
  %v8876 = vld [vmem:[#allocation3 + $0x58] sm:$0xff]
  %v8877 = vld [vmem:[#allocation3 + $0x60] sm:$0xff]
  %v8878 = vld [vmem:[#allocation3 + $0x68] sm:$0xff]
  %v8879 = vld [vmem:[#allocation3 + $0x70] sm:$0xff]
  %v8880 = vld [vmem:[#allocation3 + $0x78] sm:$0xff]
  %v8881 = vld [vmem:[#allocation3 + $0x80] sm:$0xff]
  %v8882 = vld [vmem:[#allocation3 + $0x88] sm:$0xff]
  %v8883 = vld [vmem:[#allocation3 + $0x90] sm:$0xff]
  %v8884 = vld [vmem:[#allocation3 + $0x98] sm:$0xff]
  %v8885 = vld [vmem:[#allocation3 + $0xa0] sm:$0xff]
  %v8886 = vld [vmem:[#allocation3 + $0xa8] sm:$0xff]
  %v8887 = vld [vmem:[#allocation3 + $0xb0] sm:$0xff]
  %v8888 = vld [vmem:[#allocation3 + $0xb8] sm:$0xff]
  %v8889 = vld [vmem:[#allocation3 + $0xc0] sm:$0xff]
  %v8890 = vld [vmem:[#allocation3 + $0xc8] sm:$0xff]
  %v8891 = vld [vmem:[#allocation3 + $0xd0] sm:$0xff]
  %v8892 = vld [vmem:[#allocation3 + $0xd8] sm:$0xff]
  %v8893 = vld [vmem:[#allocation3 + $0xe0] sm:$0xff]
  %v8894 = vld [vmem:[#allocation3 + $0xe8] sm:$0xff]
  %v8895 = vld [vmem:[#allocation3 + $0xf0] sm:$0xff]
  %v8896 = vld [vmem:[#allocation3 + $0xf8] sm:$0xff]
  %v8897 = vld [vmem:[#allocation3 + $0x100] sm:$0xff]
  %v8898 = vld [vmem:[#allocation3 + $0x108] sm:$0xff]
  %v8899 = vld [vmem:[#allocation3 + $0x110] sm:$0xff]
  %v8900 = vld [vmem:[#allocation3 + $0x118] sm:$0xff]
  %v8901 = vld [vmem:[#allocation3 + $0x120] sm:$0xff]
  %v8902 = vld [vmem:[#allocation3 + $0x128] sm:$0xff]
  %v8903 = vld [vmem:[#allocation3 + $0x130] sm:$0xff]
  %v8904 = vld [vmem:[#allocation3 + $0x138] sm:$0xff]
  %v8905 = vld [vmem:[#allocation3 + $0x140] sm:$0xff]
  %v8906 = vld [vmem:[#allocation3 + $0x148] sm:$0xff]
  %v8907 = vld [vmem:[#allocation3 + $0x150] sm:$0xff]
  %v8908 = vld [vmem:[#allocation3 + $0x158] sm:$0xff]
  %v8909 = vld [vmem:[#allocation3 + $0x160] sm:$0xff]
  %v8910 = vld [vmem:[#allocation3 + $0x168] sm:$0xff]
  %v8911 = vld [vmem:[#allocation3 + $0x170] sm:$0xff]
  %v8912 = vld [vmem:[#allocation3 + $0x178] sm:$0xff]
  %v8913 = vld [vmem:[#allocation3 + $0x180] sm:$0xff]
  %v8914 = vld [vmem:[#allocation3 + $0x188] sm:$0xff]
  %v8915 = vld [vmem:[#allocation3 + $0x190] sm:$0xff]
  %v8916 = vld [vmem:[#allocation3 + $0x198] sm:$0xff]
  %v8917 = vld [vmem:[#allocation3 + $0x1a0] sm:$0xff]
  %v8918 = vld [vmem:[#allocation3 + $0x1a8] sm:$0xff]
  %v8919 = vld [vmem:[#allocation3 + $0x1b0] sm:$0xff]
  %v8920 = vld [vmem:[#allocation3 + $0x1b8] sm:$0xff]
  %v8921 = vld [vmem:[#allocation3 + $0x1c0] sm:$0xff]
  %v8922 = vld [vmem:[#allocation3 + $0x1c8] sm:$0xff]
  %v8923 = vld [vmem:[#allocation3 + $0x1d0] sm:$0xff]
  %v8924 = vld [vmem:[#allocation3 + $0x1d8] sm:$0xff]
  %v8925 = vld [vmem:[#allocation3 + $0x1e0] sm:$0xff]
  %v8926 = vld [vmem:[#allocation3 + $0x1e8] sm:$0xff]
  %v8927 = vld [vmem:[#allocation3 + $0x1f0] sm:$0xff]
  %v8928 = vld [vmem:[#allocation3 + $0x1f8] sm:$0xff]
  %v8929 = vld [vmem:[#allocation3 + $0x200] sm:$0xff]
  %v8930 = vld [vmem:[#allocation3 + $0x208] sm:$0xff]
  %v8931 = vld [vmem:[#allocation3 + $0x210] sm:$0xff]
  %v8932 = vld [vmem:[#allocation3 + $0x218] sm:$0xff]
  %v8933 = vld [vmem:[#allocation3 + $0x220] sm:$0xff]
  %v8934 = vld [vmem:[#allocation3 + $0x228] sm:$0xff]
  %v8935 = vld [vmem:[#allocation3 + $0x230] sm:$0xff]
  %v8936 = vld [vmem:[#allocation3 + $0x238] sm:$0xff]
  %v8937 = vld [vmem:[#allocation3 + $0x240] sm:$0xff]
  %v8938 = vld [vmem:[#allocation3 + $0x248] sm:$0xff]
  %v8939 = vld [vmem:[#allocation3 + $0x250] sm:$0xff]
  %v8940 = vld [vmem:[#allocation3 + $0x258] sm:$0xff]
  %v8941 = vld [vmem:[#allocation3 + $0x260] sm:$0xff]
  %v8942 = vld [vmem:[#allocation3 + $0x268] sm:$0xff]
  %v8943 = vld [vmem:[#allocation3 + $0x270] sm:$0xff]
  %v8944 = vld [vmem:[#allocation3 + $0x278] sm:$0xff]
  %v8945 = vld [vmem:[#allocation3 + $0x280] sm:$0xff]
  %v8946 = vld [vmem:[#allocation3 + $0x288] sm:$0xff]
  %v8947 = vld [vmem:[#allocation3 + $0x290] sm:$0xff]
  %v8948 = vld [vmem:[#allocation3 + $0x298] sm:$0xff]
  %v8949 = vld [vmem:[#allocation3 + $0x2a0] sm:$0xff]
  %v8950 = vld [vmem:[#allocation3 + $0x2a8] sm:$0xff]
  %v8951 = vld [vmem:[#allocation3 + $0x2b0] sm:$0xff]
  %v8952 = vld [vmem:[#allocation3 + $0x2b8] sm:$0xff]
  %v8953 = vld [vmem:[#allocation2 + $0x10] sm:$0xc]
  %v8954 = vld [vmem:[#allocation2 + $0x14] sm:$0xf]
  %v8955 = vld [vmem:[#allocation2 + $0x18] sm:$0xf]
  %v8956 = vld [vmem:[#allocation2 + $0x1c] sm:$0xf]
  %v8957 = vld [vmem:[#allocation2 + $0x20] sm:$0xf]
  %v8958 = vld [vmem:[#allocation2 + $0x24] sm:$0xf]
  %v8959 = vld [vmem:[#allocation2 + $0x28] sm:$0xf]
  %v8960 = vld [vmem:[#allocation2 + $0x2c] sm:$0xf]
  %v8961 = vld [vmem:[#allocation2 + $0x30] sm:$0xf]
  %v8962 = vld [vmem:[#allocation2 + $0x34] sm:$0xf]
  %v8963 = vld [vmem:[#allocation2 + $0x38] sm:$0xf]
  %v8964 = vld [vmem:[#allocation2 + $0x3c] sm:$0xf]
  %v8965 = vld [vmem:[#allocation2 + $0x40] sm:$0xf]
  %v8966 = vld [vmem:[#allocation2 + $0x44] sm:$0xf]
  %v8967 = vld [vmem:[#allocation2 + $0x48] sm:$0xf]
  %v8968 = vld [vmem:[#allocation2 + $0x4c] sm:$0xf]
  %v8969 = vld [vmem:[#allocation2 + $0x50] sm:$0xf]
  %v8970 = vld [vmem:[#allocation2 + $0x54] sm:$0xf]
  %v8971 = vld [vmem:[#allocation2 + $0x58] sm:$0xf]
  %v8972 = vld [vmem:[#allocation2 + $0x5c] sm:$0xf]
  %v8973 = vld [vmem:[#allocation2 + $0x60] sm:$0xf]
  %v8974 = vld [vmem:[#allocation2 + $0x64] sm:$0xf]
  %v8975 = vld [vmem:[#allocation2 + $0x68] sm:$0xf]
  %v8976 = vld [vmem:[#allocation2 + $0x6c] sm:$0xf]
  %v8977 = vld [vmem:[#allocation2 + $0x70] sm:$0xf]
  %v8978 = vld [vmem:[#allocation2 + $0x74] sm:$0xf]
  %v8979 = vld [vmem:[#allocation2 + $0x78] sm:$0xf]
  %v8980 = vld [vmem:[#allocation2 + $0x7c] sm:$0xf]
  %v8981 = vld [vmem:[#allocation2 + $0x80] sm:$0xf]
  %v8982 = vld [vmem:[#allocation2 + $0x84] sm:$0xf]
  %v8983 = vld [vmem:[#allocation2 + $0x88] sm:$0xf]
  %v8984 = vld [vmem:[#allocation2 + $0x8c] sm:$0xf]
  %v8985 = vld [vmem:[#allocation2 + $0x90] sm:$0xf]
  %v8986 = vld [vmem:[#allocation2 + $0x94] sm:$0xf]
  %v8987 = vld [vmem:[#allocation2 + $0x98] sm:$0xf]
  %v8988 = vld [vmem:[#allocation2 + $0x9c] sm:$0xf]
  %v8989 = vld [vmem:[#allocation2 + $0xa0] sm:$0xf]
  %v8990 = vld [vmem:[#allocation2 + $0xa4] sm:$0xf]
  %v8991 = vld [vmem:[#allocation2 + $0xa8] sm:$0xf]
  %v8992 = vld [vmem:[#allocation2 + $0xac] sm:$0xf]
  %v8993 = vld [vmem:[#allocation2 + $0xb0] sm:$0xf]
  %v8994 = vld [vmem:[#allocation2 + $0xb4] sm:$0xf]
  %v8995 = vld [vmem:[#allocation2 + $0xb8] sm:$0xf]
  %v8996 = vld [vmem:[#allocation2 + $0xbc] sm:$0xf]
  %v8997 = vld [vmem:[#allocation2 + $0xc0] sm:$0xf]
  %v8998 = vld [vmem:[#allocation2 + $0xc4] sm:$0xf]
  %v8999 = vld [vmem:[#allocation2 + $0xc8] sm:$0xf]
  %v9000 = vld [vmem:[#allocation2 + $0xcc] sm:$0xf]
  %v9001 = vld [vmem:[#allocation2 + $0xd0] sm:$0xf]
  %v9002 = vld [vmem:[#allocation2 + $0xd4] sm:$0xf]
  %v9003 = vld [vmem:[#allocation2 + $0xd8] sm:$0xf]
  %v9004 = vld [vmem:[#allocation2 + $0xdc] sm:$0xf]
  %v9005 = vld [vmem:[#allocation2 + $0xe0] sm:$0xf]
  %v9006 = vld [vmem:[#allocation2 + $0xe4] sm:$0xf]
  %v9007 = vld [vmem:[#allocation2 + $0xe8] sm:$0xf]
  %v9008 = vld [vmem:[#allocation2 + $0xec] sm:$0xf]
  %v9009 = vld [vmem:[#allocation2 + $0xf0] sm:$0xf]
  %v9010 = vld [vmem:[#allocation2 + $0xf4] sm:$0xf]
  %v9011 = vld [vmem:[#allocation2 + $0xf8] sm:$0xf]
  %v9012 = vld [vmem:[#allocation2 + $0xfc] sm:$0xf]
  %v9013 = vld [vmem:[#allocation2 + $0x100] sm:$0xf]
  %v9014 = vld [vmem:[#allocation2 + $0x104] sm:$0xf]
  %v9015 = vld [vmem:[#allocation2 + $0x108] sm:$0xf]
  %v9016 = vld [vmem:[#allocation2 + $0x10c] sm:$0xf]
  %v9017 = vld [vmem:[#allocation2 + $0x110] sm:$0xf]
  %v9018 = vld [vmem:[#allocation2 + $0x114] sm:$0xf]
  %v9019 = vld [vmem:[#allocation2 + $0x118] sm:$0xf]
  %v9020 = vld [vmem:[#allocation2 + $0x11c] sm:$0xf]
  %v9021 = vld [vmem:[#allocation2 + $0x120] sm:$0xf]
  %v9022 = vld [vmem:[#allocation2 + $0x124] sm:$0xf]
  %v9023 = vld [vmem:[#allocation2 + $0x128] sm:$0xf]
  %v9024 = vld [vmem:[#allocation2 + $0x12c] sm:$0xf]
  %v9025 = vld [vmem:[#allocation2 + $0x130] sm:$0xf]
  %v9026 = vld [vmem:[#allocation2 + $0x134] sm:$0xf]
  %v9027 = vld [vmem:[#allocation2 + $0x138] sm:$0xf]
  %v9028 = vld [vmem:[#allocation2 + $0x13c] sm:$0xf]
  %v9029 = vld [vmem:[#allocation2 + $0x140] sm:$0xf]
  %v9030 = vld [vmem:[#allocation2 + $0x144] sm:$0xf]
  %v9031 = vld [vmem:[#allocation2 + $0x148] sm:$0xf]
  %v9032 = vld [vmem:[#allocation2 + $0x14c] sm:$0xf]
  %v9033 = vld [vmem:[#allocation2 + $0x150] sm:$0xf]
  %v9034 = vld [vmem:[#allocation2 + $0x154] sm:$0xf]
  %v9035 = vld [vmem:[#allocation2 + $0x158] sm:$0xf]
  %v9036 = vld [vmem:[#allocation2 + $0x15c] sm:$0xf]
  %v9037 = vld [vmem:[#allocation2 + $0x160] sm:$0xf]
  %v9038 = vld [vmem:[#allocation2 + $0x164] sm:$0xf]
  %v9039 = vld [vmem:[#allocation2 + $0x168] sm:$0xf]
  %v9040 = vld [vmem:[#allocation2 + $0x16c] sm:$0xf]
  %v9041 = vld [vmem:[#allocation2 + $0x170] sm:$0x7]
  %s9042 = scalar_lea.vmem %s2, 28
  %v9043 = vld [vmem:[%s9042] sm:$0xf]
  %v9133 = vunpack.c.l.b16 %v8953
  %v9134 = vunpack.c.l.b16 %v8954
  %v9135 = vunpack.c.l.b16 %v8955
  %v9136 = vunpack.c.l.b16 %v8956
  %v9137 = vunpack.c.l.b16 %v8957
  %v9138 = vunpack.c.l.b16 %v8958
  %v9139 = vunpack.c.l.b16 %v8959
  %v9140 = vunpack.c.l.b16 %v8960
  %v9141 = vunpack.c.l.b16 %v8961
  %v9142 = vunpack.c.l.b16 %v8962
  %v9143 = vunpack.c.l.b16 %v8963
  %v9144 = vunpack.c.l.b16 %v8964
  %v9145 = vunpack.c.l.b16 %v8965
  %v9146 = vunpack.c.l.b16 %v8966
  %v9147 = vunpack.c.l.b16 %v8967
  %v9148 = vunpack.c.l.b16 %v8968
  %v9149 = vunpack.c.l.b16 %v8969
  %v9150 = vunpack.c.l.b16 %v8970
  %v9151 = vunpack.c.l.b16 %v8971
  %v9152 = vunpack.c.l.b16 %v8972
  %v9153 = vunpack.c.l.b16 %v8973
  %v9154 = vunpack.c.l.b16 %v8974
  %v9155 = vunpack.c.l.b16 %v8975
  %v9156 = vunpack.c.l.b16 %v8976
  %v9157 = vunpack.c.l.b16 %v8977
  %v9158 = vunpack.c.l.b16 %v8978
  %v9159 = vunpack.c.l.b16 %v8979
  %v9160 = vunpack.c.l.b16 %v8980
  %v9161 = vunpack.c.l.b16 %v8981
  %v9162 = vunpack.c.l.b16 %v8982
  %v9163 = vunpack.c.l.b16 %v8983
  %v9164 = vunpack.c.l.b16 %v8984
  %v9165 = vunpack.c.l.b16 %v8985
  %v9166 = vunpack.c.l.b16 %v8986
  %v9167 = vunpack.c.l.b16 %v8987
  %v9168 = vunpack.c.l.b16 %v8988
  %v9169 = vunpack.c.l.b16 %v8989
  %v9170 = vunpack.c.l.b16 %v8990
  %v9171 = vunpack.c.l.b16 %v8991
  %v9172 = vunpack.c.l.b16 %v8992
  %v9173 = vunpack.c.l.b16 %v8993
  %v9174 = vunpack.c.l.b16 %v8994
  %v9175 = vunpack.c.l.b16 %v8995
  %v9176 = vunpack.c.l.b16 %v8996
  %v9177 = vunpack.c.l.b16 %v8997
  %v9178 = vunpack.c.l.b16 %v8998
  %v9179 = vunpack.c.l.b16 %v8999
  %v9180 = vunpack.c.l.b16 %v9000
  %v9181 = vunpack.c.l.b16 %v9001
  %v9182 = vunpack.c.l.b16 %v9002
  %v9183 = vunpack.c.l.b16 %v9003
  %v9184 = vunpack.c.l.b16 %v9004
  %v9185 = vunpack.c.l.b16 %v9005
  %v9186 = vunpack.c.l.b16 %v9006
  %v9187 = vunpack.c.l.b16 %v9007
  %v9188 = vunpack.c.l.b16 %v9008
  %v9189 = vunpack.c.l.b16 %v9009
  %v9190 = vunpack.c.l.b16 %v9010
  %v9191 = vunpack.c.l.b16 %v9011
  %v9192 = vunpack.c.l.b16 %v9012
  %v9193 = vunpack.c.l.b16 %v9013
  %v9194 = vunpack.c.l.b16 %v9014
  %v9195 = vunpack.c.l.b16 %v9015
  %v9196 = vunpack.c.l.b16 %v9016
  %v9197 = vunpack.c.l.b16 %v9017
  %v9198 = vunpack.c.l.b16 %v9018
  %v9199 = vunpack.c.l.b16 %v9019
  %v9200 = vunpack.c.l.b16 %v9020
  %v9201 = vunpack.c.l.b16 %v9021
  %v9202 = vunpack.c.l.b16 %v9022
  %v9203 = vunpack.c.l.b16 %v9023
  %v9204 = vunpack.c.l.b16 %v9024
  %v9205 = vunpack.c.l.b16 %v9025
  %v9206 = vunpack.c.l.b16 %v9026
  %v9207 = vunpack.c.l.b16 %v9027
  %v9208 = vunpack.c.l.b16 %v9028
  %v9209 = vunpack.c.l.b16 %v9029
  %v9210 = vunpack.c.l.b16 %v9030
  %v9211 = vunpack.c.l.b16 %v9031
  %v9212 = vunpack.c.l.b16 %v9032
  %v9213 = vunpack.c.l.b16 %v9033
  %v9214 = vunpack.c.l.b16 %v9034
  %v9215 = vunpack.c.l.b16 %v9035
  %v9216 = vunpack.c.l.b16 %v9036
  %v9217 = vunpack.c.l.b16 %v9037
  %v9218 = vunpack.c.l.b16 %v9038
  %v9219 = vunpack.c.l.b16 %v9039
  %v9220 = vunpack.c.l.b16 %v9040
  %v9221 = vunpack.c.l.b16 %v9041
  %v9222 = vpack.c.b16 %v9134, %v9133
  %v9223 = vpack.c.b16 %v9136, %v9135
  %v9224 = vpack.c.b16 %v9138, %v9137
  %v9225 = vpack.c.b16 %v9140, %v9139
  %v9226 = vpack.c.b16 %v9142, %v9141
  %v9227 = vpack.c.b16 %v9144, %v9143
  %v9228 = vpack.c.b16 %v9146, %v9145
  %v9229 = vpack.c.b16 %v9148, %v9147
  %v9230 = vpack.c.b16 %v9150, %v9149
  %v9231 = vpack.c.b16 %v9152, %v9151
  %v9232 = vpack.c.b16 %v9154, %v9153
  %v9233 = vpack.c.b16 %v9156, %v9155
  %v9234 = vpack.c.b16 %v9158, %v9157
  %v9235 = vpack.c.b16 %v9160, %v9159
  %v9236 = vpack.c.b16 %v9162, %v9161
  %v9237 = vpack.c.b16 %v9164, %v9163
  %v9238 = vpack.c.b16 %v9166, %v9165
  %v9239 = vpack.c.b16 %v9168, %v9167
  %v9240 = vpack.c.b16 %v9170, %v9169
  %v9241 = vpack.c.b16 %v9172, %v9171
  %v9242 = vpack.c.b16 %v9174, %v9173
  %v9243 = vpack.c.b16 %v9176, %v9175
  %v9244 = vpack.c.b16 %v9178, %v9177
  %v9245 = vpack.c.b16 %v9180, %v9179
  %v9246 = vpack.c.b16 %v9182, %v9181
  %v9247 = vpack.c.b16 %v9184, %v9183
  %v9248 = vpack.c.b16 %v9186, %v9185
  %v9249 = vpack.c.b16 %v9188, %v9187
  %v9250 = vpack.c.b16 %v9190, %v9189
  %v9251 = vpack.c.b16 %v9192, %v9191
  %v9252 = vpack.c.b16 %v9194, %v9193
  %v9253 = vpack.c.b16 %v9196, %v9195
  %v9254 = vpack.c.b16 %v9198, %v9197
  %v9255 = vpack.c.b16 %v9200, %v9199
  %v9256 = vpack.c.b16 %v9202, %v9201
  %v9257 = vpack.c.b16 %v9204, %v9203
  %v9258 = vpack.c.b16 %v9206, %v9205
  %v9259 = vpack.c.b16 %v9208, %v9207
  %v9260 = vpack.c.b16 %v9210, %v9209
  %v9261 = vpack.c.b16 %v9212, %v9211
  %v9262 = vpack.c.b16 %v9214, %v9213
  %v9263 = vpack.c.b16 %v9216, %v9215
  %v9264 = vpack.c.b16 %v9218, %v9217
  %v9265 = vpack.c.b16 %v9220, %v9219
  %v9266 = vpack.c.b16 %v9221, %v9221
  %vm9267 = vsmask.f32 5376
  %v9269 = vshrl.u32 %v9222, 16
  %v9271 = vrot.slane %v9269, 2
  %v9272 = vshll.u32 %v9222, 16
  %v9274 = vrot.slane %v9272, 3
  %v9275 = vor.u32 %v9271, %v9274
  %v9277 = vshrl.u32 %v9223, 16
  %v9279 = vrot.slane %v9277, 2
  %v9280 = vshll.u32 %v9223, 16
  %v9282 = vrot.slane %v9280, 3
  %v9283 = vor.u32 %v9279, %v9282
  %v9284 = vsel %vm9267, %v9275, %v9283
  %v9286 = vshrl.u32 %v9224, 16
  %v9288 = vrot.slane %v9286, 2
  %v9289 = vshll.u32 %v9224, 16
  %v9291 = vrot.slane %v9289, 3
  %v9292 = vor.u32 %v9288, %v9291
  %v9293 = vsel %vm9267, %v9283, %v9292
  %v9295 = vshrl.u32 %v9225, 16
  %v9297 = vrot.slane %v9295, 2
  %v9298 = vshll.u32 %v9225, 16
  %v9300 = vrot.slane %v9298, 3
  %v9301 = vor.u32 %v9297, %v9300
  %v9302 = vsel %vm9267, %v9292, %v9301
  %v9304 = vshrl.u32 %v9226, 16
  %v9306 = vrot.slane %v9304, 2
  %v9307 = vshll.u32 %v9226, 16
  %v9309 = vrot.slane %v9307, 3
  %v9310 = vor.u32 %v9306, %v9309
  %v9311 = vsel %vm9267, %v9301, %v9310
  %v9313 = vshrl.u32 %v9227, 16
  %v9315 = vrot.slane %v9313, 2
  %v9316 = vshll.u32 %v9227, 16
  %v9318 = vrot.slane %v9316, 3
  %v9319 = vor.u32 %v9315, %v9318
  %v9320 = vsel %vm9267, %v9310, %v9319
  %v9322 = vshrl.u32 %v9228, 16
  %v9324 = vrot.slane %v9322, 2
  %v9325 = vshll.u32 %v9228, 16
  %v9327 = vrot.slane %v9325, 3
  %v9328 = vor.u32 %v9324, %v9327
  %v9329 = vsel %vm9267, %v9319, %v9328
  %v9331 = vshrl.u32 %v9229, 16
  %v9333 = vrot.slane %v9331, 2
  %v9334 = vshll.u32 %v9229, 16
  %v9336 = vrot.slane %v9334, 3
  %v9337 = vor.u32 %v9333, %v9336
  %v9338 = vsel %vm9267, %v9328, %v9337
  %v9340 = vshrl.u32 %v9230, 16
  %v9342 = vrot.slane %v9340, 2
  %v9343 = vshll.u32 %v9230, 16
  %v9345 = vrot.slane %v9343, 3
  %v9346 = vor.u32 %v9342, %v9345
  %v9347 = vsel %vm9267, %v9337, %v9346
  %v9349 = vshrl.u32 %v9231, 16
  %v9351 = vrot.slane %v9349, 2
  %v9352 = vshll.u32 %v9231, 16
  %v9354 = vrot.slane %v9352, 3
  %v9355 = vor.u32 %v9351, %v9354
  %v9356 = vsel %vm9267, %v9346, %v9355
  %v9358 = vshrl.u32 %v9232, 16
  %v9360 = vrot.slane %v9358, 2
  %v9361 = vshll.u32 %v9232, 16
  %v9363 = vrot.slane %v9361, 3
  %v9364 = vor.u32 %v9360, %v9363
  %v9365 = vsel %vm9267, %v9355, %v9364
  %v9367 = vshrl.u32 %v9233, 16
  %v9369 = vrot.slane %v9367, 2
  %v9370 = vshll.u32 %v9233, 16
  %v9372 = vrot.slane %v9370, 3
  %v9373 = vor.u32 %v9369, %v9372
  %v9374 = vsel %vm9267, %v9364, %v9373
  %v9376 = vshrl.u32 %v9234, 16
  %v9378 = vrot.slane %v9376, 2
  %v9379 = vshll.u32 %v9234, 16
  %v9381 = vrot.slane %v9379, 3
  %v9382 = vor.u32 %v9378, %v9381
  %v9383 = vsel %vm9267, %v9373, %v9382
  %v9385 = vshrl.u32 %v9235, 16
  %v9387 = vrot.slane %v9385, 2
  %v9388 = vshll.u32 %v9235, 16
  %v9390 = vrot.slane %v9388, 3
  %v9391 = vor.u32 %v9387, %v9390
  %v9392 = vsel %vm9267, %v9382, %v9391
  %v9394 = vshrl.u32 %v9236, 16
  %v9396 = vrot.slane %v9394, 2
  %v9397 = vshll.u32 %v9236, 16
  %v9399 = vrot.slane %v9397, 3
  %v9400 = vor.u32 %v9396, %v9399
  %v9401 = vsel %vm9267, %v9391, %v9400
  %v9403 = vshrl.u32 %v9237, 16
  %v9405 = vrot.slane %v9403, 2
  %v9406 = vshll.u32 %v9237, 16
  %v9408 = vrot.slane %v9406, 3
  %v9409 = vor.u32 %v9405, %v9408
  %v9410 = vsel %vm9267, %v9400, %v9409
  %v9412 = vshrl.u32 %v9238, 16
  %v9414 = vrot.slane %v9412, 2
  %v9415 = vshll.u32 %v9238, 16
  %v9417 = vrot.slane %v9415, 3
  %v9418 = vor.u32 %v9414, %v9417
  %v9419 = vsel %vm9267, %v9409, %v9418
  %v9421 = vshrl.u32 %v9239, 16
  %v9423 = vrot.slane %v9421, 2
  %v9424 = vshll.u32 %v9239, 16
  %v9426 = vrot.slane %v9424, 3
  %v9427 = vor.u32 %v9423, %v9426
  %v9428 = vsel %vm9267, %v9418, %v9427
  %v9430 = vshrl.u32 %v9240, 16
  %v9432 = vrot.slane %v9430, 2
  %v9433 = vshll.u32 %v9240, 16
  %v9435 = vrot.slane %v9433, 3
  %v9436 = vor.u32 %v9432, %v9435
  %v9437 = vsel %vm9267, %v9427, %v9436
  %v9439 = vshrl.u32 %v9241, 16
  %v9441 = vrot.slane %v9439, 2
  %v9442 = vshll.u32 %v9241, 16
  %v9444 = vrot.slane %v9442, 3
  %v9445 = vor.u32 %v9441, %v9444
  %v9446 = vsel %vm9267, %v9436, %v9445
  %v9448 = vshrl.u32 %v9242, 16
  %v9450 = vrot.slane %v9448, 2
  %v9451 = vshll.u32 %v9242, 16
  %v9453 = vrot.slane %v9451, 3
  %v9454 = vor.u32 %v9450, %v9453
  %v9455 = vsel %vm9267, %v9445, %v9454
  %v9457 = vshrl.u32 %v9243, 16
  %v9459 = vrot.slane %v9457, 2
  %v9460 = vshll.u32 %v9243, 16
  %v9462 = vrot.slane %v9460, 3
  %v9463 = vor.u32 %v9459, %v9462
  %v9464 = vsel %vm9267, %v9454, %v9463
  %v9466 = vshrl.u32 %v9244, 16
  %v9468 = vrot.slane %v9466, 2
  %v9469 = vshll.u32 %v9244, 16
  %v9471 = vrot.slane %v9469, 3
  %v9472 = vor.u32 %v9468, %v9471
  %v9473 = vsel %vm9267, %v9463, %v9472
  %v9475 = vshrl.u32 %v9245, 16
  %v9477 = vrot.slane %v9475, 2
  %v9478 = vshll.u32 %v9245, 16
  %v9480 = vrot.slane %v9478, 3
  %v9481 = vor.u32 %v9477, %v9480
  %v9482 = vsel %vm9267, %v9472, %v9481
  %v9484 = vshrl.u32 %v9246, 16
  %v9486 = vrot.slane %v9484, 2
  %v9487 = vshll.u32 %v9246, 16
  %v9489 = vrot.slane %v9487, 3
  %v9490 = vor.u32 %v9486, %v9489
  %v9491 = vsel %vm9267, %v9481, %v9490
  %v9493 = vshrl.u32 %v9247, 16
  %v9495 = vrot.slane %v9493, 2
  %v9496 = vshll.u32 %v9247, 16
  %v9498 = vrot.slane %v9496, 3
  %v9499 = vor.u32 %v9495, %v9498
  %v9500 = vsel %vm9267, %v9490, %v9499
  %v9502 = vshrl.u32 %v9248, 16
  %v9504 = vrot.slane %v9502, 2
  %v9505 = vshll.u32 %v9248, 16
  %v9507 = vrot.slane %v9505, 3
  %v9508 = vor.u32 %v9504, %v9507
  %v9509 = vsel %vm9267, %v9499, %v9508
  %v9511 = vshrl.u32 %v9249, 16
  %v9513 = vrot.slane %v9511, 2
  %v9514 = vshll.u32 %v9249, 16
  %v9516 = vrot.slane %v9514, 3
  %v9517 = vor.u32 %v9513, %v9516
  %v9518 = vsel %vm9267, %v9508, %v9517
  %v9520 = vshrl.u32 %v9250, 16
  %v9522 = vrot.slane %v9520, 2
  %v9523 = vshll.u32 %v9250, 16
  %v9525 = vrot.slane %v9523, 3
  %v9526 = vor.u32 %v9522, %v9525
  %v9527 = vsel %vm9267, %v9517, %v9526
  %v9529 = vshrl.u32 %v9251, 16
  %v9531 = vrot.slane %v9529, 2
  %v9532 = vshll.u32 %v9251, 16
  %v9534 = vrot.slane %v9532, 3
  %v9535 = vor.u32 %v9531, %v9534
  %v9536 = vsel %vm9267, %v9526, %v9535
  %v9538 = vshrl.u32 %v9252, 16
  %v9540 = vrot.slane %v9538, 2
  %v9541 = vshll.u32 %v9252, 16
  %v9543 = vrot.slane %v9541, 3
  %v9544 = vor.u32 %v9540, %v9543
  %v9545 = vsel %vm9267, %v9535, %v9544
  %v9547 = vshrl.u32 %v9253, 16
  %v9549 = vrot.slane %v9547, 2
  %v9550 = vshll.u32 %v9253, 16
  %v9552 = vrot.slane %v9550, 3
  %v9553 = vor.u32 %v9549, %v9552
  %v9554 = vsel %vm9267, %v9544, %v9553
  %v9556 = vshrl.u32 %v9254, 16
  %v9558 = vrot.slane %v9556, 2
  %v9559 = vshll.u32 %v9254, 16
  %v9561 = vrot.slane %v9559, 3
  %v9562 = vor.u32 %v9558, %v9561
  %v9563 = vsel %vm9267, %v9553, %v9562
  %v9565 = vshrl.u32 %v9255, 16
  %v9567 = vrot.slane %v9565, 2
  %v9568 = vshll.u32 %v9255, 16
  %v9570 = vrot.slane %v9568, 3
  %v9571 = vor.u32 %v9567, %v9570
  %v9572 = vsel %vm9267, %v9562, %v9571
  %v9574 = vshrl.u32 %v9256, 16
  %v9576 = vrot.slane %v9574, 2
  %v9577 = vshll.u32 %v9256, 16
  %v9579 = vrot.slane %v9577, 3
  %v9580 = vor.u32 %v9576, %v9579
  %v9581 = vsel %vm9267, %v9571, %v9580
  %v9583 = vshrl.u32 %v9257, 16
  %v9585 = vrot.slane %v9583, 2
  %v9586 = vshll.u32 %v9257, 16
  %v9588 = vrot.slane %v9586, 3
  %v9589 = vor.u32 %v9585, %v9588
  %v9590 = vsel %vm9267, %v9580, %v9589
  %v9592 = vshrl.u32 %v9258, 16
  %v9594 = vrot.slane %v9592, 2
  %v9595 = vshll.u32 %v9258, 16
  %v9597 = vrot.slane %v9595, 3
  %v9598 = vor.u32 %v9594, %v9597
  %v9599 = vsel %vm9267, %v9589, %v9598
  %v9601 = vshrl.u32 %v9259, 16
  %v9603 = vrot.slane %v9601, 2
  %v9604 = vshll.u32 %v9259, 16
  %v9606 = vrot.slane %v9604, 3
  %v9607 = vor.u32 %v9603, %v9606
  %v9608 = vsel %vm9267, %v9598, %v9607
  %v9610 = vshrl.u32 %v9260, 16
  %v9612 = vrot.slane %v9610, 2
  %v9613 = vshll.u32 %v9260, 16
  %v9615 = vrot.slane %v9613, 3
  %v9616 = vor.u32 %v9612, %v9615
  %v9617 = vsel %vm9267, %v9607, %v9616
  %v9619 = vshrl.u32 %v9261, 16
  %v9621 = vrot.slane %v9619, 2
  %v9622 = vshll.u32 %v9261, 16
  %v9624 = vrot.slane %v9622, 3
  %v9625 = vor.u32 %v9621, %v9624
  %v9626 = vsel %vm9267, %v9616, %v9625
  %v9628 = vshrl.u32 %v9262, 16
  %v9630 = vrot.slane %v9628, 2
  %v9631 = vshll.u32 %v9262, 16
  %v9633 = vrot.slane %v9631, 3
  %v9634 = vor.u32 %v9630, %v9633
  %v9635 = vsel %vm9267, %v9625, %v9634
  %v9637 = vshrl.u32 %v9263, 16
  %v9639 = vrot.slane %v9637, 2
  %v9640 = vshll.u32 %v9263, 16
  %v9642 = vrot.slane %v9640, 3
  %v9643 = vor.u32 %v9639, %v9642
  %v9644 = vsel %vm9267, %v9634, %v9643
  %v9646 = vshrl.u32 %v9264, 16
  %v9648 = vrot.slane %v9646, 2
  %v9649 = vshll.u32 %v9264, 16
  %v9651 = vrot.slane %v9649, 3
  %v9652 = vor.u32 %v9648, %v9651
  %v9653 = vsel %vm9267, %v9643, %v9652
  %v9655 = vshrl.u32 %v9265, 16
  %v9657 = vrot.slane %v9655, 2
  %v9658 = vshll.u32 %v9265, 16
  %v9660 = vrot.slane %v9658, 3
  %v9661 = vor.u32 %v9657, %v9660
  %v9662 = vsel %vm9267, %v9652, %v9661
  %v9664 = vshrl.u32 %v9266, 16
  %v9666 = vrot.slane %v9664, 2
  %v9667 = vshll.u32 %v9266, 16
  %v9669 = vrot.slane %v9667, 3
  %v9670 = vor.u32 %v9666, %v9669
  %v9671 = vsel %vm9267, %v9661, %v9670
  %v9673 = vsel %vm547, %v9284, 0
  %v9676 = vsel %vm547, %v9293, 0
  %v9679 = vsel %vm547, %v9302, 0
  %v9682 = vsel %vm547, %v9311, 0
  %v9685 = vsel %vm547, %v9320, 0
  %v9688 = vsel %vm547, %v9329, 0
  %v9691 = vsel %vm547, %v9338, 0
  %v9694 = vsel %vm547, %v9347, 0
  %v9697 = vsel %vm547, %v9356, 0
  %v9700 = vsel %vm547, %v9365, 0
  %v9703 = vsel %vm547, %v9374, 0
  %v9706 = vsel %vm547, %v9383, 0
  %v9709 = vsel %vm547, %v9392, 0
  %v9712 = vsel %vm547, %v9401, 0
  %v9715 = vsel %vm547, %v9410, 0
  %v9718 = vsel %vm547, %v9419, 0
  %v9721 = vsel %vm547, %v9428, 0
  %v9724 = vsel %vm547, %v9437, 0
  %v9727 = vsel %vm547, %v9446, 0
  %v9730 = vsel %vm547, %v9455, 0
  %v9733 = vsel %vm547, %v9464, 0
  %v9736 = vsel %vm547, %v9473, 0
  %v9739 = vsel %vm547, %v9482, 0
  %v9742 = vsel %vm547, %v9491, 0
  %v9745 = vsel %vm547, %v9500, 0
  %v9748 = vsel %vm547, %v9509, 0
  %v9751 = vsel %vm547, %v9518, 0
  %v9754 = vsel %vm547, %v9527, 0
  %v9757 = vsel %vm547, %v9536, 0
  %v9760 = vsel %vm547, %v9545, 0
  %v9763 = vsel %vm547, %v9554, 0
  %v9766 = vsel %vm547, %v9563, 0
  %v9769 = vsel %vm547, %v9572, 0
  %v9772 = vsel %vm547, %v9581, 0
  %v9775 = vsel %vm547, %v9590, 0
  %v9778 = vsel %vm547, %v9599, 0
  %v9781 = vsel %vm547, %v9608, 0
  %v9784 = vsel %vm547, %v9617, 0
  %v9787 = vsel %vm547, %v9626, 0
  %v9790 = vsel %vm547, %v9635, 0
  %v9793 = vsel %vm547, %v9644, 0
  %v9796 = vsel %vm547, %v9653, 0
  %v9799 = vsel %vm547, %v9662, 0
  %v9802 = vsel %vm547, %v9671, 0
  %v9805 = vsel %vm680, %v9043, 0
  %9807 = vmatprep.subr.bf16.mxu0 0
  %9808 = vmatpush1.bf16.msra.mxu0 0
  %9809 = vmatprep.subr.bf16.mxu0 0
  %9810 = vmatpush1.bf16.msra.mxu0 0
  %9811 = vmatprep.subr.bf16.mxu0 0
  %9812 = vmatpush1.bf16.msra.mxu0 0
  %9813 = vmatprep.subr.bf16.mxu0 0
  %9814 = vmatpush1.bf16.msra.mxu0 0
  %9815 = vmatprep.subr.bf16.mxu0 0
  %9816 = vmatpush1.bf16.msra.mxu0 0
  %9817 = vmatprep.subr.bf16.mxu0 0
  %9818 = vmatpush1.bf16.msra.mxu0 0
  %9819 = vmatprep.subr.bf16.mxu0 0
  %9820 = vmatpush1.bf16.msra.mxu0 0
  %9821 = vmatprep.subr.bf16.mxu0 0
  %9822 = vmatpush1.bf16.msra.mxu0 %v9805
  %9823 = vmatprep.subr.bf16.mxu0 0
  %9824 = vmatpush2.bf16.msra.mxu0 0
  %9825 = vmatprep.subr.bf16.mxu0 0
  %9826 = vmatpush2.bf16.msra.mxu0 0
  %9827 = vmatprep.subr.bf16.mxu0 0
  %9828 = vmatpush2.bf16.msra.mxu0 0
  %9829 = vmatprep.subr.bf16.mxu0 0
  %9830 = vmatpush2.bf16.msra.mxu0 0
  %9831 = vmatprep.subr.bf16.mxu0 0
  %9832 = vmatpush2.bf16.msra.mxu0 0
  %9833 = vmatprep.subr.bf16.mxu0 0
  %9834 = vmatpush2.bf16.msra.mxu0 0
  %9835 = vmatprep.subr.bf16.mxu0 0
  %9836 = vmatpush2.bf16.msra.mxu0 0
  %9837 = vmatprep.subr.bf16.mxu0 0
  %9838 = vmatpush2.bf16.msra.mxu0 0
  %9839 = vmatprep.mubr.bf16.mxu0 0
  %9840 = vmatmul.mubr.bf16.gmra.mxu0 %v9673
  %v9841 = vpop.f32.mrf.mxu0
  %v9842 = vadd.f32 0.0, %v9841
  %v9843 = vpop.f32.mrf.mxu0
  %v9844 = vpop.f32.mrf.mxu0
  %v9845 = vadd.f32 0.0, %v9844
  %v9846 = vpop.f32.mrf.mxu0
  %9847 = vmatprep.mubr.bf16.mxu0 0
  %9848 = vmatmul.mubr.bf16.gmra.mxu0 %v9676
  %v9849 = vpop.f32.mrf.mxu0
  %v9850 = vadd.f32 0.0, %v9849
  %v9851 = vpop.f32.mrf.mxu0
  %v9852 = vpop.f32.mrf.mxu0
  %v9853 = vadd.f32 0.0, %v9852
  %v9854 = vpop.f32.mrf.mxu0
  %9855 = vmatprep.mubr.bf16.mxu0 0
  %9856 = vmatmul.mubr.bf16.gmra.mxu0 %v9679
  %v9857 = vpop.f32.mrf.mxu0
  %v9858 = vadd.f32 0.0, %v9857
  %v9859 = vpop.f32.mrf.mxu0
  %v9860 = vpop.f32.mrf.mxu0
  %v9861 = vadd.f32 0.0, %v9860
  %v9862 = vpop.f32.mrf.mxu0
  %9863 = vmatprep.mubr.bf16.mxu0 0
  %9864 = vmatmul.mubr.bf16.gmra.mxu0 %v9682
  %v9865 = vpop.f32.mrf.mxu0
  %v9866 = vadd.f32 0.0, %v9865
  %v9867 = vpop.f32.mrf.mxu0
  %v9868 = vpop.f32.mrf.mxu0
  %v9869 = vadd.f32 0.0, %v9868
  %v9870 = vpop.f32.mrf.mxu0
  %9871 = vmatprep.mubr.bf16.mxu0 0
  %9872 = vmatmul.mubr.bf16.gmra.mxu0 %v9685
  %v9873 = vpop.f32.mrf.mxu0
  %v9874 = vadd.f32 0.0, %v9873
  %v9875 = vpop.f32.mrf.mxu0
  %v9876 = vpop.f32.mrf.mxu0
  %v9877 = vadd.f32 0.0, %v9876
  %v9878 = vpop.f32.mrf.mxu0
  %9879 = vmatprep.mubr.bf16.mxu0 0
  %9880 = vmatmul.mubr.bf16.gmra.mxu0 %v9688
  %v9881 = vpop.f32.mrf.mxu0
  %v9882 = vadd.f32 0.0, %v9881
  %v9883 = vpop.f32.mrf.mxu0
  %v9884 = vpop.f32.mrf.mxu0
  %v9885 = vadd.f32 0.0, %v9884
  %v9886 = vpop.f32.mrf.mxu0
  %9887 = vmatprep.mubr.bf16.mxu0 0
  %9888 = vmatmul.mubr.bf16.gmra.mxu0 %v9691
  %v9889 = vpop.f32.mrf.mxu0
  %v9890 = vadd.f32 0.0, %v9889
  %v9891 = vpop.f32.mrf.mxu0
  %v9892 = vpop.f32.mrf.mxu0
  %v9893 = vadd.f32 0.0, %v9892
  %v9894 = vpop.f32.mrf.mxu0
  %9895 = vmatprep.mubr.bf16.mxu0 0
  %9896 = vmatmul.mubr.bf16.gmra.mxu0 %v9694
  %v9897 = vpop.f32.mrf.mxu0
  %v9898 = vadd.f32 0.0, %v9897
  %v9899 = vpop.f32.mrf.mxu0
  %v9900 = vpop.f32.mrf.mxu0
  %v9901 = vadd.f32 0.0, %v9900
  %v9902 = vpop.f32.mrf.mxu0
  %9903 = vmatprep.mubr.bf16.mxu0 0
  %9904 = vmatmul.mubr.bf16.gmra.mxu0 %v9697
  %v9905 = vpop.f32.mrf.mxu0
  %v9906 = vadd.f32 0.0, %v9905
  %v9907 = vpop.f32.mrf.mxu0
  %v9908 = vpop.f32.mrf.mxu0
  %v9909 = vadd.f32 0.0, %v9908
  %v9910 = vpop.f32.mrf.mxu0
  %9911 = vmatprep.mubr.bf16.mxu0 0
  %9912 = vmatmul.mubr.bf16.gmra.mxu0 %v9700
  %v9913 = vpop.f32.mrf.mxu0
  %v9914 = vadd.f32 0.0, %v9913
  %v9915 = vpop.f32.mrf.mxu0
  %v9916 = vpop.f32.mrf.mxu0
  %v9917 = vadd.f32 0.0, %v9916
  %v9918 = vpop.f32.mrf.mxu0
  %9919 = vmatprep.mubr.bf16.mxu0 0
  %9920 = vmatmul.mubr.bf16.gmra.mxu0 %v9703
  %v9921 = vpop.f32.mrf.mxu0
  %v9922 = vadd.f32 0.0, %v9921
  %v9923 = vpop.f32.mrf.mxu0
  %v9924 = vpop.f32.mrf.mxu0
  %v9925 = vadd.f32 0.0, %v9924
  %v9926 = vpop.f32.mrf.mxu0
  %9927 = vmatprep.mubr.bf16.mxu0 0
  %9928 = vmatmul.mubr.bf16.gmra.mxu0 %v9706
  %v9929 = vpop.f32.mrf.mxu0
  %v9930 = vadd.f32 0.0, %v9929
  %v9931 = vpop.f32.mrf.mxu0
  %v9932 = vpop.f32.mrf.mxu0
  %v9933 = vadd.f32 0.0, %v9932
  %v9934 = vpop.f32.mrf.mxu0
  %9935 = vmatprep.mubr.bf16.mxu0 0
  %9936 = vmatmul.mubr.bf16.gmra.mxu0 %v9709
  %v9937 = vpop.f32.mrf.mxu0
  %v9938 = vadd.f32 0.0, %v9937
  %v9939 = vpop.f32.mrf.mxu0
  %v9940 = vpop.f32.mrf.mxu0
  %v9941 = vadd.f32 0.0, %v9940
  %v9942 = vpop.f32.mrf.mxu0
  %9943 = vmatprep.mubr.bf16.mxu0 0
  %9944 = vmatmul.mubr.bf16.gmra.mxu0 %v9712
  %v9945 = vpop.f32.mrf.mxu0
  %v9946 = vadd.f32 0.0, %v9945
  %v9947 = vpop.f32.mrf.mxu0
  %v9948 = vpop.f32.mrf.mxu0
  %v9949 = vadd.f32 0.0, %v9948
  %v9950 = vpop.f32.mrf.mxu0
  %9951 = vmatprep.mubr.bf16.mxu0 0
  %9952 = vmatmul.mubr.bf16.gmra.mxu0 %v9715
  %v9953 = vpop.f32.mrf.mxu0
  %v9954 = vadd.f32 0.0, %v9953
  %v9955 = vpop.f32.mrf.mxu0
  %v9956 = vpop.f32.mrf.mxu0
  %v9957 = vadd.f32 0.0, %v9956
  %v9958 = vpop.f32.mrf.mxu0
  %9959 = vmatprep.mubr.bf16.mxu0 0
  %9960 = vmatmul.mubr.bf16.gmra.mxu0 %v9718
  %v9961 = vpop.f32.mrf.mxu0
  %v9962 = vadd.f32 0.0, %v9961
  %v9963 = vpop.f32.mrf.mxu0
  %v9964 = vpop.f32.mrf.mxu0
  %v9965 = vadd.f32 0.0, %v9964
  %v9966 = vpop.f32.mrf.mxu0
  %9967 = vmatprep.mubr.bf16.mxu0 0
  %9968 = vmatmul.mubr.bf16.gmra.mxu0 %v9721
  %v9969 = vpop.f32.mrf.mxu0
  %v9970 = vadd.f32 0.0, %v9969
  %v9971 = vpop.f32.mrf.mxu0
  %v9972 = vpop.f32.mrf.mxu0
  %v9973 = vadd.f32 0.0, %v9972
  %v9974 = vpop.f32.mrf.mxu0
  %9975 = vmatprep.mubr.bf16.mxu0 0
  %9976 = vmatmul.mubr.bf16.gmra.mxu0 %v9724
  %v9977 = vpop.f32.mrf.mxu0
  %v9978 = vadd.f32 0.0, %v9977
  %v9979 = vpop.f32.mrf.mxu0
  %v9980 = vpop.f32.mrf.mxu0
  %v9981 = vadd.f32 0.0, %v9980
  %v9982 = vpop.f32.mrf.mxu0
  %9983 = vmatprep.mubr.bf16.mxu0 0
  %9984 = vmatmul.mubr.bf16.gmra.mxu0 %v9727
  %v9985 = vpop.f32.mrf.mxu0
  %v9986 = vadd.f32 0.0, %v9985
  %v9987 = vpop.f32.mrf.mxu0
  %v9988 = vpop.f32.mrf.mxu0
  %v9989 = vadd.f32 0.0, %v9988
  %v9990 = vpop.f32.mrf.mxu0
  %9991 = vmatprep.mubr.bf16.mxu0 0
  %9992 = vmatmul.mubr.bf16.gmra.mxu0 %v9730
  %v9993 = vpop.f32.mrf.mxu0
  %v9994 = vadd.f32 0.0, %v9993
  %v9995 = vpop.f32.mrf.mxu0
  %v9996 = vpop.f32.mrf.mxu0
  %v9997 = vadd.f32 0.0, %v9996
  %v9998 = vpop.f32.mrf.mxu0
  %9999 = vmatprep.mubr.bf16.mxu0 0
  %10000 = vmatmul.mubr.bf16.gmra.mxu0 %v9733
  %v10001 = vpop.f32.mrf.mxu0
  %v10002 = vadd.f32 0.0, %v10001
  %v10003 = vpop.f32.mrf.mxu0
  %v10004 = vpop.f32.mrf.mxu0
  %v10005 = vadd.f32 0.0, %v10004
  %v10006 = vpop.f32.mrf.mxu0
  %10007 = vmatprep.mubr.bf16.mxu0 0
  %10008 = vmatmul.mubr.bf16.gmra.mxu0 %v9736
  %v10009 = vpop.f32.mrf.mxu0
  %v10010 = vadd.f32 0.0, %v10009
  %v10011 = vpop.f32.mrf.mxu0
  %v10012 = vpop.f32.mrf.mxu0
  %v10013 = vadd.f32 0.0, %v10012
  %v10014 = vpop.f32.mrf.mxu0
  %10015 = vmatprep.mubr.bf16.mxu0 0
  %10016 = vmatmul.mubr.bf16.gmra.mxu0 %v9739
  %v10017 = vpop.f32.mrf.mxu0
  %v10018 = vadd.f32 0.0, %v10017
  %v10019 = vpop.f32.mrf.mxu0
  %v10020 = vpop.f32.mrf.mxu0
  %v10021 = vadd.f32 0.0, %v10020
  %v10022 = vpop.f32.mrf.mxu0
  %10023 = vmatprep.mubr.bf16.mxu0 0
  %10024 = vmatmul.mubr.bf16.gmra.mxu0 %v9742
  %v10025 = vpop.f32.mrf.mxu0
  %v10026 = vadd.f32 0.0, %v10025
  %v10027 = vpop.f32.mrf.mxu0
  %v10028 = vpop.f32.mrf.mxu0
  %v10029 = vadd.f32 0.0, %v10028
  %v10030 = vpop.f32.mrf.mxu0
  %10031 = vmatprep.mubr.bf16.mxu0 0
  %10032 = vmatmul.mubr.bf16.gmra.mxu0 %v9745
  %v10033 = vpop.f32.mrf.mxu0
  %v10034 = vadd.f32 0.0, %v10033
  %v10035 = vpop.f32.mrf.mxu0
  %v10036 = vpop.f32.mrf.mxu0
  %v10037 = vadd.f32 0.0, %v10036
  %v10038 = vpop.f32.mrf.mxu0
  %10039 = vmatprep.mubr.bf16.mxu0 0
  %10040 = vmatmul.mubr.bf16.gmra.mxu0 %v9748
  %v10041 = vpop.f32.mrf.mxu0
  %v10042 = vadd.f32 0.0, %v10041
  %v10043 = vpop.f32.mrf.mxu0
  %v10044 = vpop.f32.mrf.mxu0
  %v10045 = vadd.f32 0.0, %v10044
  %v10046 = vpop.f32.mrf.mxu0
  %10047 = vmatprep.mubr.bf16.mxu0 0
  %10048 = vmatmul.mubr.bf16.gmra.mxu0 %v9751
  %v10049 = vpop.f32.mrf.mxu0
  %v10050 = vadd.f32 0.0, %v10049
  %v10051 = vpop.f32.mrf.mxu0
  %v10052 = vpop.f32.mrf.mxu0
  %v10053 = vadd.f32 0.0, %v10052
  %v10054 = vpop.f32.mrf.mxu0
  %10055 = vmatprep.mubr.bf16.mxu0 0
  %10056 = vmatmul.mubr.bf16.gmra.mxu0 %v9754
  %v10057 = vpop.f32.mrf.mxu0
  %v10058 = vadd.f32 0.0, %v10057
  %v10059 = vpop.f32.mrf.mxu0
  %v10060 = vpop.f32.mrf.mxu0
  %v10061 = vadd.f32 0.0, %v10060
  %v10062 = vpop.f32.mrf.mxu0
  %10063 = vmatprep.mubr.bf16.mxu0 0
  %10064 = vmatmul.mubr.bf16.gmra.mxu0 %v9757
  %v10065 = vpop.f32.mrf.mxu0
  %v10066 = vadd.f32 0.0, %v10065
  %v10067 = vpop.f32.mrf.mxu0
  %v10068 = vpop.f32.mrf.mxu0
  %v10069 = vadd.f32 0.0, %v10068
  %v10070 = vpop.f32.mrf.mxu0
  %10071 = vmatprep.mubr.bf16.mxu0 0
  %10072 = vmatmul.mubr.bf16.gmra.mxu0 %v9760
  %v10073 = vpop.f32.mrf.mxu0
  %v10074 = vadd.f32 0.0, %v10073
  %v10075 = vpop.f32.mrf.mxu0
  %v10076 = vpop.f32.mrf.mxu0
  %v10077 = vadd.f32 0.0, %v10076
  %v10078 = vpop.f32.mrf.mxu0
  %10079 = vmatprep.mubr.bf16.mxu0 0
  %10080 = vmatmul.mubr.bf16.gmra.mxu0 %v9763
  %v10081 = vpop.f32.mrf.mxu0
  %v10082 = vadd.f32 0.0, %v10081
  %v10083 = vpop.f32.mrf.mxu0
  %v10084 = vpop.f32.mrf.mxu0
  %v10085 = vadd.f32 0.0, %v10084
  %v10086 = vpop.f32.mrf.mxu0
  %10087 = vmatprep.mubr.bf16.mxu0 0
  %10088 = vmatmul.mubr.bf16.gmra.mxu0 %v9766
  %v10089 = vpop.f32.mrf.mxu0
  %v10090 = vadd.f32 0.0, %v10089
  %v10091 = vpop.f32.mrf.mxu0
  %v10092 = vpop.f32.mrf.mxu0
  %v10093 = vadd.f32 0.0, %v10092
  %v10094 = vpop.f32.mrf.mxu0
  %10095 = vmatprep.mubr.bf16.mxu0 0
  %10096 = vmatmul.mubr.bf16.gmra.mxu0 %v9769
  %v10097 = vpop.f32.mrf.mxu0
  %v10098 = vadd.f32 0.0, %v10097
  %v10099 = vpop.f32.mrf.mxu0
  %v10100 = vpop.f32.mrf.mxu0
  %v10101 = vadd.f32 0.0, %v10100
  %v10102 = vpop.f32.mrf.mxu0
  %10103 = vmatprep.mubr.bf16.mxu0 0
  %10104 = vmatmul.mubr.bf16.gmra.mxu0 %v9772
  %v10105 = vpop.f32.mrf.mxu0
  %v10106 = vadd.f32 0.0, %v10105
  %v10107 = vpop.f32.mrf.mxu0
  %v10108 = vpop.f32.mrf.mxu0
  %v10109 = vadd.f32 0.0, %v10108
  %v10110 = vpop.f32.mrf.mxu0
  %10111 = vmatprep.mubr.bf16.mxu0 0
  %10112 = vmatmul.mubr.bf16.gmra.mxu0 %v9775
  %v10113 = vpop.f32.mrf.mxu0
  %v10114 = vadd.f32 0.0, %v10113
  %v10115 = vpop.f32.mrf.mxu0
  %v10116 = vpop.f32.mrf.mxu0
  %v10117 = vadd.f32 0.0, %v10116
  %v10118 = vpop.f32.mrf.mxu0
  %10119 = vmatprep.mubr.bf16.mxu0 0
  %10120 = vmatmul.mubr.bf16.gmra.mxu0 %v9778
  %v10121 = vpop.f32.mrf.mxu0
  %v10122 = vadd.f32 0.0, %v10121
  %v10123 = vpop.f32.mrf.mxu0
  %v10124 = vpop.f32.mrf.mxu0
  %v10125 = vadd.f32 0.0, %v10124
  %v10126 = vpop.f32.mrf.mxu0
  %10127 = vmatprep.mubr.bf16.mxu0 0
  %10128 = vmatmul.mubr.bf16.gmra.mxu0 %v9781
  %v10129 = vpop.f32.mrf.mxu0
  %v10130 = vadd.f32 0.0, %v10129
  %v10131 = vpop.f32.mrf.mxu0
  %v10132 = vpop.f32.mrf.mxu0
  %v10133 = vadd.f32 0.0, %v10132
  %v10134 = vpop.f32.mrf.mxu0
  %10135 = vmatprep.mubr.bf16.mxu0 0
  %10136 = vmatmul.mubr.bf16.gmra.mxu0 %v9784
  %v10137 = vpop.f32.mrf.mxu0
  %v10138 = vadd.f32 0.0, %v10137
  %v10139 = vpop.f32.mrf.mxu0
  %v10140 = vpop.f32.mrf.mxu0
  %v10141 = vadd.f32 0.0, %v10140
  %v10142 = vpop.f32.mrf.mxu0
  %10143 = vmatprep.mubr.bf16.mxu0 0
  %10144 = vmatmul.mubr.bf16.gmra.mxu0 %v9787
  %v10145 = vpop.f32.mrf.mxu0
  %v10146 = vadd.f32 0.0, %v10145
  %v10147 = vpop.f32.mrf.mxu0
  %v10148 = vpop.f32.mrf.mxu0
  %v10149 = vadd.f32 0.0, %v10148
  %v10150 = vpop.f32.mrf.mxu0
  %10151 = vmatprep.mubr.bf16.mxu0 0
  %10152 = vmatmul.mubr.bf16.gmra.mxu0 %v9790
  %v10153 = vpop.f32.mrf.mxu0
  %v10154 = vadd.f32 0.0, %v10153
  %v10155 = vpop.f32.mrf.mxu0
  %v10156 = vpop.f32.mrf.mxu0
  %v10157 = vadd.f32 0.0, %v10156
  %v10158 = vpop.f32.mrf.mxu0
  %10159 = vmatprep.mubr.bf16.mxu0 0
  %10160 = vmatmul.mubr.bf16.gmra.mxu0 %v9793
  %v10161 = vpop.f32.mrf.mxu0
  %v10162 = vadd.f32 0.0, %v10161
  %v10163 = vpop.f32.mrf.mxu0
  %v10164 = vpop.f32.mrf.mxu0
  %v10165 = vadd.f32 0.0, %v10164
  %v10166 = vpop.f32.mrf.mxu0
  %10167 = vmatprep.mubr.bf16.mxu0 0
  %10168 = vmatmul.mubr.bf16.gmra.mxu0 %v9796
  %v10169 = vpop.f32.mrf.mxu0
  %v10170 = vadd.f32 0.0, %v10169
  %v10171 = vpop.f32.mrf.mxu0
  %v10172 = vpop.f32.mrf.mxu0
  %v10173 = vadd.f32 0.0, %v10172
  %v10174 = vpop.f32.mrf.mxu0
  %10175 = vmatprep.mubr.bf16.mxu0 0
  %10176 = vmatmul.mubr.bf16.gmra.mxu0 %v9799
  %v10177 = vpop.f32.mrf.mxu0
  %v10178 = vadd.f32 0.0, %v10177
  %v10179 = vpop.f32.mrf.mxu0
  %v10180 = vpop.f32.mrf.mxu0
  %v10181 = vadd.f32 0.0, %v10180
  %v10182 = vpop.f32.mrf.mxu0
  %10183 = vmatprep.mubr.bf16.mxu0 0
  %10184 = vmatmul.mubr.bf16.gmra.mxu0 %v9802
  %v10185 = vpop.f32.mrf.mxu0
  %v10186 = vadd.f32 0.0, %v10185
  %v10187 = vpop.f32.mrf.mxu0
  %v10188 = vpop.f32.mrf.mxu0
  %v10189 = vadd.f32 0.0, %v10188
  %v10190 = vpop.f32.mrf.mxu0
  %10191 = vdwg.mxu0
  %v10192 = vadd.f32 %v8865, %v9842
  %v10193 = vadd.f32 %v8866, %v9845
  %v10194 = vadd.f32 %v8867, %v9850
  %v10195 = vadd.f32 %v8868, %v9853
  %v10196 = vadd.f32 %v8869, %v9858
  %v10197 = vadd.f32 %v8870, %v9861
  %v10198 = vadd.f32 %v8871, %v9866
  %v10199 = vadd.f32 %v8872, %v9869
  %v10200 = vadd.f32 %v8873, %v9874
  %v10201 = vadd.f32 %v8874, %v9877
  %v10202 = vadd.f32 %v8875, %v9882
  %v10203 = vadd.f32 %v8876, %v9885
  %v10204 = vadd.f32 %v8877, %v9890
  %v10205 = vadd.f32 %v8878, %v9893
  %v10206 = vadd.f32 %v8879, %v9898
  %v10207 = vadd.f32 %v8880, %v9901
  %v10208 = vadd.f32 %v8881, %v9906
  %v10209 = vadd.f32 %v8882, %v9909
  %v10210 = vadd.f32 %v8883, %v9914
  %v10211 = vadd.f32 %v8884, %v9917
  %v10212 = vadd.f32 %v8885, %v9922
  %v10213 = vadd.f32 %v8886, %v9925
  %v10214 = vadd.f32 %v8887, %v9930
  %v10215 = vadd.f32 %v8888, %v9933
  %v10216 = vadd.f32 %v8889, %v9938
  %v10217 = vadd.f32 %v8890, %v9941
  %v10218 = vadd.f32 %v8891, %v9946
  %v10219 = vadd.f32 %v8892, %v9949
  %v10220 = vadd.f32 %v8893, %v9954
  %v10221 = vadd.f32 %v8894, %v9957
  %v10222 = vadd.f32 %v8895, %v9962
  %v10223 = vadd.f32 %v8896, %v9965
  %v10224 = vadd.f32 %v8897, %v9970
  %v10225 = vadd.f32 %v8898, %v9973
  %v10226 = vadd.f32 %v8899, %v9978
  %v10227 = vadd.f32 %v8900, %v9981
  %v10228 = vadd.f32 %v8901, %v9986
  %v10229 = vadd.f32 %v8902, %v9989
  %v10230 = vadd.f32 %v8903, %v9994
  %v10231 = vadd.f32 %v8904, %v9997
  %v10232 = vadd.f32 %v8905, %v10002
  %v10233 = vadd.f32 %v8906, %v10005
  %v10234 = vadd.f32 %v8907, %v10010
  %v10235 = vadd.f32 %v8908, %v10013
  %v10236 = vadd.f32 %v8909, %v10018
  %v10237 = vadd.f32 %v8910, %v10021
  %v10238 = vadd.f32 %v8911, %v10026
  %v10239 = vadd.f32 %v8912, %v10029
  %v10240 = vadd.f32 %v8913, %v10034
  %v10241 = vadd.f32 %v8914, %v10037
  %v10242 = vadd.f32 %v8915, %v10042
  %v10243 = vadd.f32 %v8916, %v10045
  %v10244 = vadd.f32 %v8917, %v10050
  %v10245 = vadd.f32 %v8918, %v10053
  %v10246 = vadd.f32 %v8919, %v10058
  %v10247 = vadd.f32 %v8920, %v10061
  %v10248 = vadd.f32 %v8921, %v10066
  %v10249 = vadd.f32 %v8922, %v10069
  %v10250 = vadd.f32 %v8923, %v10074
  %v10251 = vadd.f32 %v8924, %v10077
  %v10252 = vadd.f32 %v8925, %v10082
  %v10253 = vadd.f32 %v8926, %v10085
  %v10254 = vadd.f32 %v8927, %v10090
  %v10255 = vadd.f32 %v8928, %v10093
  %v10256 = vadd.f32 %v8929, %v10098
  %v10257 = vadd.f32 %v8930, %v10101
  %v10258 = vadd.f32 %v8931, %v10106
  %v10259 = vadd.f32 %v8932, %v10109
  %v10260 = vadd.f32 %v8933, %v10114
  %v10261 = vadd.f32 %v8934, %v10117
  %v10262 = vadd.f32 %v8935, %v10122
  %v10263 = vadd.f32 %v8936, %v10125
  %v10264 = vadd.f32 %v8937, %v10130
  %v10265 = vadd.f32 %v8938, %v10133
  %v10266 = vadd.f32 %v8939, %v10138
  %v10267 = vadd.f32 %v8940, %v10141
  %v10268 = vadd.f32 %v8941, %v10146
  %v10269 = vadd.f32 %v8942, %v10149
  %v10270 = vadd.f32 %v8943, %v10154
  %v10271 = vadd.f32 %v8944, %v10157
  %v10272 = vadd.f32 %v8945, %v10162
  %v10273 = vadd.f32 %v8946, %v10165
  %v10274 = vadd.f32 %v8947, %v10170
  %v10275 = vadd.f32 %v8948, %v10173
  %v10276 = vadd.f32 %v8949, %v10178
  %v10277 = vadd.f32 %v8950, %v10181
  %v10278 = vadd.f32 %v8951, %v10186
  %v10279 = vadd.f32 %v8952, %v10189
  %10280 = vst [vmem:[#allocation3] sm:$0xff] %v10192
  %10281 = vst [vmem:[#allocation3 + $0x8] sm:$0xff] %v10193
  %10282 = vst [vmem:[#allocation3 + $0x10] sm:$0xff] %v10194
  %10283 = vst [vmem:[#allocation3 + $0x18] sm:$0xff] %v10195
  %10284 = vst [vmem:[#allocation3 + $0x20] sm:$0xff] %v10196
  %10285 = vst [vmem:[#allocation3 + $0x28] sm:$0xff] %v10197
  %10286 = vst [vmem:[#allocation3 + $0x30] sm:$0xff] %v10198
  %10287 = vst [vmem:[#allocation3 + $0x38] sm:$0xff] %v10199
  %10288 = vst [vmem:[#allocation3 + $0x40] sm:$0xff] %v10200
  %10289 = vst [vmem:[#allocation3 + $0x48] sm:$0xff] %v10201
  %10290 = vst [vmem:[#allocation3 + $0x50] sm:$0xff] %v10202
  %10291 = vst [vmem:[#allocation3 + $0x58] sm:$0xff] %v10203
  %10292 = vst [vmem:[#allocation3 + $0x60] sm:$0xff] %v10204
  %10293 = vst [vmem:[#allocation3 + $0x68] sm:$0xff] %v10205
  %10294 = vst [vmem:[#allocation3 + $0x70] sm:$0xff] %v10206
  %10295 = vst [vmem:[#allocation3 + $0x78] sm:$0xff] %v10207
  %10296 = vst [vmem:[#allocation3 + $0x80] sm:$0xff] %v10208
  %10297 = vst [vmem:[#allocation3 + $0x88] sm:$0xff] %v10209
  %10298 = vst [vmem:[#allocation3 + $0x90] sm:$0xff] %v10210
  %10299 = vst [vmem:[#allocation3 + $0x98] sm:$0xff] %v10211
  %10300 = vst [vmem:[#allocation3 + $0xa0] sm:$0xff] %v10212
  %10301 = vst [vmem:[#allocation3 + $0xa8] sm:$0xff] %v10213
  %10302 = vst [vmem:[#allocation3 + $0xb0] sm:$0xff] %v10214
  %10303 = vst [vmem:[#allocation3 + $0xb8] sm:$0xff] %v10215
  %10304 = vst [vmem:[#allocation3 + $0xc0] sm:$0xff] %v10216
  %10305 = vst [vmem:[#allocation3 + $0xc8] sm:$0xff] %v10217
  %10306 = vst [vmem:[#allocation3 + $0xd0] sm:$0xff] %v10218
  %10307 = vst [vmem:[#allocation3 + $0xd8] sm:$0xff] %v10219
  %10308 = vst [vmem:[#allocation3 + $0xe0] sm:$0xff] %v10220
  %10309 = vst [vmem:[#allocation3 + $0xe8] sm:$0xff] %v10221
  %10310 = vst [vmem:[#allocation3 + $0xf0] sm:$0xff] %v10222
  %10311 = vst [vmem:[#allocation3 + $0xf8] sm:$0xff] %v10223
  %10312 = vst [vmem:[#allocation3 + $0x100] sm:$0xff] %v10224
  %10313 = vst [vmem:[#allocation3 + $0x108] sm:$0xff] %v10225
  %10314 = vst [vmem:[#allocation3 + $0x110] sm:$0xff] %v10226
  %10315 = vst [vmem:[#allocation3 + $0x118] sm:$0xff] %v10227
  %10316 = vst [vmem:[#allocation3 + $0x120] sm:$0xff] %v10228
  %10317 = vst [vmem:[#allocation3 + $0x128] sm:$0xff] %v10229
  %10318 = vst [vmem:[#allocation3 + $0x130] sm:$0xff] %v10230
  %10319 = vst [vmem:[#allocation3 + $0x138] sm:$0xff] %v10231
  %10320 = vst [vmem:[#allocation3 + $0x140] sm:$0xff] %v10232
  %10321 = vst [vmem:[#allocation3 + $0x148] sm:$0xff] %v10233
  %10322 = vst [vmem:[#allocation3 + $0x150] sm:$0xff] %v10234
  %10323 = vst [vmem:[#allocation3 + $0x158] sm:$0xff] %v10235
  %10324 = vst [vmem:[#allocation3 + $0x160] sm:$0xff] %v10236
  %10325 = vst [vmem:[#allocation3 + $0x168] sm:$0xff] %v10237
  %10326 = vst [vmem:[#allocation3 + $0x170] sm:$0xff] %v10238
  %10327 = vst [vmem:[#allocation3 + $0x178] sm:$0xff] %v10239
  %10328 = vst [vmem:[#allocation3 + $0x180] sm:$0xff] %v10240
  %10329 = vst [vmem:[#allocation3 + $0x188] sm:$0xff] %v10241
  %10330 = vst [vmem:[#allocation3 + $0x190] sm:$0xff] %v10242
  %10331 = vst [vmem:[#allocation3 + $0x198] sm:$0xff] %v10243
  %10332 = vst [vmem:[#allocation3 + $0x1a0] sm:$0xff] %v10244
  %10333 = vst [vmem:[#allocation3 + $0x1a8] sm:$0xff] %v10245
  %10334 = vst [vmem:[#allocation3 + $0x1b0] sm:$0xff] %v10246
  %10335 = vst [vmem:[#allocation3 + $0x1b8] sm:$0xff] %v10247
  %10336 = vst [vmem:[#allocation3 + $0x1c0] sm:$0xff] %v10248
  %10337 = vst [vmem:[#allocation3 + $0x1c8] sm:$0xff] %v10249
  %10338 = vst [vmem:[#allocation3 + $0x1d0] sm:$0xff] %v10250
  %10339 = vst [vmem:[#allocation3 + $0x1d8] sm:$0xff] %v10251
  %10340 = vst [vmem:[#allocation3 + $0x1e0] sm:$0xff] %v10252
  %10341 = vst [vmem:[#allocation3 + $0x1e8] sm:$0xff] %v10253
  %10342 = vst [vmem:[#allocation3 + $0x1f0] sm:$0xff] %v10254
  %10343 = vst [vmem:[#allocation3 + $0x1f8] sm:$0xff] %v10255
  %10344 = vst [vmem:[#allocation3 + $0x200] sm:$0xff] %v10256
  %10345 = vst [vmem:[#allocation3 + $0x208] sm:$0xff] %v10257
  %10346 = vst [vmem:[#allocation3 + $0x210] sm:$0xff] %v10258
  %10347 = vst [vmem:[#allocation3 + $0x218] sm:$0xff] %v10259
  %10348 = vst [vmem:[#allocation3 + $0x220] sm:$0xff] %v10260
  %10349 = vst [vmem:[#allocation3 + $0x228] sm:$0xff] %v10261
  %10350 = vst [vmem:[#allocation3 + $0x230] sm:$0xff] %v10262
  %10351 = vst [vmem:[#allocation3 + $0x238] sm:$0xff] %v10263
  %10352 = vst [vmem:[#allocation3 + $0x240] sm:$0xff] %v10264
  %10353 = vst [vmem:[#allocation3 + $0x248] sm:$0xff] %v10265
  %10354 = vst [vmem:[#allocation3 + $0x250] sm:$0xff] %v10266
  %10355 = vst [vmem:[#allocation3 + $0x258] sm:$0xff] %v10267
  %10356 = vst [vmem:[#allocation3 + $0x260] sm:$0xff] %v10268
  %10357 = vst [vmem:[#allocation3 + $0x268] sm:$0xff] %v10269
  %10358 = vst [vmem:[#allocation3 + $0x270] sm:$0xff] %v10270
  %10359 = vst [vmem:[#allocation3 + $0x278] sm:$0xff] %v10271
  %10360 = vst [vmem:[#allocation3 + $0x280] sm:$0xff] %v10272
  %10361 = vst [vmem:[#allocation3 + $0x288] sm:$0xff] %v10273
  %10362 = vst [vmem:[#allocation3 + $0x290] sm:$0xff] %v10274
  %10363 = vst [vmem:[#allocation3 + $0x298] sm:$0xff] %v10275
  %10364 = vst [vmem:[#allocation3 + $0x2a0] sm:$0xff] %v10276
  %10365 = vst [vmem:[#allocation3 + $0x2a8] sm:$0xff] %v10277
  %10366 = vst [vmem:[#allocation3 + $0x2b0] sm:$0xff] %v10278
  %10367 = vst [vmem:[#allocation3 + $0x2b8] sm:$0xff] %v10279
  %v10368 = vld [vmem:[#allocation3] sm:$0xff]
  %v10369 = vld [vmem:[#allocation3 + $0x8] sm:$0xff]
  %v10370 = vld [vmem:[#allocation3 + $0x10] sm:$0xff]
  %v10371 = vld [vmem:[#allocation3 + $0x18] sm:$0xff]
  %v10372 = vld [vmem:[#allocation3 + $0x20] sm:$0xff]
  %v10373 = vld [vmem:[#allocation3 + $0x28] sm:$0xff]
  %v10374 = vld [vmem:[#allocation3 + $0x30] sm:$0xff]
  %v10375 = vld [vmem:[#allocation3 + $0x38] sm:$0xff]
  %v10376 = vld [vmem:[#allocation3 + $0x40] sm:$0xff]
  %v10377 = vld [vmem:[#allocation3 + $0x48] sm:$0xff]
  %v10378 = vld [vmem:[#allocation3 + $0x50] sm:$0xff]
  %v10379 = vld [vmem:[#allocation3 + $0x58] sm:$0xff]
  %v10380 = vld [vmem:[#allocation3 + $0x60] sm:$0xff]
  %v10381 = vld [vmem:[#allocation3 + $0x68] sm:$0xff]
  %v10382 = vld [vmem:[#allocation3 + $0x70] sm:$0xff]
  %v10383 = vld [vmem:[#allocation3 + $0x78] sm:$0xff]
  %v10384 = vld [vmem:[#allocation3 + $0x80] sm:$0xff]
  %v10385 = vld [vmem:[#allocation3 + $0x88] sm:$0xff]
  %v10386 = vld [vmem:[#allocation3 + $0x90] sm:$0xff]
  %v10387 = vld [vmem:[#allocation3 + $0x98] sm:$0xff]
  %v10388 = vld [vmem:[#allocation3 + $0xa0] sm:$0xff]
  %v10389 = vld [vmem:[#allocation3 + $0xa8] sm:$0xff]
  %v10390 = vld [vmem:[#allocation3 + $0xb0] sm:$0xff]
  %v10391 = vld [vmem:[#allocation3 + $0xb8] sm:$0xff]
  %v10392 = vld [vmem:[#allocation3 + $0xc0] sm:$0xff]
  %v10393 = vld [vmem:[#allocation3 + $0xc8] sm:$0xff]
  %v10394 = vld [vmem:[#allocation3 + $0xd0] sm:$0xff]
  %v10395 = vld [vmem:[#allocation3 + $0xd8] sm:$0xff]
  %v10396 = vld [vmem:[#allocation3 + $0xe0] sm:$0xff]
  %v10397 = vld [vmem:[#allocation3 + $0xe8] sm:$0xff]
  %v10398 = vld [vmem:[#allocation3 + $0xf0] sm:$0xff]
  %v10399 = vld [vmem:[#allocation3 + $0xf8] sm:$0xff]
  %v10400 = vld [vmem:[#allocation3 + $0x100] sm:$0xff]
  %v10401 = vld [vmem:[#allocation3 + $0x108] sm:$0xff]
  %v10402 = vld [vmem:[#allocation3 + $0x110] sm:$0xff]
  %v10403 = vld [vmem:[#allocation3 + $0x118] sm:$0xff]
  %v10404 = vld [vmem:[#allocation3 + $0x120] sm:$0xff]
  %v10405 = vld [vmem:[#allocation3 + $0x128] sm:$0xff]
  %v10406 = vld [vmem:[#allocation3 + $0x130] sm:$0xff]
  %v10407 = vld [vmem:[#allocation3 + $0x138] sm:$0xff]
  %v10408 = vld [vmem:[#allocation3 + $0x140] sm:$0xff]
  %v10409 = vld [vmem:[#allocation3 + $0x148] sm:$0xff]
  %v10410 = vld [vmem:[#allocation3 + $0x150] sm:$0xff]
  %v10411 = vld [vmem:[#allocation3 + $0x158] sm:$0xff]
  %v10412 = vld [vmem:[#allocation3 + $0x160] sm:$0xff]
  %v10413 = vld [vmem:[#allocation3 + $0x168] sm:$0xff]
  %v10414 = vld [vmem:[#allocation3 + $0x170] sm:$0xff]
  %v10415 = vld [vmem:[#allocation3 + $0x178] sm:$0xff]
  %v10416 = vld [vmem:[#allocation3 + $0x180] sm:$0xff]
  %v10417 = vld [vmem:[#allocation3 + $0x188] sm:$0xff]
  %v10418 = vld [vmem:[#allocation3 + $0x190] sm:$0xff]
  %v10419 = vld [vmem:[#allocation3 + $0x198] sm:$0xff]
  %v10420 = vld [vmem:[#allocation3 + $0x1a0] sm:$0xff]
  %v10421 = vld [vmem:[#allocation3 + $0x1a8] sm:$0xff]
  %v10422 = vld [vmem:[#allocation3 + $0x1b0] sm:$0xff]
  %v10423 = vld [vmem:[#allocation3 + $0x1b8] sm:$0xff]
  %v10424 = vld [vmem:[#allocation3 + $0x1c0] sm:$0xff]
  %v10425 = vld [vmem:[#allocation3 + $0x1c8] sm:$0xff]
  %v10426 = vld [vmem:[#allocation3 + $0x1d0] sm:$0xff]
  %v10427 = vld [vmem:[#allocation3 + $0x1d8] sm:$0xff]
  %v10428 = vld [vmem:[#allocation3 + $0x1e0] sm:$0xff]
  %v10429 = vld [vmem:[#allocation3 + $0x1e8] sm:$0xff]
  %v10430 = vld [vmem:[#allocation3 + $0x1f0] sm:$0xff]
  %v10431 = vld [vmem:[#allocation3 + $0x1f8] sm:$0xff]
  %v10432 = vld [vmem:[#allocation3 + $0x200] sm:$0xff]
  %v10433 = vld [vmem:[#allocation3 + $0x208] sm:$0xff]
  %v10434 = vld [vmem:[#allocation3 + $0x210] sm:$0xff]
  %v10435 = vld [vmem:[#allocation3 + $0x218] sm:$0xff]
  %v10436 = vld [vmem:[#allocation3 + $0x220] sm:$0xff]
  %v10437 = vld [vmem:[#allocation3 + $0x228] sm:$0xff]
  %v10438 = vld [vmem:[#allocation3 + $0x230] sm:$0xff]
  %v10439 = vld [vmem:[#allocation3 + $0x238] sm:$0xff]
  %v10440 = vld [vmem:[#allocation3 + $0x240] sm:$0xff]
  %v10441 = vld [vmem:[#allocation3 + $0x248] sm:$0xff]
  %v10442 = vld [vmem:[#allocation3 + $0x250] sm:$0xff]
  %v10443 = vld [vmem:[#allocation3 + $0x258] sm:$0xff]
  %v10444 = vld [vmem:[#allocation3 + $0x260] sm:$0xff]
  %v10445 = vld [vmem:[#allocation3 + $0x268] sm:$0xff]
  %v10446 = vld [vmem:[#allocation3 + $0x270] sm:$0xff]
  %v10447 = vld [vmem:[#allocation3 + $0x278] sm:$0xff]
  %v10448 = vld [vmem:[#allocation3 + $0x280] sm:$0xff]
  %v10449 = vld [vmem:[#allocation3 + $0x288] sm:$0xff]
  %v10450 = vld [vmem:[#allocation3 + $0x290] sm:$0xff]
  %v10451 = vld [vmem:[#allocation3 + $0x298] sm:$0xff]
  %v10452 = vld [vmem:[#allocation3 + $0x2a0] sm:$0xff]
  %v10453 = vld [vmem:[#allocation3 + $0x2a8] sm:$0xff]
  %v10454 = vld [vmem:[#allocation3 + $0x2b0] sm:$0xff]
  %v10455 = vld [vmem:[#allocation3 + $0x2b8] sm:$0xff]
  %v10456 = vld [vmem:[#allocation2 + $0x10] sm:$0x8]
  %v10457 = vld [vmem:[#allocation2 + $0x14] sm:$0xf]
  %v10458 = vld [vmem:[#allocation2 + $0x18] sm:$0xf]
  %v10459 = vld [vmem:[#allocation2 + $0x1c] sm:$0xf]
  %v10460 = vld [vmem:[#allocation2 + $0x20] sm:$0xf]
  %v10461 = vld [vmem:[#allocation2 + $0x24] sm:$0xf]
  %v10462 = vld [vmem:[#allocation2 + $0x28] sm:$0xf]
  %v10463 = vld [vmem:[#allocation2 + $0x2c] sm:$0xf]
  %v10464 = vld [vmem:[#allocation2 + $0x30] sm:$0xf]
  %v10465 = vld [vmem:[#allocation2 + $0x34] sm:$0xf]
  %v10466 = vld [vmem:[#allocation2 + $0x38] sm:$0xf]
  %v10467 = vld [vmem:[#allocation2 + $0x3c] sm:$0xf]
  %v10468 = vld [vmem:[#allocation2 + $0x40] sm:$0xf]
  %v10469 = vld [vmem:[#allocation2 + $0x44] sm:$0xf]
  %v10470 = vld [vmem:[#allocation2 + $0x48] sm:$0xf]
  %v10471 = vld [vmem:[#allocation2 + $0x4c] sm:$0xf]
  %v10472 = vld [vmem:[#allocation2 + $0x50] sm:$0xf]
  %v10473 = vld [vmem:[#allocation2 + $0x54] sm:$0xf]
  %v10474 = vld [vmem:[#allocation2 + $0x58] sm:$0xf]
  %v10475 = vld [vmem:[#allocation2 + $0x5c] sm:$0xf]
  %v10476 = vld [vmem:[#allocation2 + $0x60] sm:$0xf]
  %v10477 = vld [vmem:[#allocation2 + $0x64] sm:$0xf]
  %v10478 = vld [vmem:[#allocation2 + $0x68] sm:$0xf]
  %v10479 = vld [vmem:[#allocation2 + $0x6c] sm:$0xf]
  %v10480 = vld [vmem:[#allocation2 + $0x70] sm:$0xf]
  %v10481 = vld [vmem:[#allocation2 + $0x74] sm:$0xf]
  %v10482 = vld [vmem:[#allocation2 + $0x78] sm:$0xf]
  %v10483 = vld [vmem:[#allocation2 + $0x7c] sm:$0xf]
  %v10484 = vld [vmem:[#allocation2 + $0x80] sm:$0xf]
  %v10485 = vld [vmem:[#allocation2 + $0x84] sm:$0xf]
  %v10486 = vld [vmem:[#allocation2 + $0x88] sm:$0xf]
  %v10487 = vld [vmem:[#allocation2 + $0x8c] sm:$0xf]
  %v10488 = vld [vmem:[#allocation2 + $0x90] sm:$0xf]
  %v10489 = vld [vmem:[#allocation2 + $0x94] sm:$0xf]
  %v10490 = vld [vmem:[#allocation2 + $0x98] sm:$0xf]
  %v10491 = vld [vmem:[#allocation2 + $0x9c] sm:$0xf]
  %v10492 = vld [vmem:[#allocation2 + $0xa0] sm:$0xf]
  %v10493 = vld [vmem:[#allocation2 + $0xa4] sm:$0xf]
  %v10494 = vld [vmem:[#allocation2 + $0xa8] sm:$0xf]
  %v10495 = vld [vmem:[#allocation2 + $0xac] sm:$0xf]
  %v10496 = vld [vmem:[#allocation2 + $0xb0] sm:$0xf]
  %v10497 = vld [vmem:[#allocation2 + $0xb4] sm:$0xf]
  %v10498 = vld [vmem:[#allocation2 + $0xb8] sm:$0xf]
  %v10499 = vld [vmem:[#allocation2 + $0xbc] sm:$0xf]
  %v10500 = vld [vmem:[#allocation2 + $0xc0] sm:$0xf]
  %v10501 = vld [vmem:[#allocation2 + $0xc4] sm:$0xf]
  %v10502 = vld [vmem:[#allocation2 + $0xc8] sm:$0xf]
  %v10503 = vld [vmem:[#allocation2 + $0xcc] sm:$0xf]
  %v10504 = vld [vmem:[#allocation2 + $0xd0] sm:$0xf]
  %v10505 = vld [vmem:[#allocation2 + $0xd4] sm:$0xf]
  %v10506 = vld [vmem:[#allocation2 + $0xd8] sm:$0xf]
  %v10507 = vld [vmem:[#allocation2 + $0xdc] sm:$0xf]
  %v10508 = vld [vmem:[#allocation2 + $0xe0] sm:$0xf]
  %v10509 = vld [vmem:[#allocation2 + $0xe4] sm:$0xf]
  %v10510 = vld [vmem:[#allocation2 + $0xe8] sm:$0xf]
  %v10511 = vld [vmem:[#allocation2 + $0xec] sm:$0xf]
  %v10512 = vld [vmem:[#allocation2 + $0xf0] sm:$0xf]
  %v10513 = vld [vmem:[#allocation2 + $0xf4] sm:$0xf]
  %v10514 = vld [vmem:[#allocation2 + $0xf8] sm:$0xf]
  %v10515 = vld [vmem:[#allocation2 + $0xfc] sm:$0xf]
  %v10516 = vld [vmem:[#allocation2 + $0x100] sm:$0xf]
  %v10517 = vld [vmem:[#allocation2 + $0x104] sm:$0xf]
  %v10518 = vld [vmem:[#allocation2 + $0x108] sm:$0xf]
  %v10519 = vld [vmem:[#allocation2 + $0x10c] sm:$0xf]
  %v10520 = vld [vmem:[#allocation2 + $0x110] sm:$0xf]
  %v10521 = vld [vmem:[#allocation2 + $0x114] sm:$0xf]
  %v10522 = vld [vmem:[#allocation2 + $0x118] sm:$0xf]
  %v10523 = vld [vmem:[#allocation2 + $0x11c] sm:$0xf]
  %v10524 = vld [vmem:[#allocation2 + $0x120] sm:$0xf]
  %v10525 = vld [vmem:[#allocation2 + $0x124] sm:$0xf]
  %v10526 = vld [vmem:[#allocation2 + $0x128] sm:$0xf]
  %v10527 = vld [vmem:[#allocation2 + $0x12c] sm:$0xf]
  %v10528 = vld [vmem:[#allocation2 + $0x130] sm:$0xf]
  %v10529 = vld [vmem:[#allocation2 + $0x134] sm:$0xf]
  %v10530 = vld [vmem:[#allocation2 + $0x138] sm:$0xf]
  %v10531 = vld [vmem:[#allocation2 + $0x13c] sm:$0xf]
  %v10532 = vld [vmem:[#allocation2 + $0x140] sm:$0xf]
  %v10533 = vld [vmem:[#allocation2 + $0x144] sm:$0xf]
  %v10534 = vld [vmem:[#allocation2 + $0x148] sm:$0xf]
  %v10535 = vld [vmem:[#allocation2 + $0x14c] sm:$0xf]
  %v10536 = vld [vmem:[#allocation2 + $0x150] sm:$0xf]
  %v10537 = vld [vmem:[#allocation2 + $0x154] sm:$0xf]
  %v10538 = vld [vmem:[#allocation2 + $0x158] sm:$0xf]
  %v10539 = vld [vmem:[#allocation2 + $0x15c] sm:$0xf]
  %v10540 = vld [vmem:[#allocation2 + $0x160] sm:$0xf]
  %v10541 = vld [vmem:[#allocation2 + $0x164] sm:$0xf]
  %v10542 = vld [vmem:[#allocation2 + $0x168] sm:$0xf]
  %v10543 = vld [vmem:[#allocation2 + $0x16c] sm:$0xf]
  %v10544 = vld [vmem:[#allocation2 + $0x170] sm:$0x7]
  %s10545 = scalar_lea.vmem %s2, 32
  %v10546 = vld [vmem:[%s10545] sm:$0xf]
  %v10636 = vunpack.c.l.b16 %v10456
  %v10637 = vunpack.c.l.b16 %v10457
  %v10638 = vunpack.c.l.b16 %v10458
  %v10639 = vunpack.c.l.b16 %v10459
  %v10640 = vunpack.c.l.b16 %v10460
  %v10641 = vunpack.c.l.b16 %v10461
  %v10642 = vunpack.c.l.b16 %v10462
  %v10643 = vunpack.c.l.b16 %v10463
  %v10644 = vunpack.c.l.b16 %v10464
  %v10645 = vunpack.c.l.b16 %v10465
  %v10646 = vunpack.c.l.b16 %v10466
  %v10647 = vunpack.c.l.b16 %v10467
  %v10648 = vunpack.c.l.b16 %v10468
  %v10649 = vunpack.c.l.b16 %v10469
  %v10650 = vunpack.c.l.b16 %v10470
  %v10651 = vunpack.c.l.b16 %v10471
  %v10652 = vunpack.c.l.b16 %v10472
  %v10653 = vunpack.c.l.b16 %v10473
  %v10654 = vunpack.c.l.b16 %v10474
  %v10655 = vunpack.c.l.b16 %v10475
  %v10656 = vunpack.c.l.b16 %v10476
  %v10657 = vunpack.c.l.b16 %v10477
  %v10658 = vunpack.c.l.b16 %v10478
  %v10659 = vunpack.c.l.b16 %v10479
  %v10660 = vunpack.c.l.b16 %v10480
  %v10661 = vunpack.c.l.b16 %v10481
  %v10662 = vunpack.c.l.b16 %v10482
  %v10663 = vunpack.c.l.b16 %v10483
  %v10664 = vunpack.c.l.b16 %v10484
  %v10665 = vunpack.c.l.b16 %v10485
  %v10666 = vunpack.c.l.b16 %v10486
  %v10667 = vunpack.c.l.b16 %v10487
  %v10668 = vunpack.c.l.b16 %v10488
  %v10669 = vunpack.c.l.b16 %v10489
  %v10670 = vunpack.c.l.b16 %v10490
  %v10671 = vunpack.c.l.b16 %v10491
  %v10672 = vunpack.c.l.b16 %v10492
  %v10673 = vunpack.c.l.b16 %v10493
  %v10674 = vunpack.c.l.b16 %v10494
  %v10675 = vunpack.c.l.b16 %v10495
  %v10676 = vunpack.c.l.b16 %v10496
  %v10677 = vunpack.c.l.b16 %v10497
  %v10678 = vunpack.c.l.b16 %v10498
  %v10679 = vunpack.c.l.b16 %v10499
  %v10680 = vunpack.c.l.b16 %v10500
  %v10681 = vunpack.c.l.b16 %v10501
  %v10682 = vunpack.c.l.b16 %v10502
  %v10683 = vunpack.c.l.b16 %v10503
  %v10684 = vunpack.c.l.b16 %v10504
  %v10685 = vunpack.c.l.b16 %v10505
  %v10686 = vunpack.c.l.b16 %v10506
  %v10687 = vunpack.c.l.b16 %v10507
  %v10688 = vunpack.c.l.b16 %v10508
  %v10689 = vunpack.c.l.b16 %v10509
  %v10690 = vunpack.c.l.b16 %v10510
  %v10691 = vunpack.c.l.b16 %v10511
  %v10692 = vunpack.c.l.b16 %v10512
  %v10693 = vunpack.c.l.b16 %v10513
  %v10694 = vunpack.c.l.b16 %v10514
  %v10695 = vunpack.c.l.b16 %v10515
  %v10696 = vunpack.c.l.b16 %v10516
  %v10697 = vunpack.c.l.b16 %v10517
  %v10698 = vunpack.c.l.b16 %v10518
  %v10699 = vunpack.c.l.b16 %v10519
  %v10700 = vunpack.c.l.b16 %v10520
  %v10701 = vunpack.c.l.b16 %v10521
  %v10702 = vunpack.c.l.b16 %v10522
  %v10703 = vunpack.c.l.b16 %v10523
  %v10704 = vunpack.c.l.b16 %v10524
  %v10705 = vunpack.c.l.b16 %v10525
  %v10706 = vunpack.c.l.b16 %v10526
  %v10707 = vunpack.c.l.b16 %v10527
  %v10708 = vunpack.c.l.b16 %v10528
  %v10709 = vunpack.c.l.b16 %v10529
  %v10710 = vunpack.c.l.b16 %v10530
  %v10711 = vunpack.c.l.b16 %v10531
  %v10712 = vunpack.c.l.b16 %v10532
  %v10713 = vunpack.c.l.b16 %v10533
  %v10714 = vunpack.c.l.b16 %v10534
  %v10715 = vunpack.c.l.b16 %v10535
  %v10716 = vunpack.c.l.b16 %v10536
  %v10717 = vunpack.c.l.b16 %v10537
  %v10718 = vunpack.c.l.b16 %v10538
  %v10719 = vunpack.c.l.b16 %v10539
  %v10720 = vunpack.c.l.b16 %v10540
  %v10721 = vunpack.c.l.b16 %v10541
  %v10722 = vunpack.c.l.b16 %v10542
  %v10723 = vunpack.c.l.b16 %v10543
  %v10724 = vunpack.c.l.b16 %v10544
  %v10725 = vpack.c.b16 %v10637, %v10636
  %v10726 = vpack.c.b16 %v10639, %v10638
  %v10727 = vpack.c.b16 %v10641, %v10640
  %v10728 = vpack.c.b16 %v10643, %v10642
  %v10729 = vpack.c.b16 %v10645, %v10644
  %v10730 = vpack.c.b16 %v10647, %v10646
  %v10731 = vpack.c.b16 %v10649, %v10648
  %v10732 = vpack.c.b16 %v10651, %v10650
  %v10733 = vpack.c.b16 %v10653, %v10652
  %v10734 = vpack.c.b16 %v10655, %v10654
  %v10735 = vpack.c.b16 %v10657, %v10656
  %v10736 = vpack.c.b16 %v10659, %v10658
  %v10737 = vpack.c.b16 %v10661, %v10660
  %v10738 = vpack.c.b16 %v10663, %v10662
  %v10739 = vpack.c.b16 %v10665, %v10664
  %v10740 = vpack.c.b16 %v10667, %v10666
  %v10741 = vpack.c.b16 %v10669, %v10668
  %v10742 = vpack.c.b16 %v10671, %v10670
  %v10743 = vpack.c.b16 %v10673, %v10672
  %v10744 = vpack.c.b16 %v10675, %v10674
  %v10745 = vpack.c.b16 %v10677, %v10676
  %v10746 = vpack.c.b16 %v10679, %v10678
  %v10747 = vpack.c.b16 %v10681, %v10680
  %v10748 = vpack.c.b16 %v10683, %v10682
  %v10749 = vpack.c.b16 %v10685, %v10684
  %v10750 = vpack.c.b16 %v10687, %v10686
  %v10751 = vpack.c.b16 %v10689, %v10688
  %v10752 = vpack.c.b16 %v10691, %v10690
  %v10753 = vpack.c.b16 %v10693, %v10692
  %v10754 = vpack.c.b16 %v10695, %v10694
  %v10755 = vpack.c.b16 %v10697, %v10696
  %v10756 = vpack.c.b16 %v10699, %v10698
  %v10757 = vpack.c.b16 %v10701, %v10700
  %v10758 = vpack.c.b16 %v10703, %v10702
  %v10759 = vpack.c.b16 %v10705, %v10704
  %v10760 = vpack.c.b16 %v10707, %v10706
  %v10761 = vpack.c.b16 %v10709, %v10708
  %v10762 = vpack.c.b16 %v10711, %v10710
  %v10763 = vpack.c.b16 %v10713, %v10712
  %v10764 = vpack.c.b16 %v10715, %v10714
  %v10765 = vpack.c.b16 %v10717, %v10716
  %v10766 = vpack.c.b16 %v10719, %v10718
  %v10767 = vpack.c.b16 %v10721, %v10720
  %v10768 = vpack.c.b16 %v10723, %v10722
  %v10769 = vpack.c.b16 %v10724, %v10724
  %vm10770 = vcmask 1044480
  %v10771 = vrot.slane %v10725, 3
  %v10772 = vrot.slane %v10726, 3
  %v10773 = vsel %vm10770, %v10771, %v10772
  %v10774 = vrot.slane %v10727, 3
  %v10775 = vsel %vm10770, %v10772, %v10774
  %v10776 = vrot.slane %v10728, 3
  %v10777 = vsel %vm10770, %v10774, %v10776
  %v10778 = vrot.slane %v10729, 3
  %v10779 = vsel %vm10770, %v10776, %v10778
  %v10780 = vrot.slane %v10730, 3
  %v10781 = vsel %vm10770, %v10778, %v10780
  %v10782 = vrot.slane %v10731, 3
  %v10783 = vsel %vm10770, %v10780, %v10782
  %v10784 = vrot.slane %v10732, 3
  %v10785 = vsel %vm10770, %v10782, %v10784
  %v10786 = vrot.slane %v10733, 3
  %v10787 = vsel %vm10770, %v10784, %v10786
  %v10788 = vrot.slane %v10734, 3
  %v10789 = vsel %vm10770, %v10786, %v10788
  %v10790 = vrot.slane %v10735, 3
  %v10791 = vsel %vm10770, %v10788, %v10790
  %v10792 = vrot.slane %v10736, 3
  %v10793 = vsel %vm10770, %v10790, %v10792
  %v10794 = vrot.slane %v10737, 3
  %v10795 = vsel %vm10770, %v10792, %v10794
  %v10796 = vrot.slane %v10738, 3
  %v10797 = vsel %vm10770, %v10794, %v10796
  %v10798 = vrot.slane %v10739, 3
  %v10799 = vsel %vm10770, %v10796, %v10798
  %v10800 = vrot.slane %v10740, 3
  %v10801 = vsel %vm10770, %v10798, %v10800
  %v10802 = vrot.slane %v10741, 3
  %v10803 = vsel %vm10770, %v10800, %v10802
  %v10804 = vrot.slane %v10742, 3
  %v10805 = vsel %vm10770, %v10802, %v10804
  %v10806 = vrot.slane %v10743, 3
  %v10807 = vsel %vm10770, %v10804, %v10806
  %v10808 = vrot.slane %v10744, 3
  %v10809 = vsel %vm10770, %v10806, %v10808
  %v10810 = vrot.slane %v10745, 3
  %v10811 = vsel %vm10770, %v10808, %v10810
  %v10812 = vrot.slane %v10746, 3
  %v10813 = vsel %vm10770, %v10810, %v10812
  %v10814 = vrot.slane %v10747, 3
  %v10815 = vsel %vm10770, %v10812, %v10814
  %v10816 = vrot.slane %v10748, 3
  %v10817 = vsel %vm10770, %v10814, %v10816
  %v10818 = vrot.slane %v10749, 3
  %v10819 = vsel %vm10770, %v10816, %v10818
  %v10820 = vrot.slane %v10750, 3
  %v10821 = vsel %vm10770, %v10818, %v10820
  %v10822 = vrot.slane %v10751, 3
  %v10823 = vsel %vm10770, %v10820, %v10822
  %v10824 = vrot.slane %v10752, 3
  %v10825 = vsel %vm10770, %v10822, %v10824
  %v10826 = vrot.slane %v10753, 3
  %v10827 = vsel %vm10770, %v10824, %v10826
  %v10828 = vrot.slane %v10754, 3
  %v10829 = vsel %vm10770, %v10826, %v10828
  %v10830 = vrot.slane %v10755, 3
  %v10831 = vsel %vm10770, %v10828, %v10830
  %v10832 = vrot.slane %v10756, 3
  %v10833 = vsel %vm10770, %v10830, %v10832
  %v10834 = vrot.slane %v10757, 3
  %v10835 = vsel %vm10770, %v10832, %v10834
  %v10836 = vrot.slane %v10758, 3
  %v10837 = vsel %vm10770, %v10834, %v10836
  %v10838 = vrot.slane %v10759, 3
  %v10839 = vsel %vm10770, %v10836, %v10838
  %v10840 = vrot.slane %v10760, 3
  %v10841 = vsel %vm10770, %v10838, %v10840
  %v10842 = vrot.slane %v10761, 3
  %v10843 = vsel %vm10770, %v10840, %v10842
  %v10844 = vrot.slane %v10762, 3
  %v10845 = vsel %vm10770, %v10842, %v10844
  %v10846 = vrot.slane %v10763, 3
  %v10847 = vsel %vm10770, %v10844, %v10846
  %v10848 = vrot.slane %v10764, 3
  %v10849 = vsel %vm10770, %v10846, %v10848
  %v10850 = vrot.slane %v10765, 3
  %v10851 = vsel %vm10770, %v10848, %v10850
  %v10852 = vrot.slane %v10766, 3
  %v10853 = vsel %vm10770, %v10850, %v10852
  %v10854 = vrot.slane %v10767, 3
  %v10855 = vsel %vm10770, %v10852, %v10854
  %v10856 = vrot.slane %v10768, 3
  %v10857 = vsel %vm10770, %v10854, %v10856
  %v10858 = vrot.slane %v10769, 3
  %v10859 = vsel %vm10770, %v10856, %v10858
  %v10861 = vsel %vm547, %v10773, 0
  %v10864 = vsel %vm547, %v10775, 0
  %v10867 = vsel %vm547, %v10777, 0
  %v10870 = vsel %vm547, %v10779, 0
  %v10873 = vsel %vm547, %v10781, 0
  %v10876 = vsel %vm547, %v10783, 0
  %v10879 = vsel %vm547, %v10785, 0
  %v10882 = vsel %vm547, %v10787, 0
  %v10885 = vsel %vm547, %v10789, 0
  %v10888 = vsel %vm547, %v10791, 0
  %v10891 = vsel %vm547, %v10793, 0
  %v10894 = vsel %vm547, %v10795, 0
  %v10897 = vsel %vm547, %v10797, 0
  %v10900 = vsel %vm547, %v10799, 0
  %v10903 = vsel %vm547, %v10801, 0
  %v10906 = vsel %vm547, %v10803, 0
  %v10909 = vsel %vm547, %v10805, 0
  %v10912 = vsel %vm547, %v10807, 0
  %v10915 = vsel %vm547, %v10809, 0
  %v10918 = vsel %vm547, %v10811, 0
  %v10921 = vsel %vm547, %v10813, 0
  %v10924 = vsel %vm547, %v10815, 0
  %v10927 = vsel %vm547, %v10817, 0
  %v10930 = vsel %vm547, %v10819, 0
  %v10933 = vsel %vm547, %v10821, 0
  %v10936 = vsel %vm547, %v10823, 0
  %v10939 = vsel %vm547, %v10825, 0
  %v10942 = vsel %vm547, %v10827, 0
  %v10945 = vsel %vm547, %v10829, 0
  %v10948 = vsel %vm547, %v10831, 0
  %v10951 = vsel %vm547, %v10833, 0
  %v10954 = vsel %vm547, %v10835, 0
  %v10957 = vsel %vm547, %v10837, 0
  %v10960 = vsel %vm547, %v10839, 0
  %v10963 = vsel %vm547, %v10841, 0
  %v10966 = vsel %vm547, %v10843, 0
  %v10969 = vsel %vm547, %v10845, 0
  %v10972 = vsel %vm547, %v10847, 0
  %v10975 = vsel %vm547, %v10849, 0
  %v10978 = vsel %vm547, %v10851, 0
  %v10981 = vsel %vm547, %v10853, 0
  %v10984 = vsel %vm547, %v10855, 0
  %v10987 = vsel %vm547, %v10857, 0
  %v10990 = vsel %vm547, %v10859, 0
  %v10993 = vsel %vm680, %v10546, 0
  %10995 = vmatprep.subr.bf16.mxu0 0
  %10996 = vmatpush1.bf16.msra.mxu0 0
  %10997 = vmatprep.subr.bf16.mxu0 0
  %10998 = vmatpush1.bf16.msra.mxu0 0
  %10999 = vmatprep.subr.bf16.mxu0 0
  %11000 = vmatpush1.bf16.msra.mxu0 0
  %11001 = vmatprep.subr.bf16.mxu0 0
  %11002 = vmatpush1.bf16.msra.mxu0 0
  %11003 = vmatprep.subr.bf16.mxu0 0
  %11004 = vmatpush1.bf16.msra.mxu0 0
  %11005 = vmatprep.subr.bf16.mxu0 0
  %11006 = vmatpush1.bf16.msra.mxu0 0
  %11007 = vmatprep.subr.bf16.mxu0 0
  %11008 = vmatpush1.bf16.msra.mxu0 0
  %11009 = vmatprep.subr.bf16.mxu0 0
  %11010 = vmatpush1.bf16.msra.mxu0 %v10993
  %11011 = vmatprep.subr.bf16.mxu0 0
  %11012 = vmatpush2.bf16.msra.mxu0 0
  %11013 = vmatprep.subr.bf16.mxu0 0
  %11014 = vmatpush2.bf16.msra.mxu0 0
  %11015 = vmatprep.subr.bf16.mxu0 0
  %11016 = vmatpush2.bf16.msra.mxu0 0
  %11017 = vmatprep.subr.bf16.mxu0 0
  %11018 = vmatpush2.bf16.msra.mxu0 0
  %11019 = vmatprep.subr.bf16.mxu0 0
  %11020 = vmatpush2.bf16.msra.mxu0 0
  %11021 = vmatprep.subr.bf16.mxu0 0
  %11022 = vmatpush2.bf16.msra.mxu0 0
  %11023 = vmatprep.subr.bf16.mxu0 0
  %11024 = vmatpush2.bf16.msra.mxu0 0
  %11025 = vmatprep.subr.bf16.mxu0 0
  %11026 = vmatpush2.bf16.msra.mxu0 0
  %11027 = vmatprep.mubr.bf16.mxu0 0
  %11028 = vmatmul.mubr.bf16.gmra.mxu0 %v10861
  %v11029 = vpop.f32.mrf.mxu0
  %v11030 = vadd.f32 0.0, %v11029
  %v11031 = vpop.f32.mrf.mxu0
  %v11032 = vpop.f32.mrf.mxu0
  %v11033 = vadd.f32 0.0, %v11032
  %v11034 = vpop.f32.mrf.mxu0
  %11035 = vmatprep.mubr.bf16.mxu0 0
  %11036 = vmatmul.mubr.bf16.gmra.mxu0 %v10864
  %v11037 = vpop.f32.mrf.mxu0
  %v11038 = vadd.f32 0.0, %v11037
  %v11039 = vpop.f32.mrf.mxu0
  %v11040 = vpop.f32.mrf.mxu0
  %v11041 = vadd.f32 0.0, %v11040
  %v11042 = vpop.f32.mrf.mxu0
  %11043 = vmatprep.mubr.bf16.mxu0 0
  %11044 = vmatmul.mubr.bf16.gmra.mxu0 %v10867
  %v11045 = vpop.f32.mrf.mxu0
  %v11046 = vadd.f32 0.0, %v11045
  %v11047 = vpop.f32.mrf.mxu0
  %v11048 = vpop.f32.mrf.mxu0
  %v11049 = vadd.f32 0.0, %v11048
  %v11050 = vpop.f32.mrf.mxu0
  %11051 = vmatprep.mubr.bf16.mxu0 0
  %11052 = vmatmul.mubr.bf16.gmra.mxu0 %v10870
  %v11053 = vpop.f32.mrf.mxu0
  %v11054 = vadd.f32 0.0, %v11053
  %v11055 = vpop.f32.mrf.mxu0
  %v11056 = vpop.f32.mrf.mxu0
  %v11057 = vadd.f32 0.0, %v11056
  %v11058 = vpop.f32.mrf.mxu0
  %11059 = vmatprep.mubr.bf16.mxu0 0
  %11060 = vmatmul.mubr.bf16.gmra.mxu0 %v10873
  %v11061 = vpop.f32.mrf.mxu0
  %v11062 = vadd.f32 0.0, %v11061
  %v11063 = vpop.f32.mrf.mxu0
  %v11064 = vpop.f32.mrf.mxu0
  %v11065 = vadd.f32 0.0, %v11064
  %v11066 = vpop.f32.mrf.mxu0
  %11067 = vmatprep.mubr.bf16.mxu0 0
  %11068 = vmatmul.mubr.bf16.gmra.mxu0 %v10876
  %v11069 = vpop.f32.mrf.mxu0
  %v11070 = vadd.f32 0.0, %v11069
  %v11071 = vpop.f32.mrf.mxu0
  %v11072 = vpop.f32.mrf.mxu0
  %v11073 = vadd.f32 0.0, %v11072
  %v11074 = vpop.f32.mrf.mxu0
  %11075 = vmatprep.mubr.bf16.mxu0 0
  %11076 = vmatmul.mubr.bf16.gmra.mxu0 %v10879
  %v11077 = vpop.f32.mrf.mxu0
  %v11078 = vadd.f32 0.0, %v11077
  %v11079 = vpop.f32.mrf.mxu0
  %v11080 = vpop.f32.mrf.mxu0
  %v11081 = vadd.f32 0.0, %v11080
  %v11082 = vpop.f32.mrf.mxu0
  %11083 = vmatprep.mubr.bf16.mxu0 0
  %11084 = vmatmul.mubr.bf16.gmra.mxu0 %v10882
  %v11085 = vpop.f32.mrf.mxu0
  %v11086 = vadd.f32 0.0, %v11085
  %v11087 = vpop.f32.mrf.mxu0
  %v11088 = vpop.f32.mrf.mxu0
  %v11089 = vadd.f32 0.0, %v11088
  %v11090 = vpop.f32.mrf.mxu0
  %11091 = vmatprep.mubr.bf16.mxu0 0
  %11092 = vmatmul.mubr.bf16.gmra.mxu0 %v10885
  %v11093 = vpop.f32.mrf.mxu0
  %v11094 = vadd.f32 0.0, %v11093
  %v11095 = vpop.f32.mrf.mxu0
  %v11096 = vpop.f32.mrf.mxu0
  %v11097 = vadd.f32 0.0, %v11096
  %v11098 = vpop.f32.mrf.mxu0
  %11099 = vmatprep.mubr.bf16.mxu0 0
  %11100 = vmatmul.mubr.bf16.gmra.mxu0 %v10888
  %v11101 = vpop.f32.mrf.mxu0
  %v11102 = vadd.f32 0.0, %v11101
  %v11103 = vpop.f32.mrf.mxu0
  %v11104 = vpop.f32.mrf.mxu0
  %v11105 = vadd.f32 0.0, %v11104
  %v11106 = vpop.f32.mrf.mxu0
  %11107 = vmatprep.mubr.bf16.mxu0 0
  %11108 = vmatmul.mubr.bf16.gmra.mxu0 %v10891
  %v11109 = vpop.f32.mrf.mxu0
  %v11110 = vadd.f32 0.0, %v11109
  %v11111 = vpop.f32.mrf.mxu0
  %v11112 = vpop.f32.mrf.mxu0
  %v11113 = vadd.f32 0.0, %v11112
  %v11114 = vpop.f32.mrf.mxu0
  %11115 = vmatprep.mubr.bf16.mxu0 0
  %11116 = vmatmul.mubr.bf16.gmra.mxu0 %v10894
  %v11117 = vpop.f32.mrf.mxu0
  %v11118 = vadd.f32 0.0, %v11117
  %v11119 = vpop.f32.mrf.mxu0
  %v11120 = vpop.f32.mrf.mxu0
  %v11121 = vadd.f32 0.0, %v11120
  %v11122 = vpop.f32.mrf.mxu0
  %11123 = vmatprep.mubr.bf16.mxu0 0
  %11124 = vmatmul.mubr.bf16.gmra.mxu0 %v10897
  %v11125 = vpop.f32.mrf.mxu0
  %v11126 = vadd.f32 0.0, %v11125
  %v11127 = vpop.f32.mrf.mxu0
  %v11128 = vpop.f32.mrf.mxu0
  %v11129 = vadd.f32 0.0, %v11128
  %v11130 = vpop.f32.mrf.mxu0
  %11131 = vmatprep.mubr.bf16.mxu0 0
  %11132 = vmatmul.mubr.bf16.gmra.mxu0 %v10900
  %v11133 = vpop.f32.mrf.mxu0
  %v11134 = vadd.f32 0.0, %v11133
  %v11135 = vpop.f32.mrf.mxu0
  %v11136 = vpop.f32.mrf.mxu0
  %v11137 = vadd.f32 0.0, %v11136
  %v11138 = vpop.f32.mrf.mxu0
  %11139 = vmatprep.mubr.bf16.mxu0 0
  %11140 = vmatmul.mubr.bf16.gmra.mxu0 %v10903
  %v11141 = vpop.f32.mrf.mxu0
  %v11142 = vadd.f32 0.0, %v11141
  %v11143 = vpop.f32.mrf.mxu0
  %v11144 = vpop.f32.mrf.mxu0
  %v11145 = vadd.f32 0.0, %v11144
  %v11146 = vpop.f32.mrf.mxu0
  %11147 = vmatprep.mubr.bf16.mxu0 0
  %11148 = vmatmul.mubr.bf16.gmra.mxu0 %v10906
  %v11149 = vpop.f32.mrf.mxu0
  %v11150 = vadd.f32 0.0, %v11149
  %v11151 = vpop.f32.mrf.mxu0
  %v11152 = vpop.f32.mrf.mxu0
  %v11153 = vadd.f32 0.0, %v11152
  %v11154 = vpop.f32.mrf.mxu0
  %11155 = vmatprep.mubr.bf16.mxu0 0
  %11156 = vmatmul.mubr.bf16.gmra.mxu0 %v10909
  %v11157 = vpop.f32.mrf.mxu0
  %v11158 = vadd.f32 0.0, %v11157
  %v11159 = vpop.f32.mrf.mxu0
  %v11160 = vpop.f32.mrf.mxu0
  %v11161 = vadd.f32 0.0, %v11160
  %v11162 = vpop.f32.mrf.mxu0
  %11163 = vmatprep.mubr.bf16.mxu0 0
  %11164 = vmatmul.mubr.bf16.gmra.mxu0 %v10912
  %v11165 = vpop.f32.mrf.mxu0
  %v11166 = vadd.f32 0.0, %v11165
  %v11167 = vpop.f32.mrf.mxu0
  %v11168 = vpop.f32.mrf.mxu0
  %v11169 = vadd.f32 0.0, %v11168
  %v11170 = vpop.f32.mrf.mxu0
  %11171 = vmatprep.mubr.bf16.mxu0 0
  %11172 = vmatmul.mubr.bf16.gmra.mxu0 %v10915
  %v11173 = vpop.f32.mrf.mxu0
  %v11174 = vadd.f32 0.0, %v11173
  %v11175 = vpop.f32.mrf.mxu0
  %v11176 = vpop.f32.mrf.mxu0
  %v11177 = vadd.f32 0.0, %v11176
  %v11178 = vpop.f32.mrf.mxu0
  %11179 = vmatprep.mubr.bf16.mxu0 0
  %11180 = vmatmul.mubr.bf16.gmra.mxu0 %v10918
  %v11181 = vpop.f32.mrf.mxu0
  %v11182 = vadd.f32 0.0, %v11181
  %v11183 = vpop.f32.mrf.mxu0
  %v11184 = vpop.f32.mrf.mxu0
  %v11185 = vadd.f32 0.0, %v11184
  %v11186 = vpop.f32.mrf.mxu0
  %11187 = vmatprep.mubr.bf16.mxu0 0
  %11188 = vmatmul.mubr.bf16.gmra.mxu0 %v10921
  %v11189 = vpop.f32.mrf.mxu0
  %v11190 = vadd.f32 0.0, %v11189
  %v11191 = vpop.f32.mrf.mxu0
  %v11192 = vpop.f32.mrf.mxu0
  %v11193 = vadd.f32 0.0, %v11192
  %v11194 = vpop.f32.mrf.mxu0
  %11195 = vmatprep.mubr.bf16.mxu0 0
  %11196 = vmatmul.mubr.bf16.gmra.mxu0 %v10924
  %v11197 = vpop.f32.mrf.mxu0
  %v11198 = vadd.f32 0.0, %v11197
  %v11199 = vpop.f32.mrf.mxu0
  %v11200 = vpop.f32.mrf.mxu0
  %v11201 = vadd.f32 0.0, %v11200
  %v11202 = vpop.f32.mrf.mxu0
  %11203 = vmatprep.mubr.bf16.mxu0 0
  %11204 = vmatmul.mubr.bf16.gmra.mxu0 %v10927
  %v11205 = vpop.f32.mrf.mxu0
  %v11206 = vadd.f32 0.0, %v11205
  %v11207 = vpop.f32.mrf.mxu0
  %v11208 = vpop.f32.mrf.mxu0
  %v11209 = vadd.f32 0.0, %v11208
  %v11210 = vpop.f32.mrf.mxu0
  %11211 = vmatprep.mubr.bf16.mxu0 0
  %11212 = vmatmul.mubr.bf16.gmra.mxu0 %v10930
  %v11213 = vpop.f32.mrf.mxu0
  %v11214 = vadd.f32 0.0, %v11213
  %v11215 = vpop.f32.mrf.mxu0
  %v11216 = vpop.f32.mrf.mxu0
  %v11217 = vadd.f32 0.0, %v11216
  %v11218 = vpop.f32.mrf.mxu0
  %11219 = vmatprep.mubr.bf16.mxu0 0
  %11220 = vmatmul.mubr.bf16.gmra.mxu0 %v10933
  %v11221 = vpop.f32.mrf.mxu0
  %v11222 = vadd.f32 0.0, %v11221
  %v11223 = vpop.f32.mrf.mxu0
  %v11224 = vpop.f32.mrf.mxu0
  %v11225 = vadd.f32 0.0, %v11224
  %v11226 = vpop.f32.mrf.mxu0
  %11227 = vmatprep.mubr.bf16.mxu0 0
  %11228 = vmatmul.mubr.bf16.gmra.mxu0 %v10936
  %v11229 = vpop.f32.mrf.mxu0
  %v11230 = vadd.f32 0.0, %v11229
  %v11231 = vpop.f32.mrf.mxu0
  %v11232 = vpop.f32.mrf.mxu0
  %v11233 = vadd.f32 0.0, %v11232
  %v11234 = vpop.f32.mrf.mxu0
  %11235 = vmatprep.mubr.bf16.mxu0 0
  %11236 = vmatmul.mubr.bf16.gmra.mxu0 %v10939
  %v11237 = vpop.f32.mrf.mxu0
  %v11238 = vadd.f32 0.0, %v11237
  %v11239 = vpop.f32.mrf.mxu0
  %v11240 = vpop.f32.mrf.mxu0
  %v11241 = vadd.f32 0.0, %v11240
  %v11242 = vpop.f32.mrf.mxu0
  %11243 = vmatprep.mubr.bf16.mxu0 0
  %11244 = vmatmul.mubr.bf16.gmra.mxu0 %v10942
  %v11245 = vpop.f32.mrf.mxu0
  %v11246 = vadd.f32 0.0, %v11245
  %v11247 = vpop.f32.mrf.mxu0
  %v11248 = vpop.f32.mrf.mxu0
  %v11249 = vadd.f32 0.0, %v11248
  %v11250 = vpop.f32.mrf.mxu0
  %11251 = vmatprep.mubr.bf16.mxu0 0
  %11252 = vmatmul.mubr.bf16.gmra.mxu0 %v10945
  %v11253 = vpop.f32.mrf.mxu0
  %v11254 = vadd.f32 0.0, %v11253
  %v11255 = vpop.f32.mrf.mxu0
  %v11256 = vpop.f32.mrf.mxu0
  %v11257 = vadd.f32 0.0, %v11256
  %v11258 = vpop.f32.mrf.mxu0
  %11259 = vmatprep.mubr.bf16.mxu0 0
  %11260 = vmatmul.mubr.bf16.gmra.mxu0 %v10948
  %v11261 = vpop.f32.mrf.mxu0
  %v11262 = vadd.f32 0.0, %v11261
  %v11263 = vpop.f32.mrf.mxu0
  %v11264 = vpop.f32.mrf.mxu0
  %v11265 = vadd.f32 0.0, %v11264
  %v11266 = vpop.f32.mrf.mxu0
  %11267 = vmatprep.mubr.bf16.mxu0 0
  %11268 = vmatmul.mubr.bf16.gmra.mxu0 %v10951
  %v11269 = vpop.f32.mrf.mxu0
  %v11270 = vadd.f32 0.0, %v11269
  %v11271 = vpop.f32.mrf.mxu0
  %v11272 = vpop.f32.mrf.mxu0
  %v11273 = vadd.f32 0.0, %v11272
  %v11274 = vpop.f32.mrf.mxu0
  %11275 = vmatprep.mubr.bf16.mxu0 0
  %11276 = vmatmul.mubr.bf16.gmra.mxu0 %v10954
  %v11277 = vpop.f32.mrf.mxu0
  %v11278 = vadd.f32 0.0, %v11277
  %v11279 = vpop.f32.mrf.mxu0
  %v11280 = vpop.f32.mrf.mxu0
  %v11281 = vadd.f32 0.0, %v11280
  %v11282 = vpop.f32.mrf.mxu0
  %11283 = vmatprep.mubr.bf16.mxu0 0
  %11284 = vmatmul.mubr.bf16.gmra.mxu0 %v10957
  %v11285 = vpop.f32.mrf.mxu0
  %v11286 = vadd.f32 0.0, %v11285
  %v11287 = vpop.f32.mrf.mxu0
  %v11288 = vpop.f32.mrf.mxu0
  %v11289 = vadd.f32 0.0, %v11288
  %v11290 = vpop.f32.mrf.mxu0
  %11291 = vmatprep.mubr.bf16.mxu0 0
  %11292 = vmatmul.mubr.bf16.gmra.mxu0 %v10960
  %v11293 = vpop.f32.mrf.mxu0
  %v11294 = vadd.f32 0.0, %v11293
  %v11295 = vpop.f32.mrf.mxu0
  %v11296 = vpop.f32.mrf.mxu0
  %v11297 = vadd.f32 0.0, %v11296
  %v11298 = vpop.f32.mrf.mxu0
  %11299 = vmatprep.mubr.bf16.mxu0 0
  %11300 = vmatmul.mubr.bf16.gmra.mxu0 %v10963
  %v11301 = vpop.f32.mrf.mxu0
  %v11302 = vadd.f32 0.0, %v11301
  %v11303 = vpop.f32.mrf.mxu0
  %v11304 = vpop.f32.mrf.mxu0
  %v11305 = vadd.f32 0.0, %v11304
  %v11306 = vpop.f32.mrf.mxu0
  %11307 = vmatprep.mubr.bf16.mxu0 0
  %11308 = vmatmul.mubr.bf16.gmra.mxu0 %v10966
  %v11309 = vpop.f32.mrf.mxu0
  %v11310 = vadd.f32 0.0, %v11309
  %v11311 = vpop.f32.mrf.mxu0
  %v11312 = vpop.f32.mrf.mxu0
  %v11313 = vadd.f32 0.0, %v11312
  %v11314 = vpop.f32.mrf.mxu0
  %11315 = vmatprep.mubr.bf16.mxu0 0
  %11316 = vmatmul.mubr.bf16.gmra.mxu0 %v10969
  %v11317 = vpop.f32.mrf.mxu0
  %v11318 = vadd.f32 0.0, %v11317
  %v11319 = vpop.f32.mrf.mxu0
  %v11320 = vpop.f32.mrf.mxu0
  %v11321 = vadd.f32 0.0, %v11320
  %v11322 = vpop.f32.mrf.mxu0
  %11323 = vmatprep.mubr.bf16.mxu0 0
  %11324 = vmatmul.mubr.bf16.gmra.mxu0 %v10972
  %v11325 = vpop.f32.mrf.mxu0
  %v11326 = vadd.f32 0.0, %v11325
  %v11327 = vpop.f32.mrf.mxu0
  %v11328 = vpop.f32.mrf.mxu0
  %v11329 = vadd.f32 0.0, %v11328
  %v11330 = vpop.f32.mrf.mxu0
  %11331 = vmatprep.mubr.bf16.mxu0 0
  %11332 = vmatmul.mubr.bf16.gmra.mxu0 %v10975
  %v11333 = vpop.f32.mrf.mxu0
  %v11334 = vadd.f32 0.0, %v11333
  %v11335 = vpop.f32.mrf.mxu0
  %v11336 = vpop.f32.mrf.mxu0
  %v11337 = vadd.f32 0.0, %v11336
  %v11338 = vpop.f32.mrf.mxu0
  %11339 = vmatprep.mubr.bf16.mxu0 0
  %11340 = vmatmul.mubr.bf16.gmra.mxu0 %v10978
  %v11341 = vpop.f32.mrf.mxu0
  %v11342 = vadd.f32 0.0, %v11341
  %v11343 = vpop.f32.mrf.mxu0
  %v11344 = vpop.f32.mrf.mxu0
  %v11345 = vadd.f32 0.0, %v11344
  %v11346 = vpop.f32.mrf.mxu0
  %11347 = vmatprep.mubr.bf16.mxu0 0
  %11348 = vmatmul.mubr.bf16.gmra.mxu0 %v10981
  %v11349 = vpop.f32.mrf.mxu0
  %v11350 = vadd.f32 0.0, %v11349
  %v11351 = vpop.f32.mrf.mxu0
  %v11352 = vpop.f32.mrf.mxu0
  %v11353 = vadd.f32 0.0, %v11352
  %v11354 = vpop.f32.mrf.mxu0
  %11355 = vmatprep.mubr.bf16.mxu0 0
  %11356 = vmatmul.mubr.bf16.gmra.mxu0 %v10984
  %v11357 = vpop.f32.mrf.mxu0
  %v11358 = vadd.f32 0.0, %v11357
  %v11359 = vpop.f32.mrf.mxu0
  %v11360 = vpop.f32.mrf.mxu0
  %v11361 = vadd.f32 0.0, %v11360
  %v11362 = vpop.f32.mrf.mxu0
  %11363 = vmatprep.mubr.bf16.mxu0 0
  %11364 = vmatmul.mubr.bf16.gmra.mxu0 %v10987
  %v11365 = vpop.f32.mrf.mxu0
  %v11366 = vadd.f32 0.0, %v11365
  %v11367 = vpop.f32.mrf.mxu0
  %v11368 = vpop.f32.mrf.mxu0
  %v11369 = vadd.f32 0.0, %v11368
  %v11370 = vpop.f32.mrf.mxu0
  %11371 = vmatprep.mubr.bf16.mxu0 0
  %11372 = vmatmul.mubr.bf16.gmra.mxu0 %v10990
  %v11373 = vpop.f32.mrf.mxu0
  %v11374 = vadd.f32 0.0, %v11373
  %v11375 = vpop.f32.mrf.mxu0
  %v11376 = vpop.f32.mrf.mxu0
  %v11377 = vadd.f32 0.0, %v11376
  %v11378 = vpop.f32.mrf.mxu0
  %11379 = vdwg.mxu0
  %v11380 = vadd.f32 %v10368, %v11030
  %v11381 = vadd.f32 %v10369, %v11033
  %v11382 = vadd.f32 %v10370, %v11038
  %v11383 = vadd.f32 %v10371, %v11041
  %v11384 = vadd.f32 %v10372, %v11046
  %v11385 = vadd.f32 %v10373, %v11049
  %v11386 = vadd.f32 %v10374, %v11054
  %v11387 = vadd.f32 %v10375, %v11057
  %v11388 = vadd.f32 %v10376, %v11062
  %v11389 = vadd.f32 %v10377, %v11065
  %v11390 = vadd.f32 %v10378, %v11070
  %v11391 = vadd.f32 %v10379, %v11073
  %v11392 = vadd.f32 %v10380, %v11078
  %v11393 = vadd.f32 %v10381, %v11081
  %v11394 = vadd.f32 %v10382, %v11086
  %v11395 = vadd.f32 %v10383, %v11089
  %v11396 = vadd.f32 %v10384, %v11094
  %v11397 = vadd.f32 %v10385, %v11097
  %v11398 = vadd.f32 %v10386, %v11102
  %v11399 = vadd.f32 %v10387, %v11105
  %v11400 = vadd.f32 %v10388, %v11110
  %v11401 = vadd.f32 %v10389, %v11113
  %v11402 = vadd.f32 %v10390, %v11118
  %v11403 = vadd.f32 %v10391, %v11121
  %v11404 = vadd.f32 %v10392, %v11126
  %v11405 = vadd.f32 %v10393, %v11129
  %v11406 = vadd.f32 %v10394, %v11134
  %v11407 = vadd.f32 %v10395, %v11137
  %v11408 = vadd.f32 %v10396, %v11142
  %v11409 = vadd.f32 %v10397, %v11145
  %v11410 = vadd.f32 %v10398, %v11150
  %v11411 = vadd.f32 %v10399, %v11153
  %v11412 = vadd.f32 %v10400, %v11158
  %v11413 = vadd.f32 %v10401, %v11161
  %v11414 = vadd.f32 %v10402, %v11166
  %v11415 = vadd.f32 %v10403, %v11169
  %v11416 = vadd.f32 %v10404, %v11174
  %v11417 = vadd.f32 %v10405, %v11177
  %v11418 = vadd.f32 %v10406, %v11182
  %v11419 = vadd.f32 %v10407, %v11185
  %v11420 = vadd.f32 %v10408, %v11190
  %v11421 = vadd.f32 %v10409, %v11193
  %v11422 = vadd.f32 %v10410, %v11198
  %v11423 = vadd.f32 %v10411, %v11201
  %v11424 = vadd.f32 %v10412, %v11206
  %v11425 = vadd.f32 %v10413, %v11209
  %v11426 = vadd.f32 %v10414, %v11214
  %v11427 = vadd.f32 %v10415, %v11217
  %v11428 = vadd.f32 %v10416, %v11222
  %v11429 = vadd.f32 %v10417, %v11225
  %v11430 = vadd.f32 %v10418, %v11230
  %v11431 = vadd.f32 %v10419, %v11233
  %v11432 = vadd.f32 %v10420, %v11238
  %v11433 = vadd.f32 %v10421, %v11241
  %v11434 = vadd.f32 %v10422, %v11246
  %v11435 = vadd.f32 %v10423, %v11249
  %v11436 = vadd.f32 %v10424, %v11254
  %v11437 = vadd.f32 %v10425, %v11257
  %v11438 = vadd.f32 %v10426, %v11262
  %v11439 = vadd.f32 %v10427, %v11265
  %v11440 = vadd.f32 %v10428, %v11270
  %v11441 = vadd.f32 %v10429, %v11273
  %v11442 = vadd.f32 %v10430, %v11278
  %v11443 = vadd.f32 %v10431, %v11281
  %v11444 = vadd.f32 %v10432, %v11286
  %v11445 = vadd.f32 %v10433, %v11289
  %v11446 = vadd.f32 %v10434, %v11294
  %v11447 = vadd.f32 %v10435, %v11297
  %v11448 = vadd.f32 %v10436, %v11302
  %v11449 = vadd.f32 %v10437, %v11305
  %v11450 = vadd.f32 %v10438, %v11310
  %v11451 = vadd.f32 %v10439, %v11313
  %v11452 = vadd.f32 %v10440, %v11318
  %v11453 = vadd.f32 %v10441, %v11321
  %v11454 = vadd.f32 %v10442, %v11326
  %v11455 = vadd.f32 %v10443, %v11329
  %v11456 = vadd.f32 %v10444, %v11334
  %v11457 = vadd.f32 %v10445, %v11337
  %v11458 = vadd.f32 %v10446, %v11342
  %v11459 = vadd.f32 %v10447, %v11345
  %v11460 = vadd.f32 %v10448, %v11350
  %v11461 = vadd.f32 %v10449, %v11353
  %v11462 = vadd.f32 %v10450, %v11358
  %v11463 = vadd.f32 %v10451, %v11361
  %v11464 = vadd.f32 %v10452, %v11366
  %v11465 = vadd.f32 %v10453, %v11369
  %v11466 = vadd.f32 %v10454, %v11374
  %v11467 = vadd.f32 %v10455, %v11377
  %11468 = vst [vmem:[#allocation3] sm:$0xff] %v11380
  %11469 = vst [vmem:[#allocation3 + $0x8] sm:$0xff] %v11381
  %11470 = vst [vmem:[#allocation3 + $0x10] sm:$0xff] %v11382
  %11471 = vst [vmem:[#allocation3 + $0x18] sm:$0xff] %v11383
  %11472 = vst [vmem:[#allocation3 + $0x20] sm:$0xff] %v11384
  %11473 = vst [vmem:[#allocation3 + $0x28] sm:$0xff] %v11385
  %11474 = vst [vmem:[#allocation3 + $0x30] sm:$0xff] %v11386
  %11475 = vst [vmem:[#allocation3 + $0x38] sm:$0xff] %v11387
  %11476 = vst [vmem:[#allocation3 + $0x40] sm:$0xff] %v11388
  %11477 = vst [vmem:[#allocation3 + $0x48] sm:$0xff] %v11389
  %11478 = vst [vmem:[#allocation3 + $0x50] sm:$0xff] %v11390
  %11479 = vst [vmem:[#allocation3 + $0x58] sm:$0xff] %v11391
  %11480 = vst [vmem:[#allocation3 + $0x60] sm:$0xff] %v11392
  %11481 = vst [vmem:[#allocation3 + $0x68] sm:$0xff] %v11393
  %11482 = vst [vmem:[#allocation3 + $0x70] sm:$0xff] %v11394
  %11483 = vst [vmem:[#allocation3 + $0x78] sm:$0xff] %v11395
  %11484 = vst [vmem:[#allocation3 + $0x80] sm:$0xff] %v11396
  %11485 = vst [vmem:[#allocation3 + $0x88] sm:$0xff] %v11397
  %11486 = vst [vmem:[#allocation3 + $0x90] sm:$0xff] %v11398
  %11487 = vst [vmem:[#allocation3 + $0x98] sm:$0xff] %v11399
  %11488 = vst [vmem:[#allocation3 + $0xa0] sm:$0xff] %v11400
  %11489 = vst [vmem:[#allocation3 + $0xa8] sm:$0xff] %v11401
  %11490 = vst [vmem:[#allocation3 + $0xb0] sm:$0xff] %v11402
  %11491 = vst [vmem:[#allocation3 + $0xb8] sm:$0xff] %v11403
  %11492 = vst [vmem:[#allocation3 + $0xc0] sm:$0xff] %v11404
  %11493 = vst [vmem:[#allocation3 + $0xc8] sm:$0xff] %v11405
  %11494 = vst [vmem:[#allocation3 + $0xd0] sm:$0xff] %v11406
  %11495 = vst [vmem:[#allocation3 + $0xd8] sm:$0xff] %v11407
  %11496 = vst [vmem:[#allocation3 + $0xe0] sm:$0xff] %v11408
  %11497 = vst [vmem:[#allocation3 + $0xe8] sm:$0xff] %v11409
  %11498 = vst [vmem:[#allocation3 + $0xf0] sm:$0xff] %v11410
  %11499 = vst [vmem:[#allocation3 + $0xf8] sm:$0xff] %v11411
  %11500 = vst [vmem:[#allocation3 + $0x100] sm:$0xff] %v11412
  %11501 = vst [vmem:[#allocation3 + $0x108] sm:$0xff] %v11413
  %11502 = vst [vmem:[#allocation3 + $0x110] sm:$0xff] %v11414
  %11503 = vst [vmem:[#allocation3 + $0x118] sm:$0xff] %v11415
  %11504 = vst [vmem:[#allocation3 + $0x120] sm:$0xff] %v11416
  %11505 = vst [vmem:[#allocation3 + $0x128] sm:$0xff] %v11417
  %11506 = vst [vmem:[#allocation3 + $0x130] sm:$0xff] %v11418
  %11507 = vst [vmem:[#allocation3 + $0x138] sm:$0xff] %v11419
  %11508 = vst [vmem:[#allocation3 + $0x140] sm:$0xff] %v11420
  %11509 = vst [vmem:[#allocation3 + $0x148] sm:$0xff] %v11421
  %11510 = vst [vmem:[#allocation3 + $0x150] sm:$0xff] %v11422
  %11511 = vst [vmem:[#allocation3 + $0x158] sm:$0xff] %v11423
  %11512 = vst [vmem:[#allocation3 + $0x160] sm:$0xff] %v11424
  %11513 = vst [vmem:[#allocation3 + $0x168] sm:$0xff] %v11425
  %11514 = vst [vmem:[#allocation3 + $0x170] sm:$0xff] %v11426
  %11515 = vst [vmem:[#allocation3 + $0x178] sm:$0xff] %v11427
  %11516 = vst [vmem:[#allocation3 + $0x180] sm:$0xff] %v11428
  %11517 = vst [vmem:[#allocation3 + $0x188] sm:$0xff] %v11429
  %11518 = vst [vmem:[#allocation3 + $0x190] sm:$0xff] %v11430
  %11519 = vst [vmem:[#allocation3 + $0x198] sm:$0xff] %v11431
  %11520 = vst [vmem:[#allocation3 + $0x1a0] sm:$0xff] %v11432
  %11521 = vst [vmem:[#allocation3 + $0x1a8] sm:$0xff] %v11433
  %11522 = vst [vmem:[#allocation3 + $0x1b0] sm:$0xff] %v11434
  %11523 = vst [vmem:[#allocation3 + $0x1b8] sm:$0xff] %v11435
  %11524 = vst [vmem:[#allocation3 + $0x1c0] sm:$0xff] %v11436
  %11525 = vst [vmem:[#allocation3 + $0x1c8] sm:$0xff] %v11437
  %11526 = vst [vmem:[#allocation3 + $0x1d0] sm:$0xff] %v11438
  %11527 = vst [vmem:[#allocation3 + $0x1d8] sm:$0xff] %v11439
  %11528 = vst [vmem:[#allocation3 + $0x1e0] sm:$0xff] %v11440
  %11529 = vst [vmem:[#allocation3 + $0x1e8] sm:$0xff] %v11441
  %11530 = vst [vmem:[#allocation3 + $0x1f0] sm:$0xff] %v11442
  %11531 = vst [vmem:[#allocation3 + $0x1f8] sm:$0xff] %v11443
  %11532 = vst [vmem:[#allocation3 + $0x200] sm:$0xff] %v11444
  %11533 = vst [vmem:[#allocation3 + $0x208] sm:$0xff] %v11445
  %11534 = vst [vmem:[#allocation3 + $0x210] sm:$0xff] %v11446
  %11535 = vst [vmem:[#allocation3 + $0x218] sm:$0xff] %v11447
  %11536 = vst [vmem:[#allocation3 + $0x220] sm:$0xff] %v11448
  %11537 = vst [vmem:[#allocation3 + $0x228] sm:$0xff] %v11449
  %11538 = vst [vmem:[#allocation3 + $0x230] sm:$0xff] %v11450
  %11539 = vst [vmem:[#allocation3 + $0x238] sm:$0xff] %v11451
  %11540 = vst [vmem:[#allocation3 + $0x240] sm:$0xff] %v11452
  %11541 = vst [vmem:[#allocation3 + $0x248] sm:$0xff] %v11453
  %11542 = vst [vmem:[#allocation3 + $0x250] sm:$0xff] %v11454
  %11543 = vst [vmem:[#allocation3 + $0x258] sm:$0xff] %v11455
  %11544 = vst [vmem:[#allocation3 + $0x260] sm:$0xff] %v11456
  %11545 = vst [vmem:[#allocation3 + $0x268] sm:$0xff] %v11457
  %11546 = vst [vmem:[#allocation3 + $0x270] sm:$0xff] %v11458
  %11547 = vst [vmem:[#allocation3 + $0x278] sm:$0xff] %v11459
  %11548 = vst [vmem:[#allocation3 + $0x280] sm:$0xff] %v11460
  %11549 = vst [vmem:[#allocation3 + $0x288] sm:$0xff] %v11461
  %11550 = vst [vmem:[#allocation3 + $0x290] sm:$0xff] %v11462
  %11551 = vst [vmem:[#allocation3 + $0x298] sm:$0xff] %v11463
  %11552 = vst [vmem:[#allocation3 + $0x2a0] sm:$0xff] %v11464
  %11553 = vst [vmem:[#allocation3 + $0x2a8] sm:$0xff] %v11465
  %11554 = vst [vmem:[#allocation3 + $0x2b0] sm:$0xff] %v11466
  %11555 = vst [vmem:[#allocation3 + $0x2b8] sm:$0xff] %v11467
  %v11556 = vld [vmem:[#allocation3] sm:$0xff]
  %v11557 = vld [vmem:[#allocation3 + $0x8] sm:$0xff]
  %v11558 = vld [vmem:[#allocation3 + $0x10] sm:$0xff]
  %v11559 = vld [vmem:[#allocation3 + $0x18] sm:$0xff]
  %v11560 = vld [vmem:[#allocation3 + $0x20] sm:$0xff]
  %v11561 = vld [vmem:[#allocation3 + $0x28] sm:$0xff]
  %v11562 = vld [vmem:[#allocation3 + $0x30] sm:$0xff]
  %v11563 = vld [vmem:[#allocation3 + $0x38] sm:$0xff]
  %v11564 = vld [vmem:[#allocation3 + $0x40] sm:$0xff]
  %v11565 = vld [vmem:[#allocation3 + $0x48] sm:$0xff]
  %v11566 = vld [vmem:[#allocation3 + $0x50] sm:$0xff]
  %v11567 = vld [vmem:[#allocation3 + $0x58] sm:$0xff]
  %v11568 = vld [vmem:[#allocation3 + $0x60] sm:$0xff]
  %v11569 = vld [vmem:[#allocation3 + $0x68] sm:$0xff]
  %v11570 = vld [vmem:[#allocation3 + $0x70] sm:$0xff]
  %v11571 = vld [vmem:[#allocation3 + $0x78] sm:$0xff]
  %v11572 = vld [vmem:[#allocation3 + $0x80] sm:$0xff]
  %v11573 = vld [vmem:[#allocation3 + $0x88] sm:$0xff]
  %v11574 = vld [vmem:[#allocation3 + $0x90] sm:$0xff]
  %v11575 = vld [vmem:[#allocation3 + $0x98] sm:$0xff]
  %v11576 = vld [vmem:[#allocation3 + $0xa0] sm:$0xff]
  %v11577 = vld [vmem:[#allocation3 + $0xa8] sm:$0xff]
  %v11578 = vld [vmem:[#allocation3 + $0xb0] sm:$0xff]
  %v11579 = vld [vmem:[#allocation3 + $0xb8] sm:$0xff]
  %v11580 = vld [vmem:[#allocation3 + $0xc0] sm:$0xff]
  %v11581 = vld [vmem:[#allocation3 + $0xc8] sm:$0xff]
  %v11582 = vld [vmem:[#allocation3 + $0xd0] sm:$0xff]
  %v11583 = vld [vmem:[#allocation3 + $0xd8] sm:$0xff]
  %v11584 = vld [vmem:[#allocation3 + $0xe0] sm:$0xff]
  %v11585 = vld [vmem:[#allocation3 + $0xe8] sm:$0xff]
  %v11586 = vld [vmem:[#allocation3 + $0xf0] sm:$0xff]
  %v11587 = vld [vmem:[#allocation3 + $0xf8] sm:$0xff]
  %v11588 = vld [vmem:[#allocation3 + $0x100] sm:$0xff]
  %v11589 = vld [vmem:[#allocation3 + $0x108] sm:$0xff]
  %v11590 = vld [vmem:[#allocation3 + $0x110] sm:$0xff]
  %v11591 = vld [vmem:[#allocation3 + $0x118] sm:$0xff]
  %v11592 = vld [vmem:[#allocation3 + $0x120] sm:$0xff]
  %v11593 = vld [vmem:[#allocation3 + $0x128] sm:$0xff]
  %v11594 = vld [vmem:[#allocation3 + $0x130] sm:$0xff]
  %v11595 = vld [vmem:[#allocation3 + $0x138] sm:$0xff]
  %v11596 = vld [vmem:[#allocation3 + $0x140] sm:$0xff]
  %v11597 = vld [vmem:[#allocation3 + $0x148] sm:$0xff]
  %v11598 = vld [vmem:[#allocation3 + $0x150] sm:$0xff]
  %v11599 = vld [vmem:[#allocation3 + $0x158] sm:$0xff]
  %v11600 = vld [vmem:[#allocation3 + $0x160] sm:$0xff]
  %v11601 = vld [vmem:[#allocation3 + $0x168] sm:$0xff]
  %v11602 = vld [vmem:[#allocation3 + $0x170] sm:$0xff]
  %v11603 = vld [vmem:[#allocation3 + $0x178] sm:$0xff]
  %v11604 = vld [vmem:[#allocation3 + $0x180] sm:$0xff]
  %v11605 = vld [vmem:[#allocation3 + $0x188] sm:$0xff]
  %v11606 = vld [vmem:[#allocation3 + $0x190] sm:$0xff]
  %v11607 = vld [vmem:[#allocation3 + $0x198] sm:$0xff]
  %v11608 = vld [vmem:[#allocation3 + $0x1a0] sm:$0xff]
  %v11609 = vld [vmem:[#allocation3 + $0x1a8] sm:$0xff]
  %v11610 = vld [vmem:[#allocation3 + $0x1b0] sm:$0xff]
  %v11611 = vld [vmem:[#allocation3 + $0x1b8] sm:$0xff]
  %v11612 = vld [vmem:[#allocation3 + $0x1c0] sm:$0xff]
  %v11613 = vld [vmem:[#allocation3 + $0x1c8] sm:$0xff]
  %v11614 = vld [vmem:[#allocation3 + $0x1d0] sm:$0xff]
  %v11615 = vld [vmem:[#allocation3 + $0x1d8] sm:$0xff]
  %v11616 = vld [vmem:[#allocation3 + $0x1e0] sm:$0xff]
  %v11617 = vld [vmem:[#allocation3 + $0x1e8] sm:$0xff]
  %v11618 = vld [vmem:[#allocation3 + $0x1f0] sm:$0xff]
  %v11619 = vld [vmem:[#allocation3 + $0x1f8] sm:$0xff]
  %v11620 = vld [vmem:[#allocation3 + $0x200] sm:$0xff]
  %v11621 = vld [vmem:[#allocation3 + $0x208] sm:$0xff]
  %v11622 = vld [vmem:[#allocation3 + $0x210] sm:$0xff]
  %v11623 = vld [vmem:[#allocation3 + $0x218] sm:$0xff]
  %v11624 = vld [vmem:[#allocation3 + $0x220] sm:$0xff]
  %v11625 = vld [vmem:[#allocation3 + $0x228] sm:$0xff]
  %v11626 = vld [vmem:[#allocation3 + $0x230] sm:$0xff]
  %v11627 = vld [vmem:[#allocation3 + $0x238] sm:$0xff]
  %v11628 = vld [vmem:[#allocation3 + $0x240] sm:$0xff]
  %v11629 = vld [vmem:[#allocation3 + $0x248] sm:$0xff]
  %v11630 = vld [vmem:[#allocation3 + $0x250] sm:$0xff]
  %v11631 = vld [vmem:[#allocation3 + $0x258] sm:$0xff]
  %v11632 = vld [vmem:[#allocation3 + $0x260] sm:$0xff]
  %v11633 = vld [vmem:[#allocation3 + $0x268] sm:$0xff]
  %v11634 = vld [vmem:[#allocation3 + $0x270] sm:$0xff]
  %v11635 = vld [vmem:[#allocation3 + $0x278] sm:$0xff]
  %v11636 = vld [vmem:[#allocation3 + $0x280] sm:$0xff]
  %v11637 = vld [vmem:[#allocation3 + $0x288] sm:$0xff]
  %v11638 = vld [vmem:[#allocation3 + $0x290] sm:$0xff]
  %v11639 = vld [vmem:[#allocation3 + $0x298] sm:$0xff]
  %v11640 = vld [vmem:[#allocation3 + $0x2a0] sm:$0xff]
  %v11641 = vld [vmem:[#allocation3 + $0x2a8] sm:$0xff]
  %v11642 = vld [vmem:[#allocation3 + $0x2b0] sm:$0xff]
  %v11643 = vld [vmem:[#allocation3 + $0x2b8] sm:$0xff]
  %v11644 = vld [vmem:[%s3] sm:$0x1]
  %v11646 = vlaneseq
  %v11647 = vshrl.u32 %v11646, 7
  %v11648 = vsub.s32 0, %v11647
  %v11649 = vrot.slane %v11644, %v11648
  %v11651 = vadd.f32 %v11556, %v11649
  %v11652 = vadd.f32 %v11557, %v11649
  %v11653 = vadd.f32 %v11558, %v11649
  %v11654 = vadd.f32 %v11559, %v11649
  %v11655 = vadd.f32 %v11560, %v11649
  %v11656 = vadd.f32 %v11561, %v11649
  %v11657 = vadd.f32 %v11562, %v11649
  %v11658 = vadd.f32 %v11563, %v11649
  %v11659 = vadd.f32 %v11564, %v11649
  %v11660 = vadd.f32 %v11565, %v11649
  %v11661 = vadd.f32 %v11566, %v11649
  %v11662 = vadd.f32 %v11567, %v11649
  %v11663 = vadd.f32 %v11568, %v11649
  %v11664 = vadd.f32 %v11569, %v11649
  %v11665 = vadd.f32 %v11570, %v11649
  %v11666 = vadd.f32 %v11571, %v11649
  %v11667 = vadd.f32 %v11572, %v11649
  %v11668 = vadd.f32 %v11573, %v11649
  %v11669 = vadd.f32 %v11574, %v11649
  %v11670 = vadd.f32 %v11575, %v11649
  %v11671 = vadd.f32 %v11576, %v11649
  %v11672 = vadd.f32 %v11577, %v11649
  %v11673 = vadd.f32 %v11578, %v11649
  %v11674 = vadd.f32 %v11579, %v11649
  %v11675 = vadd.f32 %v11580, %v11649
  %v11676 = vadd.f32 %v11581, %v11649
  %v11677 = vadd.f32 %v11582, %v11649
  %v11678 = vadd.f32 %v11583, %v11649
  %v11679 = vadd.f32 %v11584, %v11649
  %v11680 = vadd.f32 %v11585, %v11649
  %v11681 = vadd.f32 %v11586, %v11649
  %v11682 = vadd.f32 %v11587, %v11649
  %v11683 = vadd.f32 %v11588, %v11649
  %v11684 = vadd.f32 %v11589, %v11649
  %v11685 = vadd.f32 %v11590, %v11649
  %v11686 = vadd.f32 %v11591, %v11649
  %v11687 = vadd.f32 %v11592, %v11649
  %v11688 = vadd.f32 %v11593, %v11649
  %v11689 = vadd.f32 %v11594, %v11649
  %v11690 = vadd.f32 %v11595, %v11649
  %v11691 = vadd.f32 %v11596, %v11649
  %v11692 = vadd.f32 %v11597, %v11649
  %v11693 = vadd.f32 %v11598, %v11649
  %v11694 = vadd.f32 %v11599, %v11649
  %v11695 = vadd.f32 %v11600, %v11649
  %v11696 = vadd.f32 %v11601, %v11649
  %v11697 = vadd.f32 %v11602, %v11649
  %v11698 = vadd.f32 %v11603, %v11649
  %v11699 = vadd.f32 %v11604, %v11649
  %v11700 = vadd.f32 %v11605, %v11649
  %v11701 = vadd.f32 %v11606, %v11649
  %v11702 = vadd.f32 %v11607, %v11649
  %v11703 = vadd.f32 %v11608, %v11649
  %v11704 = vadd.f32 %v11609, %v11649
  %v11705 = vadd.f32 %v11610, %v11649
  %v11706 = vadd.f32 %v11611, %v11649
  %v11707 = vadd.f32 %v11612, %v11649
  %v11708 = vadd.f32 %v11613, %v11649
  %v11709 = vadd.f32 %v11614, %v11649
  %v11710 = vadd.f32 %v11615, %v11649
  %v11711 = vadd.f32 %v11616, %v11649
  %v11712 = vadd.f32 %v11617, %v11649
  %v11713 = vadd.f32 %v11618, %v11649
  %v11714 = vadd.f32 %v11619, %v11649
  %v11715 = vadd.f32 %v11620, %v11649
  %v11716 = vadd.f32 %v11621, %v11649
  %v11717 = vadd.f32 %v11622, %v11649
  %v11718 = vadd.f32 %v11623, %v11649
  %v11719 = vadd.f32 %v11624, %v11649
  %v11720 = vadd.f32 %v11625, %v11649
  %v11721 = vadd.f32 %v11626, %v11649
  %v11722 = vadd.f32 %v11627, %v11649
  %v11723 = vadd.f32 %v11628, %v11649
  %v11724 = vadd.f32 %v11629, %v11649
  %v11725 = vadd.f32 %v11630, %v11649
  %v11726 = vadd.f32 %v11631, %v11649
  %v11727 = vadd.f32 %v11632, %v11649
  %v11728 = vadd.f32 %v11633, %v11649
  %v11729 = vadd.f32 %v11634, %v11649
  %v11730 = vadd.f32 %v11635, %v11649
  %v11731 = vadd.f32 %v11636, %v11649
  %v11732 = vadd.f32 %v11637, %v11649
  %v11733 = vadd.f32 %v11638, %v11649
  %v11734 = vadd.f32 %v11639, %v11649
  %v11735 = vadd.f32 %v11640, %v11649
  %v11736 = vadd.f32 %v11641, %v11649
  %v11737 = vadd.f32 %v11642, %v11649
  %v11738 = vadd.f32 %v11643, %v11649
  %v11739 = vmax.f32 %v11651, 0.0
  %v11740 = vmax.f32 %v11652, 0.0
  %v11741 = vmax.f32 %v11653, 0.0
  %v11742 = vmax.f32 %v11654, 0.0
  %v11743 = vmax.f32 %v11655, 0.0
  %v11744 = vmax.f32 %v11656, 0.0
  %v11745 = vmax.f32 %v11657, 0.0
  %v11746 = vmax.f32 %v11658, 0.0
  %v11747 = vmax.f32 %v11659, 0.0
  %v11748 = vmax.f32 %v11660, 0.0
  %v11749 = vmax.f32 %v11661, 0.0
  %v11750 = vmax.f32 %v11662, 0.0
  %v11751 = vmax.f32 %v11663, 0.0
  %v11752 = vmax.f32 %v11664, 0.0
  %v11753 = vmax.f32 %v11665, 0.0
  %v11754 = vmax.f32 %v11666, 0.0
  %v11755 = vmax.f32 %v11667, 0.0
  %v11756 = vmax.f32 %v11668, 0.0
  %v11757 = vmax.f32 %v11669, 0.0
  %v11758 = vmax.f32 %v11670, 0.0
  %v11759 = vmax.f32 %v11671, 0.0
  %v11760 = vmax.f32 %v11672, 0.0
  %v11761 = vmax.f32 %v11673, 0.0
  %v11762 = vmax.f32 %v11674, 0.0
  %v11763 = vmax.f32 %v11675, 0.0
  %v11764 = vmax.f32 %v11676, 0.0
  %v11765 = vmax.f32 %v11677, 0.0
  %v11766 = vmax.f32 %v11678, 0.0
  %v11767 = vmax.f32 %v11679, 0.0
  %v11768 = vmax.f32 %v11680, 0.0
  %v11769 = vmax.f32 %v11681, 0.0
  %v11770 = vmax.f32 %v11682, 0.0
  %v11771 = vmax.f32 %v11683, 0.0
  %v11772 = vmax.f32 %v11684, 0.0
  %v11773 = vmax.f32 %v11685, 0.0
  %v11774 = vmax.f32 %v11686, 0.0
  %v11775 = vmax.f32 %v11687, 0.0
  %v11776 = vmax.f32 %v11688, 0.0
  %v11777 = vmax.f32 %v11689, 0.0
  %v11778 = vmax.f32 %v11690, 0.0
  %v11779 = vmax.f32 %v11691, 0.0
  %v11780 = vmax.f32 %v11692, 0.0
  %v11781 = vmax.f32 %v11693, 0.0
  %v11782 = vmax.f32 %v11694, 0.0
  %v11783 = vmax.f32 %v11695, 0.0
  %v11784 = vmax.f32 %v11696, 0.0
  %v11785 = vmax.f32 %v11697, 0.0
  %v11786 = vmax.f32 %v11698, 0.0
  %v11787 = vmax.f32 %v11699, 0.0
  %v11788 = vmax.f32 %v11700, 0.0
  %v11789 = vmax.f32 %v11701, 0.0
  %v11790 = vmax.f32 %v11702, 0.0
  %v11791 = vmax.f32 %v11703, 0.0
  %v11792 = vmax.f32 %v11704, 0.0
  %v11793 = vmax.f32 %v11705, 0.0
  %v11794 = vmax.f32 %v11706, 0.0
  %v11795 = vmax.f32 %v11707, 0.0
  %v11796 = vmax.f32 %v11708, 0.0
  %v11797 = vmax.f32 %v11709, 0.0
  %v11798 = vmax.f32 %v11710, 0.0
  %v11799 = vmax.f32 %v11711, 0.0
  %v11800 = vmax.f32 %v11712, 0.0
  %v11801 = vmax.f32 %v11713, 0.0
  %v11802 = vmax.f32 %v11714, 0.0
  %v11803 = vmax.f32 %v11715, 0.0
  %v11804 = vmax.f32 %v11716, 0.0
  %v11805 = vmax.f32 %v11717, 0.0
  %v11806 = vmax.f32 %v11718, 0.0
  %v11807 = vmax.f32 %v11719, 0.0
  %v11808 = vmax.f32 %v11720, 0.0
  %v11809 = vmax.f32 %v11721, 0.0
  %v11810 = vmax.f32 %v11722, 0.0
  %v11811 = vmax.f32 %v11723, 0.0
  %v11812 = vmax.f32 %v11724, 0.0
  %v11813 = vmax.f32 %v11725, 0.0
  %v11814 = vmax.f32 %v11726, 0.0
  %v11815 = vmax.f32 %v11727, 0.0
  %v11816 = vmax.f32 %v11728, 0.0
  %v11817 = vmax.f32 %v11729, 0.0
  %v11818 = vmax.f32 %v11730, 0.0
  %v11819 = vmax.f32 %v11731, 0.0
  %v11820 = vmax.f32 %v11732, 0.0
  %v11821 = vmax.f32 %v11733, 0.0
  %v11822 = vmax.f32 %v11734, 0.0
  %v11823 = vmax.f32 %v11735, 0.0
  %v11824 = vmax.f32 %v11736, 0.0
  %v11825 = vmax.f32 %v11737, 0.0
  %v11826 = vmax.f32 %v11738, 0.0
  %11827 = vst [vmem:[%s4] sm:$0xff] %v11739
  %11828 = vst [vmem:[%s4 + $0x8] sm:$0xff] %v11740
  %11829 = vst [vmem:[%s4 + $0x10] sm:$0xff] %v11741
  %11830 = vst [vmem:[%s4 + $0x18] sm:$0xff] %v11742
  %11831 = vst [vmem:[%s4 + $0x20] sm:$0xff] %v11743
  %11832 = vst [vmem:[%s4 + $0x28] sm:$0xff] %v11744
  %11833 = vst [vmem:[%s4 + $0x30] sm:$0xff] %v11745
  %11834 = vst [vmem:[%s4 + $0x38] sm:$0xff] %v11746
  %11835 = vst [vmem:[%s4 + $0x40] sm:$0xff] %v11747
  %11836 = vst [vmem:[%s4 + $0x48] sm:$0xff] %v11748
  %11837 = vst [vmem:[%s4 + $0x50] sm:$0xff] %v11749
  %11838 = vst [vmem:[%s4 + $0x58] sm:$0xff] %v11750
  %11839 = vst [vmem:[%s4 + $0x60] sm:$0xff] %v11751
  %11840 = vst [vmem:[%s4 + $0x68] sm:$0xff] %v11752
  %11841 = vst [vmem:[%s4 + $0x70] sm:$0xff] %v11753
  %11842 = vst [vmem:[%s4 + $0x78] sm:$0xff] %v11754
  %11843 = vst [vmem:[%s4 + $0x80] sm:$0xff] %v11755
  %11844 = vst [vmem:[%s4 + $0x88] sm:$0xff] %v11756
  %11845 = vst [vmem:[%s4 + $0x90] sm:$0xff] %v11757
  %11846 = vst [vmem:[%s4 + $0x98] sm:$0xff] %v11758
  %11847 = vst [vmem:[%s4 + $0xa0] sm:$0xff] %v11759
  %11848 = vst [vmem:[%s4 + $0xa8] sm:$0xff] %v11760
  %11849 = vst [vmem:[%s4 + $0xb0] sm:$0xff] %v11761
  %11850 = vst [vmem:[%s4 + $0xb8] sm:$0xff] %v11762
  %11851 = vst [vmem:[%s4 + $0xc0] sm:$0xff] %v11763
  %11852 = vst [vmem:[%s4 + $0xc8] sm:$0xff] %v11764
  %11853 = vst [vmem:[%s4 + $0xd0] sm:$0xff] %v11765
  %11854 = vst [vmem:[%s4 + $0xd8] sm:$0xff] %v11766
  %11855 = vst [vmem:[%s4 + $0xe0] sm:$0xff] %v11767
  %11856 = vst [vmem:[%s4 + $0xe8] sm:$0xff] %v11768
  %11857 = vst [vmem:[%s4 + $0xf0] sm:$0xff] %v11769
  %11858 = vst [vmem:[%s4 + $0xf8] sm:$0xff] %v11770
  %11859 = vst [vmem:[%s4 + $0x100] sm:$0xff] %v11771
  %11860 = vst [vmem:[%s4 + $0x108] sm:$0xff] %v11772
  %11861 = vst [vmem:[%s4 + $0x110] sm:$0xff] %v11773
  %11862 = vst [vmem:[%s4 + $0x118] sm:$0xff] %v11774
  %11863 = vst [vmem:[%s4 + $0x120] sm:$0xff] %v11775
  %11864 = vst [vmem:[%s4 + $0x128] sm:$0xff] %v11776
  %11865 = vst [vmem:[%s4 + $0x130] sm:$0xff] %v11777
  %11866 = vst [vmem:[%s4 + $0x138] sm:$0xff] %v11778
  %11867 = vst [vmem:[%s4 + $0x140] sm:$0xff] %v11779
  %11868 = vst [vmem:[%s4 + $0x148] sm:$0xff] %v11780
  %11869 = vst [vmem:[%s4 + $0x150] sm:$0xff] %v11781
  %11870 = vst [vmem:[%s4 + $0x158] sm:$0xff] %v11782
  %11871 = vst [vmem:[%s4 + $0x160] sm:$0xff] %v11783
  %11872 = vst [vmem:[%s4 + $0x168] sm:$0xff] %v11784
  %11873 = vst [vmem:[%s4 + $0x170] sm:$0xff] %v11785
  %11874 = vst [vmem:[%s4 + $0x178] sm:$0xff] %v11786
  %11875 = vst [vmem:[%s4 + $0x180] sm:$0xff] %v11787
  %11876 = vst [vmem:[%s4 + $0x188] sm:$0xff] %v11788
  %11877 = vst [vmem:[%s4 + $0x190] sm:$0xff] %v11789
  %11878 = vst [vmem:[%s4 + $0x198] sm:$0xff] %v11790
  %11879 = vst [vmem:[%s4 + $0x1a0] sm:$0xff] %v11791
  %11880 = vst [vmem:[%s4 + $0x1a8] sm:$0xff] %v11792
  %11881 = vst [vmem:[%s4 + $0x1b0] sm:$0xff] %v11793
  %11882 = vst [vmem:[%s4 + $0x1b8] sm:$0xff] %v11794
  %11883 = vst [vmem:[%s4 + $0x1c0] sm:$0xff] %v11795
  %11884 = vst [vmem:[%s4 + $0x1c8] sm:$0xff] %v11796
  %11885 = vst [vmem:[%s4 + $0x1d0] sm:$0xff] %v11797
  %11886 = vst [vmem:[%s4 + $0x1d8] sm:$0xff] %v11798
  %11887 = vst [vmem:[%s4 + $0x1e0] sm:$0xff] %v11799
  %11888 = vst [vmem:[%s4 + $0x1e8] sm:$0xff] %v11800
  %11889 = vst [vmem:[%s4 + $0x1f0] sm:$0xff] %v11801
  %11890 = vst [vmem:[%s4 + $0x1f8] sm:$0xff] %v11802
  %11891 = vst [vmem:[%s4 + $0x200] sm:$0xff] %v11803
  %11892 = vst [vmem:[%s4 + $0x208] sm:$0xff] %v11804
  %11893 = vst [vmem:[%s4 + $0x210] sm:$0xff] %v11805
  %11894 = vst [vmem:[%s4 + $0x218] sm:$0xff] %v11806
  %11895 = vst [vmem:[%s4 + $0x220] sm:$0xff] %v11807
  %11896 = vst [vmem:[%s4 + $0x228] sm:$0xff] %v11808
  %11897 = vst [vmem:[%s4 + $0x230] sm:$0xff] %v11809
  %11898 = vst [vmem:[%s4 + $0x238] sm:$0xff] %v11810
  %11899 = vst [vmem:[%s4 + $0x240] sm:$0xff] %v11811
  %11900 = vst [vmem:[%s4 + $0x248] sm:$0xff] %v11812
  %11901 = vst [vmem:[%s4 + $0x250] sm:$0xff] %v11813
  %11902 = vst [vmem:[%s4 + $0x258] sm:$0xff] %v11814
  %11903 = vst [vmem:[%s4 + $0x260] sm:$0xff] %v11815
  %11904 = vst [vmem:[%s4 + $0x268] sm:$0xff] %v11816
  %11905 = vst [vmem:[%s4 + $0x270] sm:$0xff] %v11817
  %11906 = vst [vmem:[%s4 + $0x278] sm:$0xff] %v11818
  %11907 = vst [vmem:[%s4 + $0x280] sm:$0xff] %v11819
  %11908 = vst [vmem:[%s4 + $0x288] sm:$0xff] %v11820
  %11909 = vst [vmem:[%s4 + $0x290] sm:$0xff] %v11821
  %11910 = vst [vmem:[%s4 + $0x298] sm:$0xff] %v11822
  %11911 = vst [vmem:[%s4 + $0x2a0] sm:$0xff] %v11823
  %11912 = vst [vmem:[%s4 + $0x2a8] sm:$0xff] %v11824
  %11913 = vst [vmem:[%s4 + $0x2b0] sm:$0xff] %v11825
  %11914 = vst [vmem:[%s4 + $0x2b8] sm:$0xff] %v11826
  // Predicated region
  $region18: #{conv2d_thingy.1} parent=0 // pred_check
    _
  $region19: #{conv2d_thingy.1} parent=0 // pred_check_branch
    %11916 = sbr.rel (0) target = $region21
  $region20: #{conv2d_thingy.1} parent=0 // pred_region
    _
  $region21: #{conv2d_thingy.1} parent=0 // pred_fallthru
    _
  // Predicated region
  $region22: #{conv2d_thingy.1} parent=0 // pred_check
    _
  $region23: #{conv2d_thingy.1} parent=0 // pred_check_branch
    %11918 = sbr.rel (0) target = $region25
  $region24: #{conv2d_thingy.1} parent=0 // pred_region
    _
  $region25: #{conv2d_thingy.1} parent=0 // pred_fallthru
    _

</llo_original>
